<compile_context>
chip_gen: v7x
topology: tpu7x:2x2x1
jax: 0.10.0
libtpu: 0.0.40
codegen_flags: <defaults>
</compile_context>

<pallas_src>
import functools

import jax
import jax.numpy as jnp
from jax.experimental import pallas as pl
from jax.experimental.pallas import tpu as pltpu


# ----------------------------------------------------------------------------
# Kernel 1: stacked LSTM, all layers & timesteps, gridless (everything in VMEM).
# ----------------------------------------------------------------------------
def _lstm_kernel(nlayers, T, Bp, H,
                 x_ref, h0_ref, c0_ref, wx_ref, wh_ref, b_ref,
                 out_ref, hN_ref, cN_ref,
                 seq_a, seq_b, xproj_sc):
    bufs = (seq_a, seq_b)
    src = x_ref
    for layer in range(nlayers):
        # Last layer writes straight into the (bf16) output ref; intermediate layers
        # ping-pong between two VMEM scratches (no HBM round trip between layers).
        dst = out_ref if layer == nlayers - 1 else bufs[layer % 2]

        # Hoisted cuDNN-style input projection: ONE (T*Bp, IN) x (IN, 4H) bf16 GEMM
        # per layer; the sequential loop below only does h_prev @ Wh4.
        xproj_sc[...] = (jnp.dot(src[...], wx_ref[layer],
                                 preferred_element_type=jnp.float32)
                         + b_ref[layer])                               # (TB, 4H) f32

        h = h0_ref[layer]                                              # (Bp, H) f32
        c = c0_ref[layer]
        # TODO(synk): keep wh_ref[layer] resident in the MXU across the time loop
        # (pltpu.matmul_push_rhs once per layer + matmul_acc_lhs/matmul_pop per step)
        # to avoid re-pushing the (H, 4H) RHS on the serial h->h critical path.
        # TODO(synk): for long T switch this static unroll to lax.fori_loop(..., unroll=2)
        # with pl.ds(pl.multiple_of(t * Bp, 8), Bp) slices to bound live ranges.
        for t in range(T):
            r0 = t * Bp
            gates = (xproj_sc[r0:r0 + Bp, :]
                     + jnp.dot(h.astype(jnp.bfloat16), wh_ref[layer],
                               preferred_element_type=jnp.float32))    # (Bp, 4H) f32
            i_g = jax.nn.sigmoid(gates[:, 0 * H:1 * H])  # PyTorch gate order: i, f, g, o
            f_g = jax.nn.sigmoid(gates[:, 1 * H:2 * H])
            g_g = jnp.tanh(gates[:, 2 * H:3 * H])
            o_g = jax.nn.sigmoid(gates[:, 3 * H:4 * H])
            c = f_g * c + i_g * g_g
            h = o_g * jnp.tanh(c)
            dst[r0:r0 + Bp, :] = h.astype(jnp.bfloat16)
        hN_ref[layer] = h
        cN_ref[layer] = c
        src = dst


def lstm_forward(x2d, h0, c0, wx4, wh4, b4, *, nlayers, T, Bp, H):
    TB = T * Bp
    vmem = pl.BlockSpec(memory_space=pltpu.MemorySpace.VMEM)
    return pl.pallas_call(
        functools.partial(_lstm_kernel, nlayers, T, Bp, H),
        in_specs=[vmem] * 6,
        out_specs=(vmem, vmem, vmem),
        out_shape=(
            jax.ShapeDtypeStruct((TB, H), jnp.bfloat16),          # last-layer sequence
            jax.ShapeDtypeStruct((nlayers, Bp, H), jnp.float32),  # h_N
            jax.ShapeDtypeStruct((nlayers, Bp, H), jnp.float32),  # c_N
        ),
        scratch_shapes=[
            pltpu.VMEM((TB, H), jnp.bfloat16),        # layer output sequence (ping)
            pltpu.VMEM((TB, H), jnp.bfloat16),        # layer output sequence (pong)
            pltpu.VMEM((TB, 4 * H), jnp.float32),     # hoisted input projection
        ],
        # In-place state update: h0 -> hN, c0 -> cN (same shape/dtype; h0[l]/c0[l] are
        # never re-read after hN[l]/cN[l] are written, so aliasing is safe).
        input_output_aliases={1: 1, 2: 2},
        compiler_params=pltpu.CompilerParams(vmem_limit_bytes=32 * 1024 * 1024),
    )(x2d, h0, c0, wx4, wh4, b4)


# ----------------------------------------------------------------------------
# Kernel 2: decoder, tiled over rows of the flattened (T*Bp, H) LSTM output.
# The row axis is "parallel" -> megacore / v7x second TensorCore can take half the grid.
# ----------------------------------------------------------------------------
def _decoder_kernel(nbasis, RB, H,
                    y_ref, wg_ref, bg_ref, mt_ref, mw_ref, ctx_ref, sb_ref,
                    m1_ref, m2_ref,
                    word_ref, gate_ref, sense_ref,
                    tr_sc, t2_sc, g2_sc, ml_sc, co_sc, logit_sc):
    ob = y_ref[...]                                                  # (RB, H) bf16

    # gate = sigmoid(gdecoder(output))
    gate = jax.nn.sigmoid(
        jnp.dot(ob, wg_ref[...], preferred_element_type=jnp.float32) + bg_ref[...])
    gate_ref[...] = gate.astype(gate_ref.dtype)

    # softmax0(multi_weight) over the basis axis; EUP reciprocal instead of a divide.
    mw = mw_ref[...]                                                 # (nbasis, S) f32
    mex = jnp.exp(mw - jnp.max(mw, axis=0, keepdims=True))
    sm_w = mex * pl.reciprocal(jnp.sum(mex, axis=0, keepdims=True), approx=True)

    # Fused multi_trans: ONE (RB, H) x (H, nbasis*H) GEMM instead of nbasis small ones.
    tr_sc[...] = jnp.dot(ob, mt_ref[...], preferred_element_type=jnp.float32)

    # Re-pack to basis-major (nbasis*RB, ...) so the nbasis logits / coeff GEMMs collapse
    # into ONE contraction each (M = nbasis*RB row occupancy, single RHS push of ctx / m1).
    # This matches the original flatten order: (nbasis, batch, S).view(nbasis*batch, S).
    for k in range(nbasis):
        t2_sc[k * RB:(k + 1) * RB, :] = tr_sc[:, k * H:(k + 1) * H].astype(jnp.bfloat16)
        g2_sc[k * RB:(k + 1) * RB, :] = (gate * sm_w[k:k + 1, :]).astype(jnp.bfloat16)

    # ctx arrives pre-transposed (H, nsenses): plain (K, N) contractions, no in-kernel
    # transpose.  multi_logits and mymm1(multi_coeff) each in a single GEMM.
    ml_sc[...] = jnp.dot(t2_sc[...], ctx_ref[...], preferred_element_type=jnp.float32)
    co_sc[...] = jnp.dot(g2_sc[...], m1_ref[...], preferred_element_type=jnp.float32)

    # logits = sum_k mlogit_k * coeff_k + sense_bias, accumulated in a VMEM scratch
    # (bounds vreg pressure vs. carrying full (nbasis*RB, nsenses) live values).
    logit_sc[...] = ml_sc[0:RB, :] * co_sc[0:RB, :] + sb_ref[...]
    for k in range(1, nbasis):
        logit_sc[...] += ml_sc[k * RB:(k + 1) * RB, :] * co_sc[k * RB:(k + 1) * RB, :]

    # softmax(1); normalization via EUP reciprocal.
    lg = logit_sc[...]
    lex = jnp.exp(lg - jnp.max(lg, axis=1, keepdims=True))
    sense_prob = lex * pl.reciprocal(jnp.sum(lex, axis=1, keepdims=True), approx=True)
    sense_ref[...] = sense_prob.astype(sense_ref.dtype)

    # word_prob = mymm2(sense_prob)
    # TODO(synk): if mymm2 is truly the one-hot sense->token map, replace this GEMM
    # (and the (nsenses, ntoken) weight) with a gather/scatter over word_idx_s.
    word_ref[...] = jnp.dot(sense_prob.astype(jnp.bfloat16), m2_ref[...],
                            preferred_element_type=jnp.float32).astype(word_ref.dtype)


def decoder_forward(y2d, wg_t, bg, mt_all, mw, ctx_t, sense_bias, m1, m2,
                    *, nbasis, RB, H):
    TB = y2d.shape[0]
    S = wg_t.shape[1]
    nsenses = ctx_t.shape[1]
    ntoken = m2.shape[1]
    n_blk = TB // RB

    def full(shape):
        return pl.BlockSpec(shape, lambda i, _n=len(shape): (0,) * _n)

    def row(width):
        return pl.BlockSpec((RB, width), lambda i: (i, 0))

    return pl.pallas_call(
        functools.partial(_decoder_kernel, nbasis, RB, H),
        grid=(n_blk,),
        in_specs=[
            row(H),                         # LSTM output rows (bf16)
            full(wg_t.shape), full(bg.shape), full(mt_all.shape), full(mw.shape),
            full(ctx_t.shape), full(sense_bias.shape), full(m1.shape), full(m2.shape),
        ],
        out_specs=(row(ntoken), row(S), row(nsenses)),
        out_shape=(
            jax.ShapeDtypeStruct((TB, ntoken), jnp.float32),    # word_prob (padded rows)
            jax.ShapeDtypeStruct((TB, S), jnp.float32),         # gate
            jax.ShapeDtypeStruct((TB, nsenses), jnp.float32),   # sense_prob
        ),
        scratch_shapes=[
            pltpu.VMEM((RB, nbasis * H), jnp.float32),          # fused multi_trans output
            pltpu.VMEM((nbasis * RB, H), jnp.bfloat16),         # basis-major transed
            pltpu.VMEM((nbasis * RB, S), jnp.bfloat16),         # basis-major gate*sm_w
            pltpu.VMEM((nbasis * RB, nsenses), jnp.float32),    # fused multi_logits
            pltpu.VMEM((nbasis * RB, nsenses), jnp.float32),    # fused multi_coeff
            pltpu.VMEM((RB, nsenses), jnp.float32),             # logits accumulator
        ],
        compiler_params=pltpu.CompilerParams(
            dimension_semantics=("parallel",),           # megacore / v7x 2nd TC
            vmem_limit_bytes=32 * 1024 * 1024),          # explicit budget (v7x: 64 MiB total)
    )(y2d, wg_t, bg, mt_all, mw, ctx_t, sense_bias, m1, m2)


def _pick_row_block(TB):
    for rb in (256, 128, 64, 32, 16, 8):
        if TB % rb == 0 and TB // rb >= 2:
            return rb
    return TB


# ----------------------------------------------------------------------------
# Full forward (glue: embedding gather, batch padding, weight layout / bf16 prep).
# ----------------------------------------------------------------------------
def rnn_model_forward(params, tokens, hidden, m1, m2):
    h0, c0 = hidden                                   # (nlayers, B, H) each
    nlayers, B, H = h0.shape
    T = tokens.shape[0]
    Bp = ((B + 7) // 8) * 8                           # sublane-dense batch slab

    # Embedding lookup (glue); drop()/drop2()/drop3() are identity at inference.
    x = params["encoder"][tokens]                     # (T, B, ninp) f32
    x = jnp.pad(x, ((0, 0), (0, Bp - B), (0, 0)))
    x2d = x.reshape(T * Bp, -1).astype(jnp.bfloat16)  # bf16 MXU operand
    h0p = jnp.pad(h0, ((0, 0), (0, Bp - B), (0, 0)))
    c0p = jnp.pad(c0, ((0, 0), (0, Bp - B), (0, 0)))

    # bf16 weight prep (one-time layout plumbing; f32 accumulation inside the kernels).
    wx4 = params["wx4"].astype(jnp.bfloat16)
    wh4 = params["wh4"].astype(jnp.bfloat16)
    wg_t = params["wg_t"].astype(jnp.bfloat16)
    m1b = m1.astype(jnp.bfloat16)
    m2b = m2.astype(jnp.bfloat16)

    # dropout_mask is ones at inference -> dropout_weight == encoder.weight.
    # ctx is transposed ONCE here to (ninp, nsenses) so the decoder contractions are
    # plain (K, N) matmuls (no per-basis transpose in the kernel).
    ctx_t = params["encoder"][params["word_idx_s"]].T.astype(jnp.bfloat16)

    nbasis = params["multi_trans"].shape[0]
    mt_all = (jnp.transpose(params["multi_trans"], (1, 0, 2))
              .reshape(H, nbasis * H).astype(jnp.bfloat16))
    mw = params["multi_weight"].reshape(nbasis, -1)   # (nbasis, nsememes) f32

    out2d, hN, cN = lstm_forward(x2d, h0p, c0p, wx4, wh4, params["b4"],
                                 nlayers=nlayers, T=T, Bp=Bp, H=H)

    TB = T * Bp
    RB = _pick_row_block(TB)
    word_p, gate_p, sense_p = decoder_forward(
        out2d, wg_t, params["bg"], mt_all, mw, ctx_t, params["sense_bias"],
        m1b, m2b, nbasis=nbasis, RB=RB, H=H)

    def strip(a):                                     # (T*Bp, X) -> (T*B, X)
        return a.reshape(T, Bp, -1)[:, :B, :].reshape(T * B, -1)

    word_prob = strip(word_p)
    gate = strip(gate_p)
    sense_prob = strip(sense_p)
    # Padded batch rows produce nonzero state; they are stripped here and must never
    # be fed back as state for rows >= B.
    new_hidden = (hN[:, :B, :], cN[:, :B, :])
    return word_prob, gate, new_hidden, sense_prob


# ----------------------------------------------------------------------------
# Deterministic parameter construction + run.
# ----------------------------------------------------------------------------
def make_params(key, ntoken, ninp, nhid, nlayers, nsememes, nsenses, nbasis):
    initrange = 0.1
    keys = jax.random.split(key, 4 + 3 * nlayers)
    ki = iter(keys)

    encoder = jax.random.uniform(next(ki), (ntoken, ninp),
                                 minval=-initrange, maxval=initrange, dtype=jnp.float32)

    # Gate-fused LSTM weights, PyTorch gate order (i, f, g, o) along the 4H axis.
    # ninp == nhid (tied) so the per-layer shapes stack.  b4 = b_ih + b_hh (pre-summed).
    scale = float(nhid) ** -0.5
    wx4 = jnp.stack([jax.random.uniform(next(ki), (ninp if l == 0 else nhid, 4 * nhid),
                                        minval=-scale, maxval=scale, dtype=jnp.float32)
                     for l in range(nlayers)])
    wh4 = jnp.stack([jax.random.uniform(next(ki), (nhid, 4 * nhid),
                                        minval=-scale, maxval=scale, dtype=jnp.float32)
                     for l in range(nlayers)])
    b4 = jnp.stack([jax.random.uniform(next(ki), (1, 4 * nhid),
                                       minval=-scale, maxval=scale, dtype=jnp.float32)
                    for l in range(nlayers)])

    wg_t = jax.random.uniform(next(ki), (nhid, nsememes),
                              minval=-initrange, maxval=initrange, dtype=jnp.float32)
    bg = jnp.zeros((1, nsememes), jnp.float32)
    sense_bias = jnp.zeros((1, nsenses), jnp.float32)
    multi_trans = jax.random.uniform(next(ki), (nbasis, nhid, nhid),
                                     minval=-0.5 * initrange, maxval=0.5 * initrange,
                                     dtype=jnp.float32)
    multi_weight = jax.random.uniform(next(ki), (nbasis, 1, nsememes),
                                      minval=-initrange, maxval=initrange,
                                      dtype=jnp.float32)
    word_idx_s = jnp.arange(nsenses, dtype=jnp.int32) % ntoken

    return dict(encoder=encoder, wx4=wx4, wh4=wh4, b4=b4, wg_t=wg_t, bg=bg,
                sense_bias=sense_bias, multi_trans=multi_trans,
                multi_weight=multi_weight, word_idx_s=word_idx_s)


if __name__ == "__main__":
    # Small shapes; ninp == nhid as the original math requires (tied dims).
    # All lane (last) dims are multiples of 128 so every store is unmasked.
    T, B = 8, 2
    ntoken, ninp, nhid, nlayers = 128, 128, 128, 2
    nsememes, nsenses, nbasis = 128, 256, 5

    key = jax.random.PRNGKey(0)
    kp, kt = jax.random.split(key)
    params = make_params(kp, ntoken, ninp, nhid, nlayers, nsememes, nsenses, nbasis)

    tokens = jax.random.randint(kt, (T, B), 0, ntoken, dtype=jnp.int32)
    hidden = (jnp.zeros((nlayers, B, nhid), jnp.float32),
              jnp.zeros((nlayers, B, nhid), jnp.float32))

    # Deterministic stand-ins for the external sparse modules mymm1 / mymm2.
    m1 = (jnp.arange(nsenses)[None, :] % nsememes
          == jnp.arange(nsememes)[:, None]).astype(jnp.float32)           # (nsememes, nsenses)
    m2 = jax.nn.one_hot(params["word_idx_s"], ntoken, dtype=jnp.float32)  # (nsenses, ntoken)

    word_prob, gate, new_hidden, sense_prob = jax.jit(rnn_model_forward)(
        params, tokens, hidden, m1, m2)
    jax.block_until_ready((word_prob, gate, new_hidden, sense_prob))

    assert word_prob.shape == (T * B, ntoken)
    assert gate.shape == (T * B, nsememes)
    assert sense_prob.shape == (T * B, nsenses)
    assert new_hidden[0].shape == (nlayers, B, nhid)
    assert new_hidden[1].shape == (nlayers, B, nhid)
    assert bool(jnp.all(jnp.isfinite(word_prob)))
    assert bool(jnp.all(jnp.isfinite(new_hidden[0])))
    # sense_prob is a softmax routed through the one-hot m2 -> word_prob rows sum to ~1
    # (bf16 operands + approx reciprocal keep it well inside this tolerance).
    assert bool(jnp.allclose(jnp.sum(word_prob, axis=-1), 1.0, atol=5e-2))
    print("KERNEL_OK")
</pallas_src>

<mosaic_0001>
module attributes {stable_mosaic.version = 11 : i64} {
  func.func @_lstm_kernel(%arg0: memref<64x128xbf16, #tpu.memory_space<vmem>>, %arg1: memref<2x8x128xf32, #tpu.memory_space<vmem>>, %arg2: memref<2x8x128xf32, #tpu.memory_space<vmem>>, %arg3: memref<2x128x512xbf16, #tpu.memory_space<vmem>>, %arg4: memref<2x128x512xbf16, #tpu.memory_space<vmem>>, %arg5: memref<2x1x512xf32, #tpu.memory_space<vmem>>, %arg6: memref<64x128xbf16, #tpu.memory_space<vmem>>, %arg7: memref<2x8x128xf32, #tpu.memory_space<vmem>>, %arg8: memref<2x8x128xf32, #tpu.memory_space<vmem>>, %arg9: memref<64x128xbf16, #tpu.memory_space<vmem>>, %arg10: memref<64x128xbf16, #tpu.memory_space<vmem>>, %arg11: memref<64x512xf32, #tpu.memory_space<vmem>>) attributes {dimension_semantics = [], scalar_prefetch = 0 : i64, scratch_operands = 3 : i64, tpu.core_type = #tpu.core_type<tc>} {
    %c0 = arith.constant 0 : index
    %c0_0 = arith.constant 0 : index
    %0 = vector.load %arg0[%c0, %c0_0] : memref<64x128xbf16, #tpu.memory_space<vmem>>, vector<64x128xbf16>
    %c0_1 = arith.constant 0 : index
    %c0_2 = arith.constant 0 : index
    %c0_3 = arith.constant 0 : index
    %1 = vector.load %arg3[%c0_1, %c0_2, %c0_3] : memref<2x128x512xbf16, #tpu.memory_space<vmem>>, vector<1x128x512xbf16>
    %2 = vector.shape_cast %1 : vector<1x128x512xbf16> to vector<128x512xbf16>
    %cst = arith.constant dense<0.000000e+00> : vector<64x512xf32>
    %3 = tpu.matmul %0, %2, %cst {dimension_numbers = #tpu.dot_dimension_numbers<[1], [0], [0], [1], [0, 0, 1, 1], [], []>} : vector<64x128xbf16>, vector<128x512xbf16>, vector<64x512xf32> -> vector<64x512xf32>
    %c0_4 = arith.constant 0 : index
    %c0_5 = arith.constant 0 : index
    %c0_6 = arith.constant 0 : index
    %4 = vector.load %arg5[%c0_4, %c0_5, %c0_6] : memref<2x1x512xf32, #tpu.memory_space<vmem>>, vector<1x1x512xf32>
    %5 = vector.shape_cast %4 : vector<1x1x512xf32> to vector<1x512xf32>
    %6 = vector.broadcast %5 : vector<1x512xf32> to vector<64x512xf32>
    %7 = arith.addf %3, %6 : vector<64x512xf32>
    %c0_7 = arith.constant 0 : index
    %c0_8 = arith.constant 0 : index
    %8 = vector.load %arg11[%c0_7, %c0_8] : memref<64x512xf32, #tpu.memory_space<vmem>>, vector<64x512xf32>
    tpu.vector_store %arg11[%c0_7, %c0_8], %7 {strides = array<i32>} : memref<64x512xf32, #tpu.memory_space<vmem>>, vector<64x512xf32>,
    %c0_9 = arith.constant 0 : index
    %c0_10 = arith.constant 0 : index
    %c0_11 = arith.constant 0 : index
    %9 = vector.load %arg1[%c0_9, %c0_10, %c0_11] : memref<2x8x128xf32, #tpu.memory_space<vmem>>, vector<1x8x128xf32>
    %10 = vector.shape_cast %9 : vector<1x8x128xf32> to vector<8x128xf32>
    %c0_12 = arith.constant 0 : index
    %c0_13 = arith.constant 0 : index
    %c0_14 = arith.constant 0 : index
    %11 = vector.load %arg2[%c0_12, %c0_13, %c0_14] : memref<2x8x128xf32, #tpu.memory_space<vmem>>, vector<1x8x128xf32>
    %12 = vector.shape_cast %11 : vector<1x8x128xf32> to vector<8x128xf32>
    %c0_15 = arith.constant 0 : index
    %c0_16 = arith.constant 0 : index
    %13 = vector.load %arg11[%c0_15, %c0_16] : memref<64x512xf32, #tpu.memory_space<vmem>>, vector<8x512xf32>
    %14 = arith.truncf %10 : vector<8x128xf32> to vector<8x128xbf16>
    %c0_17 = arith.constant 0 : index
    %c0_18 = arith.constant 0 : index
    %c0_19 = arith.constant 0 : index
    %15 = vector.load %arg4[%c0_17, %c0_18, %c0_19] : memref<2x128x512xbf16, #tpu.memory_space<vmem>>, vector<1x128x512xbf16>
    %16 = vector.shape_cast %15 : vector<1x128x512xbf16> to vector<128x512xbf16>
    %cst_20 = arith.constant dense<0.000000e+00> : vector<8x512xf32>
    %17 = tpu.matmul %14, %16, %cst_20 {dimension_numbers = #tpu.dot_dimension_numbers<[1], [0], [0], [1], [0, 0, 1, 1], [], []>} : vector<8x128xbf16>, vector<128x512xbf16>, vector<8x512xf32> -> vector<8x512xf32>
    %18 = arith.addf %13, %17 : vector<8x512xf32>
    %19 = vector.extract_strided_slice %18 {offsets = [0, 0], sizes = [8, 128], strides = [1, 1]} : vector<8x512xf32> to vector<8x128xf32>
    %20 = arith.negf %19 : vector<8x128xf32>
    %21 = math.exp %20 : vector<8x128xf32>
    %cst_21 = arith.constant 1.000000e+00 : f32
    %22 = vector.broadcast %cst_21 : f32 to vector<8x128xf32>
    %23 = arith.addf %22, %21 : vector<8x128xf32>
    %24 = arith.divf %22, %23 : vector<8x128xf32>
    %25 = vector.extract_strided_slice %18 {offsets = [0, 128], sizes = [8, 128], strides = [1, 1]} : vector<8x512xf32> to vector<8x128xf32>
    %26 = arith.negf %25 : vector<8x128xf32>
    %27 = math.exp %26 : vector<8x128xf32>
    %cst_22 = arith.constant 1.000000e+00 : f32
    %28 = vector.broadcast %cst_22 : f32 to vector<8x128xf32>
    %29 = arith.addf %28, %27 : vector<8x128xf32>
    %30 = arith.divf %28, %29 : vector<8x128xf32>
    %31 = vector.extract_strided_slice %18 {offsets = [0, 256], sizes = [8, 128], strides = [1, 1]} : vector<8x512xf32> to vector<8x128xf32>
    %32 = math.tanh %31 : vector<8x128xf32>
    %33 = vector.extract_strided_slice %18 {offsets = [0, 384], sizes = [8, 128], strides = [1, 1]} : vector<8x512xf32> to vector<8x128xf32>
    %34 = arith.negf %33 : vector<8x128xf32>
    %35 = math.exp %34 : vector<8x128xf32>
    %cst_23 = arith.constant 1.000000e+00 : f32
    %36 = vector.broadcast %cst_23 : f32 to vector<8x128xf32>
    %37 = arith.addf %36, %35 : vector<8x128xf32>
    %38 = arith.divf %36, %37 : vector<8x128xf32>
    %39 = arith.mulf %30, %12 : vector<8x128xf32>
    %40 = arith.mulf %24, %32 : vector<8x128xf32>
    %41 = arith.addf %39, %40 : vector<8x128xf32>
    %42 = math.tanh %41 : vector<8x128xf32>
    %43 = arith.mulf %38, %42 : vector<8x128xf32>
    %44 = arith.truncf %43 : vector<8x128xf32> to vector<8x128xbf16>
    %c0_24 = arith.constant 0 : index
    %c0_25 = arith.constant 0 : index
    %45 = vector.load %arg9[%c0_24, %c0_25] : memref<64x128xbf16, #tpu.memory_space<vmem>>, vector<8x128xbf16>
    tpu.vector_store %arg9[%c0_24, %c0_25], %44 {strides = array<i32>} : memref<64x128xbf16, #tpu.memory_space<vmem>>, vector<8x128xbf16>,
    %c8 = arith.constant 8 : index
    %c0_26 = arith.constant 0 : index
    %46 = vector.load %arg11[%c8, %c0_26] : memref<64x512xf32, #tpu.memory_space<vmem>>, vector<8x512xf32>
    %47 = arith.truncf %43 : vector<8x128xf32> to vector<8x128xbf16>
    %c0_27 = arith.constant 0 : index
    %c0_28 = arith.constant 0 : index
    %c0_29 = arith.constant 0 : index
    %48 = vector.load %arg4[%c0_27, %c0_28, %c0_29] : memref<2x128x512xbf16, #tpu.memory_space<vmem>>, vector<1x128x512xbf16>
    %49 = vector.shape_cast %48 : vector<1x128x512xbf16> to vector<128x512xbf16>
    %cst_30 = arith.constant dense<0.000000e+00> : vector<8x512xf32>
    %50 = tpu.matmul %47, %49, %cst_30 {dimension_numbers = #tpu.dot_dimension_numbers<[1], [0], [0], [1], [0, 0, 1, 1], [], []>} : vector<8x128xbf16>, vector<128x512xbf16>, vector<8x512xf32> -> vector<8x512xf32>
    %51 = arith.addf %46, %50 : vector<8x512xf32>
    %52 = vector.extract_strided_slice %51 {offsets = [0, 0], sizes = [8, 128], strides = [1, 1]} : vector<8x512xf32> to vector<8x128xf32>
    %53 = arith.negf %52 : vector<8x128xf32>
    %54 = math.exp %53 : vector<8x128xf32>
    %cst_31 = arith.constant 1.000000e+00 : f32
    %55 = vector.broadcast %cst_31 : f32 to vector<8x128xf32>
    %56 = arith.addf %55, %54 : vector<8x128xf32>
    %57 = arith.divf %55, %56 : vector<8x128xf32>
    %58 = vector.extract_strided_slice %51 {offsets = [0, 128], sizes = [8, 128], strides = [1, 1]} : vector<8x512xf32> to vector<8x128xf32>
    %59 = arith.negf %58 : vector<8x128xf32>
    %60 = math.exp %59 : vector<8x128xf32>
    %cst_32 = arith.constant 1.000000e+00 : f32
    %61 = vector.broadcast %cst_32 : f32 to vector<8x128xf32>
    %62 = arith.addf %61, %60 : vector<8x128xf32>
    %63 = arith.divf %61, %62 : vector<8x128xf32>
    %64 = vector.extract_strided_slice %51 {offsets = [0, 256], sizes = [8, 128], strides = [1, 1]} : vector<8x512xf32> to vector<8x128xf32>
    %65 = math.tanh %64 : vector<8x128xf32>
    %66 = vector.extract_strided_slice %51 {offsets = [0, 384], sizes = [8, 128], strides = [1, 1]} : vector<8x512xf32> to vector<8x128xf32>
    %67 = arith.negf %66 : vector<8x128xf32>
    %68 = math.exp %67 : vector<8x128xf32>
    %cst_33 = arith.constant 1.000000e+00 : f32
    %69 = vector.broadcast %cst_33 : f32 to vector<8x128xf32>
    %70 = arith.addf %69, %68 : vector<8x128xf32>
    %71 = arith.divf %69, %70 : vector<8x128xf32>
    %72 = arith.mulf %63, %41 : vector<8x128xf32>
    %73 = arith.mulf %57, %65 : vector<8x128xf32>
    %74 = arith.addf %72, %73 : vector<8x128xf32>
    %75 = math.tanh %74 : vector<8x128xf32>
    %76 = arith.mulf %71, %75 : vector<8x128xf32>
    %77 = arith.truncf %76 : vector<8x128xf32> to vector<8x128xbf16>
    %c8_34 = arith.constant 8 : index
    %c0_35 = arith.constant 0 : index
    %78 = vector.load %arg9[%c8_34, %c0_35] : memref<64x128xbf16, #tpu.memory_space<vmem>>, vector<8x128xbf16>
    tpu.vector_store %arg9[%c8_34, %c0_35], %77 {strides = array<i32>} : memref<64x128xbf16, #tpu.memory_space<vmem>>, vector<8x128xbf16>,
    %c16 = arith.constant 16 : index
    %c0_36 = arith.constant 0 : index
    %79 = vector.load %arg11[%c16, %c0_36] : memref<64x512xf32, #tpu.memory_space<vmem>>, vector<8x512xf32>
    %80 = arith.truncf %76 : vector<8x128xf32> to vector<8x128xbf16>
    %c0_37 = arith.constant 0 : index
    %c0_38 = arith.constant 0 : index
    %c0_39 = arith.constant 0 : index
    %81 = vector.load %arg4[%c0_37, %c0_38, %c0_39] : memref<2x128x512xbf16, #tpu.memory_space<vmem>>, vector<1x128x512xbf16>
    %82 = vector.shape_cast %81 : vector<1x128x512xbf16> to vector<128x512xbf16>
    %cst_40 = arith.constant dense<0.000000e+00> : vector<8x512xf32>
    %83 = tpu.matmul %80, %82, %cst_40 {dimension_numbers = #tpu.dot_dimension_numbers<[1], [0], [0], [1], [0, 0, 1, 1], [], []>} : vector<8x128xbf16>, vector<128x512xbf16>, vector<8x512xf32> -> vector<8x512xf32>
    %84 = arith.addf %79, %83 : vector<8x512xf32>
    %85 = vector.extract_strided_slice %84 {offsets = [0, 0], sizes = [8, 128], strides = [1, 1]} : vector<8x512xf32> to vector<8x128xf32>
    %86 = arith.negf %85 : vector<8x128xf32>
    %87 = math.exp %86 : vector<8x128xf32>
    %cst_41 = arith.constant 1.000000e+00 : f32
    %88 = vector.broadcast %cst_41 : f32 to vector<8x128xf32>
    %89 = arith.addf %88, %87 : vector<8x128xf32>
    %90 = arith.divf %88, %89 : vector<8x128xf32>
    %91 = vector.extract_strided_slice %84 {offsets = [0, 128], sizes = [8, 128], strides = [1, 1]} : vector<8x512xf32> to vector<8x128xf32>
    %92 = arith.negf %91 : vector<8x128xf32>
    %93 = math.exp %92 : vector<8x128xf32>
    %cst_42 = arith.constant 1.000000e+00 : f32
    %94 = vector.broadcast %cst_42 : f32 to vector<8x128xf32>
    %95 = arith.addf %94, %93 : vector<8x128xf32>
    %96 = arith.divf %94, %95 : vector<8x128xf32>
    %97 = vector.extract_strided_slice %84 {offsets = [0, 256], sizes = [8, 128], strides = [1, 1]} : vector<8x512xf32> to vector<8x128xf32>
    %98 = math.tanh %97 : vector<8x128xf32>
    %99 = vector.extract_strided_slice %84 {offsets = [0, 384], sizes = [8, 128], strides = [1, 1]} : vector<8x512xf32> to vector<8x128xf32>
    %100 = arith.negf %99 : vector<8x128xf32>
    %101 = math.exp %100 : vector<8x128xf32>
    %cst_43 = arith.constant 1.000000e+00 : f32
    %102 = vector.broadcast %cst_43 : f32 to vector<8x128xf32>
    %103 = arith.addf %102, %101 : vector<8x128xf32>
    %104 = arith.divf %102, %103 : vector<8x128xf32>
    %105 = arith.mulf %96, %74 : vector<8x128xf32>
    %106 = arith.mulf %90, %98 : vector<8x128xf32>
    %107 = arith.addf %105, %106 : vector<8x128xf32>
    %108 = math.tanh %107 : vector<8x128xf32>
    %109 = arith.mulf %104, %108 : vector<8x128xf32>
    %110 = arith.truncf %109 : vector<8x128xf32> to vector<8x128xbf16>
    %c16_44 = arith.constant 16 : index
    %c0_45 = arith.constant 0 : index
    %111 = vector.load %arg9[%c16_44, %c0_45] : memref<64x128xbf16, #tpu.memory_space<vmem>>, vector<8x128xbf16>
    tpu.vector_store %arg9[%c16_44, %c0_45], %110 {strides = array<i32>} : memref<64x128xbf16, #tpu.memory_space<vmem>>, vector<8x128xbf16>,
    %c24 = arith.constant 24 : index
    %c0_46 = arith.constant 0 : index
    %112 = vector.load %arg11[%c24, %c0_46] : memref<64x512xf32, #tpu.memory_space<vmem>>, vector<8x512xf32>
    %113 = arith.truncf %109 : vector<8x128xf32> to vector<8x128xbf16>
    %c0_47 = arith.constant 0 : index
    %c0_48 = arith.constant 0 : index
    %c0_49 = arith.constant 0 : index
    %114 = vector.load %arg4[%c0_47, %c0_48, %c0_49] : memref<2x128x512xbf16, #tpu.memory_space<vmem>>, vector<1x128x512xbf16>
    %115 = vector.shape_cast %114 : vector<1x128x512xbf16> to vector<128x512xbf16>
    %cst_50 = arith.constant dense<0.000000e+00> : vector<8x512xf32>
    %116 = tpu.matmul %113, %115, %cst_50 {dimension_numbers = #tpu.dot_dimension_numbers<[1], [0], [0], [1], [0, 0, 1, 1], [], []>} : vector<8x128xbf16>, vector<128x512xbf16>, vector<8x512xf32> -> vector<8x512xf32>
    %117 = arith.addf %112, %116 : vector<8x512xf32>
    %118 = vector.extract_strided_slice %117 {offsets = [0, 0], sizes = [8, 128], strides = [1, 1]} : vector<8x512xf32> to vector<8x128xf32>
    %119 = arith.negf %118 : vector<8x128xf32>
    %120 = math.exp %119 : vector<8x128xf32>
    %cst_51 = arith.constant 1.000000e+00 : f32
    %121 = vector.broadcast %cst_51 : f32 to vector<8x128xf32>
    %122 = arith.addf %121, %120 : vector<8x128xf32>
    %123 = arith.divf %121, %122 : vector<8x128xf32>
    %124 = vector.extract_strided_slice %117 {offsets = [0, 128], sizes = [8, 128], strides = [1, 1]} : vector<8x512xf32> to vector<8x128xf32>
    %125 = arith.negf %124 : vector<8x128xf32>
    %126 = math.exp %125 : vector<8x128xf32>
    %cst_52 = arith.constant 1.000000e+00 : f32
    %127 = vector.broadcast %cst_52 : f32 to vector<8x128xf32>
    %128 = arith.addf %127, %126 : vector<8x128xf32>
    %129 = arith.divf %127, %128 : vector<8x128xf32>
    %130 = vector.extract_strided_slice %117 {offsets = [0, 256], sizes = [8, 128], strides = [1, 1]} : vector<8x512xf32> to vector<8x128xf32>
    %131 = math.tanh %130 : vector<8x128xf32>
    %132 = vector.extract_strided_slice %117 {offsets = [0, 384], sizes = [8, 128], strides = [1, 1]} : vector<8x512xf32> to vector<8x128xf32>
    %133 = arith.negf %132 : vector<8x128xf32>
    %134 = math.exp %133 : vector<8x128xf32>
    %cst_53 = arith.constant 1.000000e+00 : f32
    %135 = vector.broadcast %cst_53 : f32 to vector<8x128xf32>
    %136 = arith.addf %135, %134 : vector<8x128xf32>
    %137 = arith.divf %135, %136 : vector<8x128xf32>
    %138 = arith.mulf %129, %107 : vector<8x128xf32>
    %139 = arith.mulf %123, %131 : vector<8x128xf32>
    %140 = arith.addf %138, %139 : vector<8x128xf32>
    %141 = math.tanh %140 : vector<8x128xf32>
    %142 = arith.mulf %137, %141 : vector<8x128xf32>
    %143 = arith.truncf %142 : vector<8x128xf32> to vector<8x128xbf16>
    %c24_54 = arith.constant 24 : index
    %c0_55 = arith.constant 0 : index
    %144 = vector.load %arg9[%c24_54, %c0_55] : memref<64x128xbf16, #tpu.memory_space<vmem>>, vector<8x128xbf16>
    tpu.vector_store %arg9[%c24_54, %c0_55], %143 {strides = array<i32>} : memref<64x128xbf16, #tpu.memory_space<vmem>>, vector<8x128xbf16>,
    %c32 = arith.constant 32 : index
    %c0_56 = arith.constant 0 : index
    %145 = vector.load %arg11[%c32, %c0_56] : memref<64x512xf32, #tpu.memory_space<vmem>>, vector<8x512xf32>
    %146 = arith.truncf %142 : vector<8x128xf32> to vector<8x128xbf16>
    %c0_57 = arith.constant 0 : index
    %c0_58 = arith.constant 0 : index
    %c0_59 = arith.constant 0 : index
    %147 = vector.load %arg4[%c0_57, %c0_58, %c0_59] : memref<2x128x512xbf16, #tpu.memory_space<vmem>>, vector<1x128x512xbf16>
    %148 = vector.shape_cast %147 : vector<1x128x512xbf16> to vector<128x512xbf16>
    %cst_60 = arith.constant dense<0.000000e+00> : vector<8x512xf32>
    %149 = tpu.matmul %146, %148, %cst_60 {dimension_numbers = #tpu.dot_dimension_numbers<[1], [0], [0], [1], [0, 0, 1, 1], [], []>} : vector<8x128xbf16>, vector<128x512xbf16>, vector<8x512xf32> -> vector<8x512xf32>
    %150 = arith.addf %145, %149 : vector<8x512xf32>
    %151 = vector.extract_strided_slice %150 {offsets = [0, 0], sizes = [8, 128], strides = [1, 1]} : vector<8x512xf32> to vector<8x128xf32>
    %152 = arith.negf %151 : vector<8x128xf32>
    %153 = math.exp %152 : vector<8x128xf32>
    %cst_61 = arith.constant 1.000000e+00 : f32
    %154 = vector.broadcast %cst_61 : f32 to vector<8x128xf32>
    %155 = arith.addf %154, %153 : vector<8x128xf32>
    %156 = arith.divf %154, %155 : vector<8x128xf32>
    %157 = vector.extract_strided_slice %150 {offsets = [0, 128], sizes = [8, 128], strides = [1, 1]} : vector<8x512xf32> to vector<8x128xf32>
    %158 = arith.negf %157 : vector<8x128xf32>
    %159 = math.exp %158 : vector<8x128xf32>
    %cst_62 = arith.constant 1.000000e+00 : f32
    %160 = vector.broadcast %cst_62 : f32 to vector<8x128xf32>
    %161 = arith.addf %160, %159 : vector<8x128xf32>
    %162 = arith.divf %160, %161 : vector<8x128xf32>
    %163 = vector.extract_strided_slice %150 {offsets = [0, 256], sizes = [8, 128], strides = [1, 1]} : vector<8x512xf32> to vector<8x128xf32>
    %164 = math.tanh %163 : vector<8x128xf32>
    %165 = vector.extract_strided_slice %150 {offsets = [0, 384], sizes = [8, 128], strides = [1, 1]} : vector<8x512xf32> to vector<8x128xf32>
    %166 = arith.negf %165 : vector<8x128xf32>
    %167 = math.exp %166 : vector<8x128xf32>
    %cst_63 = arith.constant 1.000000e+00 : f32
    %168 = vector.broadcast %cst_63 : f32 to vector<8x128xf32>
    %169 = arith.addf %168, %167 : vector<8x128xf32>
    %170 = arith.divf %168, %169 : vector<8x128xf32>
    %171 = arith.mulf %162, %140 : vector<8x128xf32>
    %172 = arith.mulf %156, %164 : vector<8x128xf32>
    %173 = arith.addf %171, %172 : vector<8x128xf32>
    %174 = math.tanh %173 : vector<8x128xf32>
    %175 = arith.mulf %170, %174 : vector<8x128xf32>
    %176 = arith.truncf %175 : vector<8x128xf32> to vector<8x128xbf16>
    %c32_64 = arith.constant 32 : index
    %c0_65 = arith.constant 0 : index
    %177 = vector.load %arg9[%c32_64, %c0_65] : memref<64x128xbf16, #tpu.memory_space<vmem>>, vector<8x128xbf16>
    tpu.vector_store %arg9[%c32_64, %c0_65], %176 {strides = array<i32>} : memref<64x128xbf16, #tpu.memory_space<vmem>>, vector<8x128xbf16>,
    %c40 = arith.constant 40 : index
    %c0_66 = arith.constant 0 : index
    %178 = vector.load %arg11[%c40, %c0_66] : memref<64x512xf32, #tpu.memory_space<vmem>>, vector<8x512xf32>
    %179 = arith.truncf %175 : vector<8x128xf32> to vector<8x128xbf16>
    %c0_67 = arith.constant 0 : index
    %c0_68 = arith.constant 0 : index
    %c0_69 = arith.constant 0 : index
    %180 = vector.load %arg4[%c0_67, %c0_68, %c0_69] : memref<2x128x512xbf16, #tpu.memory_space<vmem>>, vector<1x128x512xbf16>
    %181 = vector.shape_cast %180 : vector<1x128x512xbf16> to vector<128x512xbf16>
    %cst_70 = arith.constant dense<0.000000e+00> : vector<8x512xf32>
    %182 = tpu.matmul %179, %181, %cst_70 {dimension_numbers = #tpu.dot_dimension_numbers<[1], [0], [0], [1], [0, 0, 1, 1], [], []>} : vector<8x128xbf16>, vector<128x512xbf16>, vector<8x512xf32> -> vector<8x512xf32>
    %183 = arith.addf %178, %182 : vector<8x512xf32>
    %184 = vector.extract_strided_slice %183 {offsets = [0, 0], sizes = [8, 128], strides = [1, 1]} : vector<8x512xf32> to vector<8x128xf32>
    %185 = arith.negf %184 : vector<8x128xf32>
    %186 = math.exp %185 : vector<8x128xf32>
    %cst_71 = arith.constant 1.000000e+00 : f32
    %187 = vector.broadcast %cst_71 : f32 to vector<8x128xf32>
    %188 = arith.addf %187, %186 : vector<8x128xf32>
    %189 = arith.divf %187, %188 : vector<8x128xf32>
    %190 = vector.extract_strided_slice %183 {offsets = [0, 128], sizes = [8, 128], strides = [1, 1]} : vector<8x512xf32> to vector<8x128xf32>
    %191 = arith.negf %190 : vector<8x128xf32>
    %192 = math.exp %191 : vector<8x128xf32>
    %cst_72 = arith.constant 1.000000e+00 : f32
    %193 = vector.broadcast %cst_72 : f32 to vector<8x128xf32>
    %194 = arith.addf %193, %192 : vector<8x128xf32>
    %195 = arith.divf %193, %194 : vector<8x128xf32>
    %196 = vector.extract_strided_slice %183 {offsets = [0, 256], sizes = [8, 128], strides = [1, 1]} : vector<8x512xf32> to vector<8x128xf32>
    %197 = math.tanh %196 : vector<8x128xf32>
    %198 = vector.extract_strided_slice %183 {offsets = [0, 384], sizes = [8, 128], strides = [1, 1]} : vector<8x512xf32> to vector<8x128xf32>
    %199 = arith.negf %198 : vector<8x128xf32>
    %200 = math.exp %199 : vector<8x128xf32>
    %cst_73 = arith.constant 1.000000e+00 : f32
    %201 = vector.broadcast %cst_73 : f32 to vector<8x128xf32>
    %202 = arith.addf %201, %200 : vector<8x128xf32>
    %203 = arith.divf %201, %202 : vector<8x128xf32>
    %204 = arith.mulf %195, %173 : vector<8x128xf32>
    %205 = arith.mulf %189, %197 : vector<8x128xf32>
    %206 = arith.addf %204, %205 : vector<8x128xf32>
    %207 = math.tanh %206 : vector<8x128xf32>
    %208 = arith.mulf %203, %207 : vector<8x128xf32>
    %209 = arith.truncf %208 : vector<8x128xf32> to vector<8x128xbf16>
    %c40_74 = arith.constant 40 : index
    %c0_75 = arith.constant 0 : index
    %210 = vector.load %arg9[%c40_74, %c0_75] : memref<64x128xbf16, #tpu.memory_space<vmem>>, vector<8x128xbf16>
    tpu.vector_store %arg9[%c40_74, %c0_75], %209 {strides = array<i32>} : memref<64x128xbf16, #tpu.memory_space<vmem>>, vector<8x128xbf16>,
    %c48 = arith.constant 48 : index
    %c0_76 = arith.constant 0 : index
    %211 = vector.load %arg11[%c48, %c0_76] : memref<64x512xf32, #tpu.memory_space<vmem>>, vector<8x512xf32>
    %212 = arith.truncf %208 : vector<8x128xf32> to vector<8x128xbf16>
    %c0_77 = arith.constant 0 : index
    %c0_78 = arith.constant 0 : index
    %c0_79 = arith.constant 0 : index
    %213 = vector.load %arg4[%c0_77, %c0_78, %c0_79] : memref<2x128x512xbf16, #tpu.memory_space<vmem>>, vector<1x128x512xbf16>
    %214 = vector.shape_cast %213 : vector<1x128x512xbf16> to vector<128x512xbf16>
    %cst_80 = arith.constant dense<0.000000e+00> : vector<8x512xf32>
    %215 = tpu.matmul %212, %214, %cst_80 {dimension_numbers = #tpu.dot_dimension_numbers<[1], [0], [0], [1], [0, 0, 1, 1], [], []>} : vector<8x128xbf16>, vector<128x512xbf16>, vector<8x512xf32> -> vector<8x512xf32>
    %216 = arith.addf %211, %215 : vector<8x512xf32>
    %217 = vector.extract_strided_slice %216 {offsets = [0, 0], sizes = [8, 128], strides = [1, 1]} : vector<8x512xf32> to vector<8x128xf32>
    %218 = arith.negf %217 : vector<8x128xf32>
    %219 = math.exp %218 : vector<8x128xf32>
    %cst_81 = arith.constant 1.000000e+00 : f32
    %220 = vector.broadcast %cst_81 : f32 to vector<8x128xf32>
    %221 = arith.addf %220, %219 : vector<8x128xf32>
    %222 = arith.divf %220, %221 : vector<8x128xf32>
    %223 = vector.extract_strided_slice %216 {offsets = [0, 128], sizes = [8, 128], strides = [1, 1]} : vector<8x512xf32> to vector<8x128xf32>
    %224 = arith.negf %223 : vector<8x128xf32>
    %225 = math.exp %224 : vector<8x128xf32>
    %cst_82 = arith.constant 1.000000e+00 : f32
    %226 = vector.broadcast %cst_82 : f32 to vector<8x128xf32>
    %227 = arith.addf %226, %225 : vector<8x128xf32>
    %228 = arith.divf %226, %227 : vector<8x128xf32>
    %229 = vector.extract_strided_slice %216 {offsets = [0, 256], sizes = [8, 128], strides = [1, 1]} : vector<8x512xf32> to vector<8x128xf32>
    %230 = math.tanh %229 : vector<8x128xf32>
    %231 = vector.extract_strided_slice %216 {offsets = [0, 384], sizes = [8, 128], strides = [1, 1]} : vector<8x512xf32> to vector<8x128xf32>
    %232 = arith.negf %231 : vector<8x128xf32>
    %233 = math.exp %232 : vector<8x128xf32>
    %cst_83 = arith.constant 1.000000e+00 : f32
    %234 = vector.broadcast %cst_83 : f32 to vector<8x128xf32>
    %235 = arith.addf %234, %233 : vector<8x128xf32>
    %236 = arith.divf %234, %235 : vector<8x128xf32>
    %237 = arith.mulf %228, %206 : vector<8x128xf32>
    %238 = arith.mulf %222, %230 : vector<8x128xf32>
    %239 = arith.addf %237, %238 : vector<8x128xf32>
    %240 = math.tanh %239 : vector<8x128xf32>
    %241 = arith.mulf %236, %240 : vector<8x128xf32>
    %242 = arith.truncf %241 : vector<8x128xf32> to vector<8x128xbf16>
    %c48_84 = arith.constant 48 : index
    %c0_85 = arith.constant 0 : index
    %243 = vector.load %arg9[%c48_84, %c0_85] : memref<64x128xbf16, #tpu.memory_space<vmem>>, vector<8x128xbf16>
    tpu.vector_store %arg9[%c48_84, %c0_85], %242 {strides = array<i32>} : memref<64x128xbf16, #tpu.memory_space<vmem>>, vector<8x128xbf16>,
    %c56 = arith.constant 56 : index
    %c0_86 = arith.constant 0 : index
    %244 = vector.load %arg11[%c56, %c0_86] : memref<64x512xf32, #tpu.memory_space<vmem>>, vector<8x512xf32>
    %245 = arith.truncf %241 : vector<8x128xf32> to vector<8x128xbf16>
    %c0_87 = arith.constant 0 : index
    %c0_88 = arith.constant 0 : index
    %c0_89 = arith.constant 0 : index
    %246 = vector.load %arg4[%c0_87, %c0_88, %c0_89] : memref<2x128x512xbf16, #tpu.memory_space<vmem>>, vector<1x128x512xbf16>
    %247 = vector.shape_cast %246 : vector<1x128x512xbf16> to vector<128x512xbf16>
    %cst_90 = arith.constant dense<0.000000e+00> : vector<8x512xf32>
    %248 = tpu.matmul %245, %247, %cst_90 {dimension_numbers = #tpu.dot_dimension_numbers<[1], [0], [0], [1], [0, 0, 1, 1], [], []>} : vector<8x128xbf16>, vector<128x512xbf16>, vector<8x512xf32> -> vector<8x512xf32>
    %249 = arith.addf %244, %248 : vector<8x512xf32>
    %250 = vector.extract_strided_slice %249 {offsets = [0, 0], sizes = [8, 128], strides = [1, 1]} : vector<8x512xf32> to vector<8x128xf32>
    %251 = arith.negf %250 : vector<8x128xf32>
    %252 = math.exp %251 : vector<8x128xf32>
    %cst_91 = arith.constant 1.000000e+00 : f32
    %253 = vector.broadcast %cst_91 : f32 to vector<8x128xf32>
    %254 = arith.addf %253, %252 : vector<8x128xf32>
    %255 = arith.divf %253, %254 : vector<8x128xf32>
    %256 = vector.extract_strided_slice %249 {offsets = [0, 128], sizes = [8, 128], strides = [1, 1]} : vector<8x512xf32> to vector<8x128xf32>
    %257 = arith.negf %256 : vector<8x128xf32>
    %258 = math.exp %257 : vector<8x128xf32>
    %cst_92 = arith.constant 1.000000e+00 : f32
    %259 = vector.broadcast %cst_92 : f32 to vector<8x128xf32>
    %260 = arith.addf %259, %258 : vector<8x128xf32>
    %261 = arith.divf %259, %260 : vector<8x128xf32>
    %262 = vector.extract_strided_slice %249 {offsets = [0, 256], sizes = [8, 128], strides = [1, 1]} : vector<8x512xf32> to vector<8x128xf32>
    %263 = math.tanh %262 : vector<8x128xf32>
    %264 = vector.extract_strided_slice %249 {offsets = [0, 384], sizes = [8, 128], strides = [1, 1]} : vector<8x512xf32> to vector<8x128xf32>
    %265 = arith.negf %264 : vector<8x128xf32>
    %266 = math.exp %265 : vector<8x128xf32>
    %cst_93 = arith.constant 1.000000e+00 : f32
    %267 = vector.broadcast %cst_93 : f32 to vector<8x128xf32>
    %268 = arith.addf %267, %266 : vector<8x128xf32>
    %269 = arith.divf %267, %268 : vector<8x128xf32>
    %270 = arith.mulf %261, %239 : vector<8x128xf32>
    %271 = arith.mulf %255, %263 : vector<8x128xf32>
    %272 = arith.addf %270, %271 : vector<8x128xf32>
    %273 = math.tanh %272 : vector<8x128xf32>
    %274 = arith.mulf %269, %273 : vector<8x128xf32>
    %275 = arith.truncf %274 : vector<8x128xf32> to vector<8x128xbf16>
    %c56_94 = arith.constant 56 : index
    %c0_95 = arith.constant 0 : index
    %276 = vector.load %arg9[%c56_94, %c0_95] : memref<64x128xbf16, #tpu.memory_space<vmem>>, vector<8x128xbf16>
    tpu.vector_store %arg9[%c56_94, %c0_95], %275 {strides = array<i32>} : memref<64x128xbf16, #tpu.memory_space<vmem>>, vector<8x128xbf16>,
    %c0_96 = arith.constant 0 : index
    %c0_97 = arith.constant 0 : index
    %c0_98 = arith.constant 0 : index
    %277 = vector.load %arg7[%c0_96, %c0_97, %c0_98] : memref<2x8x128xf32, #tpu.memory_space<vmem>>, vector<1x8x128xf32>
    %278 = vector.shape_cast %277 : vector<1x8x128xf32> to vector<8x128xf32>
    %279 = vector.shape_cast %274 : vector<8x128xf32> to vector<1x8x128xf32>
    tpu.vector_store %arg7[%c0_96, %c0_97, %c0_98], %279 {strides = array<i32>} : memref<2x8x128xf32, #tpu.memory_space<vmem>>, vector<1x8x128xf32>,
    %c0_99 = arith.constant 0 : index
    %c0_100 = arith.constant 0 : index
    %c0_101 = arith.constant 0 : index
    %280 = vector.load %arg8[%c0_99, %c0_100, %c0_101] : memref<2x8x128xf32, #tpu.memory_space<vmem>>, vector<1x8x128xf32>
    %281 = vector.shape_cast %280 : vector<1x8x128xf32> to vector<8x128xf32>
    %282 = vector.shape_cast %272 : vector<8x128xf32> to vector<1x8x128xf32>
    tpu.vector_store %arg8[%c0_99, %c0_100, %c0_101], %282 {strides = array<i32>} : memref<2x8x128xf32, #tpu.memory_space<vmem>>, vector<1x8x128xf32>,
    %c0_102 = arith.constant 0 : index
    %c0_103 = arith.constant 0 : index
    %283 = vector.load %arg9[%c0_102, %c0_103] : memref<64x128xbf16, #tpu.memory_space<vmem>>, vector<64x128xbf16>
    %c1 = arith.constant 1 : index
    %c0_104 = arith.constant 0 : index
    %c0_105 = arith.constant 0 : index
    %284 = vector.load %arg3[%c1, %c0_104, %c0_105] : memref<2x128x512xbf16, #tpu.memory_space<vmem>>, vector<1x128x512xbf16>
    %285 = vector.shape_cast %284 : vector<1x128x512xbf16> to vector<128x512xbf16>
    %cst_106 = arith.constant dense<0.000000e+00> : vector<64x512xf32>
    %286 = tpu.matmul %283, %285, %cst_106 {dimension_numbers = #tpu.dot_dimension_numbers<[1], [0], [0], [1], [0, 0, 1, 1], [], []>} : vector<64x128xbf16>, vector<128x512xbf16>, vector<64x512xf32> -> vector<64x512xf32>
    %c1_107 = arith.constant 1 : index
    %c0_108 = arith.constant 0 : index
    %c0_109 = arith.constant 0 : index
    %287 = vector.load %arg5[%c1_107, %c0_108, %c0_109] : memref<2x1x512xf32, #tpu.memory_space<vmem>>, vector<1x1x512xf32>
    %288 = vector.shape_cast %287 : vector<1x1x512xf32> to vector<1x512xf32>
    %289 = vector.broadcast %288 : vector<1x512xf32> to vector<64x512xf32>
    %290 = arith.addf %286, %289 : vector<64x512xf32>
    %c0_110 = arith.constant 0 : index
    %c0_111 = arith.constant 0 : index
    %291 = vector.load %arg11[%c0_110, %c0_111] : memref<64x512xf32, #tpu.memory_space<vmem>>, vector<64x512xf32>
    tpu.vector_store %arg11[%c0_110, %c0_111], %290 {strides = array<i32>} : memref<64x512xf32, #tpu.memory_space<vmem>>, vector<64x512xf32>,
    %c1_112 = arith.constant 1 : index
    %c0_113 = arith.constant 0 : index
    %c0_114 = arith.constant 0 : index
    %292 = vector.load %arg1[%c1_112, %c0_113, %c0_114] : memref<2x8x128xf32, #tpu.memory_space<vmem>>, vector<1x8x128xf32>
    %293 = vector.shape_cast %292 : vector<1x8x128xf32> to vector<8x128xf32>
    %c1_115 = arith.constant 1 : index
    %c0_116 = arith.constant 0 : index
    %c0_117 = arith.constant 0 : index
    %294 = vector.load %arg2[%c1_115, %c0_116, %c0_117] : memref<2x8x128xf32, #tpu.memory_space<vmem>>, vector<1x8x128xf32>
    %295 = vector.shape_cast %294 : vector<1x8x128xf32> to vector<8x128xf32>
    %c0_118 = arith.constant 0 : index
    %c0_119 = arith.constant 0 : index
    %296 = vector.load %arg11[%c0_118, %c0_119] : memref<64x512xf32, #tpu.memory_space<vmem>>, vector<8x512xf32>
    %297 = arith.truncf %293 : vector<8x128xf32> to vector<8x128xbf16>
    %c1_120 = arith.constant 1 : index
    %c0_121 = arith.constant 0 : index
    %c0_122 = arith.constant 0 : index
    %298 = vector.load %arg4[%c1_120, %c0_121, %c0_122] : memref<2x128x512xbf16, #tpu.memory_space<vmem>>, vector<1x128x512xbf16>
    %299 = vector.shape_cast %298 : vector<1x128x512xbf16> to vector<128x512xbf16>
    %cst_123 = arith.constant dense<0.000000e+00> : vector<8x512xf32>
    %300 = tpu.matmul %297, %299, %cst_123 {dimension_numbers = #tpu.dot_dimension_numbers<[1], [0], [0], [1], [0, 0, 1, 1], [], []>} : vector<8x128xbf16>, vector<128x512xbf16>, vector<8x512xf32> -> vector<8x512xf32>
    %301 = arith.addf %296, %300 : vector<8x512xf32>
    %302 = vector.extract_strided_slice %301 {offsets = [0, 0], sizes = [8, 128], strides = [1, 1]} : vector<8x512xf32> to vector<8x128xf32>
    %303 = arith.negf %302 : vector<8x128xf32>
    %304 = math.exp %303 : vector<8x128xf32>
    %cst_124 = arith.constant 1.000000e+00 : f32
    %305 = vector.broadcast %cst_124 : f32 to vector<8x128xf32>
    %306 = arith.addf %305, %304 : vector<8x128xf32>
    %307 = arith.divf %305, %306 : vector<8x128xf32>
    %308 = vector.extract_strided_slice %301 {offsets = [0, 128], sizes = [8, 128], strides = [1, 1]} : vector<8x512xf32> to vector<8x128xf32>
    %309 = arith.negf %308 : vector<8x128xf32>
    %310 = math.exp %309 : vector<8x128xf32>
    %cst_125 = arith.constant 1.000000e+00 : f32
    %311 = vector.broadcast %cst_125 : f32 to vector<8x128xf32>
    %312 = arith.addf %311, %310 : vector<8x128xf32>
    %313 = arith.divf %311, %312 : vector<8x128xf32>
    %314 = vector.extract_strided_slice %301 {offsets = [0, 256], sizes = [8, 128], strides = [1, 1]} : vector<8x512xf32> to vector<8x128xf32>
    %315 = math.tanh %314 : vector<8x128xf32>
    %316 = vector.extract_strided_slice %301 {offsets = [0, 384], sizes = [8, 128], strides = [1, 1]} : vector<8x512xf32> to vector<8x128xf32>
    %317 = arith.negf %316 : vector<8x128xf32>
    %318 = math.exp %317 : vector<8x128xf32>
    %cst_126 = arith.constant 1.000000e+00 : f32
    %319 = vector.broadcast %cst_126 : f32 to vector<8x128xf32>
    %320 = arith.addf %319, %318 : vector<8x128xf32>
    %321 = arith.divf %319, %320 : vector<8x128xf32>
    %322 = arith.mulf %313, %295 : vector<8x128xf32>
    %323 = arith.mulf %307, %315 : vector<8x128xf32>
    %324 = arith.addf %322, %323 : vector<8x128xf32>
    %325 = math.tanh %324 : vector<8x128xf32>
    %326 = arith.mulf %321, %325 : vector<8x128xf32>
    %327 = arith.truncf %326 : vector<8x128xf32> to vector<8x128xbf16>
    %c0_127 = arith.constant 0 : index
    %c0_128 = arith.constant 0 : index
    %328 = vector.load %arg6[%c0_127, %c0_128] : memref<64x128xbf16, #tpu.memory_space<vmem>>, vector<8x128xbf16>
    tpu.vector_store %arg6[%c0_127, %c0_128], %327 {strides = array<i32>} : memref<64x128xbf16, #tpu.memory_space<vmem>>, vector<8x128xbf16>,
    %c8_129 = arith.constant 8 : index
    %c0_130 = arith.constant 0 : index
    %329 = vector.load %arg11[%c8_129, %c0_130] : memref<64x512xf32, #tpu.memory_space<vmem>>, vector<8x512xf32>
    %330 = arith.truncf %326 : vector<8x128xf32> to vector<8x128xbf16>
    %c1_131 = arith.constant 1 : index
    %c0_132 = arith.constant 0 : index
    %c0_133 = arith.constant 0 : index
    %331 = vector.load %arg4[%c1_131, %c0_132, %c0_133] : memref<2x128x512xbf16, #tpu.memory_space<vmem>>, vector<1x128x512xbf16>
    %332 = vector.shape_cast %331 : vector<1x128x512xbf16> to vector<128x512xbf16>
    %cst_134 = arith.constant dense<0.000000e+00> : vector<8x512xf32>
    %333 = tpu.matmul %330, %332, %cst_134 {dimension_numbers = #tpu.dot_dimension_numbers<[1], [0], [0], [1], [0, 0, 1, 1], [], []>} : vector<8x128xbf16>, vector<128x512xbf16>, vector<8x512xf32> -> vector<8x512xf32>
    %334 = arith.addf %329, %333 : vector<8x512xf32>
    %335 = vector.extract_strided_slice %334 {offsets = [0, 0], sizes = [8, 128], strides = [1, 1]} : vector<8x512xf32> to vector<8x128xf32>
    %336 = arith.negf %335 : vector<8x128xf32>
    %337 = math.exp %336 : vector<8x128xf32>
    %cst_135 = arith.constant 1.000000e+00 : f32
    %338 = vector.broadcast %cst_135 : f32 to vector<8x128xf32>
    %339 = arith.addf %338, %337 : vector<8x128xf32>
    %340 = arith.divf %338, %339 : vector<8x128xf32>
    %341 = vector.extract_strided_slice %334 {offsets = [0, 128], sizes = [8, 128], strides = [1, 1]} : vector<8x512xf32> to vector<8x128xf32>
    %342 = arith.negf %341 : vector<8x128xf32>
    %343 = math.exp %342 : vector<8x128xf32>
    %cst_136 = arith.constant 1.000000e+00 : f32
    %344 = vector.broadcast %cst_136 : f32 to vector<8x128xf32>
    %345 = arith.addf %344, %343 : vector<8x128xf32>
    %346 = arith.divf %344, %345 : vector<8x128xf32>
    %347 = vector.extract_strided_slice %334 {offsets = [0, 256], sizes = [8, 128], strides = [1, 1]} : vector<8x512xf32> to vector<8x128xf32>
    %348 = math.tanh %347 : vector<8x128xf32>
    %349 = vector.extract_strided_slice %334 {offsets = [0, 384], sizes = [8, 128], strides = [1, 1]} : vector<8x512xf32> to vector<8x128xf32>
    %350 = arith.negf %349 : vector<8x128xf32>
    %351 = math.exp %350 : vector<8x128xf32>
    %cst_137 = arith.constant 1.000000e+00 : f32
    %352 = vector.broadcast %cst_137 : f32 to vector<8x128xf32>
    %353 = arith.addf %352, %351 : vector<8x128xf32>
    %354 = arith.divf %352, %353 : vector<8x128xf32>
    %355 = arith.mulf %346, %324 : vector<8x128xf32>
    %356 = arith.mulf %340, %348 : vector<8x128xf32>
    %357 = arith.addf %355, %356 : vector<8x128xf32>
    %358 = math.tanh %357 : vector<8x128xf32>
    %359 = arith.mulf %354, %358 : vector<8x128xf32>
    %360 = arith.truncf %359 : vector<8x128xf32> to vector<8x128xbf16>
    %c8_138 = arith.constant 8 : index
    %c0_139 = arith.constant 0 : index
    %361 = vector.load %arg6[%c8_138, %c0_139] : memref<64x128xbf16, #tpu.memory_space<vmem>>, vector<8x128xbf16>
    tpu.vector_store %arg6[%c8_138, %c0_139], %360 {strides = array<i32>} : memref<64x128xbf16, #tpu.memory_space<vmem>>, vector<8x128xbf16>,
    %c16_140 = arith.constant 16 : index
    %c0_141 = arith.constant 0 : index
    %362 = vector.load %arg11[%c16_140, %c0_141] : memref<64x512xf32, #tpu.memory_space<vmem>>, vector<8x512xf32>
    %363 = arith.truncf %359 : vector<8x128xf32> to vector<8x128xbf16>
    %c1_142 = arith.constant 1 : index
    %c0_143 = arith.constant 0 : index
    %c0_144 = arith.constant 0 : index
    %364 = vector.load %arg4[%c1_142, %c0_143, %c0_144] : memref<2x128x512xbf16, #tpu.memory_space<vmem>>, vector<1x128x512xbf16>
    %365 = vector.shape_cast %364 : vector<1x128x512xbf16> to vector<128x512xbf16>
    %cst_145 = arith.constant dense<0.000000e+00> : vector<8x512xf32>
    %366 = tpu.matmul %363, %365, %cst_145 {dimension_numbers = #tpu.dot_dimension_numbers<[1], [0], [0], [1], [0, 0, 1, 1], [], []>} : vector<8x128xbf16>, vector<128x512xbf16>, vector<8x512xf32> -> vector<8x512xf32>
    %367 = arith.addf %362, %366 : vector<8x512xf32>
    %368 = vector.extract_strided_slice %367 {offsets = [0, 0], sizes = [8, 128], strides = [1, 1]} : vector<8x512xf32> to vector<8x128xf32>
    %369 = arith.negf %368 : vector<8x128xf32>
    %370 = math.exp %369 : vector<8x128xf32>
    %cst_146 = arith.constant 1.000000e+00 : f32
    %371 = vector.broadcast %cst_146 : f32 to vector<8x128xf32>
    %372 = arith.addf %371, %370 : vector<8x128xf32>
    %373 = arith.divf %371, %372 : vector<8x128xf32>
    %374 = vector.extract_strided_slice %367 {offsets = [0, 128], sizes = [8, 128], strides = [1, 1]} : vector<8x512xf32> to vector<8x128xf32>
    %375 = arith.negf %374 : vector<8x128xf32>
    %376 = math.exp %375 : vector<8x128xf32>
    %cst_147 = arith.constant 1.000000e+00 : f32
    %377 = vector.broadcast %cst_147 : f32 to vector<8x128xf32>
    %378 = arith.addf %377, %376 : vector<8x128xf32>
    %379 = arith.divf %377, %378 : vector<8x128xf32>
    %380 = vector.extract_strided_slice %367 {offsets = [0, 256], sizes = [8, 128], strides = [1, 1]} : vector<8x512xf32> to vector<8x128xf32>
    %381 = math.tanh %380 : vector<8x128xf32>
    %382 = vector.extract_strided_slice %367 {offsets = [0, 384], sizes = [8, 128], strides = [1, 1]} : vector<8x512xf32> to vector<8x128xf32>
    %383 = arith.negf %382 : vector<8x128xf32>
    %384 = math.exp %383 : vector<8x128xf32>
    %cst_148 = arith.constant 1.000000e+00 : f32
    %385 = vector.broadcast %cst_148 : f32 to vector<8x128xf32>
    %386 = arith.addf %385, %384 : vector<8x128xf32>
    %387 = arith.divf %385, %386 : vector<8x128xf32>
    %388 = arith.mulf %379, %357 : vector<8x128xf32>
    %389 = arith.mulf %373, %381 : vector<8x128xf32>
    %390 = arith.addf %388, %389 : vector<8x128xf32>
    %391 = math.tanh %390 : vector<8x128xf32>
    %392 = arith.mulf %387, %391 : vector<8x128xf32>
    %393 = arith.truncf %392 : vector<8x128xf32> to vector<8x128xbf16>
    %c16_149 = arith.constant 16 : index
    %c0_150 = arith.constant 0 : index
    %394 = vector.load %arg6[%c16_149, %c0_150] : memref<64x128xbf16, #tpu.memory_space<vmem>>, vector<8x128xbf16>
    tpu.vector_store %arg6[%c16_149, %c0_150], %393 {strides = array<i32>} : memref<64x128xbf16, #tpu.memory_space<vmem>>, vector<8x128xbf16>,
    %c24_151 = arith.constant 24 : index
    %c0_152 = arith.constant 0 : index
    %395 = vector.load %arg11[%c24_151, %c0_152] : memref<64x512xf32, #tpu.memory_space<vmem>>, vector<8x512xf32>
    %396 = arith.truncf %392 : vector<8x128xf32> to vector<8x128xbf16>
    %c1_153 = arith.constant 1 : index
    %c0_154 = arith.constant 0 : index
    %c0_155 = arith.constant 0 : index
    %397 = vector.load %arg4[%c1_153, %c0_154, %c0_155] : memref<2x128x512xbf16, #tpu.memory_space<vmem>>, vector<1x128x512xbf16>
    %398 = vector.shape_cast %397 : vector<1x128x512xbf16> to vector<128x512xbf16>
    %cst_156 = arith.constant dense<0.000000e+00> : vector<8x512xf32>
    %399 = tpu.matmul %396, %398, %cst_156 {dimension_numbers = #tpu.dot_dimension_numbers<[1], [0], [0], [1], [0, 0, 1, 1], [], []>} : vector<8x128xbf16>, vector<128x512xbf16>, vector<8x512xf32> -> vector<8x512xf32>
    %400 = arith.addf %395, %399 : vector<8x512xf32>
    %401 = vector.extract_strided_slice %400 {offsets = [0, 0], sizes = [8, 128], strides = [1, 1]} : vector<8x512xf32> to vector<8x128xf32>
    %402 = arith.negf %401 : vector<8x128xf32>
    %403 = math.exp %402 : vector<8x128xf32>
    %cst_157 = arith.constant 1.000000e+00 : f32
    %404 = vector.broadcast %cst_157 : f32 to vector<8x128xf32>
    %405 = arith.addf %404, %403 : vector<8x128xf32>
    %406 = arith.divf %404, %405 : vector<8x128xf32>
    %407 = vector.extract_strided_slice %400 {offsets = [0, 128], sizes = [8, 128], strides = [1, 1]} : vector<8x512xf32> to vector<8x128xf32>
    %408 = arith.negf %407 : vector<8x128xf32>
    %409 = math.exp %408 : vector<8x128xf32>
    %cst_158 = arith.constant 1.000000e+00 : f32
    %410 = vector.broadcast %cst_158 : f32 to vector<8x128xf32>
    %411 = arith.addf %410, %409 : vector<8x128xf32>
    %412 = arith.divf %410, %411 : vector<8x128xf32>
    %413 = vector.extract_strided_slice %400 {offsets = [0, 256], sizes = [8, 128], strides = [1, 1]} : vector<8x512xf32> to vector<8x128xf32>
    %414 = math.tanh %413 : vector<8x128xf32>
    %415 = vector.extract_strided_slice %400 {offsets = [0, 384], sizes = [8, 128], strides = [1, 1]} : vector<8x512xf32> to vector<8x128xf32>
    %416 = arith.negf %415 : vector<8x128xf32>
    %417 = math.exp %416 : vector<8x128xf32>
    %cst_159 = arith.constant 1.000000e+00 : f32
    %418 = vector.broadcast %cst_159 : f32 to vector<8x128xf32>
    %419 = arith.addf %418, %417 : vector<8x128xf32>
    %420 = arith.divf %418, %419 : vector<8x128xf32>
    %421 = arith.mulf %412, %390 : vector<8x128xf32>
    %422 = arith.mulf %406, %414 : vector<8x128xf32>
    %423 = arith.addf %421, %422 : vector<8x128xf32>
    %424 = math.tanh %423 : vector<8x128xf32>
    %425 = arith.mulf %420, %424 : vector<8x128xf32>
    %426 = arith.truncf %425 : vector<8x128xf32> to vector<8x128xbf16>
    %c24_160 = arith.constant 24 : index
    %c0_161 = arith.constant 0 : index
    %427 = vector.load %arg6[%c24_160, %c0_161] : memref<64x128xbf16, #tpu.memory_space<vmem>>, vector<8x128xbf16>
    tpu.vector_store %arg6[%c24_160, %c0_161], %426 {strides = array<i32>} : memref<64x128xbf16, #tpu.memory_space<vmem>>, vector<8x128xbf16>,
    %c32_162 = arith.constant 32 : index
    %c0_163 = arith.constant 0 : index
    %428 = vector.load %arg11[%c32_162, %c0_163] : memref<64x512xf32, #tpu.memory_space<vmem>>, vector<8x512xf32>
    %429 = arith.truncf %425 : vector<8x128xf32> to vector<8x128xbf16>
    %c1_164 = arith.constant 1 : index
    %c0_165 = arith.constant 0 : index
    %c0_166 = arith.constant 0 : index
    %430 = vector.load %arg4[%c1_164, %c0_165, %c0_166] : memref<2x128x512xbf16, #tpu.memory_space<vmem>>, vector<1x128x512xbf16>
    %431 = vector.shape_cast %430 : vector<1x128x512xbf16> to vector<128x512xbf16>
    %cst_167 = arith.constant dense<0.000000e+00> : vector<8x512xf32>
    %432 = tpu.matmul %429, %431, %cst_167 {dimension_numbers = #tpu.dot_dimension_numbers<[1], [0], [0], [1], [0, 0, 1, 1], [], []>} : vector<8x128xbf16>, vector<128x512xbf16>, vector<8x512xf32> -> vector<8x512xf32>
    %433 = arith.addf %428, %432 : vector<8x512xf32>
    %434 = vector.extract_strided_slice %433 {offsets = [0, 0], sizes = [8, 128], strides = [1, 1]} : vector<8x512xf32> to vector<8x128xf32>
    %435 = arith.negf %434 : vector<8x128xf32>
    %436 = math.exp %435 : vector<8x128xf32>
    %cst_168 = arith.constant 1.000000e+00 : f32
    %437 = vector.broadcast %cst_168 : f32 to vector<8x128xf32>
    %438 = arith.addf %437, %436 : vector<8x128xf32>
    %439 = arith.divf %437, %438 : vector<8x128xf32>
    %440 = vector.extract_strided_slice %433 {offsets = [0, 128], sizes = [8, 128], strides = [1, 1]} : vector<8x512xf32> to vector<8x128xf32>
    %441 = arith.negf %440 : vector<8x128xf32>
    %442 = math.exp %441 : vector<8x128xf32>
    %cst_169 = arith.constant 1.000000e+00 : f32
    %443 = vector.broadcast %cst_169 : f32 to vector<8x128xf32>
    %444 = arith.addf %443, %442 : vector<8x128xf32>
    %445 = arith.divf %443, %444 : vector<8x128xf32>
    %446 = vector.extract_strided_slice %433 {offsets = [0, 256], sizes = [8, 128], strides = [1, 1]} : vector<8x512xf32> to vector<8x128xf32>
    %447 = math.tanh %446 : vector<8x128xf32>
    %448 = vector.extract_strided_slice %433 {offsets = [0, 384], sizes = [8, 128], strides = [1, 1]} : vector<8x512xf32> to vector<8x128xf32>
    %449 = arith.negf %448 : vector<8x128xf32>
    %450 = math.exp %449 : vector<8x128xf32>
    %cst_170 = arith.constant 1.000000e+00 : f32
    %451 = vector.broadcast %cst_170 : f32 to vector<8x128xf32>
    %452 = arith.addf %451, %450 : vector<8x128xf32>
    %453 = arith.divf %451, %452 : vector<8x128xf32>
    %454 = arith.mulf %445, %423 : vector<8x128xf32>
    %455 = arith.mulf %439, %447 : vector<8x128xf32>
    %456 = arith.addf %454, %455 : vector<8x128xf32>
    %457 = math.tanh %456 : vector<8x128xf32>
    %458 = arith.mulf %453, %457 : vector<8x128xf32>
    %459 = arith.truncf %458 : vector<8x128xf32> to vector<8x128xbf16>
    %c32_171 = arith.constant 32 : index
    %c0_172 = arith.constant 0 : index
    %460 = vector.load %arg6[%c32_171, %c0_172] : memref<64x128xbf16, #tpu.memory_space<vmem>>, vector<8x128xbf16>
    tpu.vector_store %arg6[%c32_171, %c0_172], %459 {strides = array<i32>} : memref<64x128xbf16, #tpu.memory_space<vmem>>, vector<8x128xbf16>,
    %c40_173 = arith.constant 40 : index
    %c0_174 = arith.constant 0 : index
    %461 = vector.load %arg11[%c40_173, %c0_174] : memref<64x512xf32, #tpu.memory_space<vmem>>, vector<8x512xf32>
    %462 = arith.truncf %458 : vector<8x128xf32> to vector<8x128xbf16>
    %c1_175 = arith.constant 1 : index
    %c0_176 = arith.constant 0 : index
    %c0_177 = arith.constant 0 : index
    %463 = vector.load %arg4[%c1_175, %c0_176, %c0_177] : memref<2x128x512xbf16, #tpu.memory_space<vmem>>, vector<1x128x512xbf16>
    %464 = vector.shape_cast %463 : vector<1x128x512xbf16> to vector<128x512xbf16>
    %cst_178 = arith.constant dense<0.000000e+00> : vector<8x512xf32>
    %465 = tpu.matmul %462, %464, %cst_178 {dimension_numbers = #tpu.dot_dimension_numbers<[1], [0], [0], [1], [0, 0, 1, 1], [], []>} : vector<8x128xbf16>, vector<128x512xbf16>, vector<8x512xf32> -> vector<8x512xf32>
    %466 = arith.addf %461, %465 : vector<8x512xf32>
    %467 = vector.extract_strided_slice %466 {offsets = [0, 0], sizes = [8, 128], strides = [1, 1]} : vector<8x512xf32> to vector<8x128xf32>
    %468 = arith.negf %467 : vector<8x128xf32>
    %469 = math.exp %468 : vector<8x128xf32>
    %cst_179 = arith.constant 1.000000e+00 : f32
    %470 = vector.broadcast %cst_179 : f32 to vector<8x128xf32>
    %471 = arith.addf %470, %469 : vector<8x128xf32>
    %472 = arith.divf %470, %471 : vector<8x128xf32>
    %473 = vector.extract_strided_slice %466 {offsets = [0, 128], sizes = [8, 128], strides = [1, 1]} : vector<8x512xf32> to vector<8x128xf32>
    %474 = arith.negf %473 : vector<8x128xf32>
    %475 = math.exp %474 : vector<8x128xf32>
    %cst_180 = arith.constant 1.000000e+00 : f32
    %476 = vector.broadcast %cst_180 : f32 to vector<8x128xf32>
    %477 = arith.addf %476, %475 : vector<8x128xf32>
    %478 = arith.divf %476, %477 : vector<8x128xf32>
    %479 = vector.extract_strided_slice %466 {offsets = [0, 256], sizes = [8, 128], strides = [1, 1]} : vector<8x512xf32> to vector<8x128xf32>
    %480 = math.tanh %479 : vector<8x128xf32>
    %481 = vector.extract_strided_slice %466 {offsets = [0, 384], sizes = [8, 128], strides = [1, 1]} : vector<8x512xf32> to vector<8x128xf32>
    %482 = arith.negf %481 : vector<8x128xf32>
    %483 = math.exp %482 : vector<8x128xf32>
    %cst_181 = arith.constant 1.000000e+00 : f32
    %484 = vector.broadcast %cst_181 : f32 to vector<8x128xf32>
    %485 = arith.addf %484, %483 : vector<8x128xf32>
    %486 = arith.divf %484, %485 : vector<8x128xf32>
    %487 = arith.mulf %478, %456 : vector<8x128xf32>
    %488 = arith.mulf %472, %480 : vector<8x128xf32>
    %489 = arith.addf %487, %488 : vector<8x128xf32>
    %490 = math.tanh %489 : vector<8x128xf32>
    %491 = arith.mulf %486, %490 : vector<8x128xf32>
    %492 = arith.truncf %491 : vector<8x128xf32> to vector<8x128xbf16>
    %c40_182 = arith.constant 40 : index
    %c0_183 = arith.constant 0 : index
    %493 = vector.load %arg6[%c40_182, %c0_183] : memref<64x128xbf16, #tpu.memory_space<vmem>>, vector<8x128xbf16>
    tpu.vector_store %arg6[%c40_182, %c0_183], %492 {strides = array<i32>} : memref<64x128xbf16, #tpu.memory_space<vmem>>, vector<8x128xbf16>,
    %c48_184 = arith.constant 48 : index
    %c0_185 = arith.constant 0 : index
    %494 = vector.load %arg11[%c48_184, %c0_185] : memref<64x512xf32, #tpu.memory_space<vmem>>, vector<8x512xf32>
    %495 = arith.truncf %491 : vector<8x128xf32> to vector<8x128xbf16>
    %c1_186 = arith.constant 1 : index
    %c0_187 = arith.constant 0 : index
    %c0_188 = arith.constant 0 : index
    %496 = vector.load %arg4[%c1_186, %c0_187, %c0_188] : memref<2x128x512xbf16, #tpu.memory_space<vmem>>, vector<1x128x512xbf16>
    %497 = vector.shape_cast %496 : vector<1x128x512xbf16> to vector<128x512xbf16>
    %cst_189 = arith.constant dense<0.000000e+00> : vector<8x512xf32>
    %498 = tpu.matmul %495, %497, %cst_189 {dimension_numbers = #tpu.dot_dimension_numbers<[1], [0], [0], [1], [0, 0, 1, 1], [], []>} : vector<8x128xbf16>, vector<128x512xbf16>, vector<8x512xf32> -> vector<8x512xf32>
    %499 = arith.addf %494, %498 : vector<8x512xf32>
    %500 = vector.extract_strided_slice %499 {offsets = [0, 0], sizes = [8, 128], strides = [1, 1]} : vector<8x512xf32> to vector<8x128xf32>
    %501 = arith.negf %500 : vector<8x128xf32>
    %502 = math.exp %501 : vector<8x128xf32>
    %cst_190 = arith.constant 1.000000e+00 : f32
    %503 = vector.broadcast %cst_190 : f32 to vector<8x128xf32>
    %504 = arith.addf %503, %502 : vector<8x128xf32>
    %505 = arith.divf %503, %504 : vector<8x128xf32>
    %506 = vector.extract_strided_slice %499 {offsets = [0, 128], sizes = [8, 128], strides = [1, 1]} : vector<8x512xf32> to vector<8x128xf32>
    %507 = arith.negf %506 : vector<8x128xf32>
    %508 = math.exp %507 : vector<8x128xf32>
    %cst_191 = arith.constant 1.000000e+00 : f32
    %509 = vector.broadcast %cst_191 : f32 to vector<8x128xf32>
    %510 = arith.addf %509, %508 : vector<8x128xf32>
    %511 = arith.divf %509, %510 : vector<8x128xf32>
    %512 = vector.extract_strided_slice %499 {offsets = [0, 256], sizes = [8, 128], strides = [1, 1]} : vector<8x512xf32> to vector<8x128xf32>
    %513 = math.tanh %512 : vector<8x128xf32>
    %514 = vector.extract_strided_slice %499 {offsets = [0, 384], sizes = [8, 128], strides = [1, 1]} : vector<8x512xf32> to vector<8x128xf32>
    %515 = arith.negf %514 : vector<8x128xf32>
    %516 = math.exp %515 : vector<8x128xf32>
    %cst_192 = arith.constant 1.000000e+00 : f32
    %517 = vector.broadcast %cst_192 : f32 to vector<8x128xf32>
    %518 = arith.addf %517, %516 : vector<8x128xf32>
    %519 = arith.divf %517, %518 : vector<8x128xf32>
    %520 = arith.mulf %511, %489 : vector<8x128xf32>
    %521 = arith.mulf %505, %513 : vector<8x128xf32>
    %522 = arith.addf %520, %521 : vector<8x128xf32>
    %523 = math.tanh %522 : vector<8x128xf32>
    %524 = arith.mulf %519, %523 : vector<8x128xf32>
    %525 = arith.truncf %524 : vector<8x128xf32> to vector<8x128xbf16>
    %c48_193 = arith.constant 48 : index
    %c0_194 = arith.constant 0 : index
    %526 = vector.load %arg6[%c48_193, %c0_194] : memref<64x128xbf16, #tpu.memory_space<vmem>>, vector<8x128xbf16>
    tpu.vector_store %arg6[%c48_193, %c0_194], %525 {strides = array<i32>} : memref<64x128xbf16, #tpu.memory_space<vmem>>, vector<8x128xbf16>,
    %c56_195 = arith.constant 56 : index
    %c0_196 = arith.constant 0 : index
    %527 = vector.load %arg11[%c56_195, %c0_196] : memref<64x512xf32, #tpu.memory_space<vmem>>, vector<8x512xf32>
    %528 = arith.truncf %524 : vector<8x128xf32> to vector<8x128xbf16>
    %c1_197 = arith.constant 1 : index
    %c0_198 = arith.constant 0 : index
    %c0_199 = arith.constant 0 : index
    %529 = vector.load %arg4[%c1_197, %c0_198, %c0_199] : memref<2x128x512xbf16, #tpu.memory_space<vmem>>, vector<1x128x512xbf16>
    %530 = vector.shape_cast %529 : vector<1x128x512xbf16> to vector<128x512xbf16>
    %cst_200 = arith.constant dense<0.000000e+00> : vector<8x512xf32>
    %531 = tpu.matmul %528, %530, %cst_200 {dimension_numbers = #tpu.dot_dimension_numbers<[1], [0], [0], [1], [0, 0, 1, 1], [], []>} : vector<8x128xbf16>, vector<128x512xbf16>, vector<8x512xf32> -> vector<8x512xf32>
    %532 = arith.addf %527, %531 : vector<8x512xf32>
    %533 = vector.extract_strided_slice %532 {offsets = [0, 0], sizes = [8, 128], strides = [1, 1]} : vector<8x512xf32> to vector<8x128xf32>
    %534 = arith.negf %533 : vector<8x128xf32>
    %535 = math.exp %534 : vector<8x128xf32>
    %cst_201 = arith.constant 1.000000e+00 : f32
    %536 = vector.broadcast %cst_201 : f32 to vector<8x128xf32>
    %537 = arith.addf %536, %535 : vector<8x128xf32>
    %538 = arith.divf %536, %537 : vector<8x128xf32>
    %539 = vector.extract_strided_slice %532 {offsets = [0, 128], sizes = [8, 128], strides = [1, 1]} : vector<8x512xf32> to vector<8x128xf32>
    %540 = arith.negf %539 : vector<8x128xf32>
    %541 = math.exp %540 : vector<8x128xf32>
    %cst_202 = arith.constant 1.000000e+00 : f32
    %542 = vector.broadcast %cst_202 : f32 to vector<8x128xf32>
    %543 = arith.addf %542, %541 : vector<8x128xf32>
    %544 = arith.divf %542, %543 : vector<8x128xf32>
    %545 = vector.extract_strided_slice %532 {offsets = [0, 256], sizes = [8, 128], strides = [1, 1]} : vector<8x512xf32> to vector<8x128xf32>
    %546 = math.tanh %545 : vector<8x128xf32>
    %547 = vector.extract_strided_slice %532 {offsets = [0, 384], sizes = [8, 128], strides = [1, 1]} : vector<8x512xf32> to vector<8x128xf32>
    %548 = arith.negf %547 : vector<8x128xf32>
    %549 = math.exp %548 : vector<8x128xf32>
    %cst_203 = arith.constant 1.000000e+00 : f32
    %550 = vector.broadcast %cst_203 : f32 to vector<8x128xf32>
    %551 = arith.addf %550, %549 : vector<8x128xf32>
    %552 = arith.divf %550, %551 : vector<8x128xf32>
    %553 = arith.mulf %544, %522 : vector<8x128xf32>
    %554 = arith.mulf %538, %546 : vector<8x128xf32>
    %555 = arith.addf %553, %554 : vector<8x128xf32>
    %556 = math.tanh %555 : vector<8x128xf32>
    %557 = arith.mulf %552, %556 : vector<8x128xf32>
    %558 = arith.truncf %557 : vector<8x128xf32> to vector<8x128xbf16>
    %c56_204 = arith.constant 56 : index
    %c0_205 = arith.constant 0 : index
    %559 = vector.load %arg6[%c56_204, %c0_205] : memref<64x128xbf16, #tpu.memory_space<vmem>>, vector<8x128xbf16>
    tpu.vector_store %arg6[%c56_204, %c0_205], %558 {strides = array<i32>} : memref<64x128xbf16, #tpu.memory_space<vmem>>, vector<8x128xbf16>,
    %c1_206 = arith.constant 1 : index
    %c0_207 = arith.constant 0 : index
    %c0_208 = arith.constant 0 : index
    %560 = vector.load %arg7[%c1_206, %c0_207, %c0_208] : memref<2x8x128xf32, #tpu.memory_space<vmem>>, vector<1x8x128xf32>
    %561 = vector.shape_cast %560 : vector<1x8x128xf32> to vector<8x128xf32>
    %562 = vector.shape_cast %557 : vector<8x128xf32> to vector<1x8x128xf32>
    tpu.vector_store %arg7[%c1_206, %c0_207, %c0_208], %562 {strides = array<i32>} : memref<2x8x128xf32, #tpu.memory_space<vmem>>, vector<1x8x128xf32>,
    %c1_209 = arith.constant 1 : index
    %c0_210 = arith.constant 0 : index
    %c0_211 = arith.constant 0 : index
    %563 = vector.load %arg8[%c1_209, %c0_210, %c0_211] : memref<2x8x128xf32, #tpu.memory_space<vmem>>, vector<1x8x128xf32>
    %564 = vector.shape_cast %563 : vector<1x8x128xf32> to vector<8x128xf32>
    %565 = vector.shape_cast %555 : vector<8x128xf32> to vector<1x8x128xf32>
    tpu.vector_store %arg8[%c1_209, %c0_210, %c0_211], %565 {strides = array<i32>} : memref<2x8x128xf32, #tpu.memory_space<vmem>>, vector<1x8x128xf32>,
    return
  }
}

module attributes {stable_mosaic.version = 11 : i64} {
  func.func @_decoder_kernel(%arg0: i32, %arg1: memref<32x128xbf16, #tpu.memory_space<vmem>>, %arg2: memref<128x128xbf16, #tpu.memory_space<vmem>>, %arg3: memref<1x128xf32, #tpu.memory_space<vmem>>, %arg4: memref<128x640xbf16, #tpu.memory_space<vmem>>, %arg5: memref<5x128xf32, #tpu.memory_space<vmem>>, %arg6: memref<128x256xbf16, #tpu.memory_space<vmem>>, %arg7: memref<1x256xf32, #tpu.memory_space<vmem>>, %arg8: memref<128x256xbf16, #tpu.memory_space<vmem>>, %arg9: memref<256x128xbf16, #tpu.memory_space<vmem>>, %arg10: memref<32x128xf32, #tpu.memory_space<vmem>>, %arg11: memref<32x128xf32, #tpu.memory_space<vmem>>, %arg12: memref<32x256xf32, #tpu.memory_space<vmem>>, %arg13: memref<32x640xf32, #tpu.memory_space<vmem>>, %arg14: memref<160x128xbf16, #tpu.memory_space<vmem>>, %arg15: memref<160x128xbf16, #tpu.memory_space<vmem>>, %arg16: memref<160x256xf32, #tpu.memory_space<vmem>>, %arg17: memref<160x256xf32, #tpu.memory_space<vmem>>, %arg18: memref<32x256xf32, #tpu.memory_space<vmem>>) attributes {dimension_semantics = [#tpu.dimension_semantics<parallel>], iteration_bounds = array<i64: 2>, scalar_prefetch = 0 : i64, scratch_operands = 6 : i64, tpu.core_type = #tpu.core_type<tc>, window_params = [{transform_indices = @transform_0, window_bounds = array<i64: 32, 128>}, {pipeline_mode = #tpu.pipeline_mode<synchronous>, transform_indices = @transform_1, window_bounds = array<i64: 128, 128>}, {pipeline_mode = #tpu.pipeline_mode<synchronous>, transform_indices = @transform_2, window_bounds = array<i64: 1, 128>}, {pipeline_mode = #tpu.pipeline_mode<synchronous>, transform_indices = @transform_3, window_bounds = array<i64: 128, 640>}, {pipeline_mode = #tpu.pipeline_mode<synchronous>, transform_indices = @transform_4, window_bounds = array<i64: 5, 128>}, {pipeline_mode = #tpu.pipeline_mode<synchronous>, transform_indices = @transform_5, window_bounds = array<i64: 128, 256>}, {pipeline_mode = #tpu.pipeline_mode<synchronous>, transform_indices = @transform_6, window_bounds = array<i64: 1, 256>}, {pipeline_mode = #tpu.pipeline_mode<synchronous>, transform_indices = @transform_7, window_bounds = array<i64: 128, 256>}, {pipeline_mode = #tpu.pipeline_mode<synchronous>, transform_indices = @transform_8, window_bounds = array<i64: 256, 128>}, {transform_indices = @transform_9, window_bounds = array<i64: 32, 128>}, {transform_indices = @transform_10, window_bounds = array<i64: 32, 128>}, {transform_indices = @transform_11, window_bounds = array<i64: 32, 256>}]} {
    %c0 = arith.constant 0 : index
    %c0_0 = arith.constant 0 : index
    %0 = vector.load %arg1[%c0, %c0_0] : memref<32x128xbf16, #tpu.memory_space<vmem>>, vector<32x128xbf16>
    %c0_1 = arith.constant 0 : index
    %c0_2 = arith.constant 0 : index
    %1 = vector.load %arg2[%c0_1, %c0_2] : memref<128x128xbf16, #tpu.memory_space<vmem>>, vector<128x128xbf16>
    %cst = arith.constant dense<0.000000e+00> : vector<32x128xf32>
    %2 = tpu.matmul %0, %1, %cst {dimension_numbers = #tpu.dot_dimension_numbers<[1], [0], [0], [1], [0, 0, 1, 1], [], []>} : vector<32x128xbf16>, vector<128x128xbf16>, vector<32x128xf32> -> vector<32x128xf32>
    %c0_3 = arith.constant 0 : index
    %c0_4 = arith.constant 0 : index
    %3 = vector.load %arg3[%c0_3, %c0_4] : memref<1x128xf32, #tpu.memory_space<vmem>>, vector<1x128xf32>
    %4 = vector.broadcast %3 : vector<1x128xf32> to vector<32x128xf32>
    %5 = arith.addf %2, %4 : vector<32x128xf32>
    %6 = arith.negf %5 : vector<32x128xf32>
    %7 = math.exp %6 : vector<32x128xf32>
    %cst_5 = arith.constant 1.000000e+00 : f32
    %8 = vector.broadcast %cst_5 : f32 to vector<32x128xf32>
    %9 = arith.addf %8, %7 : vector<32x128xf32>
    %10 = arith.divf %8, %9 : vector<32x128xf32>
    %c0_6 = arith.constant 0 : index
    %c0_7 = arith.constant 0 : index
    %11 = vector.load %arg11[%c0_6, %c0_7] : memref<32x128xf32, #tpu.memory_space<vmem>>, vector<32x128xf32>
    tpu.vector_store %arg11[%c0_6, %c0_7], %10 {strides = array<i32>} : memref<32x128xf32, #tpu.memory_space<vmem>>, vector<32x128xf32>,
    %c0_8 = arith.constant 0 : index
    %c0_9 = arith.constant 0 : index
    %12 = vector.load %arg5[%c0_8, %c0_9] : memref<5x128xf32, #tpu.memory_space<vmem>>, vector<5x128xf32>
    %cst_10 = arith.constant dense<0xFF800000> : vector<128xf32>
    %13 = vector.multi_reduction <maximumf>, %12, %cst_10 [0] : vector<5x128xf32> to vector<128xf32>
    %14 = vector.shape_cast %13 : vector<128xf32> to vector<1x128xf32>
    %15 = vector.broadcast %14 : vector<1x128xf32> to vector<5x128xf32>
    %16 = arith.subf %12, %15 : vector<5x128xf32>
    %17 = math.exp %16 : vector<5x128xf32>
    %cst_11 = arith.constant dense<0.000000e+00> : vector<128xf32>
    %18 = vector.multi_reduction <add>, %17, %cst_11 [0] : vector<5x128xf32> to vector<128xf32>
    %19 = vector.shape_cast %18 : vector<128xf32> to vector<1x128xf32>
    %20 = tpu.reciprocal %19 {approx = true} : vector<1x128xf32> -> vector<1x128xf32>
    %21 = vector.broadcast %20 : vector<1x128xf32> to vector<5x128xf32>
    %22 = arith.mulf %17, %21 : vector<5x128xf32>
    %c0_12 = arith.constant 0 : index
    %c0_13 = arith.constant 0 : index
    %23 = vector.load %arg4[%c0_12, %c0_13] : memref<128x640xbf16, #tpu.memory_space<vmem>>, vector<128x640xbf16>
    %cst_14 = arith.constant dense<0.000000e+00> : vector<32x640xf32>
    %24 = tpu.matmul %0, %23, %cst_14 {dimension_numbers = #tpu.dot_dimension_numbers<[1], [0], [0], [1], [0, 0, 1, 1], [], []>} : vector<32x128xbf16>, vector<128x640xbf16>, vector<32x640xf32> -> vector<32x640xf32>
    %c0_15 = arith.constant 0 : index
    %c0_16 = arith.constant 0 : index
    %25 = vector.load %arg13[%c0_15, %c0_16] : memref<32x640xf32, #tpu.memory_space<vmem>>, vector<32x640xf32>
    tpu.vector_store %arg13[%c0_15, %c0_16], %24 {strides = array<i32>} : memref<32x640xf32, #tpu.memory_space<vmem>>, vector<32x640xf32>,
    %c0_17 = arith.constant 0 : index
    %c0_18 = arith.constant 0 : index
    %26 = vector.load %arg13[%c0_17, %c0_18] : memref<32x640xf32, #tpu.memory_space<vmem>>, vector<32x128xf32>
    %27 = arith.truncf %26 : vector<32x128xf32> to vector<32x128xbf16>
    %c0_19 = arith.constant 0 : index
    %c0_20 = arith.constant 0 : index
    %28 = vector.load %arg14[%c0_19, %c0_20] : memref<160x128xbf16, #tpu.memory_space<vmem>>, vector<32x128xbf16>
    tpu.vector_store %arg14[%c0_19, %c0_20], %27 {strides = array<i32>} : memref<160x128xbf16, #tpu.memory_space<vmem>>, vector<32x128xbf16>,
    %29 = vector.extract_strided_slice %22 {offsets = [0, 0], sizes = [1, 128], strides = [1, 1]} : vector<5x128xf32> to vector<1x128xf32>
    %30 = vector.broadcast %29 : vector<1x128xf32> to vector<32x128xf32>
    %31 = arith.mulf %10, %30 : vector<32x128xf32>
    %32 = arith.truncf %31 : vector<32x128xf32> to vector<32x128xbf16>
    %c0_21 = arith.constant 0 : index
    %c0_22 = arith.constant 0 : index
    %33 = vector.load %arg15[%c0_21, %c0_22] : memref<160x128xbf16, #tpu.memory_space<vmem>>, vector<32x128xbf16>
    tpu.vector_store %arg15[%c0_21, %c0_22], %32 {strides = array<i32>} : memref<160x128xbf16, #tpu.memory_space<vmem>>, vector<32x128xbf16>,
    %c0_23 = arith.constant 0 : index
    %c128 = arith.constant 128 : index
    %34 = vector.load %arg13[%c0_23, %c128] : memref<32x640xf32, #tpu.memory_space<vmem>>, vector<32x128xf32>
    %35 = arith.truncf %34 : vector<32x128xf32> to vector<32x128xbf16>
    %c32 = arith.constant 32 : index
    %c0_24 = arith.constant 0 : index
    %36 = vector.load %arg14[%c32, %c0_24] : memref<160x128xbf16, #tpu.memory_space<vmem>>, vector<32x128xbf16>
    tpu.vector_store %arg14[%c32, %c0_24], %35 {strides = array<i32>} : memref<160x128xbf16, #tpu.memory_space<vmem>>, vector<32x128xbf16>,
    %37 = vector.extract_strided_slice %22 {offsets = [1, 0], sizes = [1, 128], strides = [1, 1]} : vector<5x128xf32> to vector<1x128xf32>
    %38 = vector.broadcast %37 : vector<1x128xf32> to vector<32x128xf32>
    %39 = arith.mulf %10, %38 : vector<32x128xf32>
    %40 = arith.truncf %39 : vector<32x128xf32> to vector<32x128xbf16>
    %c32_25 = arith.constant 32 : index
    %c0_26 = arith.constant 0 : index
    %41 = vector.load %arg15[%c32_25, %c0_26] : memref<160x128xbf16, #tpu.memory_space<vmem>>, vector<32x128xbf16>
    tpu.vector_store %arg15[%c32_25, %c0_26], %40 {strides = array<i32>} : memref<160x128xbf16, #tpu.memory_space<vmem>>, vector<32x128xbf16>,
    %c0_27 = arith.constant 0 : index
    %c256 = arith.constant 256 : index
    %42 = vector.load %arg13[%c0_27, %c256] : memref<32x640xf32, #tpu.memory_space<vmem>>, vector<32x128xf32>
    %43 = arith.truncf %42 : vector<32x128xf32> to vector<32x128xbf16>
    %c64 = arith.constant 64 : index
    %c0_28 = arith.constant 0 : index
    %44 = vector.load %arg14[%c64, %c0_28] : memref<160x128xbf16, #tpu.memory_space<vmem>>, vector<32x128xbf16>
    tpu.vector_store %arg14[%c64, %c0_28], %43 {strides = array<i32>} : memref<160x128xbf16, #tpu.memory_space<vmem>>, vector<32x128xbf16>,
    %45 = vector.extract_strided_slice %22 {offsets = [2, 0], sizes = [1, 128], strides = [1, 1]} : vector<5x128xf32> to vector<1x128xf32>
    %46 = vector.broadcast %45 : vector<1x128xf32> to vector<32x128xf32>
    %47 = arith.mulf %10, %46 : vector<32x128xf32>
    %48 = arith.truncf %47 : vector<32x128xf32> to vector<32x128xbf16>
    %c64_29 = arith.constant 64 : index
    %c0_30 = arith.constant 0 : index
    %49 = vector.load %arg15[%c64_29, %c0_30] : memref<160x128xbf16, #tpu.memory_space<vmem>>, vector<32x128xbf16>
    tpu.vector_store %arg15[%c64_29, %c0_30], %48 {strides = array<i32>} : memref<160x128xbf16, #tpu.memory_space<vmem>>, vector<32x128xbf16>,
    %c0_31 = arith.constant 0 : index
    %c384 = arith.constant 384 : index
    %50 = vector.load %arg13[%c0_31, %c384] : memref<32x640xf32, #tpu.memory_space<vmem>>, vector<32x128xf32>
    %51 = arith.truncf %50 : vector<32x128xf32> to vector<32x128xbf16>
    %c96 = arith.constant 96 : index
    %c0_32 = arith.constant 0 : index
    %52 = vector.load %arg14[%c96, %c0_32] : memref<160x128xbf16, #tpu.memory_space<vmem>>, vector<32x128xbf16>
    tpu.vector_store %arg14[%c96, %c0_32], %51 {strides = array<i32>} : memref<160x128xbf16, #tpu.memory_space<vmem>>, vector<32x128xbf16>,
    %53 = vector.extract_strided_slice %22 {offsets = [3, 0], sizes = [1, 128], strides = [1, 1]} : vector<5x128xf32> to vector<1x128xf32>
    %54 = vector.broadcast %53 : vector<1x128xf32> to vector<32x128xf32>
    %55 = arith.mulf %10, %54 : vector<32x128xf32>
    %56 = arith.truncf %55 : vector<32x128xf32> to vector<32x128xbf16>
    %c96_33 = arith.constant 96 : index
    %c0_34 = arith.constant 0 : index
    %57 = vector.load %arg15[%c96_33, %c0_34] : memref<160x128xbf16, #tpu.memory_space<vmem>>, vector<32x128xbf16>
    tpu.vector_store %arg15[%c96_33, %c0_34], %56 {strides = array<i32>} : memref<160x128xbf16, #tpu.memory_space<vmem>>, vector<32x128xbf16>,
    %c0_35 = arith.constant 0 : index
    %c512 = arith.constant 512 : index
    %58 = vector.load %arg13[%c0_35, %c512] : memref<32x640xf32, #tpu.memory_space<vmem>>, vector<32x128xf32>
    %59 = arith.truncf %58 : vector<32x128xf32> to vector<32x128xbf16>
    %c128_36 = arith.constant 128 : index
    %c0_37 = arith.constant 0 : index
    %60 = vector.load %arg14[%c128_36, %c0_37] : memref<160x128xbf16, #tpu.memory_space<vmem>>, vector<32x128xbf16>
    tpu.vector_store %arg14[%c128_36, %c0_37], %59 {strides = array<i32>} : memref<160x128xbf16, #tpu.memory_space<vmem>>, vector<32x128xbf16>,
    %61 = vector.extract_strided_slice %22 {offsets = [4, 0], sizes = [1, 128], strides = [1, 1]} : vector<5x128xf32> to vector<1x128xf32>
    %62 = vector.broadcast %61 : vector<1x128xf32> to vector<32x128xf32>
    %63 = arith.mulf %10, %62 : vector<32x128xf32>
    %64 = arith.truncf %63 : vector<32x128xf32> to vector<32x128xbf16>
    %c128_38 = arith.constant 128 : index
    %c0_39 = arith.constant 0 : index
    %65 = vector.load %arg15[%c128_38, %c0_39] : memref<160x128xbf16, #tpu.memory_space<vmem>>, vector<32x128xbf16>
    tpu.vector_store %arg15[%c128_38, %c0_39], %64 {strides = array<i32>} : memref<160x128xbf16, #tpu.memory_space<vmem>>, vector<32x128xbf16>,
    %c0_40 = arith.constant 0 : index
    %c0_41 = arith.constant 0 : index
    %66 = vector.load %arg14[%c0_40, %c0_41] : memref<160x128xbf16, #tpu.memory_space<vmem>>, vector<160x128xbf16>
    %c0_42 = arith.constant 0 : index
    %c0_43 = arith.constant 0 : index
    %67 = vector.load %arg6[%c0_42, %c0_43] : memref<128x256xbf16, #tpu.memory_space<vmem>>, vector<128x256xbf16>
    %cst_44 = arith.constant dense<0.000000e+00> : vector<160x256xf32>
    %68 = tpu.matmul %66, %67, %cst_44 {dimension_numbers = #tpu.dot_dimension_numbers<[1], [0], [0], [1], [0, 0, 1, 1], [], []>} : vector<160x128xbf16>, vector<128x256xbf16>, vector<160x256xf32> -> vector<160x256xf32>
    %c0_45 = arith.constant 0 : index
    %c0_46 = arith.constant 0 : index
    %69 = vector.load %arg16[%c0_45, %c0_46] : memref<160x256xf32, #tpu.memory_space<vmem>>, vector<160x256xf32>
    tpu.vector_store %arg16[%c0_45, %c0_46], %68 {strides = array<i32>} : memref<160x256xf32, #tpu.memory_space<vmem>>, vector<160x256xf32>,
    %c0_47 = arith.constant 0 : index
    %c0_48 = arith.constant 0 : index
    %70 = vector.load %arg15[%c0_47, %c0_48] : memref<160x128xbf16, #tpu.memory_space<vmem>>, vector<160x128xbf16>
    %c0_49 = arith.constant 0 : index
    %c0_50 = arith.constant 0 : index
    %71 = vector.load %arg8[%c0_49, %c0_50] : memref<128x256xbf16, #tpu.memory_space<vmem>>, vector<128x256xbf16>
    %cst_51 = arith.constant dense<0.000000e+00> : vector<160x256xf32>
    %72 = tpu.matmul %70, %71, %cst_51 {dimension_numbers = #tpu.dot_dimension_numbers<[1], [0], [0], [1], [0, 0, 1, 1], [], []>} : vector<160x128xbf16>, vector<128x256xbf16>, vector<160x256xf32> -> vector<160x256xf32>
    %c0_52 = arith.constant 0 : index
    %c0_53 = arith.constant 0 : index
    %73 = vector.load %arg17[%c0_52, %c0_53] : memref<160x256xf32, #tpu.memory_space<vmem>>, vector<160x256xf32>
    tpu.vector_store %arg17[%c0_52, %c0_53], %72 {strides = array<i32>} : memref<160x256xf32, #tpu.memory_space<vmem>>, vector<160x256xf32>,
    %c0_54 = arith.constant 0 : index
    %c0_55 = arith.constant 0 : index
    %74 = vector.load %arg16[%c0_54, %c0_55] : memref<160x256xf32, #tpu.memory_space<vmem>>, vector<32x256xf32>
    %c0_56 = arith.constant 0 : index
    %c0_57 = arith.constant 0 : index
    %75 = vector.load %arg17[%c0_56, %c0_57] : memref<160x256xf32, #tpu.memory_space<vmem>>, vector<32x256xf32>
    %76 = arith.mulf %74, %75 : vector<32x256xf32>
    %c0_58 = arith.constant 0 : index
    %c0_59 = arith.constant 0 : index
    %77 = vector.load %arg7[%c0_58, %c0_59] : memref<1x256xf32, #tpu.memory_space<vmem>>, vector<1x256xf32>
    %78 = vector.broadcast %77 : vector<1x256xf32> to vector<32x256xf32>
    %79 = arith.addf %76, %78 : vector<32x256xf32>
    %c0_60 = arith.constant 0 : index
    %c0_61 = arith.constant 0 : index
    %80 = vector.load %arg18[%c0_60, %c0_61] : memref<32x256xf32, #tpu.memory_space<vmem>>, vector<32x256xf32>
    tpu.vector_store %arg18[%c0_60, %c0_61], %79 {strides = array<i32>} : memref<32x256xf32, #tpu.memory_space<vmem>>, vector<32x256xf32>,
    %c0_62 = arith.constant 0 : index
    %c0_63 = arith.constant 0 : index
    %81 = vector.load %arg18[%c0_62, %c0_63] : memref<32x256xf32, #tpu.memory_space<vmem>>, vector<32x256xf32>
    %c32_64 = arith.constant 32 : index
    %c0_65 = arith.constant 0 : index
    %82 = vector.load %arg16[%c32_64, %c0_65] : memref<160x256xf32, #tpu.memory_space<vmem>>, vector<32x256xf32>
    %c32_66 = arith.constant 32 : index
    %c0_67 = arith.constant 0 : index
    %83 = vector.load %arg17[%c32_66, %c0_67] : memref<160x256xf32, #tpu.memory_space<vmem>>, vector<32x256xf32>
    %84 = arith.mulf %82, %83 : vector<32x256xf32>
    %85 = arith.addf %81, %84 : vector<32x256xf32>
    %c0_68 = arith.constant 0 : index
    %c0_69 = arith.constant 0 : index
    %86 = vector.load %arg18[%c0_68, %c0_69] : memref<32x256xf32, #tpu.memory_space<vmem>>, vector<32x256xf32>
    tpu.vector_store %arg18[%c0_68, %c0_69], %85 {strides = array<i32>} : memref<32x256xf32, #tpu.memory_space<vmem>>, vector<32x256xf32>,
    %c0_70 = arith.constant 0 : index
    %c0_71 = arith.constant 0 : index
    %87 = vector.load %arg18[%c0_70, %c0_71] : memref<32x256xf32, #tpu.memory_space<vmem>>, vector<32x256xf32>
    %c64_72 = arith.constant 64 : index
    %c0_73 = arith.constant 0 : index
    %88 = vector.load %arg16[%c64_72, %c0_73] : memref<160x256xf32, #tpu.memory_space<vmem>>, vector<32x256xf32>
    %c64_74 = arith.constant 64 : index
    %c0_75 = arith.constant 0 : index
    %89 = vector.load %arg17[%c64_74, %c0_75] : memref<160x256xf32, #tpu.memory_space<vmem>>, vector<32x256xf32>
    %90 = arith.mulf %88, %89 : vector<32x256xf32>
    %91 = arith.addf %87, %90 : vector<32x256xf32>
    %c0_76 = arith.constant 0 : index
    %c0_77 = arith.constant 0 : index
    %92 = vector.load %arg18[%c0_76, %c0_77] : memref<32x256xf32, #tpu.memory_space<vmem>>, vector<32x256xf32>
    tpu.vector_store %arg18[%c0_76, %c0_77], %91 {strides = array<i32>} : memref<32x256xf32, #tpu.memory_space<vmem>>, vector<32x256xf32>,
    %c0_78 = arith.constant 0 : index
    %c0_79 = arith.constant 0 : index
    %93 = vector.load %arg18[%c0_78, %c0_79] : memref<32x256xf32, #tpu.memory_space<vmem>>, vector<32x256xf32>
    %c96_80 = arith.constant 96 : index
    %c0_81 = arith.constant 0 : index
    %94 = vector.load %arg16[%c96_80, %c0_81] : memref<160x256xf32, #tpu.memory_space<vmem>>, vector<32x256xf32>
    %c96_82 = arith.constant 96 : index
    %c0_83 = arith.constant 0 : index
    %95 = vector.load %arg17[%c96_82, %c0_83] : memref<160x256xf32, #tpu.memory_space<vmem>>, vector<32x256xf32>
    %96 = arith.mulf %94, %95 : vector<32x256xf32>
    %97 = arith.addf %93, %96 : vector<32x256xf32>
    %c0_84 = arith.constant 0 : index
    %c0_85 = arith.constant 0 : index
    %98 = vector.load %arg18[%c0_84, %c0_85] : memref<32x256xf32, #tpu.memory_space<vmem>>, vector<32x256xf32>
    tpu.vector_store %arg18[%c0_84, %c0_85], %97 {strides = array<i32>} : memref<32x256xf32, #tpu.memory_space<vmem>>, vector<32x256xf32>,
    %c0_86 = arith.constant 0 : index
    %c0_87 = arith.constant 0 : index
    %99 = vector.load %arg18[%c0_86, %c0_87] : memref<32x256xf32, #tpu.memory_space<vmem>>, vector<32x256xf32>
    %c128_88 = arith.constant 128 : index
    %c0_89 = arith.constant 0 : index
    %100 = vector.load %arg16[%c128_88, %c0_89] : memref<160x256xf32, #tpu.memory_space<vmem>>, vector<32x256xf32>
    %c128_90 = arith.constant 128 : index
    %c0_91 = arith.constant 0 : index
    %101 = vector.load %arg17[%c128_90, %c0_91] : memref<160x256xf32, #tpu.memory_space<vmem>>, vector<32x256xf32>
    %102 = arith.mulf %100, %101 : vector<32x256xf32>
    %103 = arith.addf %99, %102 : vector<32x256xf32>
    %c0_92 = arith.constant 0 : index
    %c0_93 = arith.constant 0 : index
    %104 = vector.load %arg18[%c0_92, %c0_93] : memref<32x256xf32, #tpu.memory_space<vmem>>, vector<32x256xf32>
    tpu.vector_store %arg18[%c0_92, %c0_93], %103 {strides = array<i32>} : memref<32x256xf32, #tpu.memory_space<vmem>>, vector<32x256xf32>,
    %c0_94 = arith.constant 0 : index
    %c0_95 = arith.constant 0 : index
    %105 = vector.load %arg18[%c0_94, %c0_95] : memref<32x256xf32, #tpu.memory_space<vmem>>, vector<32x256xf32>
    %cst_96 = arith.constant dense<0xFF800000> : vector<32xf32>
    %106 = vector.multi_reduction <maximumf>, %105, %cst_96 [1] : vector<32x256xf32> to vector<32xf32>
    %107 = vector.shape_cast %106 : vector<32xf32> to vector<32x1xf32>
    %108 = vector.broadcast %107 : vector<32x1xf32> to vector<32x256xf32>
    %109 = arith.subf %105, %108 : vector<32x256xf32>
    %110 = math.exp %109 : vector<32x256xf32>
    %cst_97 = arith.constant dense<0.000000e+00> : vector<32xf32>
    %111 = vector.multi_reduction <add>, %110, %cst_97 [1] : vector<32x256xf32> to vector<32xf32>
    %112 = vector.shape_cast %111 : vector<32xf32> to vector<32x1xf32>
    %113 = tpu.reciprocal %112 {approx = true} : vector<32x1xf32> -> vector<32x1xf32>
    %114 = vector.broadcast %113 : vector<32x1xf32> to vector<32x256xf32>
    %115 = arith.mulf %110, %114 : vector<32x256xf32>
    %c0_98 = arith.constant 0 : index
    %c0_99 = arith.constant 0 : index
    %116 = vector.load %arg12[%c0_98, %c0_99] : memref<32x256xf32, #tpu.memory_space<vmem>>, vector<32x256xf32>
    tpu.vector_store %arg12[%c0_98, %c0_99], %115 {strides = array<i32>} : memref<32x256xf32, #tpu.memory_space<vmem>>, vector<32x256xf32>,
    %117 = arith.truncf %115 : vector<32x256xf32> to vector<32x256xbf16>
    %c0_100 = arith.constant 0 : index
    %c0_101 = arith.constant 0 : index
    %118 = vector.load %arg9[%c0_100, %c0_101] : memref<256x128xbf16, #tpu.memory_space<vmem>>, vector<256x128xbf16>
    %cst_102 = arith.constant dense<0.000000e+00> : vector<32x128xf32>
    %119 = tpu.matmul %117, %118, %cst_102 {dimension_numbers = #tpu.dot_dimension_numbers<[1], [0], [0], [1], [0, 0, 1, 1], [], []>} : vector<32x256xbf16>, vector<256x128xbf16>, vector<32x128xf32> -> vector<32x128xf32>
    %c0_103 = arith.constant 0 : index
    %c0_104 = arith.constant 0 : index
    %120 = vector.load %arg10[%c0_103, %c0_104] : memref<32x128xf32, #tpu.memory_space<vmem>>, vector<32x128xf32>
    tpu.vector_store %arg10[%c0_103, %c0_104], %119 {strides = array<i32>} : memref<32x128xf32, #tpu.memory_space<vmem>>, vector<32x128xf32>,
    return
  }
  func.func @transform_0(%arg0: i32) -> (i32, i32) {
    %c0_i32 = arith.constant 0 : i32
    %c0_i32_0 = arith.constant 0 : i32
    return %arg0, %c0_i32 : i32, i32
  }
  func.func @transform_1(%arg0: i32) -> (i32, i32) {
    %c0_i32 = arith.constant 0 : i32
    %c0_i32_0 = arith.constant 0 : i32
    %c0_i32_1 = arith.constant 0 : i32
    return %c0_i32, %c0_i32_0 : i32, i32
  }
  func.func @transform_2(%arg0: i32) -> (i32, i32) {
    %c0_i32 = arith.constant 0 : i32
    %c0_i32_0 = arith.constant 0 : i32
    %c0_i32_1 = arith.constant 0 : i32
    return %c0_i32, %c0_i32_0 : i32, i32
  }
  func.func @transform_3(%arg0: i32) -> (i32, i32) {
    %c0_i32 = arith.constant 0 : i32
    %c0_i32_0 = arith.constant 0 : i32
    %c0_i32_1 = arith.constant 0 : i32
    return %c0_i32, %c0_i32_0 : i32, i32
  }
  func.func @transform_4(%arg0: i32) -> (i32, i32) {
    %c0_i32 = arith.constant 0 : i32
    %c0_i32_0 = arith.constant 0 : i32
    %c0_i32_1 = arith.constant 0 : i32
    return %c0_i32, %c0_i32_0 : i32, i32
  }
  func.func @transform_5(%arg0: i32) -> (i32, i32) {
    %c0_i32 = arith.constant 0 : i32
    %c0_i32_0 = arith.constant 0 : i32
    %c0_i32_1 = arith.constant 0 : i32
    return %c0_i32, %c0_i32_0 : i32, i32
  }
  func.func @transform_6(%arg0: i32) -> (i32, i32) {
    %c0_i32 = arith.constant 0 : i32
    %c0_i32_0 = arith.constant 0 : i32
    %c0_i32_1 = arith.constant 0 : i32
    return %c0_i32, %c0_i32_0 : i32, i32
  }
  func.func @transform_7(%arg0: i32) -> (i32, i32) {
    %c0_i32 = arith.constant 0 : i32
    %c0_i32_0 = arith.constant 0 : i32
    %c0_i32_1 = arith.constant 0 : i32
    return %c0_i32, %c0_i32_0 : i32, i32
  }
  func.func @transform_8(%arg0: i32) -> (i32, i32) {
    %c0_i32 = arith.constant 0 : i32
    %c0_i32_0 = arith.constant 0 : i32
    %c0_i32_1 = arith.constant 0 : i32
    return %c0_i32, %c0_i32_0 : i32, i32
  }
  func.func @transform_9(%arg0: i32) -> (i32, i32) {
    %c0_i32 = arith.constant 0 : i32
    %c0_i32_0 = arith.constant 0 : i32
    return %arg0, %c0_i32 : i32, i32
  }
  func.func @transform_10(%arg0: i32) -> (i32, i32) {
    %c0_i32 = arith.constant 0 : i32
    %c0_i32_0 = arith.constant 0 : i32
    return %arg0, %c0_i32 : i32, i32
  }
  func.func @transform_11(%arg0: i32) -> (i32, i32) {
    %c0_i32 = arith.constant 0 : i32
    %c0_i32_0 = arith.constant 0 : i32
    return %arg0, %c0_i32 : i32, i32
  }
}

</mosaic_0001>

<llo_original>
// kernel: rnn_model_forward.3
$region0: #{rnn_model_forward.3}
  #allocation0 [shape = 'u32[]', space=smem, size = 0x4, offset = 0x4, fixed_abs, tag = 'smem constant byte address 0x4 - core index']
  #allocation1 [shape = 'u32[144,128]{1,0:T(1,128)}', space=vmem, size = 0x12000, scoped, tag = 'internal scratch']
  #allocation2 [shape = 'f32[32,640]{1,0:T(8,128)}', space=vmem, size = 0x14000, scoped, tag = 'scratch operand']
  #allocation3 [shape = 'bf16[160,128]{1,0:T(16,128)(2,1)}', space=vmem, size = 0xa000, scoped, tag = 'scratch operand']
  #allocation4 [shape = 'bf16[160,128]{1,0:T(16,128)(2,1)}', space=vmem, size = 0xa000, scoped, tag = 'scratch operand']
  #allocation5 [shape = 'f32[160,256]{1,0:T(8,128)}', space=vmem, size = 0x28000, scoped, tag = 'scratch operand']
  #allocation6 [shape = 'f32[160,256]{1,0:T(8,128)}', space=vmem, size = 0x28000, scoped, tag = 'scratch operand']
  #allocation7 [shape = 'f32[32,256]{1,0:T(8,128)}', space=vmem, size = 0x8000, scoped, tag = 'scratch operand']
  %s0 = inlined_call_operand.vmem [shape: bf16[64,128], index: 0, kind: input, shape index: {}]
  %s1 = inlined_call_operand.vmem [shape: bf16[128,128], index: 1, kind: input, shape index: {}]
  %s2 = inlined_call_operand.vmem [shape: f32[1,128], index: 2, kind: input, shape index: {}]
  %s3 = inlined_call_operand.vmem [shape: bf16[128,640], index: 3, kind: input, shape index: {}]
  %s4 = inlined_call_operand.vmem [shape: f32[5,128], index: 4, kind: input, shape index: {}]
  %s5 = inlined_call_operand.vmem [shape: bf16[128,256], index: 5, kind: input, shape index: {}]
  %s6 = inlined_call_operand.vmem [shape: f32[1,256], index: 6, kind: input, shape index: {}]
  %s7 = inlined_call_operand.vmem [shape: bf16[128,256], index: 7, kind: input, shape index: {}]
  %s8 = inlined_call_operand.vmem [shape: bf16[256,128], index: 8, kind: input, shape index: {}]
  %s9 = inlined_call_operand.vmem [shape: f32[64,128], index: 9, kind: output, shape index: {0}]
  %s10 = inlined_call_operand.vmem [shape: f32[64,128], index: 10, kind: output, shape index: {1}]
  %s11 = inlined_call_operand.vmem [shape: f32[64,256], index: 11, kind: output, shape index: {2}]
  %12 = xla_tuple %s9, %s10, %s11
  %s13 = sld [smem:[#allocation0]]
  $region85: #{rnn_model_forward.3} parent=0
    _
  %s15 = ssub.s32 1, %s13
  %s16 = scalar_select 0, %s15, %s13
  loop: start=0, step=1, limit=4
  $region2: #{rnn_model_forward.3} parent=0 // loop_pre_header
    _
  $region3: #{rnn_model_forward.3} parent=0 // loop_header
    %s18 = sphi 0, %s22
    %p19 = scmp.ge.s32.totalorder %s18, 4
    %s28 = sphi 0, %s30
    %s31 = sphi 0, %s28
    %s32 = sphi 0, %s31
    %s48 = sphi 0, %s32
    %s52 = sphi 0, %s52
    %s54 = sphi 0, %s52
    %s55 = sphi 0, %s54
    %s69 = sphi 0, %s55
    %s73 = sphi 0, %s73
    %s75 = sphi 0, %s73
    %s76 = sphi 0, %s75
    %s90 = sphi 0, %s76
    %s94 = sphi 0, %s94
    %s96 = sphi 0, %s94
    %s97 = sphi 0, %s96
    %s111 = sphi 0, %s97
    %s115 = sphi 0, %s115
    %s117 = sphi 0, %s115
    %s118 = sphi 0, %s117
    %s132 = sphi 0, %s118
    %s136 = sphi 0, %s136
    %s138 = sphi 0, %s136
    %s139 = sphi 0, %s138
    %s153 = sphi 0, %s139
    %s157 = sphi 0, %s157
    %s159 = sphi 0, %s157
    %s160 = sphi 0, %s159
    %s174 = sphi 0, %s160
    %s178 = sphi 0, %s178
    %s180 = sphi 0, %s178
    %s181 = sphi 0, %s180
    %s195 = sphi 0, %s181
    %s199 = sphi 0, %s199
    %s201 = sphi 0, %s199
    %s202 = sphi 0, %s201
    %s216 = sphi 0, %s202
    %s222 = sphi 0, %s224
    %s225 = sphi 0, %s222
    %s226 = sphi 0, %s225
    %s242 = sphi 0, %s226
    %s248 = sphi 0, %s250
    %s251 = sphi 0, %s248
    %s252 = sphi 0, %s251
    %s268 = sphi 0, %s252
    %s274 = sphi 0, %s276
    %s277 = sphi 0, %s274
    %s278 = sphi 0, %s277
    %s294 = sphi 0, %s278
  $region4: #{rnn_model_forward.3} parent=0 // loop_header_branch
    %21 = sbr.rel (%p19) target = $region8
  $region5: #{rnn_model_forward.3} parent=0 // loop_body
    %s23 = ssub.s32 %s18, 1
    %s24 = ssub.s32 %s18, 2
    %s25 = sadd.s32 %s18, 1
    %s26 = ssub.s32 %s18, %s25
    %p27 = scmp.eq.s32.totalorder %s26, 0
    %s29 = sadd.s32 %s28, 1
    %s30 = scalar_select %p27, %s28, %s29
    %p33 = pneg %p27
    %p34 = scmp.eq.s32.totalorder %s18, 1
    %p35 = por %p33, %p34
    %p36 = scmp.ne.s32.totalorder %s28, %s31
    %p37 = scmp.eq.s32.totalorder %s18, 0
    %p38 = por %p36, %p37
    %p39 = scmp.ne.s32.totalorder %s28, %s31
    %p40 = scmp.eq.s32.totalorder %s23, 1
    %p41 = por %p39, %p40
    %p42 = scmp.ne.s32.totalorder %s31, %s32
    %p43 = scmp.eq.s32.totalorder %s23, 0
    %p44 = por %p42, %p43
    %p45 = scmp.ne.s32.totalorder %s31, %s32
    %p46 = scmp.eq.s32.totalorder %s24, 1
    %p47 = por %p45, %p46
    %p49 = scmp.ne.s32.totalorder %s32, %s48
    %p50 = scmp.eq.s32.totalorder %s24, 0
    %p51 = por %p49, %p50
    %s53 = sadd.s32 %s52, 1
    %p56 = scmp.eq.s32.totalorder %s18, 1
    %p57 = scmp.ne.s32.totalorder %s52, %s54
    %p58 = scmp.eq.s32.totalorder %s18, 0
    %p59 = por %p57, %p58
    %p60 = scmp.ne.s32.totalorder %s52, %s54
    %p61 = scmp.eq.s32.totalorder %s23, 1
    %p62 = por %p60, %p61
    %p63 = scmp.ne.s32.totalorder %s54, %s55
    %p64 = scmp.eq.s32.totalorder %s23, 0
    %p65 = por %p63, %p64
    %p66 = scmp.ne.s32.totalorder %s54, %s55
    %p67 = scmp.eq.s32.totalorder %s24, 1
    %p68 = por %p66, %p67
    %p70 = scmp.ne.s32.totalorder %s55, %s69
    %p71 = scmp.eq.s32.totalorder %s24, 0
    %p72 = por %p70, %p71
    %s74 = sadd.s32 %s73, 1
    %p77 = scmp.eq.s32.totalorder %s18, 1
    %p78 = scmp.ne.s32.totalorder %s73, %s75
    %p79 = scmp.eq.s32.totalorder %s18, 0
    %p80 = por %p78, %p79
    %p81 = scmp.ne.s32.totalorder %s73, %s75
    %p82 = scmp.eq.s32.totalorder %s23, 1
    %p83 = por %p81, %p82
    %p84 = scmp.ne.s32.totalorder %s75, %s76
    %p85 = scmp.eq.s32.totalorder %s23, 0
    %p86 = por %p84, %p85
    %p87 = scmp.ne.s32.totalorder %s75, %s76
    %p88 = scmp.eq.s32.totalorder %s24, 1
    %p89 = por %p87, %p88
    %p91 = scmp.ne.s32.totalorder %s76, %s90
    %p92 = scmp.eq.s32.totalorder %s24, 0
    %p93 = por %p91, %p92
    %s95 = sadd.s32 %s94, 1
    %p98 = scmp.eq.s32.totalorder %s18, 1
    %p99 = scmp.ne.s32.totalorder %s94, %s96
    %p100 = scmp.eq.s32.totalorder %s18, 0
    %p101 = por %p99, %p100
    %p102 = scmp.ne.s32.totalorder %s94, %s96
    %p103 = scmp.eq.s32.totalorder %s23, 1
    %p104 = por %p102, %p103
    %p105 = scmp.ne.s32.totalorder %s96, %s97
    %p106 = scmp.eq.s32.totalorder %s23, 0
    %p107 = por %p105, %p106
    %p108 = scmp.ne.s32.totalorder %s96, %s97
    %p109 = scmp.eq.s32.totalorder %s24, 1
    %p110 = por %p108, %p109
    %p112 = scmp.ne.s32.totalorder %s97, %s111
    %p113 = scmp.eq.s32.totalorder %s24, 0
    %p114 = por %p112, %p113
    %s116 = sadd.s32 %s115, 1
    %p119 = scmp.eq.s32.totalorder %s18, 1
    %p120 = scmp.ne.s32.totalorder %s115, %s117
    %p121 = scmp.eq.s32.totalorder %s18, 0
    %p122 = por %p120, %p121
    %p123 = scmp.ne.s32.totalorder %s115, %s117
    %p124 = scmp.eq.s32.totalorder %s23, 1
    %p125 = por %p123, %p124
    %p126 = scmp.ne.s32.totalorder %s117, %s118
    %p127 = scmp.eq.s32.totalorder %s23, 0
    %p128 = por %p126, %p127
    %p129 = scmp.ne.s32.totalorder %s117, %s118
    %p130 = scmp.eq.s32.totalorder %s24, 1
    %p131 = por %p129, %p130
    %p133 = scmp.ne.s32.totalorder %s118, %s132
    %p134 = scmp.eq.s32.totalorder %s24, 0
    %p135 = por %p133, %p134
    %s137 = sadd.s32 %s136, 1
    %p140 = scmp.eq.s32.totalorder %s18, 1
    %p141 = scmp.ne.s32.totalorder %s136, %s138
    %p142 = scmp.eq.s32.totalorder %s18, 0
    %p143 = por %p141, %p142
    %p144 = scmp.ne.s32.totalorder %s136, %s138
    %p145 = scmp.eq.s32.totalorder %s23, 1
    %p146 = por %p144, %p145
    %p147 = scmp.ne.s32.totalorder %s138, %s139
    %p148 = scmp.eq.s32.totalorder %s23, 0
    %p149 = por %p147, %p148
    %p150 = scmp.ne.s32.totalorder %s138, %s139
    %p151 = scmp.eq.s32.totalorder %s24, 1
    %p152 = por %p150, %p151
    %p154 = scmp.ne.s32.totalorder %s139, %s153
    %p155 = scmp.eq.s32.totalorder %s24, 0
    %p156 = por %p154, %p155
    %s158 = sadd.s32 %s157, 1
    %p161 = scmp.eq.s32.totalorder %s18, 1
    %p162 = scmp.ne.s32.totalorder %s157, %s159
    %p163 = scmp.eq.s32.totalorder %s18, 0
    %p164 = por %p162, %p163
    %p165 = scmp.ne.s32.totalorder %s157, %s159
    %p166 = scmp.eq.s32.totalorder %s23, 1
    %p167 = por %p165, %p166
    %p168 = scmp.ne.s32.totalorder %s159, %s160
    %p169 = scmp.eq.s32.totalorder %s23, 0
    %p170 = por %p168, %p169
    %p171 = scmp.ne.s32.totalorder %s159, %s160
    %p172 = scmp.eq.s32.totalorder %s24, 1
    %p173 = por %p171, %p172
    %p175 = scmp.ne.s32.totalorder %s160, %s174
    %p176 = scmp.eq.s32.totalorder %s24, 0
    %p177 = por %p175, %p176
    %s179 = sadd.s32 %s178, 1
    %p182 = scmp.eq.s32.totalorder %s18, 1
    %p183 = scmp.ne.s32.totalorder %s178, %s180
    %p184 = scmp.eq.s32.totalorder %s18, 0
    %p185 = por %p183, %p184
    %p186 = scmp.ne.s32.totalorder %s178, %s180
    %p187 = scmp.eq.s32.totalorder %s23, 1
    %p188 = por %p186, %p187
    %p189 = scmp.ne.s32.totalorder %s180, %s181
    %p190 = scmp.eq.s32.totalorder %s23, 0
    %p191 = por %p189, %p190
    %p192 = scmp.ne.s32.totalorder %s180, %s181
    %p193 = scmp.eq.s32.totalorder %s24, 1
    %p194 = por %p192, %p193
    %p196 = scmp.ne.s32.totalorder %s181, %s195
    %p197 = scmp.eq.s32.totalorder %s24, 0
    %p198 = por %p196, %p197
    %s200 = sadd.s32 %s199, 1
    %p203 = scmp.eq.s32.totalorder %s18, 1
    %p204 = scmp.ne.s32.totalorder %s199, %s201
    %p205 = scmp.eq.s32.totalorder %s18, 0
    %p206 = por %p204, %p205
    %p207 = scmp.ne.s32.totalorder %s199, %s201
    %p208 = scmp.eq.s32.totalorder %s23, 1
    %p209 = por %p207, %p208
    %p210 = scmp.ne.s32.totalorder %s201, %s202
    %p211 = scmp.eq.s32.totalorder %s23, 0
    %p212 = por %p210, %p211
    %p213 = scmp.ne.s32.totalorder %s201, %s202
    %p214 = scmp.eq.s32.totalorder %s24, 1
    %p215 = por %p213, %p214
    %p217 = scmp.ne.s32.totalorder %s202, %s216
    %p218 = scmp.eq.s32.totalorder %s24, 0
    %p219 = por %p217, %p218
    %s220 = ssub.s32 %s18, %s25
    %p221 = scmp.eq.s32.totalorder %s220, 0
    %s223 = sadd.s32 %s222, 1
    %s224 = scalar_select %p221, %s222, %s223
    %p227 = pneg %p221
    %p228 = scmp.eq.s32.totalorder %s18, 1
    %p229 = por %p227, %p228
    %p230 = scmp.ne.s32.totalorder %s222, %s225
    %p231 = scmp.eq.s32.totalorder %s18, 0
    %p232 = por %p230, %p231
    %p233 = scmp.ne.s32.totalorder %s222, %s225
    %p234 = scmp.eq.s32.totalorder %s23, 1
    %p235 = por %p233, %p234
    %p236 = scmp.ne.s32.totalorder %s225, %s226
    %p237 = scmp.eq.s32.totalorder %s23, 0
    %p238 = por %p236, %p237
    %p239 = scmp.ne.s32.totalorder %s225, %s226
    %p240 = scmp.eq.s32.totalorder %s24, 1
    %p241 = por %p239, %p240
    %p243 = scmp.ne.s32.totalorder %s226, %s242
    %p244 = scmp.eq.s32.totalorder %s24, 0
    %p245 = por %p243, %p244
    %s246 = ssub.s32 %s18, %s25
    %p247 = scmp.eq.s32.totalorder %s246, 0
    %s249 = sadd.s32 %s248, 1
    %s250 = scalar_select %p247, %s248, %s249
    %p253 = pneg %p247
    %p254 = scmp.eq.s32.totalorder %s18, 1
    %p255 = por %p253, %p254
    %p256 = scmp.ne.s32.totalorder %s248, %s251
    %p257 = scmp.eq.s32.totalorder %s18, 0
    %p258 = por %p256, %p257
    %p259 = scmp.ne.s32.totalorder %s248, %s251
    %p260 = scmp.eq.s32.totalorder %s23, 1
    %p261 = por %p259, %p260
    %p262 = scmp.ne.s32.totalorder %s251, %s252
    %p263 = scmp.eq.s32.totalorder %s23, 0
    %p264 = por %p262, %p263
    %p265 = scmp.ne.s32.totalorder %s251, %s252
    %p266 = scmp.eq.s32.totalorder %s24, 1
    %p267 = por %p265, %p266
    %p269 = scmp.ne.s32.totalorder %s252, %s268
    %p270 = scmp.eq.s32.totalorder %s24, 0
    %p271 = por %p269, %p270
    %s272 = ssub.s32 %s18, %s25
    %p273 = scmp.eq.s32.totalorder %s272, 0
    %s275 = sadd.s32 %s274, 1
    %s276 = scalar_select %p273, %s274, %s275
    %p279 = pneg %p273
    %p280 = scmp.eq.s32.totalorder %s18, 1
    %p281 = por %p279, %p280
    %p282 = scmp.ne.s32.totalorder %s274, %s277
    %p283 = scmp.eq.s32.totalorder %s18, 0
    %p284 = por %p282, %p283
    %p285 = scmp.ne.s32.totalorder %s274, %s277
    %p286 = scmp.eq.s32.totalorder %s23, 1
    %p287 = por %p285, %p286
    %p288 = scmp.ne.s32.totalorder %s277, %s278
    %p289 = scmp.eq.s32.totalorder %s23, 0
    %p290 = por %p288, %p289
    %p291 = scmp.ne.s32.totalorder %s277, %s278
    %p292 = scmp.eq.s32.totalorder %s24, 1
    %p293 = por %p291, %p292
    %p295 = scmp.ne.s32.totalorder %s278, %s294
    %p296 = scmp.eq.s32.totalorder %s24, 0
    %p297 = por %p295, %p296
    %p298 = scmp.le.s32.totalorder 1, %s18
    %p299 = scmp.lt.s32.totalorder %s18, 3
    %p300 = pnand %p298, %p299
    %p301 = pneg %p300
    // Predicated region
    $region9: #{rnn_model_forward.3} parent=5 // pred_check
      _
    $region10: #{rnn_model_forward.3} parent=5 // pred_check_branch
      %303 = sbr.rel (%p300) target = $region12
    $region11: #{rnn_model_forward.3} parent=5 // pred_region
      %s304 = ssub.s32 %s18, 1
      // Predicated region
      $region13: #{rnn_model_forward.3} parent=11 // pred_check
        %p305 = pneg %p65
      $region14: #{rnn_model_forward.3} parent=11 // pred_check_branch
        %307 = sbr.rel (%p305) target = $region16
      $region15: #{rnn_model_forward.3} parent=11 // pred_region
        _
      $region16: #{rnn_model_forward.3} parent=11 // pred_fallthru
        _
      // Predicated region
      $region17: #{rnn_model_forward.3} parent=11 // pred_check
        %p308 = pneg %p86
      $region18: #{rnn_model_forward.3} parent=11 // pred_check_branch
        %310 = sbr.rel (%p308) target = $region20
      $region19: #{rnn_model_forward.3} parent=11 // pred_region
        _
      $region20: #{rnn_model_forward.3} parent=11 // pred_fallthru
        _
      // Predicated region
      $region21: #{rnn_model_forward.3} parent=11 // pred_check
        %p311 = pneg %p107
      $region22: #{rnn_model_forward.3} parent=11 // pred_check_branch
        %313 = sbr.rel (%p311) target = $region24
      $region23: #{rnn_model_forward.3} parent=11 // pred_region
        _
      $region24: #{rnn_model_forward.3} parent=11 // pred_fallthru
        _
      // Predicated region
      $region25: #{rnn_model_forward.3} parent=11 // pred_check
        %p314 = pneg %p128
      $region26: #{rnn_model_forward.3} parent=11 // pred_check_branch
        %316 = sbr.rel (%p314) target = $region28
      $region27: #{rnn_model_forward.3} parent=11 // pred_region
        _
      $region28: #{rnn_model_forward.3} parent=11 // pred_fallthru
        _
      // Predicated region
      $region29: #{rnn_model_forward.3} parent=11 // pred_check
        %p317 = pneg %p149
      $region30: #{rnn_model_forward.3} parent=11 // pred_check_branch
        %319 = sbr.rel (%p317) target = $region32
      $region31: #{rnn_model_forward.3} parent=11 // pred_region
        _
      $region32: #{rnn_model_forward.3} parent=11 // pred_fallthru
        _
      // Predicated region
      $region33: #{rnn_model_forward.3} parent=11 // pred_check
        %p320 = pneg %p170
      $region34: #{rnn_model_forward.3} parent=11 // pred_check_branch
        %322 = sbr.rel (%p320) target = $region36
      $region35: #{rnn_model_forward.3} parent=11 // pred_region
        _
      $region36: #{rnn_model_forward.3} parent=11 // pred_fallthru
        _
      // Predicated region
      $region37: #{rnn_model_forward.3} parent=11 // pred_check
        %p323 = pneg %p191
      $region38: #{rnn_model_forward.3} parent=11 // pred_check_branch
        %325 = sbr.rel (%p323) target = $region40
      $region39: #{rnn_model_forward.3} parent=11 // pred_region
        _
      $region40: #{rnn_model_forward.3} parent=11 // pred_fallthru
        _
      // Predicated region
      $region41: #{rnn_model_forward.3} parent=11 // pred_check
        %p326 = pneg %p212
      $region42: #{rnn_model_forward.3} parent=11 // pred_check_branch
        %328 = sbr.rel (%p326) target = $region44
      $region43: #{rnn_model_forward.3} parent=11 // pred_region
        _
      $region44: #{rnn_model_forward.3} parent=11 // pred_fallthru
        _
    $region12: #{rnn_model_forward.3} parent=5 // pred_fallthru
      _
    %p329 = scmp.lt.s32.totalorder %s18, 2
    // Predicated region
    $region45: #{rnn_model_forward.3} parent=5 // pred_check
      %p330 = pneg %p329
    $region46: #{rnn_model_forward.3} parent=5 // pred_check_branch
      %332 = sbr.rel (%p330) target = $region48
    $region47: #{rnn_model_forward.3} parent=5 // pred_region
      // Predicated region
      $region49: #{rnn_model_forward.3} parent=47 // pred_check
        %p333 = pneg %p38
      $region50: #{rnn_model_forward.3} parent=47 // pred_check_branch
        %335 = sbr.rel (%p333) target = $region52
      $region51: #{rnn_model_forward.3} parent=47 // pred_region
        %s336 = smul.u32 4, %s18
        %p337 = scmp.lt.s32.totalorder %s336, 7
        %s338 = scalar_select %p337, %s336, 7
        %s339 = smul.addr %s338, 4
        %s340 = scalar_lea.vmem %s0, %s339
        %s341 = smul.u32 4, %s18
      $region52: #{rnn_model_forward.3} parent=47 // pred_fallthru
        _
    $region48: #{rnn_model_forward.3} parent=5 // pred_fallthru
      _
    %p342 = scmp.le.s32.totalorder 1, %s18
    %p343 = scmp.lt.s32.totalorder %s18, 3
    %p344 = pnand %p342, %p343
    %p345 = pneg %p344
    // Predicated region
    $region53: #{rnn_model_forward.3} parent=5 // pred_check
      _
    $region54: #{rnn_model_forward.3} parent=5 // pred_check_branch
      %347 = sbr.rel (%p344) target = $region56
    $region55: #{rnn_model_forward.3} parent=5 // pred_region
      %s348 = ssub.s32 %s18, 1
      %s349 = smul.u32 4, %s23
      %p350 = scmp.lt.s32.totalorder %s349, 7
      %s351 = scalar_select %p350, %s349, 7
      %s352 = smul.addr %s351, 4
      %s353 = scalar_lea.vmem %s0, %s352
      %p354 = pneg %p44
      %p355 = pneg %p41
      %p356 = pneg %p65
      %p357 = pneg %p62
      %p358 = pneg %p86
      %p359 = pneg %p83
      %p360 = pneg %p107
      %p361 = pneg %p104
      %p362 = pneg %p128
      %p363 = pneg %p125
      %p364 = pneg %p149
      %p365 = pneg %p146
      %p366 = pneg %p170
      %p367 = pneg %p167
      %p368 = pneg %p191
      %p369 = pneg %p188
      %p370 = pneg %p212
      %p371 = pneg %p209
      %p372 = pneg %p238
      %p373 = pneg %p235
      %s374 = smul.u32 4, %s23
      %p375 = scmp.lt.s32.totalorder %s374, 7
      %s376 = scalar_select %p375, %s374, 7
      %s377 = smul.addr %s376, 8
      %s378 = scalar_lea.vmem %s9, %s377
      %p379 = pneg %p264
      %p380 = pneg %p261
      %s381 = smul.u32 4, %s23
      %p382 = scmp.lt.s32.totalorder %s381, 7
      %s383 = scalar_select %p382, %s381, 7
      %s384 = smul.addr %s383, 8
      %s385 = scalar_lea.vmem %s10, %s384
      %p386 = pneg %p290
      %p387 = pneg %p287
      %s388 = smul.u32 4, %s23
      %p389 = scmp.lt.s32.totalorder %s388, 7
      %s390 = scalar_select %p389, %s388, 7
      %s391 = smul.addr %s390, 2
      %s392 = smul.addr %s391, 8
      %s393 = scalar_lea.vmem %s11, %s392
      %s394 = smul.u32 4, %s23
      %p395 = scmp.lt.s32.totalorder %s394, 7
      %s396 = scalar_select %p395, %s394, 7
      %s397 = smul.addr %s396, 4
      %s398 = scalar_lea.vmem %s0, %s397
      %s399 = smul.u32 4, %s23
      %s400 = smul.u32 4, %s23
      %p401 = scmp.lt.s32.totalorder %s400, 7
      %s402 = scalar_select %p401, %s400, 7
      %s403 = smul.addr %s402, 8
      %s404 = scalar_lea.vmem %s9, %s403
      %s405 = smul.u32 4, %s23
      %s406 = smul.u32 4, %s23
      %p407 = scmp.lt.s32.totalorder %s406, 7
      %s408 = scalar_select %p407, %s406, 7
      %s409 = smul.addr %s408, 8
      %s410 = scalar_lea.vmem %s10, %s409
      %s411 = smul.u32 4, %s23
      %s412 = smul.u32 4, %s23
      %p413 = scmp.lt.s32.totalorder %s412, 7
      %s414 = scalar_select %p413, %s412, 7
      %s415 = smul.addr %s414, 2
      %s416 = smul.addr %s415, 8
      %s417 = scalar_lea.vmem %s11, %s416
      %s418 = smul.u32 4, %s23
      %v420 = vld [vmem:[%s398] sm:$0xf]
      %v421 = vld [vmem:[%s398 + $0x4] sm:$0xf]
      %v422 = vld [vmem:[%s398 + $0x8] sm:$0xf]
      %v423 = vld [vmem:[%s398 + $0xc] sm:$0xf]
      %v424 = vld [vmem:[%s1] sm:$0xf]
      %v425 = vld [vmem:[%s1 + $0x4] sm:$0xf]
      %v426 = vld [vmem:[%s1 + $0x8] sm:$0xf]
      %v427 = vld [vmem:[%s1 + $0xc] sm:$0xf]
      %v428 = vld [vmem:[%s1 + $0x10] sm:$0xf]
      %v429 = vld [vmem:[%s1 + $0x14] sm:$0xf]
      %v430 = vld [vmem:[%s1 + $0x18] sm:$0xf]
      %v431 = vld [vmem:[%s1 + $0x1c] sm:$0xf]
      %v432 = vld [vmem:[%s1 + $0x20] sm:$0xf]
      %v433 = vld [vmem:[%s1 + $0x24] sm:$0xf]
      %v434 = vld [vmem:[%s1 + $0x28] sm:$0xf]
      %v435 = vld [vmem:[%s1 + $0x2c] sm:$0xf]
      %v436 = vld [vmem:[%s1 + $0x30] sm:$0xf]
      %v437 = vld [vmem:[%s1 + $0x34] sm:$0xf]
      %v438 = vld [vmem:[%s1 + $0x38] sm:$0xf]
      %v439 = vld [vmem:[%s1 + $0x3c] sm:$0xf]
      %v440 = vld [vmem:[%s2] sm:$0x1]
      %v442 = vlaneseq
      %v443 = vshrl.u32 %v442, 7
      %v444 = vsub.s32 0, %v443
      %v445 = vrot.slane %v440, %v444
      %v451 = vunpack.c.l.b16 %v420
      %v452 = vunpack.c.l.b16 %v421
      %v453 = vunpack.c.l.b16 %v422
      %v454 = vunpack.c.l.b16 %v423
      %v455 = vpack.c.b16 %v452, %v451
      %v456 = vpack.c.b16 %v454, %v453
      %v475 = vunpack.c.l.b16 %v424
      %v476 = vunpack.c.l.b16 %v425
      %v477 = vunpack.c.l.b16 %v426
      %v478 = vunpack.c.l.b16 %v427
      %v479 = vunpack.c.l.b16 %v428
      %v480 = vunpack.c.l.b16 %v429
      %v481 = vunpack.c.l.b16 %v430
      %v482 = vunpack.c.l.b16 %v431
      %v483 = vunpack.c.l.b16 %v432
      %v484 = vunpack.c.l.b16 %v433
      %v485 = vunpack.c.l.b16 %v434
      %v486 = vunpack.c.l.b16 %v435
      %v487 = vunpack.c.l.b16 %v436
      %v488 = vunpack.c.l.b16 %v437
      %v489 = vunpack.c.l.b16 %v438
      %v490 = vunpack.c.l.b16 %v439
      %v491 = vpack.c.b16 %v476, %v475
      %v492 = vpack.c.b16 %v478, %v477
      %v493 = vpack.c.b16 %v480, %v479
      %v494 = vpack.c.b16 %v482, %v481
      %v495 = vpack.c.b16 %v484, %v483
      %v496 = vpack.c.b16 %v486, %v485
      %v497 = vpack.c.b16 %v488, %v487
      %v498 = vpack.c.b16 %v490, %v489
      %507 = vmatprep.subr.bf16.mxu0 0
      %508 = vmatpush1.bf16.msra.mxu0 %v491
      %509 = vmatprep.subr.bf16.mxu0 0
      %510 = vmatpush1.bf16.msra.mxu0 %v492
      %511 = vmatprep.subr.bf16.mxu0 0
      %512 = vmatpush1.bf16.msra.mxu0 %v493
      %513 = vmatprep.subr.bf16.mxu0 0
      %514 = vmatpush1.bf16.msra.mxu0 %v494
      %515 = vmatprep.subr.bf16.mxu0 0
      %516 = vmatpush1.bf16.msra.mxu0 %v495
      %517 = vmatprep.subr.bf16.mxu0 0
      %518 = vmatpush1.bf16.msra.mxu0 %v496
      %519 = vmatprep.subr.bf16.mxu0 0
      %520 = vmatpush1.bf16.msra.mxu0 %v497
      %521 = vmatprep.subr.bf16.mxu0 0
      %522 = vmatpush1.bf16.msra.mxu0 %v498
      %523 = vmatprep.subr.bf16.mxu0 0
      %524 = vmatpush1.bf16.msra.mxu0 0
      %525 = vmatprep.subr.bf16.mxu0 0
      %526 = vmatpush1.bf16.msra.mxu0 0
      %527 = vmatprep.subr.bf16.mxu0 0
      %528 = vmatpush1.bf16.msra.mxu0 0
      %529 = vmatprep.subr.bf16.mxu0 0
      %530 = vmatpush1.bf16.msra.mxu0 0
      %531 = vmatprep.subr.bf16.mxu0 0
      %532 = vmatpush1.bf16.msra.mxu0 0
      %533 = vmatprep.subr.bf16.mxu0 0
      %534 = vmatpush1.bf16.msra.mxu0 0
      %535 = vmatprep.subr.bf16.mxu0 0
      %536 = vmatpush1.bf16.msra.mxu0 0
      %537 = vmatprep.subr.bf16.mxu0 0
      %538 = vmatpush1.bf16.msra.mxu0 0
      %539 = vmatprep.mubr.bf16.mxu0 0
      %540 = vmatmul.mubr.bf16.gmra.mrb[0].mxu0 %v455
      %v541 = vpop.f32.mrb[0].mxu0
      %v542 = vadd.f32 %v445, %v541
      %v543 = vpop.f32.mrb[0].mxu0
      %v544 = vpop.f32.mrb[0].mxu0
      %v545 = vadd.f32 %v445, %v544
      %v546 = vpop.f32.mrb[0].mxu0
      %547 = vmatprep.mubr.bf16.mxu0 0
      %548 = vmatmul.mubr.bf16.gmra.mrb[0].mxu0 %v456
      %v549 = vpop.f32.mrb[0].mxu0
      %v550 = vadd.f32 %v445, %v549
      %v551 = vpop.f32.mrb[0].mxu0
      %v552 = vpop.f32.mrb[0].mxu0
      %v553 = vadd.f32 %v445, %v552
      %v554 = vpop.f32.mrb[0].mxu0
      %555 = vdwg.mxu0
      %v556 = vxor.u32 %v542, 2147483648
      %v557 = vxor.u32 %v545, 2147483648
      %v558 = vxor.u32 %v550, 2147483648
      %v559 = vxor.u32 %v553, 2147483648
      %v560 = vmul.f32 %v556, 1.442695
      %v561 = vpow.pop %v560
      %v562 = vmul.f32 %v557, 1.442695
      %v563 = vpow.pop %v562
      %v564 = vmul.f32 %v558, 1.442695
      %v565 = vpow.pop %v564
      %v566 = vmul.f32 %v559, 1.442695
      %v567 = vpow.pop %v566
      %v568 = vadd.f32 %v561, 1.0
      %v569 = vadd.f32 %v563, 1.0
      %v570 = vadd.f32 %v565, 1.0
      %v571 = vadd.f32 %v567, 1.0
      %v572 = vrcp.pop %v568
      %v573 = vmul.f32 1.0, %v572
      %v574 = vrcp.pop %v569
      %v575 = vmul.f32 1.0, %v574
      %v576 = vrcp.pop %v570
      %v577 = vmul.f32 1.0, %v576
      %v578 = vrcp.pop %v571
      %v579 = vmul.f32 1.0, %v578
      %580 = vst [vmem:[%s410] sm:$0xff] %v573
      %581 = vst [vmem:[%s410 + $0x8] sm:$0xff] %v575
      %582 = vst [vmem:[%s410 + $0x10] sm:$0xff] %v577
      %583 = vst [vmem:[%s410 + $0x18] sm:$0xff] %v579
      %v584 = vld [vmem:[%s4] sm:$0x1f]
      %vm585 = vcmask 1044480
      %v586 = vsel %vm585, %v584, -inf
      %v587 = vrot.slane %v586, 4
      %v588 = vmax.f32 %v586, %v587
      %v589 = vrot.slane %v588, 2
      %v590 = vmax.f32 %v588, %v589
      %v591 = vrot.slane %v590, 1
      %v592 = vmax.f32 %v590, %v591
      %v593 = vsub.f32 %v584, %v592
      %v594 = vmul.f32 %v593, 1.442695
      %v595 = vpow.pop %v594
      %v596 = vsel %vm585, %v595, 0.0
      %v597 = vrot.slane %v596, 4
      %v598 = vadd.f32 %v596, %v597
      %v599 = vrot.slane %v598, 2
      %v600 = vadd.f32 %v598, %v599
      %v601 = vrot.slane %v600, 1
      %v602 = vadd.f32 %v600, %v601
      %v603 = vrcp.pop %v602
      %v604 = vmul.f32 %v595, %v603
      %v605 = vld [vmem:[%s3] sm:$0xff]
      %v606 = vld [vmem:[%s3 + $0x8] sm:$0xff]
      %v607 = vld [vmem:[%s3 + $0x10] sm:$0xf]
      %v608 = vld [vmem:[%s3 + $0x14] sm:$0xff]
      %v609 = vld [vmem:[%s3 + $0x1c] sm:$0xff]
      %v610 = vld [vmem:[%s3 + $0x24] sm:$0xf]
      %v611 = vld [vmem:[%s3 + $0x28] sm:$0xff]
      %v612 = vld [vmem:[%s3 + $0x30] sm:$0xff]
      %v613 = vld [vmem:[%s3 + $0x38] sm:$0xf]
      %v614 = vld [vmem:[%s3 + $0x3c] sm:$0xff]
      %v615 = vld [vmem:[%s3 + $0x44] sm:$0xff]
      %v616 = vld [vmem:[%s3 + $0x4c] sm:$0xf]
      %v617 = vld [vmem:[%s3 + $0x50] sm:$0xff]
      %v618 = vld [vmem:[%s3 + $0x58] sm:$0xff]
      %v619 = vld [vmem:[%s3 + $0x60] sm:$0xf]
      %v620 = vld [vmem:[%s3 + $0x64] sm:$0xff]
      %v621 = vld [vmem:[%s3 + $0x6c] sm:$0xff]
      %v622 = vld [vmem:[%s3 + $0x74] sm:$0xf]
      %v623 = vld [vmem:[%s3 + $0x78] sm:$0xff]
      %v624 = vld [vmem:[%s3 + $0x80] sm:$0xff]
      %v625 = vld [vmem:[%s3 + $0x88] sm:$0xf]
      %v626 = vld [vmem:[%s3 + $0x8c] sm:$0xff]
      %v627 = vld [vmem:[%s3 + $0x94] sm:$0xff]
      %v628 = vld [vmem:[%s3 + $0x9c] sm:$0xf]
      %v629 = vld [vmem:[%s3 + $0xa0] sm:$0xff]
      %v630 = vld [vmem:[%s3 + $0xa8] sm:$0xff]
      %v631 = vld [vmem:[%s3 + $0xb0] sm:$0xf]
      %v632 = vld [vmem:[%s3 + $0xb4] sm:$0xff]
      %v633 = vld [vmem:[%s3 + $0xbc] sm:$0xff]
      %v634 = vld [vmem:[%s3 + $0xc4] sm:$0xf]
      %v635 = vld [vmem:[%s3 + $0xc8] sm:$0xff]
      %v636 = vld [vmem:[%s3 + $0xd0] sm:$0xff]
      %v637 = vld [vmem:[%s3 + $0xd8] sm:$0xf]
      %v638 = vld [vmem:[%s3 + $0xdc] sm:$0xff]
      %v639 = vld [vmem:[%s3 + $0xe4] sm:$0xff]
      %v640 = vld [vmem:[%s3 + $0xec] sm:$0xf]
      %v641 = vld [vmem:[%s3 + $0xf0] sm:$0xff]
      %v642 = vld [vmem:[%s3 + $0xf8] sm:$0xff]
      %v643 = vld [vmem:[%s3 + $0x100] sm:$0xf]
      %v644 = vld [vmem:[%s3 + $0x104] sm:$0xff]
      %v645 = vld [vmem:[%s3 + $0x10c] sm:$0xff]
      %v646 = vld [vmem:[%s3 + $0x114] sm:$0xf]
      %v647 = vld [vmem:[%s3 + $0x118] sm:$0xff]
      %v648 = vld [vmem:[%s3 + $0x120] sm:$0xff]
      %v649 = vld [vmem:[%s3 + $0x128] sm:$0xf]
      %v650 = vld [vmem:[%s3 + $0x12c] sm:$0xff]
      %v651 = vld [vmem:[%s3 + $0x134] sm:$0xff]
      %v652 = vld [vmem:[%s3 + $0x13c] sm:$0xf]
      %v701 = vunpack.c.l.b16 %v605
      %v702 = vunpack.c.h.b16 %v605
      %v703 = vunpack.c.l.b16 %v606
      %v704 = vunpack.c.h.b16 %v606
      %v705 = vunpack.c.l.b16 %v607
      %v706 = vunpack.c.l.b16 %v608
      %v707 = vunpack.c.h.b16 %v608
      %v708 = vunpack.c.l.b16 %v609
      %v709 = vunpack.c.h.b16 %v609
      %v710 = vunpack.c.l.b16 %v610
      %v711 = vunpack.c.l.b16 %v611
      %v712 = vunpack.c.h.b16 %v611
      %v713 = vunpack.c.l.b16 %v612
      %v714 = vunpack.c.h.b16 %v612
      %v715 = vunpack.c.l.b16 %v613
      %v716 = vunpack.c.l.b16 %v614
      %v717 = vunpack.c.h.b16 %v614
      %v718 = vunpack.c.l.b16 %v615
      %v719 = vunpack.c.h.b16 %v615
      %v720 = vunpack.c.l.b16 %v616
      %v721 = vunpack.c.l.b16 %v617
      %v722 = vunpack.c.h.b16 %v617
      %v723 = vunpack.c.l.b16 %v618
      %v724 = vunpack.c.h.b16 %v618
      %v725 = vunpack.c.l.b16 %v619
      %v726 = vunpack.c.l.b16 %v620
      %v727 = vunpack.c.h.b16 %v620
      %v728 = vunpack.c.l.b16 %v621
      %v729 = vunpack.c.h.b16 %v621
      %v730 = vunpack.c.l.b16 %v622
      %v731 = vunpack.c.l.b16 %v623
      %v732 = vunpack.c.h.b16 %v623
      %v733 = vunpack.c.l.b16 %v624
      %v734 = vunpack.c.h.b16 %v624
      %v735 = vunpack.c.l.b16 %v625
      %v736 = vunpack.c.l.b16 %v626
      %v737 = vunpack.c.h.b16 %v626
      %v738 = vunpack.c.l.b16 %v627
      %v739 = vunpack.c.h.b16 %v627
      %v740 = vunpack.c.l.b16 %v628
      %v741 = vunpack.c.l.b16 %v629
      %v742 = vunpack.c.h.b16 %v629
      %v743 = vunpack.c.l.b16 %v630
      %v744 = vunpack.c.h.b16 %v630
      %v745 = vunpack.c.l.b16 %v631
      %v746 = vunpack.c.l.b16 %v632
      %v747 = vunpack.c.h.b16 %v632
      %v748 = vunpack.c.l.b16 %v633
      %v749 = vunpack.c.h.b16 %v633
      %v750 = vunpack.c.l.b16 %v634
      %v751 = vunpack.c.l.b16 %v635
      %v752 = vunpack.c.h.b16 %v635
      %v753 = vunpack.c.l.b16 %v636
      %v754 = vunpack.c.h.b16 %v636
      %v755 = vunpack.c.l.b16 %v637
      %v756 = vunpack.c.l.b16 %v638
      %v757 = vunpack.c.h.b16 %v638
      %v758 = vunpack.c.l.b16 %v639
      %v759 = vunpack.c.h.b16 %v639
      %v760 = vunpack.c.l.b16 %v640
      %v761 = vunpack.c.l.b16 %v641
      %v762 = vunpack.c.h.b16 %v641
      %v763 = vunpack.c.l.b16 %v642
      %v764 = vunpack.c.h.b16 %v642
      %v765 = vunpack.c.l.b16 %v643
      %v766 = vunpack.c.l.b16 %v644
      %v767 = vunpack.c.h.b16 %v644
      %v768 = vunpack.c.l.b16 %v645
      %v769 = vunpack.c.h.b16 %v645
      %v770 = vunpack.c.l.b16 %v646
      %v771 = vunpack.c.l.b16 %v647
      %v772 = vunpack.c.h.b16 %v647
      %v773 = vunpack.c.l.b16 %v648
      %v774 = vunpack.c.h.b16 %v648
      %v775 = vunpack.c.l.b16 %v649
      %v776 = vunpack.c.l.b16 %v650
      %v777 = vunpack.c.h.b16 %v650
      %v778 = vunpack.c.l.b16 %v651
      %v779 = vunpack.c.h.b16 %v651
      %v780 = vunpack.c.l.b16 %v652
      %v781 = vpack.c.b16 %v706, %v701
      %v782 = vpack.c.b16 %v707, %v702
      %v783 = vpack.c.b16 %v708, %v703
      %v784 = vpack.c.b16 %v709, %v704
      %v785 = vpack.c.b16 %v710, %v705
      %v786 = vpack.c.b16 %v716, %v711
      %v787 = vpack.c.b16 %v717, %v712
      %v788 = vpack.c.b16 %v718, %v713
      %v789 = vpack.c.b16 %v719, %v714
      %v790 = vpack.c.b16 %v720, %v715
      %v791 = vpack.c.b16 %v726, %v721
      %v792 = vpack.c.b16 %v727, %v722
      %v793 = vpack.c.b16 %v728, %v723
      %v794 = vpack.c.b16 %v729, %v724
      %v795 = vpack.c.b16 %v730, %v725
      %v796 = vpack.c.b16 %v736, %v731
      %v797 = vpack.c.b16 %v737, %v732
      %v798 = vpack.c.b16 %v738, %v733
      %v799 = vpack.c.b16 %v739, %v734
      %v800 = vpack.c.b16 %v740, %v735
      %v801 = vpack.c.b16 %v746, %v741
      %v802 = vpack.c.b16 %v747, %v742
      %v803 = vpack.c.b16 %v748, %v743
      %v804 = vpack.c.b16 %v749, %v744
      %v805 = vpack.c.b16 %v750, %v745
      %v806 = vpack.c.b16 %v756, %v751
      %v807 = vpack.c.b16 %v757, %v752
      %v808 = vpack.c.b16 %v758, %v753
      %v809 = vpack.c.b16 %v759, %v754
      %v810 = vpack.c.b16 %v760, %v755
      %v811 = vpack.c.b16 %v766, %v761
      %v812 = vpack.c.b16 %v767, %v762
      %v813 = vpack.c.b16 %v768, %v763
      %v814 = vpack.c.b16 %v769, %v764
      %v815 = vpack.c.b16 %v770, %v765
      %v816 = vpack.c.b16 %v776, %v771
      %v817 = vpack.c.b16 %v777, %v772
      %v818 = vpack.c.b16 %v778, %v773
      %v819 = vpack.c.b16 %v779, %v774
      %v820 = vpack.c.b16 %v780, %v775
      %861 = vmatprep.subr.bf16.mxu0 %v782
      %862 = vmatpush1.bf16.msra.mxu0 %v781
      %863 = vmatprep.subr.bf16.mxu0 %v787
      %864 = vmatpush1.bf16.msra.mxu0 %v786
      %865 = vmatprep.subr.bf16.mxu0 %v792
      %866 = vmatpush1.bf16.msra.mxu0 %v791
      %867 = vmatprep.subr.bf16.mxu0 %v797
      %868 = vmatpush1.bf16.msra.mxu0 %v796
      %869 = vmatprep.subr.bf16.mxu0 %v802
      %870 = vmatpush1.bf16.msra.mxu0 %v801
      %871 = vmatprep.subr.bf16.mxu0 %v807
      %872 = vmatpush1.bf16.msra.mxu0 %v806
      %873 = vmatprep.subr.bf16.mxu0 %v812
      %874 = vmatpush1.bf16.msra.mxu0 %v811
      %875 = vmatprep.subr.bf16.mxu0 %v817
      %876 = vmatpush1.bf16.msra.mxu0 %v816
      %877 = vmatprep.subr.bf16.mxu0 0
      %878 = vmatpush1.bf16.msra.mxu0 0
      %879 = vmatprep.subr.bf16.mxu0 0
      %880 = vmatpush1.bf16.msra.mxu0 0
      %881 = vmatprep.subr.bf16.mxu0 0
      %882 = vmatpush1.bf16.msra.mxu0 0
      %883 = vmatprep.subr.bf16.mxu0 0
      %884 = vmatpush1.bf16.msra.mxu0 0
      %885 = vmatprep.subr.bf16.mxu0 0
      %886 = vmatpush1.bf16.msra.mxu0 0
      %887 = vmatprep.subr.bf16.mxu0 0
      %888 = vmatpush1.bf16.msra.mxu0 0
      %889 = vmatprep.subr.bf16.mxu0 0
      %890 = vmatpush1.bf16.msra.mxu0 0
      %891 = vmatprep.subr.bf16.mxu0 0
      %892 = vmatpush1.bf16.msra.mxu0 0
      %893 = vmatprep.mubr.bf16.mxu0 0
      %894 = vmatmul.mubr.bf16.gmra.mrb[0].mxu0 %v455
      %v895 = vpop.f32.mrb[0].mxu0
      %v896 = vadd.f32 0.0, %v895
      %v897 = vpop.f32.mrb[0].mxu0
      %v898 = vadd.f32 0.0, %v897
      %v899 = vpop.f32.mrb[0].mxu0
      %v900 = vadd.f32 0.0, %v899
      %v901 = vpop.f32.mrb[0].mxu0
      %v902 = vadd.f32 0.0, %v901
      %903 = vmatprep.mubr.bf16.mxu0 0
      %904 = vmatmul.mubr.bf16.gmra.mrb[0].mxu0 %v456
      %v905 = vpop.f32.mrb[0].mxu0
      %v906 = vadd.f32 0.0, %v905
      %v907 = vpop.f32.mrb[0].mxu0
      %v908 = vadd.f32 0.0, %v907
      %v909 = vpop.f32.mrb[0].mxu0
      %v910 = vadd.f32 0.0, %v909
      %v911 = vpop.f32.mrb[0].mxu0
      %v912 = vadd.f32 0.0, %v911
      %913 = vdwg.mxu0
      %914 = vmatprep.subr.bf16.mxu0 %v784
      %915 = vmatpush1.bf16.msra.mxu0 %v783
      %916 = vmatprep.subr.bf16.mxu0 %v789
      %917 = vmatpush1.bf16.msra.mxu0 %v788
      %918 = vmatprep.subr.bf16.mxu0 %v794
      %919 = vmatpush1.bf16.msra.mxu0 %v793
      %920 = vmatprep.subr.bf16.mxu0 %v799
      %921 = vmatpush1.bf16.msra.mxu0 %v798
      %922 = vmatprep.subr.bf16.mxu0 %v804
      %923 = vmatpush1.bf16.msra.mxu0 %v803
      %924 = vmatprep.subr.bf16.mxu0 %v809
      %925 = vmatpush1.bf16.msra.mxu0 %v808
      %926 = vmatprep.subr.bf16.mxu0 %v814
      %927 = vmatpush1.bf16.msra.mxu0 %v813
      %928 = vmatprep.subr.bf16.mxu0 %v819
      %929 = vmatpush1.bf16.msra.mxu0 %v818
      %930 = vmatprep.subr.bf16.mxu0 0
      %931 = vmatpush1.bf16.msra.mxu0 0
      %932 = vmatprep.subr.bf16.mxu0 0
      %933 = vmatpush1.bf16.msra.mxu0 0
      %934 = vmatprep.subr.bf16.mxu0 0
      %935 = vmatpush1.bf16.msra.mxu0 0
      %936 = vmatprep.subr.bf16.mxu0 0
      %937 = vmatpush1.bf16.msra.mxu0 0
      %938 = vmatprep.subr.bf16.mxu0 0
      %939 = vmatpush1.bf16.msra.mxu0 0
      %940 = vmatprep.subr.bf16.mxu0 0
      %941 = vmatpush1.bf16.msra.mxu0 0
      %942 = vmatprep.subr.bf16.mxu0 0
      %943 = vmatpush1.bf16.msra.mxu0 0
      %944 = vmatprep.subr.bf16.mxu0 0
      %945 = vmatpush1.bf16.msra.mxu0 0
      %946 = vmatprep.mubr.bf16.mxu0 0
      %947 = vmatmul.mubr.bf16.gmra.mrb[0].mxu0 %v455
      %v948 = vpop.f32.mrb[0].mxu0
      %v949 = vadd.f32 0.0, %v948
      %v950 = vpop.f32.mrb[0].mxu0
      %v951 = vadd.f32 0.0, %v950
      %v952 = vpop.f32.mrb[0].mxu0
      %v953 = vadd.f32 0.0, %v952
      %v954 = vpop.f32.mrb[0].mxu0
      %v955 = vadd.f32 0.0, %v954
      %956 = vmatprep.mubr.bf16.mxu0 0
      %957 = vmatmul.mubr.bf16.gmra.mrb[0].mxu0 %v456
      %v958 = vpop.f32.mrb[0].mxu0
      %v959 = vadd.f32 0.0, %v958
      %v960 = vpop.f32.mrb[0].mxu0
      %v961 = vadd.f32 0.0, %v960
      %v962 = vpop.f32.mrb[0].mxu0
      %v963 = vadd.f32 0.0, %v962
      %v964 = vpop.f32.mrb[0].mxu0
      %v965 = vadd.f32 0.0, %v964
      %966 = vdwg.mxu0
      %967 = vmatprep.subr.bf16.mxu0 0
      %968 = vmatpush1.bf16.msra.mxu0 %v785
      %969 = vmatprep.subr.bf16.mxu0 0
      %970 = vmatpush1.bf16.msra.mxu0 %v790
      %971 = vmatprep.subr.bf16.mxu0 0
      %972 = vmatpush1.bf16.msra.mxu0 %v795
      %973 = vmatprep.subr.bf16.mxu0 0
      %974 = vmatpush1.bf16.msra.mxu0 %v800
      %975 = vmatprep.subr.bf16.mxu0 0
      %976 = vmatpush1.bf16.msra.mxu0 %v805
      %977 = vmatprep.subr.bf16.mxu0 0
      %978 = vmatpush1.bf16.msra.mxu0 %v810
      %979 = vmatprep.subr.bf16.mxu0 0
      %980 = vmatpush1.bf16.msra.mxu0 %v815
      %981 = vmatprep.subr.bf16.mxu0 0
      %982 = vmatpush1.bf16.msra.mxu0 %v820
      %983 = vmatprep.subr.bf16.mxu0 0
      %984 = vmatpush1.bf16.msra.mxu0 0
      %985 = vmatprep.subr.bf16.mxu0 0
      %986 = vmatpush1.bf16.msra.mxu0 0
      %987 = vmatprep.subr.bf16.mxu0 0
      %988 = vmatpush1.bf16.msra.mxu0 0
      %989 = vmatprep.subr.bf16.mxu0 0
      %990 = vmatpush1.bf16.msra.mxu0 0
      %991 = vmatprep.subr.bf16.mxu0 0
      %992 = vmatpush1.bf16.msra.mxu0 0
      %993 = vmatprep.subr.bf16.mxu0 0
      %994 = vmatpush1.bf16.msra.mxu0 0
      %995 = vmatprep.subr.bf16.mxu0 0
      %996 = vmatpush1.bf16.msra.mxu0 0
      %997 = vmatprep.subr.bf16.mxu0 0
      %998 = vmatpush1.bf16.msra.mxu0 0
      %999 = vmatprep.mubr.bf16.mxu0 0
      %1000 = vmatmul.mubr.bf16.gmra.mrb[0].mxu0 %v455
      %v1001 = vpop.f32.mrb[0].mxu0
      %v1002 = vadd.f32 0.0, %v1001
      %v1003 = vpop.f32.mrb[0].mxu0
      %v1004 = vpop.f32.mrb[0].mxu0
      %v1005 = vadd.f32 0.0, %v1004
      %v1006 = vpop.f32.mrb[0].mxu0
      %1007 = vmatprep.mubr.bf16.mxu0 0
      %1008 = vmatmul.mubr.bf16.gmra.mrb[0].mxu0 %v456
      %v1009 = vpop.f32.mrb[0].mxu0
      %v1010 = vadd.f32 0.0, %v1009
      %v1011 = vpop.f32.mrb[0].mxu0
      %v1012 = vpop.f32.mrb[0].mxu0
      %v1013 = vadd.f32 0.0, %v1012
      %v1014 = vpop.f32.mrb[0].mxu0
      %1015 = vdwg.mxu0
      %1016 = vst [vmem:[#allocation2] sm:$0xff] %v896
      %1017 = vst [vmem:[#allocation2 + $0x8] sm:$0xff] %v898
      %1018 = vst [vmem:[#allocation2 + $0x10] sm:$0xff] %v949
      %1019 = vst [vmem:[#allocation2 + $0x18] sm:$0xff] %v951
      %1020 = vst [vmem:[#allocation2 + $0x20] sm:$0xff] %v1002
      %1021 = vst [vmem:[#allocation2 + $0x28] sm:$0xff] %v900
      %1022 = vst [vmem:[#allocation2 + $0x30] sm:$0xff] %v902
      %1023 = vst [vmem:[#allocation2 + $0x38] sm:$0xff] %v953
      %1024 = vst [vmem:[#allocation2 + $0x40] sm:$0xff] %v955
      %1025 = vst [vmem:[#allocation2 + $0x48] sm:$0xff] %v1005
      %1026 = vst [vmem:[#allocation2 + $0x50] sm:$0xff] %v906
      %1027 = vst [vmem:[#allocation2 + $0x58] sm:$0xff] %v908
      %1028 = vst [vmem:[#allocation2 + $0x60] sm:$0xff] %v959
      %1029 = vst [vmem:[#allocation2 + $0x68] sm:$0xff] %v961
      %1030 = vst [vmem:[#allocation2 + $0x70] sm:$0xff] %v1010
      %1031 = vst [vmem:[#allocation2 + $0x78] sm:$0xff] %v910
      %1032 = vst [vmem:[#allocation2 + $0x80] sm:$0xff] %v912
      %1033 = vst [vmem:[#allocation2 + $0x88] sm:$0xff] %v963
      %1034 = vst [vmem:[#allocation2 + $0x90] sm:$0xff] %v965
      %1035 = vst [vmem:[#allocation2 + $0x98] sm:$0xff] %v1013
      %v1036 = vld [vmem:[#allocation2] sm:$0xff]
      %v1037 = vld [vmem:[#allocation2 + $0x28] sm:$0xff]
      %v1038 = vld [vmem:[#allocation2 + $0x50] sm:$0xff]
      %v1039 = vld [vmem:[#allocation2 + $0x78] sm:$0xff]
      %v1040 = vpack.c.bf16 %v1037, %v1036
      %v1041 = vpack.c.bf16 %v1039, %v1038
      %1042 = vst [vmem:[#allocation3] sm:$0xff] %v1040
      %1043 = vst [vmem:[#allocation3 + $0x8] sm:$0xff] %v1041
      %v1044 = vlaneseq
      %v1045 = vshrl.u32 %v1044, 7
      %v1046 = vsub.s32 0, %v1045
      %v1047 = vrot.slane %v604, %v1046
      %v1048 = vmul.f32 %v573, %v1047
      %v1049 = vmul.f32 %v575, %v1047
      %v1050 = vmul.f32 %v577, %v1047
      %v1051 = vmul.f32 %v579, %v1047
      %v1052 = vpack.c.bf16 %v1049, %v1048
      %v1053 = vpack.c.bf16 %v1051, %v1050
      %1054 = vst [vmem:[#allocation4] sm:$0xff] %v1052
      %1055 = vst [vmem:[#allocation4 + $0x8] sm:$0xff] %v1053
      %v1056 = vld [vmem:[#allocation2 + $0x8] sm:$0xff]
      %v1057 = vld [vmem:[#allocation2 + $0x30] sm:$0xff]
      %v1058 = vld [vmem:[#allocation2 + $0x58] sm:$0xff]
      %v1059 = vld [vmem:[#allocation2 + $0x80] sm:$0xff]
      %v1060 = vpack.c.bf16 %v1057, %v1056
      %v1061 = vpack.c.bf16 %v1059, %v1058
      %1062 = vst [vmem:[#allocation3 + $0x10] sm:$0xff] %v1060
      %1063 = vst [vmem:[#allocation3 + $0x18] sm:$0xff] %v1061
      %v1064 = vlaneseq
      %v1065 = vshrl.u32 %v1064, 7
      %v1066 = vsub.s32 1, %v1065
      %v1067 = vrot.slane %v604, %v1066
      %v1068 = vmul.f32 %v573, %v1067
      %v1069 = vmul.f32 %v575, %v1067
      %v1070 = vmul.f32 %v577, %v1067
      %v1071 = vmul.f32 %v579, %v1067
      %v1072 = vpack.c.bf16 %v1069, %v1068
      %v1073 = vpack.c.bf16 %v1071, %v1070
      %1074 = vst [vmem:[#allocation4 + $0x10] sm:$0xff] %v1072
      %1075 = vst [vmem:[#allocation4 + $0x18] sm:$0xff] %v1073
      %v1076 = vld [vmem:[#allocation2 + $0x10] sm:$0xff]
      %v1077 = vld [vmem:[#allocation2 + $0x38] sm:$0xff]
      %v1078 = vld [vmem:[#allocation2 + $0x60] sm:$0xff]
      %v1079 = vld [vmem:[#allocation2 + $0x88] sm:$0xff]
      %v1080 = vpack.c.bf16 %v1077, %v1076
      %v1081 = vpack.c.bf16 %v1079, %v1078
      %1082 = vst [vmem:[#allocation3 + $0x20] sm:$0xff] %v1080
      %1083 = vst [vmem:[#allocation3 + $0x28] sm:$0xff] %v1081
      %v1084 = vlaneseq
      %v1085 = vshrl.u32 %v1084, 7
      %v1086 = vsub.s32 2, %v1085
      %v1087 = vrot.slane %v604, %v1086
      %v1088 = vmul.f32 %v573, %v1087
      %v1089 = vmul.f32 %v575, %v1087
      %v1090 = vmul.f32 %v577, %v1087
      %v1091 = vmul.f32 %v579, %v1087
      %v1092 = vpack.c.bf16 %v1089, %v1088
      %v1093 = vpack.c.bf16 %v1091, %v1090
      %1094 = vst [vmem:[#allocation4 + $0x20] sm:$0xff] %v1092
      %1095 = vst [vmem:[#allocation4 + $0x28] sm:$0xff] %v1093
      %v1096 = vld [vmem:[#allocation2 + $0x18] sm:$0xff]
      %v1097 = vld [vmem:[#allocation2 + $0x40] sm:$0xff]
      %v1098 = vld [vmem:[#allocation2 + $0x68] sm:$0xff]
      %v1099 = vld [vmem:[#allocation2 + $0x90] sm:$0xff]
      %v1100 = vpack.c.bf16 %v1097, %v1096
      %v1101 = vpack.c.bf16 %v1099, %v1098
      %1102 = vst [vmem:[#allocation3 + $0x30] sm:$0xff] %v1100
      %1103 = vst [vmem:[#allocation3 + $0x38] sm:$0xff] %v1101
      %v1104 = vlaneseq
      %v1105 = vshrl.u32 %v1104, 7
      %v1106 = vsub.s32 3, %v1105
      %v1107 = vrot.slane %v604, %v1106
      %v1108 = vmul.f32 %v573, %v1107
      %v1109 = vmul.f32 %v575, %v1107
      %v1110 = vmul.f32 %v577, %v1107
      %v1111 = vmul.f32 %v579, %v1107
      %v1112 = vpack.c.bf16 %v1109, %v1108
      %v1113 = vpack.c.bf16 %v1111, %v1110
      %1114 = vst [vmem:[#allocation4 + $0x30] sm:$0xff] %v1112
      %1115 = vst [vmem:[#allocation4 + $0x38] sm:$0xff] %v1113
      %v1116 = vld [vmem:[#allocation2 + $0x20] sm:$0xff]
      %v1117 = vld [vmem:[#allocation2 + $0x48] sm:$0xff]
      %v1118 = vld [vmem:[#allocation2 + $0x70] sm:$0xff]
      %v1119 = vld [vmem:[#allocation2 + $0x98] sm:$0xff]
      %v1120 = vpack.c.bf16 %v1117, %v1116
      %v1121 = vpack.c.bf16 %v1119, %v1118
      %1122 = vst [vmem:[#allocation3 + $0x40] sm:$0xff] %v1120
      %1123 = vst [vmem:[#allocation3 + $0x48] sm:$0xff] %v1121
      %v1124 = vlaneseq
      %v1125 = vshrl.u32 %v1124, 7
      %v1126 = vsub.s32 4, %v1125
      %v1127 = vrot.slane %v604, %v1126
      %v1128 = vmul.f32 %v573, %v1127
      %v1129 = vmul.f32 %v575, %v1127
      %v1130 = vmul.f32 %v577, %v1127
      %v1131 = vmul.f32 %v579, %v1127
      %v1132 = vpack.c.bf16 %v1129, %v1128
      %v1133 = vpack.c.bf16 %v1131, %v1130
      %1134 = vst [vmem:[#allocation4 + $0x40] sm:$0xff] %v1132
      %1135 = vst [vmem:[#allocation4 + $0x48] sm:$0xff] %v1133
      %v1136 = vld [vmem:[#allocation3] sm:$0xff]
      %v1137 = vld [vmem:[#allocation3 + $0x8] sm:$0xff]
      %v1138 = vld [vmem:[#allocation3 + $0x10] sm:$0xff]
      %v1139 = vld [vmem:[#allocation3 + $0x18] sm:$0xff]
      %v1140 = vld [vmem:[#allocation3 + $0x20] sm:$0xff]
      %v1141 = vld [vmem:[#allocation3 + $0x28] sm:$0xff]
      %v1142 = vld [vmem:[#allocation3 + $0x30] sm:$0xff]
      %v1143 = vld [vmem:[#allocation3 + $0x38] sm:$0xff]
      %v1144 = vld [vmem:[#allocation3 + $0x40] sm:$0xff]
      %v1145 = vld [vmem:[#allocation3 + $0x48] sm:$0xff]
      %v1146 = vld [vmem:[%s5] sm:$0xff]
      %v1147 = vld [vmem:[%s5 + $0x8] sm:$0xff]
      %v1148 = vld [vmem:[%s5 + $0x10] sm:$0xff]
      %v1149 = vld [vmem:[%s5 + $0x18] sm:$0xff]
      %v1150 = vld [vmem:[%s5 + $0x20] sm:$0xff]
      %v1151 = vld [vmem:[%s5 + $0x28] sm:$0xff]
      %v1152 = vld [vmem:[%s5 + $0x30] sm:$0xff]
      %v1153 = vld [vmem:[%s5 + $0x38] sm:$0xff]
      %v1154 = vld [vmem:[%s5 + $0x40] sm:$0xff]
      %v1155 = vld [vmem:[%s5 + $0x48] sm:$0xff]
      %v1156 = vld [vmem:[%s5 + $0x50] sm:$0xff]
      %v1157 = vld [vmem:[%s5 + $0x58] sm:$0xff]
      %v1158 = vld [vmem:[%s5 + $0x60] sm:$0xff]
      %v1159 = vld [vmem:[%s5 + $0x68] sm:$0xff]
      %v1160 = vld [vmem:[%s5 + $0x70] sm:$0xff]
      %v1161 = vld [vmem:[%s5 + $0x78] sm:$0xff]
      %v1178 = vunpack.c.l.b16 %v1146
      %v1179 = vunpack.c.h.b16 %v1146
      %v1180 = vunpack.c.l.b16 %v1147
      %v1181 = vunpack.c.h.b16 %v1147
      %v1182 = vunpack.c.l.b16 %v1148
      %v1183 = vunpack.c.h.b16 %v1148
      %v1184 = vunpack.c.l.b16 %v1149
      %v1185 = vunpack.c.h.b16 %v1149
      %v1186 = vunpack.c.l.b16 %v1150
      %v1187 = vunpack.c.h.b16 %v1150
      %v1188 = vunpack.c.l.b16 %v1151
      %v1189 = vunpack.c.h.b16 %v1151
      %v1190 = vunpack.c.l.b16 %v1152
      %v1191 = vunpack.c.h.b16 %v1152
      %v1192 = vunpack.c.l.b16 %v1153
      %v1193 = vunpack.c.h.b16 %v1153
      %v1194 = vunpack.c.l.b16 %v1154
      %v1195 = vunpack.c.h.b16 %v1154
      %v1196 = vunpack.c.l.b16 %v1155
      %v1197 = vunpack.c.h.b16 %v1155
      %v1198 = vunpack.c.l.b16 %v1156
      %v1199 = vunpack.c.h.b16 %v1156
      %v1200 = vunpack.c.l.b16 %v1157
      %v1201 = vunpack.c.h.b16 %v1157
      %v1202 = vunpack.c.l.b16 %v1158
      %v1203 = vunpack.c.h.b16 %v1158
      %v1204 = vunpack.c.l.b16 %v1159
      %v1205 = vunpack.c.h.b16 %v1159
      %v1206 = vunpack.c.l.b16 %v1160
      %v1207 = vunpack.c.h.b16 %v1160
      %v1208 = vunpack.c.l.b16 %v1161
      %v1209 = vunpack.c.h.b16 %v1161
      %v1210 = vpack.c.b16 %v1180, %v1178
      %v1211 = vpack.c.b16 %v1181, %v1179
      %v1212 = vpack.c.b16 %v1184, %v1182
      %v1213 = vpack.c.b16 %v1185, %v1183
      %v1214 = vpack.c.b16 %v1188, %v1186
      %v1215 = vpack.c.b16 %v1189, %v1187
      %v1216 = vpack.c.b16 %v1192, %v1190
      %v1217 = vpack.c.b16 %v1193, %v1191
      %v1218 = vpack.c.b16 %v1196, %v1194
      %v1219 = vpack.c.b16 %v1197, %v1195
      %v1220 = vpack.c.b16 %v1200, %v1198
      %v1221 = vpack.c.b16 %v1201, %v1199
      %v1222 = vpack.c.b16 %v1204, %v1202
      %v1223 = vpack.c.b16 %v1205, %v1203
      %v1224 = vpack.c.b16 %v1208, %v1206
      %v1225 = vpack.c.b16 %v1209, %v1207
      %1242 = vmatprep.subr.bf16.mxu0 %v1211
      %1243 = vmatpush1.bf16.msra.mxu0 %v1210
      %1244 = vmatprep.subr.bf16.mxu0 %v1213
      %1245 = vmatpush1.bf16.msra.mxu0 %v1212
      %1246 = vmatprep.subr.bf16.mxu0 %v1215
      %1247 = vmatpush1.bf16.msra.mxu0 %v1214
      %1248 = vmatprep.subr.bf16.mxu0 %v1217
      %1249 = vmatpush1.bf16.msra.mxu0 %v1216
      %1250 = vmatprep.subr.bf16.mxu0 %v1219
      %1251 = vmatpush1.bf16.msra.mxu0 %v1218
      %1252 = vmatprep.subr.bf16.mxu0 %v1221
      %1253 = vmatpush1.bf16.msra.mxu0 %v1220
      %1254 = vmatprep.subr.bf16.mxu0 %v1223
      %1255 = vmatpush1.bf16.msra.mxu0 %v1222
      %1256 = vmatprep.subr.bf16.mxu0 %v1225
      %1257 = vmatpush1.bf16.msra.mxu0 %v1224
      %1258 = vmatprep.subr.bf16.mxu0 0
      %1259 = vmatpush1.bf16.msra.mxu0 0
      %1260 = vmatprep.subr.bf16.mxu0 0
      %1261 = vmatpush1.bf16.msra.mxu0 0
      %1262 = vmatprep.subr.bf16.mxu0 0
      %1263 = vmatpush1.bf16.msra.mxu0 0
      %1264 = vmatprep.subr.bf16.mxu0 0
      %1265 = vmatpush1.bf16.msra.mxu0 0
      %1266 = vmatprep.subr.bf16.mxu0 0
      %1267 = vmatpush1.bf16.msra.mxu0 0
      %1268 = vmatprep.subr.bf16.mxu0 0
      %1269 = vmatpush1.bf16.msra.mxu0 0
      %1270 = vmatprep.subr.bf16.mxu0 0
      %1271 = vmatpush1.bf16.msra.mxu0 0
      %1272 = vmatprep.subr.bf16.mxu0 0
      %1273 = vmatpush1.bf16.msra.mxu0 0
      %1274 = vmatprep.mubr.bf16.mxu0 0
      %1275 = vmatmul.mubr.bf16.gmra.mrb[0].mxu0 %v1136
      %v1276 = vpop.f32.mrb[0].mxu0
      %v1277 = vadd.f32 0.0, %v1276
      %v1278 = vpop.f32.mrb[0].mxu0
      %v1279 = vadd.f32 0.0, %v1278
      %v1280 = vpop.f32.mrb[0].mxu0
      %v1281 = vadd.f32 0.0, %v1280
      %v1282 = vpop.f32.mrb[0].mxu0
      %v1283 = vadd.f32 0.0, %v1282
      %1284 = vmatprep.mubr.bf16.mxu0 0
      %1285 = vmatmul.mubr.bf16.gmra.mrb[0].mxu0 %v1137
      %v1286 = vpop.f32.mrb[0].mxu0
      %v1287 = vadd.f32 0.0, %v1286
      %v1288 = vpop.f32.mrb[0].mxu0
      %v1289 = vadd.f32 0.0, %v1288
      %v1290 = vpop.f32.mrb[0].mxu0
      %v1291 = vadd.f32 0.0, %v1290
      %v1292 = vpop.f32.mrb[0].mxu0
      %v1293 = vadd.f32 0.0, %v1292
      %1294 = vmatprep.mubr.bf16.mxu0 0
      %1295 = vmatmul.mubr.bf16.gmra.mrb[0].mxu0 %v1138
      %v1296 = vpop.f32.mrb[0].mxu0
      %v1297 = vadd.f32 0.0, %v1296
      %v1298 = vpop.f32.mrb[0].mxu0
      %v1299 = vadd.f32 0.0, %v1298
      %v1300 = vpop.f32.mrb[0].mxu0
      %v1301 = vadd.f32 0.0, %v1300
      %v1302 = vpop.f32.mrb[0].mxu0
      %v1303 = vadd.f32 0.0, %v1302
      %1304 = vmatprep.mubr.bf16.mxu0 0
      %1305 = vmatmul.mubr.bf16.gmra.mrb[0].mxu0 %v1139
      %v1306 = vpop.f32.mrb[0].mxu0
      %v1307 = vadd.f32 0.0, %v1306
      %v1308 = vpop.f32.mrb[0].mxu0
      %v1309 = vadd.f32 0.0, %v1308
      %v1310 = vpop.f32.mrb[0].mxu0
      %v1311 = vadd.f32 0.0, %v1310
      %v1312 = vpop.f32.mrb[0].mxu0
      %v1313 = vadd.f32 0.0, %v1312
      %1314 = vmatprep.mubr.bf16.mxu0 0
      %1315 = vmatmul.mubr.bf16.gmra.mrb[0].mxu0 %v1140
      %v1316 = vpop.f32.mrb[0].mxu0
      %v1317 = vadd.f32 0.0, %v1316
      %v1318 = vpop.f32.mrb[0].mxu0
      %v1319 = vadd.f32 0.0, %v1318
      %v1320 = vpop.f32.mrb[0].mxu0
      %v1321 = vadd.f32 0.0, %v1320
      %v1322 = vpop.f32.mrb[0].mxu0
      %v1323 = vadd.f32 0.0, %v1322
      %1324 = vmatprep.mubr.bf16.mxu0 0
      %1325 = vmatmul.mubr.bf16.gmra.mrb[0].mxu0 %v1141
      %v1326 = vpop.f32.mrb[0].mxu0
      %v1327 = vadd.f32 0.0, %v1326
      %v1328 = vpop.f32.mrb[0].mxu0
      %v1329 = vadd.f32 0.0, %v1328
      %v1330 = vpop.f32.mrb[0].mxu0
      %v1331 = vadd.f32 0.0, %v1330
      %v1332 = vpop.f32.mrb[0].mxu0
      %v1333 = vadd.f32 0.0, %v1332
      %1334 = vmatprep.mubr.bf16.mxu0 0
      %1335 = vmatmul.mubr.bf16.gmra.mrb[0].mxu0 %v1142
      %v1336 = vpop.f32.mrb[0].mxu0
      %v1337 = vadd.f32 0.0, %v1336
      %v1338 = vpop.f32.mrb[0].mxu0
      %v1339 = vadd.f32 0.0, %v1338
      %v1340 = vpop.f32.mrb[0].mxu0
      %v1341 = vadd.f32 0.0, %v1340
      %v1342 = vpop.f32.mrb[0].mxu0
      %v1343 = vadd.f32 0.0, %v1342
      %1344 = vmatprep.mubr.bf16.mxu0 0
      %1345 = vmatmul.mubr.bf16.gmra.mrb[0].mxu0 %v1143
      %v1346 = vpop.f32.mrb[0].mxu0
      %v1347 = vadd.f32 0.0, %v1346
      %v1348 = vpop.f32.mrb[0].mxu0
      %v1349 = vadd.f32 0.0, %v1348
      %v1350 = vpop.f32.mrb[0].mxu0
      %v1351 = vadd.f32 0.0, %v1350
      %v1352 = vpop.f32.mrb[0].mxu0
      %v1353 = vadd.f32 0.0, %v1352
      %1354 = vmatprep.mubr.bf16.mxu0 0
      %1355 = vmatmul.mubr.bf16.gmra.mrb[0].mxu0 %v1144
      %v1356 = vpop.f32.mrb[0].mxu0
      %v1357 = vadd.f32 0.0, %v1356
      %v1358 = vpop.f32.mrb[0].mxu0
      %v1359 = vadd.f32 0.0, %v1358
      %v1360 = vpop.f32.mrb[0].mxu0
      %v1361 = vadd.f32 0.0, %v1360
      %v1362 = vpop.f32.mrb[0].mxu0
      %v1363 = vadd.f32 0.0, %v1362
      %1364 = vmatprep.mubr.bf16.mxu0 0
      %1365 = vmatmul.mubr.bf16.gmra.mrb[0].mxu0 %v1145
      %v1366 = vpop.f32.mrb[0].mxu0
      %v1367 = vadd.f32 0.0, %v1366
      %v1368 = vpop.f32.mrb[0].mxu0
      %v1369 = vadd.f32 0.0, %v1368
      %v1370 = vpop.f32.mrb[0].mxu0
      %v1371 = vadd.f32 0.0, %v1370
      %v1372 = vpop.f32.mrb[0].mxu0
      %v1373 = vadd.f32 0.0, %v1372
      %1374 = vdwg.mxu0
      %1375 = vst [vmem:[#allocation5] sm:$0xff] %v1277
      %1376 = vst [vmem:[#allocation5 + $0x8] sm:$0xff] %v1279
      %1377 = vst [vmem:[#allocation5 + $0x10] sm:$0xff] %v1281
      %1378 = vst [vmem:[#allocation5 + $0x18] sm:$0xff] %v1283
      %1379 = vst [vmem:[#allocation5 + $0x20] sm:$0xff] %v1287
      %1380 = vst [vmem:[#allocation5 + $0x28] sm:$0xff] %v1289
      %1381 = vst [vmem:[#allocation5 + $0x30] sm:$0xff] %v1291
      %1382 = vst [vmem:[#allocation5 + $0x38] sm:$0xff] %v1293
      %1383 = vst [vmem:[#allocation5 + $0x40] sm:$0xff] %v1297
      %1384 = vst [vmem:[#allocation5 + $0x48] sm:$0xff] %v1299
      %1385 = vst [vmem:[#allocation5 + $0x50] sm:$0xff] %v1301
      %1386 = vst [vmem:[#allocation5 + $0x58] sm:$0xff] %v1303
      %1387 = vst [vmem:[#allocation5 + $0x60] sm:$0xff] %v1307
      %1388 = vst [vmem:[#allocation5 + $0x68] sm:$0xff] %v1309
      %1389 = vst [vmem:[#allocation5 + $0x70] sm:$0xff] %v1311
      %1390 = vst [vmem:[#allocation5 + $0x78] sm:$0xff] %v1313
      %1391 = vst [vmem:[#allocation5 + $0x80] sm:$0xff] %v1317
      %1392 = vst [vmem:[#allocation5 + $0x88] sm:$0xff] %v1319
      %1393 = vst [vmem:[#allocation5 + $0x90] sm:$0xff] %v1321
      %1394 = vst [vmem:[#allocation5 + $0x98] sm:$0xff] %v1323
      %1395 = vst [vmem:[#allocation5 + $0xa0] sm:$0xff] %v1327
      %1396 = vst [vmem:[#allocation5 + $0xa8] sm:$0xff] %v1329
      %1397 = vst [vmem:[#allocation5 + $0xb0] sm:$0xff] %v1331
      %1398 = vst [vmem:[#allocation5 + $0xb8] sm:$0xff] %v1333
      %1399 = vst [vmem:[#allocation5 + $0xc0] sm:$0xff] %v1337
      %1400 = vst [vmem:[#allocation5 + $0xc8] sm:$0xff] %v1339
      %1401 = vst [vmem:[#allocation5 + $0xd0] sm:$0xff] %v1341
      %1402 = vst [vmem:[#allocation5 + $0xd8] sm:$0xff] %v1343
      %1403 = vst [vmem:[#allocation5 + $0xe0] sm:$0xff] %v1347
      %1404 = vst [vmem:[#allocation5 + $0xe8] sm:$0xff] %v1349
      %1405 = vst [vmem:[#allocation5 + $0xf0] sm:$0xff] %v1351
      %1406 = vst [vmem:[#allocation5 + $0xf8] sm:$0xff] %v1353
      %1407 = vst [vmem:[#allocation5 + $0x100] sm:$0xff] %v1357
      %1408 = vst [vmem:[#allocation5 + $0x108] sm:$0xff] %v1359
      %1409 = vst [vmem:[#allocation5 + $0x110] sm:$0xff] %v1361
      %1410 = vst [vmem:[#allocation5 + $0x118] sm:$0xff] %v1363
      %1411 = vst [vmem:[#allocation5 + $0x120] sm:$0xff] %v1367
      %1412 = vst [vmem:[#allocation5 + $0x128] sm:$0xff] %v1369
      %1413 = vst [vmem:[#allocation5 + $0x130] sm:$0xff] %v1371
      %1414 = vst [vmem:[#allocation5 + $0x138] sm:$0xff] %v1373
      %v1415 = vld [vmem:[#allocation4] sm:$0xff]
      %v1416 = vld [vmem:[#allocation4 + $0x8] sm:$0xff]
      %v1417 = vld [vmem:[#allocation4 + $0x10] sm:$0xff]
      %v1418 = vld [vmem:[#allocation4 + $0x18] sm:$0xff]
      %v1419 = vld [vmem:[#allocation4 + $0x20] sm:$0xff]
      %v1420 = vld [vmem:[#allocation4 + $0x28] sm:$0xff]
      %v1421 = vld [vmem:[#allocation4 + $0x30] sm:$0xff]
      %v1422 = vld [vmem:[#allocation4 + $0x38] sm:$0xff]
      %v1423 = vld [vmem:[#allocation4 + $0x40] sm:$0xff]
      %v1424 = vld [vmem:[#allocation4 + $0x48] sm:$0xff]
      %v1425 = vld [vmem:[%s7] sm:$0xff]
      %v1426 = vld [vmem:[%s7 + $0x8] sm:$0xff]
      %v1427 = vld [vmem:[%s7 + $0x10] sm:$0xff]
      %v1428 = vld [vmem:[%s7 + $0x18] sm:$0xff]
      %v1429 = vld [vmem:[%s7 + $0x20] sm:$0xff]
      %v1430 = vld [vmem:[%s7 + $0x28] sm:$0xff]
      %v1431 = vld [vmem:[%s7 + $0x30] sm:$0xff]
      %v1432 = vld [vmem:[%s7 + $0x38] sm:$0xff]
      %v1433 = vld [vmem:[%s7 + $0x40] sm:$0xff]
      %v1434 = vld [vmem:[%s7 + $0x48] sm:$0xff]
      %v1435 = vld [vmem:[%s7 + $0x50] sm:$0xff]
      %v1436 = vld [vmem:[%s7 + $0x58] sm:$0xff]
      %v1437 = vld [vmem:[%s7 + $0x60] sm:$0xff]
      %v1438 = vld [vmem:[%s7 + $0x68] sm:$0xff]
      %v1439 = vld [vmem:[%s7 + $0x70] sm:$0xff]
      %v1440 = vld [vmem:[%s7 + $0x78] sm:$0xff]
      %v1457 = vunpack.c.l.b16 %v1425
      %v1458 = vunpack.c.h.b16 %v1425
      %v1459 = vunpack.c.l.b16 %v1426
      %v1460 = vunpack.c.h.b16 %v1426
      %v1461 = vunpack.c.l.b16 %v1427
      %v1462 = vunpack.c.h.b16 %v1427
      %v1463 = vunpack.c.l.b16 %v1428
      %v1464 = vunpack.c.h.b16 %v1428
      %v1465 = vunpack.c.l.b16 %v1429
      %v1466 = vunpack.c.h.b16 %v1429
      %v1467 = vunpack.c.l.b16 %v1430
      %v1468 = vunpack.c.h.b16 %v1430
      %v1469 = vunpack.c.l.b16 %v1431
      %v1470 = vunpack.c.h.b16 %v1431
      %v1471 = vunpack.c.l.b16 %v1432
      %v1472 = vunpack.c.h.b16 %v1432
      %v1473 = vunpack.c.l.b16 %v1433
      %v1474 = vunpack.c.h.b16 %v1433
      %v1475 = vunpack.c.l.b16 %v1434
      %v1476 = vunpack.c.h.b16 %v1434
      %v1477 = vunpack.c.l.b16 %v1435
      %v1478 = vunpack.c.h.b16 %v1435
      %v1479 = vunpack.c.l.b16 %v1436
      %v1480 = vunpack.c.h.b16 %v1436
      %v1481 = vunpack.c.l.b16 %v1437
      %v1482 = vunpack.c.h.b16 %v1437
      %v1483 = vunpack.c.l.b16 %v1438
      %v1484 = vunpack.c.h.b16 %v1438
      %v1485 = vunpack.c.l.b16 %v1439
      %v1486 = vunpack.c.h.b16 %v1439
      %v1487 = vunpack.c.l.b16 %v1440
      %v1488 = vunpack.c.h.b16 %v1440
      %v1489 = vpack.c.b16 %v1459, %v1457
      %v1490 = vpack.c.b16 %v1460, %v1458
      %v1491 = vpack.c.b16 %v1463, %v1461
      %v1492 = vpack.c.b16 %v1464, %v1462
      %v1493 = vpack.c.b16 %v1467, %v1465
      %v1494 = vpack.c.b16 %v1468, %v1466
      %v1495 = vpack.c.b16 %v1471, %v1469
      %v1496 = vpack.c.b16 %v1472, %v1470
      %v1497 = vpack.c.b16 %v1475, %v1473
      %v1498 = vpack.c.b16 %v1476, %v1474
      %v1499 = vpack.c.b16 %v1479, %v1477
      %v1500 = vpack.c.b16 %v1480, %v1478
      %v1501 = vpack.c.b16 %v1483, %v1481
      %v1502 = vpack.c.b16 %v1484, %v1482
      %v1503 = vpack.c.b16 %v1487, %v1485
      %v1504 = vpack.c.b16 %v1488, %v1486
      %1521 = vmatprep.subr.bf16.mxu0 %v1490
      %1522 = vmatpush1.bf16.msra.mxu0 %v1489
      %1523 = vmatprep.subr.bf16.mxu0 %v1492
      %1524 = vmatpush1.bf16.msra.mxu0 %v1491
      %1525 = vmatprep.subr.bf16.mxu0 %v1494
      %1526 = vmatpush1.bf16.msra.mxu0 %v1493
      %1527 = vmatprep.subr.bf16.mxu0 %v1496
      %1528 = vmatpush1.bf16.msra.mxu0 %v1495
      %1529 = vmatprep.subr.bf16.mxu0 %v1498
      %1530 = vmatpush1.bf16.msra.mxu0 %v1497
      %1531 = vmatprep.subr.bf16.mxu0 %v1500
      %1532 = vmatpush1.bf16.msra.mxu0 %v1499
      %1533 = vmatprep.subr.bf16.mxu0 %v1502
      %1534 = vmatpush1.bf16.msra.mxu0 %v1501
      %1535 = vmatprep.subr.bf16.mxu0 %v1504
      %1536 = vmatpush1.bf16.msra.mxu0 %v1503
      %1537 = vmatprep.subr.bf16.mxu0 0
      %1538 = vmatpush1.bf16.msra.mxu0 0
      %1539 = vmatprep.subr.bf16.mxu0 0
      %1540 = vmatpush1.bf16.msra.mxu0 0
      %1541 = vmatprep.subr.bf16.mxu0 0
      %1542 = vmatpush1.bf16.msra.mxu0 0
      %1543 = vmatprep.subr.bf16.mxu0 0
      %1544 = vmatpush1.bf16.msra.mxu0 0
      %1545 = vmatprep.subr.bf16.mxu0 0
      %1546 = vmatpush1.bf16.msra.mxu0 0
      %1547 = vmatprep.subr.bf16.mxu0 0
      %1548 = vmatpush1.bf16.msra.mxu0 0
      %1549 = vmatprep.subr.bf16.mxu0 0
      %1550 = vmatpush1.bf16.msra.mxu0 0
      %1551 = vmatprep.subr.bf16.mxu0 0
      %1552 = vmatpush1.bf16.msra.mxu0 0
      %1553 = vmatprep.mubr.bf16.mxu0 0
      %1554 = vmatmul.mubr.bf16.gmra.mrb[0].mxu0 %v1415
      %v1555 = vpop.f32.mrb[0].mxu0
      %v1556 = vadd.f32 0.0, %v1555
      %v1557 = vpop.f32.mrb[0].mxu0
      %v1558 = vadd.f32 0.0, %v1557
      %v1559 = vpop.f32.mrb[0].mxu0
      %v1560 = vadd.f32 0.0, %v1559
      %v1561 = vpop.f32.mrb[0].mxu0
      %v1562 = vadd.f32 0.0, %v1561
      %1563 = vmatprep.mubr.bf16.mxu0 0
      %1564 = vmatmul.mubr.bf16.gmra.mrb[0].mxu0 %v1416
      %v1565 = vpop.f32.mrb[0].mxu0
      %v1566 = vadd.f32 0.0, %v1565
      %v1567 = vpop.f32.mrb[0].mxu0
      %v1568 = vadd.f32 0.0, %v1567
      %v1569 = vpop.f32.mrb[0].mxu0
      %v1570 = vadd.f32 0.0, %v1569
      %v1571 = vpop.f32.mrb[0].mxu0
      %v1572 = vadd.f32 0.0, %v1571
      %1573 = vmatprep.mubr.bf16.mxu0 0
      %1574 = vmatmul.mubr.bf16.gmra.mrb[0].mxu0 %v1417
      %v1575 = vpop.f32.mrb[0].mxu0
      %v1576 = vadd.f32 0.0, %v1575
      %v1577 = vpop.f32.mrb[0].mxu0
      %v1578 = vadd.f32 0.0, %v1577
      %v1579 = vpop.f32.mrb[0].mxu0
      %v1580 = vadd.f32 0.0, %v1579
      %v1581 = vpop.f32.mrb[0].mxu0
      %v1582 = vadd.f32 0.0, %v1581
      %1583 = vmatprep.mubr.bf16.mxu0 0
      %1584 = vmatmul.mubr.bf16.gmra.mrb[0].mxu0 %v1418
      %v1585 = vpop.f32.mrb[0].mxu0
      %v1586 = vadd.f32 0.0, %v1585
      %v1587 = vpop.f32.mrb[0].mxu0
      %v1588 = vadd.f32 0.0, %v1587
      %v1589 = vpop.f32.mrb[0].mxu0
      %v1590 = vadd.f32 0.0, %v1589
      %v1591 = vpop.f32.mrb[0].mxu0
      %v1592 = vadd.f32 0.0, %v1591
      %1593 = vmatprep.mubr.bf16.mxu0 0
      %1594 = vmatmul.mubr.bf16.gmra.mrb[0].mxu0 %v1419
      %v1595 = vpop.f32.mrb[0].mxu0
      %v1596 = vadd.f32 0.0, %v1595
      %v1597 = vpop.f32.mrb[0].mxu0
      %v1598 = vadd.f32 0.0, %v1597
      %v1599 = vpop.f32.mrb[0].mxu0
      %v1600 = vadd.f32 0.0, %v1599
      %v1601 = vpop.f32.mrb[0].mxu0
      %v1602 = vadd.f32 0.0, %v1601
      %1603 = vmatprep.mubr.bf16.mxu0 0
      %1604 = vmatmul.mubr.bf16.gmra.mrb[0].mxu0 %v1420
      %v1605 = vpop.f32.mrb[0].mxu0
      %v1606 = vadd.f32 0.0, %v1605
      %v1607 = vpop.f32.mrb[0].mxu0
      %v1608 = vadd.f32 0.0, %v1607
      %v1609 = vpop.f32.mrb[0].mxu0
      %v1610 = vadd.f32 0.0, %v1609
      %v1611 = vpop.f32.mrb[0].mxu0
      %v1612 = vadd.f32 0.0, %v1611
      %1613 = vmatprep.mubr.bf16.mxu0 0
      %1614 = vmatmul.mubr.bf16.gmra.mrb[0].mxu0 %v1421
      %v1615 = vpop.f32.mrb[0].mxu0
      %v1616 = vadd.f32 0.0, %v1615
      %v1617 = vpop.f32.mrb[0].mxu0
      %v1618 = vadd.f32 0.0, %v1617
      %v1619 = vpop.f32.mrb[0].mxu0
      %v1620 = vadd.f32 0.0, %v1619
      %v1621 = vpop.f32.mrb[0].mxu0
      %v1622 = vadd.f32 0.0, %v1621
      %1623 = vmatprep.mubr.bf16.mxu0 0
      %1624 = vmatmul.mubr.bf16.gmra.mrb[0].mxu0 %v1422
      %v1625 = vpop.f32.mrb[0].mxu0
      %v1626 = vadd.f32 0.0, %v1625
      %v1627 = vpop.f32.mrb[0].mxu0
      %v1628 = vadd.f32 0.0, %v1627
      %v1629 = vpop.f32.mrb[0].mxu0
      %v1630 = vadd.f32 0.0, %v1629
      %v1631 = vpop.f32.mrb[0].mxu0
      %v1632 = vadd.f32 0.0, %v1631
      %1633 = vmatprep.mubr.bf16.mxu0 0
      %1634 = vmatmul.mubr.bf16.gmra.mrb[0].mxu0 %v1423
      %v1635 = vpop.f32.mrb[0].mxu0
      %v1636 = vadd.f32 0.0, %v1635
      %v1637 = vpop.f32.mrb[0].mxu0
      %v1638 = vadd.f32 0.0, %v1637
      %v1639 = vpop.f32.mrb[0].mxu0
      %v1640 = vadd.f32 0.0, %v1639
      %v1641 = vpop.f32.mrb[0].mxu0
      %v1642 = vadd.f32 0.0, %v1641
      %1643 = vmatprep.mubr.bf16.mxu0 0
      %1644 = vmatmul.mubr.bf16.gmra.mrb[0].mxu0 %v1424
      %v1645 = vpop.f32.mrb[0].mxu0
      %v1646 = vadd.f32 0.0, %v1645
      %v1647 = vpop.f32.mrb[0].mxu0
      %v1648 = vadd.f32 0.0, %v1647
      %v1649 = vpop.f32.mrb[0].mxu0
      %v1650 = vadd.f32 0.0, %v1649
      %v1651 = vpop.f32.mrb[0].mxu0
      %v1652 = vadd.f32 0.0, %v1651
      %1653 = vdwg.mxu0
      %1654 = vst [vmem:[#allocation6] sm:$0xff] %v1556
      %1655 = vst [vmem:[#allocation6 + $0x8] sm:$0xff] %v1558
      %1656 = vst [vmem:[#allocation6 + $0x10] sm:$0xff] %v1560
      %1657 = vst [vmem:[#allocation6 + $0x18] sm:$0xff] %v1562
      %1658 = vst [vmem:[#allocation6 + $0x20] sm:$0xff] %v1566
      %1659 = vst [vmem:[#allocation6 + $0x28] sm:$0xff] %v1568
      %1660 = vst [vmem:[#allocation6 + $0x30] sm:$0xff] %v1570
      %1661 = vst [vmem:[#allocation6 + $0x38] sm:$0xff] %v1572
      %1662 = vst [vmem:[#allocation6 + $0x40] sm:$0xff] %v1576
      %1663 = vst [vmem:[#allocation6 + $0x48] sm:$0xff] %v1578
      %1664 = vst [vmem:[#allocation6 + $0x50] sm:$0xff] %v1580
      %1665 = vst [vmem:[#allocation6 + $0x58] sm:$0xff] %v1582
      %1666 = vst [vmem:[#allocation6 + $0x60] sm:$0xff] %v1586
      %1667 = vst [vmem:[#allocation6 + $0x68] sm:$0xff] %v1588
      %1668 = vst [vmem:[#allocation6 + $0x70] sm:$0xff] %v1590
      %1669 = vst [vmem:[#allocation6 + $0x78] sm:$0xff] %v1592
      %1670 = vst [vmem:[#allocation6 + $0x80] sm:$0xff] %v1596
      %1671 = vst [vmem:[#allocation6 + $0x88] sm:$0xff] %v1598
      %1672 = vst [vmem:[#allocation6 + $0x90] sm:$0xff] %v1600
      %1673 = vst [vmem:[#allocation6 + $0x98] sm:$0xff] %v1602
      %1674 = vst [vmem:[#allocation6 + $0xa0] sm:$0xff] %v1606
      %1675 = vst [vmem:[#allocation6 + $0xa8] sm:$0xff] %v1608
      %1676 = vst [vmem:[#allocation6 + $0xb0] sm:$0xff] %v1610
      %1677 = vst [vmem:[#allocation6 + $0xb8] sm:$0xff] %v1612
      %1678 = vst [vmem:[#allocation6 + $0xc0] sm:$0xff] %v1616
      %1679 = vst [vmem:[#allocation6 + $0xc8] sm:$0xff] %v1618
      %1680 = vst [vmem:[#allocation6 + $0xd0] sm:$0xff] %v1620
      %1681 = vst [vmem:[#allocation6 + $0xd8] sm:$0xff] %v1622
      %1682 = vst [vmem:[#allocation6 + $0xe0] sm:$0xff] %v1626
      %1683 = vst [vmem:[#allocation6 + $0xe8] sm:$0xff] %v1628
      %1684 = vst [vmem:[#allocation6 + $0xf0] sm:$0xff] %v1630
      %1685 = vst [vmem:[#allocation6 + $0xf8] sm:$0xff] %v1632
      %1686 = vst [vmem:[#allocation6 + $0x100] sm:$0xff] %v1636
      %1687 = vst [vmem:[#allocation6 + $0x108] sm:$0xff] %v1638
      %1688 = vst [vmem:[#allocation6 + $0x110] sm:$0xff] %v1640
      %1689 = vst [vmem:[#allocation6 + $0x118] sm:$0xff] %v1642
      %1690 = vst [vmem:[#allocation6 + $0x120] sm:$0xff] %v1646
      %1691 = vst [vmem:[#allocation6 + $0x128] sm:$0xff] %v1648
      %1692 = vst [vmem:[#allocation6 + $0x130] sm:$0xff] %v1650
      %1693 = vst [vmem:[#allocation6 + $0x138] sm:$0xff] %v1652
      %v1694 = vld [vmem:[#allocation5] sm:$0xff]
      %v1695 = vld [vmem:[#allocation5 + $0x8] sm:$0xff]
      %v1696 = vld [vmem:[#allocation5 + $0x10] sm:$0xff]
      %v1697 = vld [vmem:[#allocation5 + $0x18] sm:$0xff]
      %v1698 = vld [vmem:[#allocation5 + $0x20] sm:$0xff]
      %v1699 = vld [vmem:[#allocation5 + $0x28] sm:$0xff]
      %v1700 = vld [vmem:[#allocation5 + $0x30] sm:$0xff]
      %v1701 = vld [vmem:[#allocation5 + $0x38] sm:$0xff]
      %v1702 = vld [vmem:[#allocation6] sm:$0xff]
      %v1703 = vld [vmem:[#allocation6 + $0x8] sm:$0xff]
      %v1704 = vld [vmem:[#allocation6 + $0x10] sm:$0xff]
      %v1705 = vld [vmem:[#allocation6 + $0x18] sm:$0xff]
      %v1706 = vld [vmem:[#allocation6 + $0x20] sm:$0xff]
      %v1707 = vld [vmem:[#allocation6 + $0x28] sm:$0xff]
      %v1708 = vld [vmem:[#allocation6 + $0x30] sm:$0xff]
      %v1709 = vld [vmem:[#allocation6 + $0x38] sm:$0xff]
      %v1710 = vmul.f32 %v1694, %v1702
      %v1711 = vmul.f32 %v1695, %v1703
      %v1712 = vmul.f32 %v1696, %v1704
      %v1713 = vmul.f32 %v1697, %v1705
      %v1714 = vmul.f32 %v1698, %v1706
      %v1715 = vmul.f32 %v1699, %v1707
      %v1716 = vmul.f32 %v1700, %v1708
      %v1717 = vmul.f32 %v1701, %v1709
      %v1718 = vld [vmem:[%s6] sm:$0x3]
      %v1720 = vlaneseq
      %v1721 = vshrl.u32 %v1720, 7
      %v1722 = vsub.s32 0, %v1721
      %v1723 = vrot.slane %v1718, %v1722
      %v1724 = vlaneseq
      %v1725 = vshrl.u32 %v1724, 7
      %v1726 = vsub.s32 1, %v1725
      %v1727 = vrot.slane %v1718, %v1726
      %v1730 = vadd.f32 %v1710, %v1723
      %v1731 = vadd.f32 %v1711, %v1727
      %v1732 = vadd.f32 %v1712, %v1723
      %v1733 = vadd.f32 %v1713, %v1727
      %v1734 = vadd.f32 %v1714, %v1723
      %v1735 = vadd.f32 %v1715, %v1727
      %v1736 = vadd.f32 %v1716, %v1723
      %v1737 = vadd.f32 %v1717, %v1727
      %1738 = vst [vmem:[#allocation7] sm:$0xff] %v1730
      %1739 = vst [vmem:[#allocation7 + $0x8] sm:$0xff] %v1731
      %1740 = vst [vmem:[#allocation7 + $0x10] sm:$0xff] %v1732
      %1741 = vst [vmem:[#allocation7 + $0x18] sm:$0xff] %v1733
      %1742 = vst [vmem:[#allocation7 + $0x20] sm:$0xff] %v1734
      %1743 = vst [vmem:[#allocation7 + $0x28] sm:$0xff] %v1735
      %1744 = vst [vmem:[#allocation7 + $0x30] sm:$0xff] %v1736
      %1745 = vst [vmem:[#allocation7 + $0x38] sm:$0xff] %v1737
      %v1746 = vld [vmem:[#allocation7] sm:$0xff]
      %v1747 = vld [vmem:[#allocation7 + $0x8] sm:$0xff]
      %v1748 = vld [vmem:[#allocation7 + $0x10] sm:$0xff]
      %v1749 = vld [vmem:[#allocation7 + $0x18] sm:$0xff]
      %v1750 = vld [vmem:[#allocation7 + $0x20] sm:$0xff]
      %v1751 = vld [vmem:[#allocation7 + $0x28] sm:$0xff]
      %v1752 = vld [vmem:[#allocation7 + $0x30] sm:$0xff]
      %v1753 = vld [vmem:[#allocation7 + $0x38] sm:$0xff]
      %v1754 = vld [vmem:[#allocation5 + $0x40] sm:$0xff]
      %v1755 = vld [vmem:[#allocation5 + $0x48] sm:$0xff]
      %v1756 = vld [vmem:[#allocation5 + $0x50] sm:$0xff]
      %v1757 = vld [vmem:[#allocation5 + $0x58] sm:$0xff]
      %v1758 = vld [vmem:[#allocation5 + $0x60] sm:$0xff]
      %v1759 = vld [vmem:[#allocation5 + $0x68] sm:$0xff]
      %v1760 = vld [vmem:[#allocation5 + $0x70] sm:$0xff]
      %v1761 = vld [vmem:[#allocation5 + $0x78] sm:$0xff]
      %v1762 = vld [vmem:[#allocation6 + $0x40] sm:$0xff]
      %v1763 = vld [vmem:[#allocation6 + $0x48] sm:$0xff]
      %v1764 = vld [vmem:[#allocation6 + $0x50] sm:$0xff]
      %v1765 = vld [vmem:[#allocation6 + $0x58] sm:$0xff]
      %v1766 = vld [vmem:[#allocation6 + $0x60] sm:$0xff]
      %v1767 = vld [vmem:[#allocation6 + $0x68] sm:$0xff]
      %v1768 = vld [vmem:[#allocation6 + $0x70] sm:$0xff]
      %v1769 = vld [vmem:[#allocation6 + $0x78] sm:$0xff]
      %v1770 = vmul.f32 %v1754, %v1762
      %v1771 = vmul.f32 %v1755, %v1763
      %v1772 = vmul.f32 %v1756, %v1764
      %v1773 = vmul.f32 %v1757, %v1765
      %v1774 = vmul.f32 %v1758, %v1766
      %v1775 = vmul.f32 %v1759, %v1767
      %v1776 = vmul.f32 %v1760, %v1768
      %v1777 = vmul.f32 %v1761, %v1769
      %v1778 = vadd.f32 %v1746, %v1770
      %v1779 = vadd.f32 %v1747, %v1771
      %v1780 = vadd.f32 %v1748, %v1772
      %v1781 = vadd.f32 %v1749, %v1773
      %v1782 = vadd.f32 %v1750, %v1774
      %v1783 = vadd.f32 %v1751, %v1775
      %v1784 = vadd.f32 %v1752, %v1776
      %v1785 = vadd.f32 %v1753, %v1777
      %1786 = vst [vmem:[#allocation7] sm:$0xff] %v1778
      %1787 = vst [vmem:[#allocation7 + $0x8] sm:$0xff] %v1779
      %1788 = vst [vmem:[#allocation7 + $0x10] sm:$0xff] %v1780
      %1789 = vst [vmem:[#allocation7 + $0x18] sm:$0xff] %v1781
      %1790 = vst [vmem:[#allocation7 + $0x20] sm:$0xff] %v1782
      %1791 = vst [vmem:[#allocation7 + $0x28] sm:$0xff] %v1783
      %1792 = vst [vmem:[#allocation7 + $0x30] sm:$0xff] %v1784
      %1793 = vst [vmem:[#allocation7 + $0x38] sm:$0xff] %v1785
      %v1794 = vld [vmem:[#allocation7] sm:$0xff]
      %v1795 = vld [vmem:[#allocation7 + $0x8] sm:$0xff]
      %v1796 = vld [vmem:[#allocation7 + $0x10] sm:$0xff]
      %v1797 = vld [vmem:[#allocation7 + $0x18] sm:$0xff]
      %v1798 = vld [vmem:[#allocation7 + $0x20] sm:$0xff]
      %v1799 = vld [vmem:[#allocation7 + $0x28] sm:$0xff]
      %v1800 = vld [vmem:[#allocation7 + $0x30] sm:$0xff]
      %v1801 = vld [vmem:[#allocation7 + $0x38] sm:$0xff]
      %v1802 = vld [vmem:[#allocation5 + $0x80] sm:$0xff]
      %v1803 = vld [vmem:[#allocation5 + $0x88] sm:$0xff]
      %v1804 = vld [vmem:[#allocation5 + $0x90] sm:$0xff]
      %v1805 = vld [vmem:[#allocation5 + $0x98] sm:$0xff]
      %v1806 = vld [vmem:[#allocation5 + $0xa0] sm:$0xff]
      %v1807 = vld [vmem:[#allocation5 + $0xa8] sm:$0xff]
      %v1808 = vld [vmem:[#allocation5 + $0xb0] sm:$0xff]
      %v1809 = vld [vmem:[#allocation5 + $0xb8] sm:$0xff]
      %v1810 = vld [vmem:[#allocation6 + $0x80] sm:$0xff]
      %v1811 = vld [vmem:[#allocation6 + $0x88] sm:$0xff]
      %v1812 = vld [vmem:[#allocation6 + $0x90] sm:$0xff]
      %v1813 = vld [vmem:[#allocation6 + $0x98] sm:$0xff]
      %v1814 = vld [vmem:[#allocation6 + $0xa0] sm:$0xff]
      %v1815 = vld [vmem:[#allocation6 + $0xa8] sm:$0xff]
      %v1816 = vld [vmem:[#allocation6 + $0xb0] sm:$0xff]
      %v1817 = vld [vmem:[#allocation6 + $0xb8] sm:$0xff]
      %v1818 = vmul.f32 %v1802, %v1810
      %v1819 = vmul.f32 %v1803, %v1811
      %v1820 = vmul.f32 %v1804, %v1812
      %v1821 = vmul.f32 %v1805, %v1813
      %v1822 = vmul.f32 %v1806, %v1814
      %v1823 = vmul.f32 %v1807, %v1815
      %v1824 = vmul.f32 %v1808, %v1816
      %v1825 = vmul.f32 %v1809, %v1817
      %v1826 = vadd.f32 %v1794, %v1818
      %v1827 = vadd.f32 %v1795, %v1819
      %v1828 = vadd.f32 %v1796, %v1820
      %v1829 = vadd.f32 %v1797, %v1821
      %v1830 = vadd.f32 %v1798, %v1822
      %v1831 = vadd.f32 %v1799, %v1823
      %v1832 = vadd.f32 %v1800, %v1824
      %v1833 = vadd.f32 %v1801, %v1825
      %1834 = vst [vmem:[#allocation7] sm:$0xff] %v1826
      %1835 = vst [vmem:[#allocation7 + $0x8] sm:$0xff] %v1827
      %1836 = vst [vmem:[#allocation7 + $0x10] sm:$0xff] %v1828
      %1837 = vst [vmem:[#allocation7 + $0x18] sm:$0xff] %v1829
      %1838 = vst [vmem:[#allocation7 + $0x20] sm:$0xff] %v1830
      %1839 = vst [vmem:[#allocation7 + $0x28] sm:$0xff] %v1831
      %1840 = vst [vmem:[#allocation7 + $0x30] sm:$0xff] %v1832
      %1841 = vst [vmem:[#allocation7 + $0x38] sm:$0xff] %v1833
      %v1842 = vld [vmem:[#allocation7] sm:$0xff]
      %v1843 = vld [vmem:[#allocation7 + $0x8] sm:$0xff]
      %v1844 = vld [vmem:[#allocation7 + $0x10] sm:$0xff]
      %v1845 = vld [vmem:[#allocation7 + $0x18] sm:$0xff]
      %v1846 = vld [vmem:[#allocation7 + $0x20] sm:$0xff]
      %v1847 = vld [vmem:[#allocation7 + $0x28] sm:$0xff]
      %v1848 = vld [vmem:[#allocation7 + $0x30] sm:$0xff]
      %v1849 = vld [vmem:[#allocation7 + $0x38] sm:$0xff]
      %v1850 = vld [vmem:[#allocation5 + $0xc0] sm:$0xff]
      %v1851 = vld [vmem:[#allocation5 + $0xc8] sm:$0xff]
      %v1852 = vld [vmem:[#allocation5 + $0xd0] sm:$0xff]
      %v1853 = vld [vmem:[#allocation5 + $0xd8] sm:$0xff]
      %v1854 = vld [vmem:[#allocation5 + $0xe0] sm:$0xff]
      %v1855 = vld [vmem:[#allocation5 + $0xe8] sm:$0xff]
      %v1856 = vld [vmem:[#allocation5 + $0xf0] sm:$0xff]
      %v1857 = vld [vmem:[#allocation5 + $0xf8] sm:$0xff]
      %v1858 = vld [vmem:[#allocation6 + $0xc0] sm:$0xff]
      %v1859 = vld [vmem:[#allocation6 + $0xc8] sm:$0xff]
      %v1860 = vld [vmem:[#allocation6 + $0xd0] sm:$0xff]
      %v1861 = vld [vmem:[#allocation6 + $0xd8] sm:$0xff]
      %v1862 = vld [vmem:[#allocation6 + $0xe0] sm:$0xff]
      %v1863 = vld [vmem:[#allocation6 + $0xe8] sm:$0xff]
      %v1864 = vld [vmem:[#allocation6 + $0xf0] sm:$0xff]
      %v1865 = vld [vmem:[#allocation6 + $0xf8] sm:$0xff]
      %v1866 = vmul.f32 %v1850, %v1858
      %v1867 = vmul.f32 %v1851, %v1859
      %v1868 = vmul.f32 %v1852, %v1860
      %v1869 = vmul.f32 %v1853, %v1861
      %v1870 = vmul.f32 %v1854, %v1862
      %v1871 = vmul.f32 %v1855, %v1863
      %v1872 = vmul.f32 %v1856, %v1864
      %v1873 = vmul.f32 %v1857, %v1865
      %v1874 = vadd.f32 %v1842, %v1866
      %v1875 = vadd.f32 %v1843, %v1867
      %v1876 = vadd.f32 %v1844, %v1868
      %v1877 = vadd.f32 %v1845, %v1869
      %v1878 = vadd.f32 %v1846, %v1870
      %v1879 = vadd.f32 %v1847, %v1871
      %v1880 = vadd.f32 %v1848, %v1872
      %v1881 = vadd.f32 %v1849, %v1873
      %1882 = vst [vmem:[#allocation7] sm:$0xff] %v1874
      %1883 = vst [vmem:[#allocation7 + $0x8] sm:$0xff] %v1875
      %1884 = vst [vmem:[#allocation7 + $0x10] sm:$0xff] %v1876
      %1885 = vst [vmem:[#allocation7 + $0x18] sm:$0xff] %v1877
      %1886 = vst [vmem:[#allocation7 + $0x20] sm:$0xff] %v1878
      %1887 = vst [vmem:[#allocation7 + $0x28] sm:$0xff] %v1879
      %1888 = vst [vmem:[#allocation7 + $0x30] sm:$0xff] %v1880
      %1889 = vst [vmem:[#allocation7 + $0x38] sm:$0xff] %v1881
      %v1890 = vld [vmem:[#allocation7] sm:$0xff]
      %v1891 = vld [vmem:[#allocation7 + $0x8] sm:$0xff]
      %v1892 = vld [vmem:[#allocation7 + $0x10] sm:$0xff]
      %v1893 = vld [vmem:[#allocation7 + $0x18] sm:$0xff]
      %v1894 = vld [vmem:[#allocation7 + $0x20] sm:$0xff]
      %v1895 = vld [vmem:[#allocation7 + $0x28] sm:$0xff]
      %v1896 = vld [vmem:[#allocation7 + $0x30] sm:$0xff]
      %v1897 = vld [vmem:[#allocation7 + $0x38] sm:$0xff]
      %v1898 = vld [vmem:[#allocation5 + $0x100] sm:$0xff]
      %v1899 = vld [vmem:[#allocation5 + $0x108] sm:$0xff]
      %v1900 = vld [vmem:[#allocation5 + $0x110] sm:$0xff]
      %v1901 = vld [vmem:[#allocation5 + $0x118] sm:$0xff]
      %v1902 = vld [vmem:[#allocation5 + $0x120] sm:$0xff]
      %v1903 = vld [vmem:[#allocation5 + $0x128] sm:$0xff]
      %v1904 = vld [vmem:[#allocation5 + $0x130] sm:$0xff]
      %v1905 = vld [vmem:[#allocation5 + $0x138] sm:$0xff]
      %v1906 = vld [vmem:[#allocation6 + $0x100] sm:$0xff]
      %v1907 = vld [vmem:[#allocation6 + $0x108] sm:$0xff]
      %v1908 = vld [vmem:[#allocation6 + $0x110] sm:$0xff]
      %v1909 = vld [vmem:[#allocation6 + $0x118] sm:$0xff]
      %v1910 = vld [vmem:[#allocation6 + $0x120] sm:$0xff]
      %v1911 = vld [vmem:[#allocation6 + $0x128] sm:$0xff]
      %v1912 = vld [vmem:[#allocation6 + $0x130] sm:$0xff]
      %v1913 = vld [vmem:[#allocation6 + $0x138] sm:$0xff]
      %v1914 = vmul.f32 %v1898, %v1906
      %v1915 = vmul.f32 %v1899, %v1907
      %v1916 = vmul.f32 %v1900, %v1908
      %v1917 = vmul.f32 %v1901, %v1909
      %v1918 = vmul.f32 %v1902, %v1910
      %v1919 = vmul.f32 %v1903, %v1911
      %v1920 = vmul.f32 %v1904, %v1912
      %v1921 = vmul.f32 %v1905, %v1913
      %v1922 = vadd.f32 %v1890, %v1914
      %v1923 = vadd.f32 %v1891, %v1915
      %v1924 = vadd.f32 %v1892, %v1916
      %v1925 = vadd.f32 %v1893, %v1917
      %v1926 = vadd.f32 %v1894, %v1918
      %v1927 = vadd.f32 %v1895, %v1919
      %v1928 = vadd.f32 %v1896, %v1920
      %v1929 = vadd.f32 %v1897, %v1921
      %1930 = vst [vmem:[#allocation7] sm:$0xff] %v1922
      %1931 = vst [vmem:[#allocation7 + $0x8] sm:$0xff] %v1923
      %1932 = vst [vmem:[#allocation7 + $0x10] sm:$0xff] %v1924
      %1933 = vst [vmem:[#allocation7 + $0x18] sm:$0xff] %v1925
      %1934 = vst [vmem:[#allocation7 + $0x20] sm:$0xff] %v1926
      %1935 = vst [vmem:[#allocation7 + $0x28] sm:$0xff] %v1927
      %1936 = vst [vmem:[#allocation7 + $0x30] sm:$0xff] %v1928
      %1937 = vst [vmem:[#allocation7 + $0x38] sm:$0xff] %v1929
      %v1938 = vld [vmem:[#allocation7] sm:$0xff]
      %v1939 = vld [vmem:[#allocation7 + $0x8] sm:$0xff]
      %v1940 = vld [vmem:[#allocation7 + $0x10] sm:$0xff]
      %v1941 = vld [vmem:[#allocation7 + $0x18] sm:$0xff]
      %v1942 = vld [vmem:[#allocation7 + $0x20] sm:$0xff]
      %v1943 = vld [vmem:[#allocation7 + $0x28] sm:$0xff]
      %v1944 = vld [vmem:[#allocation7 + $0x30] sm:$0xff]
      %v1945 = vld [vmem:[#allocation7 + $0x38] sm:$0xff]
      %v1946 = vmax.f32 %v1938, %v1939
      %1947 = vmax.xlane.f32.xlu0 %v1946
      %v1948 = vpop.xlane.xlu0 %1947
      %v1949 = vmax.f32 %v1940, %v1941
      %1950 = vmax.xlane.f32.xlu0 %v1949
      %v1951 = vpop.xlane.xlu0 %1950
      %v1952 = vmax.f32 %v1942, %v1943
      %1953 = vmax.xlane.f32.xlu0 %v1952
      %v1954 = vpop.xlane.xlu0 %1953
      %v1955 = vmax.f32 %v1944, %v1945
      %1956 = vmax.xlane.f32.xlu0 %v1955
      %v1957 = vpop.xlane.xlu0 %1956
      %v1958 = vsub.f32 %v1938, %v1948
      %v1959 = vsub.f32 %v1939, %v1948
      %v1960 = vsub.f32 %v1940, %v1951
      %v1961 = vsub.f32 %v1941, %v1951
      %v1962 = vsub.f32 %v1942, %v1954
      %v1963 = vsub.f32 %v1943, %v1954
      %v1964 = vsub.f32 %v1944, %v1957
      %v1965 = vsub.f32 %v1945, %v1957
      %v1966 = vmul.f32 %v1958, 1.442695
      %v1967 = vpow.pop %v1966
      %v1968 = vmul.f32 %v1959, 1.442695
      %v1969 = vpow.pop %v1968
      %v1970 = vmul.f32 %v1960, 1.442695
      %v1971 = vpow.pop %v1970
      %v1972 = vmul.f32 %v1961, 1.442695
      %v1973 = vpow.pop %v1972
      %v1974 = vmul.f32 %v1962, 1.442695
      %v1975 = vpow.pop %v1974
      %v1976 = vmul.f32 %v1963, 1.442695
      %v1977 = vpow.pop %v1976
      %v1978 = vmul.f32 %v1964, 1.442695
      %v1979 = vpow.pop %v1978
      %v1980 = vmul.f32 %v1965, 1.442695
      %v1981 = vpow.pop %v1980
      %v1982 = vadd.f32 %v1967, %v1969
      %1983 = vadd.xlane.f32.xlu0 %v1982
      %v1984 = vpop.xlane.xlu0 %1983
      %v1985 = vadd.f32 %v1971, %v1973
      %1986 = vadd.xlane.f32.xlu0 %v1985
      %v1987 = vpop.xlane.xlu0 %1986
      %v1988 = vadd.f32 %v1975, %v1977
      %1989 = vadd.xlane.f32.xlu0 %v1988
      %v1990 = vpop.xlane.xlu0 %1989
      %v1991 = vadd.f32 %v1979, %v1981
      %1992 = vadd.xlane.f32.xlu0 %v1991
      %v1993 = vpop.xlane.xlu0 %1992
      %v1994 = vrcp.pop %v1984
      %v1995 = vrcp.pop %v1987
      %v1996 = vrcp.pop %v1990
      %v1997 = vrcp.pop %v1993
      %v1998 = vmul.f32 %v1967, %v1994
      %v1999 = vmul.f32 %v1969, %v1994
      %v2000 = vmul.f32 %v1971, %v1995
      %v2001 = vmul.f32 %v1973, %v1995
      %v2002 = vmul.f32 %v1975, %v1996
      %v2003 = vmul.f32 %v1977, %v1996
      %v2004 = vmul.f32 %v1979, %v1997
      %v2005 = vmul.f32 %v1981, %v1997
      %2006 = vst [vmem:[%s417] sm:$0xff] %v1998
      %2007 = vst [vmem:[%s417 + $0x8] sm:$0xff] %v1999
      %2008 = vst [vmem:[%s417 + $0x10] sm:$0xff] %v2000
      %2009 = vst [vmem:[%s417 + $0x18] sm:$0xff] %v2001
      %2010 = vst [vmem:[%s417 + $0x20] sm:$0xff] %v2002
      %2011 = vst [vmem:[%s417 + $0x28] sm:$0xff] %v2003
      %2012 = vst [vmem:[%s417 + $0x30] sm:$0xff] %v2004
      %2013 = vst [vmem:[%s417 + $0x38] sm:$0xff] %v2005
      %v2014 = vpack.c.bf16 %v2000, %v1998
      %v2015 = vpack.c.bf16 %v2001, %v1999
      %v2016 = vpack.c.bf16 %v2004, %v2002
      %v2017 = vpack.c.bf16 %v2005, %v2003
      %v2018 = vld [vmem:[%s8] sm:$0xf]
      %v2019 = vld [vmem:[%s8 + $0x4] sm:$0xf]
      %v2020 = vld [vmem:[%s8 + $0x8] sm:$0xf]
      %v2021 = vld [vmem:[%s8 + $0xc] sm:$0xf]
      %v2022 = vld [vmem:[%s8 + $0x10] sm:$0xf]
      %v2023 = vld [vmem:[%s8 + $0x14] sm:$0xf]
      %v2024 = vld [vmem:[%s8 + $0x18] sm:$0xf]
      %v2025 = vld [vmem:[%s8 + $0x1c] sm:$0xf]
      %v2026 = vld [vmem:[%s8 + $0x20] sm:$0xf]
      %v2027 = vld [vmem:[%s8 + $0x24] sm:$0xf]
      %v2028 = vld [vmem:[%s8 + $0x28] sm:$0xf]
      %v2029 = vld [vmem:[%s8 + $0x2c] sm:$0xf]
      %v2030 = vld [vmem:[%s8 + $0x30] sm:$0xf]
      %v2031 = vld [vmem:[%s8 + $0x34] sm:$0xf]
      %v2032 = vld [vmem:[%s8 + $0x38] sm:$0xf]
      %v2033 = vld [vmem:[%s8 + $0x3c] sm:$0xf]
      %v2034 = vld [vmem:[%s8 + $0x40] sm:$0xf]
      %v2035 = vld [vmem:[%s8 + $0x44] sm:$0xf]
      %v2036 = vld [vmem:[%s8 + $0x48] sm:$0xf]
      %v2037 = vld [vmem:[%s8 + $0x4c] sm:$0xf]
      %v2038 = vld [vmem:[%s8 + $0x50] sm:$0xf]
      %v2039 = vld [vmem:[%s8 + $0x54] sm:$0xf]
      %v2040 = vld [vmem:[%s8 + $0x58] sm:$0xf]
      %v2041 = vld [vmem:[%s8 + $0x5c] sm:$0xf]
      %v2042 = vld [vmem:[%s8 + $0x60] sm:$0xf]
      %v2043 = vld [vmem:[%s8 + $0x64] sm:$0xf]
      %v2044 = vld [vmem:[%s8 + $0x68] sm:$0xf]
      %v2045 = vld [vmem:[%s8 + $0x6c] sm:$0xf]
      %v2046 = vld [vmem:[%s8 + $0x70] sm:$0xf]
      %v2047 = vld [vmem:[%s8 + $0x74] sm:$0xf]
      %v2048 = vld [vmem:[%s8 + $0x78] sm:$0xf]
      %v2049 = vld [vmem:[%s8 + $0x7c] sm:$0xf]
      %v2082 = vunpack.c.l.b16 %v2018
      %v2083 = vunpack.c.l.b16 %v2019
      %v2084 = vunpack.c.l.b16 %v2020
      %v2085 = vunpack.c.l.b16 %v2021
      %v2086 = vunpack.c.l.b16 %v2022
      %v2087 = vunpack.c.l.b16 %v2023
      %v2088 = vunpack.c.l.b16 %v2024
      %v2089 = vunpack.c.l.b16 %v2025
      %v2090 = vunpack.c.l.b16 %v2026
      %v2091 = vunpack.c.l.b16 %v2027
      %v2092 = vunpack.c.l.b16 %v2028
      %v2093 = vunpack.c.l.b16 %v2029
      %v2094 = vunpack.c.l.b16 %v2030
      %v2095 = vunpack.c.l.b16 %v2031
      %v2096 = vunpack.c.l.b16 %v2032
      %v2097 = vunpack.c.l.b16 %v2033
      %v2098 = vunpack.c.l.b16 %v2034
      %v2099 = vunpack.c.l.b16 %v2035
      %v2100 = vunpack.c.l.b16 %v2036
      %v2101 = vunpack.c.l.b16 %v2037
      %v2102 = vunpack.c.l.b16 %v2038
      %v2103 = vunpack.c.l.b16 %v2039
      %v2104 = vunpack.c.l.b16 %v2040
      %v2105 = vunpack.c.l.b16 %v2041
      %v2106 = vunpack.c.l.b16 %v2042
      %v2107 = vunpack.c.l.b16 %v2043
      %v2108 = vunpack.c.l.b16 %v2044
      %v2109 = vunpack.c.l.b16 %v2045
      %v2110 = vunpack.c.l.b16 %v2046
      %v2111 = vunpack.c.l.b16 %v2047
      %v2112 = vunpack.c.l.b16 %v2048
      %v2113 = vunpack.c.l.b16 %v2049
      %v2114 = vpack.c.b16 %v2083, %v2082
      %v2115 = vpack.c.b16 %v2085, %v2084
      %v2116 = vpack.c.b16 %v2087, %v2086
      %v2117 = vpack.c.b16 %v2089, %v2088
      %v2118 = vpack.c.b16 %v2091, %v2090
      %v2119 = vpack.c.b16 %v2093, %v2092
      %v2120 = vpack.c.b16 %v2095, %v2094
      %v2121 = vpack.c.b16 %v2097, %v2096
      %v2122 = vpack.c.b16 %v2099, %v2098
      %v2123 = vpack.c.b16 %v2101, %v2100
      %v2124 = vpack.c.b16 %v2103, %v2102
      %v2125 = vpack.c.b16 %v2105, %v2104
      %v2126 = vpack.c.b16 %v2107, %v2106
      %v2127 = vpack.c.b16 %v2109, %v2108
      %v2128 = vpack.c.b16 %v2111, %v2110
      %v2129 = vpack.c.b16 %v2113, %v2112
      %2146 = vmatprep.subr.bf16.mxu0 0
      %2147 = vmatpush1.bf16.msra.mxu0 %v2114
      %2148 = vmatprep.subr.bf16.mxu0 0
      %2149 = vmatpush1.bf16.msra.mxu0 %v2115
      %2150 = vmatprep.subr.bf16.mxu0 0
      %2151 = vmatpush1.bf16.msra.mxu0 %v2116
      %2152 = vmatprep.subr.bf16.mxu0 0
      %2153 = vmatpush1.bf16.msra.mxu0 %v2117
      %2154 = vmatprep.subr.bf16.mxu0 0
      %2155 = vmatpush1.bf16.msra.mxu0 %v2118
      %2156 = vmatprep.subr.bf16.mxu0 0
      %2157 = vmatpush1.bf16.msra.mxu0 %v2119
      %2158 = vmatprep.subr.bf16.mxu0 0
      %2159 = vmatpush1.bf16.msra.mxu0 %v2120
      %2160 = vmatprep.subr.bf16.mxu0 0
      %2161 = vmatpush1.bf16.msra.mxu0 %v2121
      %2162 = vmatprep.subr.bf16.mxu0 0
      %2163 = vmatpush1.bf16.msra.mxu0 %v2122
      %2164 = vmatprep.subr.bf16.mxu0 0
      %2165 = vmatpush1.bf16.msra.mxu0 %v2123
      %2166 = vmatprep.subr.bf16.mxu0 0
      %2167 = vmatpush1.bf16.msra.mxu0 %v2124
      %2168 = vmatprep.subr.bf16.mxu0 0
      %2169 = vmatpush1.bf16.msra.mxu0 %v2125
      %2170 = vmatprep.subr.bf16.mxu0 0
      %2171 = vmatpush1.bf16.msra.mxu0 %v2126
      %2172 = vmatprep.subr.bf16.mxu0 0
      %2173 = vmatpush1.bf16.msra.mxu0 %v2127
      %2174 = vmatprep.subr.bf16.mxu0 0
      %2175 = vmatpush1.bf16.msra.mxu0 %v2128
      %2176 = vmatprep.subr.bf16.mxu0 0
      %2177 = vmatpush1.bf16.msra.mxu0 %v2129
      %2178 = vmatprep.mubr.bf16.mxu0 %v2015
      %2179 = vmatmul.mubr.bf16.gmra.mrb[0].mxu0 %v2014
      %v2180 = vpop.f32.mrb[0].mxu0
      %v2181 = vadd.f32 0.0, %v2180
      %v2182 = vpop.f32.mrb[0].mxu0
      %v2183 = vpop.f32.mrb[0].mxu0
      %v2184 = vadd.f32 0.0, %v2183
      %v2185 = vpop.f32.mrb[0].mxu0
      %2186 = vmatprep.mubr.bf16.mxu0 %v2017
      %2187 = vmatmul.mubr.bf16.gmra.mrb[0].mxu0 %v2016
      %v2188 = vpop.f32.mrb[0].mxu0
      %v2189 = vadd.f32 0.0, %v2188
      %v2190 = vpop.f32.mrb[0].mxu0
      %v2191 = vpop.f32.mrb[0].mxu0
      %v2192 = vadd.f32 0.0, %v2191
      %v2193 = vpop.f32.mrb[0].mxu0
      %2194 = vdwg.mxu0
      %2195 = vst [vmem:[%s404] sm:$0xff] %v2181
      %2196 = vst [vmem:[%s404 + $0x8] sm:$0xff] %v2184
      %2197 = vst [vmem:[%s404 + $0x10] sm:$0xff] %v2189
      %2198 = vst [vmem:[%s404 + $0x18] sm:$0xff] %v2192
      %s2199 = smul.u32 4, %s23
      %p2200 = scmp.lt.s32.totalorder %s2199, 7
      %s2201 = scalar_select %p2200, %s2199, 7
      %s2202 = smul.addr %s2201, 8
      %s2203 = scalar_lea.vmem %s9, %s2202
      %s2204 = smul.u32 4, %s23
      %p2205 = scmp.lt.s32.totalorder %s2204, 7
      %s2206 = scalar_select %p2205, %s2204, 7
      %s2207 = smul.addr %s2206, 8
      %s2208 = scalar_lea.vmem %s10, %s2207
      %s2209 = smul.u32 4, %s23
      %p2210 = scmp.lt.s32.totalorder %s2209, 7
      %s2211 = scalar_select %p2210, %s2209, 7
      %s2212 = smul.addr %s2211, 2
      %s2213 = smul.addr %s2212, 8
      %s2214 = scalar_lea.vmem %s11, %s2213
      // Predicated region
      $region57: #{rnn_model_forward.3} parent=55 // pred_check
        %p2215 = pneg %p235
      $region58: #{rnn_model_forward.3} parent=55 // pred_check_branch
        %2217 = sbr.rel (%p2215) target = $region60
      $region59: #{rnn_model_forward.3} parent=55 // pred_region
        %s2218 = smul.u32 4, %s23
      $region60: #{rnn_model_forward.3} parent=55 // pred_fallthru
        _
      // Predicated region
      $region61: #{rnn_model_forward.3} parent=55 // pred_check
        %p2219 = pneg %p261
      $region62: #{rnn_model_forward.3} parent=55 // pred_check_branch
        %2221 = sbr.rel (%p2219) target = $region64
      $region63: #{rnn_model_forward.3} parent=55 // pred_region
        %s2222 = smul.u32 4, %s23
      $region64: #{rnn_model_forward.3} parent=55 // pred_fallthru
        _
      // Predicated region
      $region65: #{rnn_model_forward.3} parent=55 // pred_check
        %p2223 = pneg %p287
      $region66: #{rnn_model_forward.3} parent=55 // pred_check_branch
        %2225 = sbr.rel (%p2223) target = $region68
      $region67: #{rnn_model_forward.3} parent=55 // pred_region
        %s2226 = smul.u32 4, %s23
      $region68: #{rnn_model_forward.3} parent=55 // pred_fallthru
        _
    $region56: #{rnn_model_forward.3} parent=5 // pred_fallthru
      _
    %p2227 = scmp.le.s32.totalorder 2, %s18
    // Predicated region
    $region69: #{rnn_model_forward.3} parent=5 // pred_check
      %p2228 = pneg %p2227
    $region70: #{rnn_model_forward.3} parent=5 // pred_check_branch
      %2230 = sbr.rel (%p2228) target = $region72
    $region71: #{rnn_model_forward.3} parent=5 // pred_region
      %s2231 = ssub.s32 %s18, 2
      // Predicated region
      $region73: #{rnn_model_forward.3} parent=71 // pred_check
        %p2232 = pneg %p241
      $region74: #{rnn_model_forward.3} parent=71 // pred_check_branch
        %2234 = sbr.rel (%p2232) target = $region76
      $region75: #{rnn_model_forward.3} parent=71 // pred_region
        %s2235 = smul.u32 4, %s24
        %p2236 = scmp.lt.s32.totalorder %s2235, 7
        %s2237 = scalar_select %p2236, %s2235, 7
        %s2238 = smul.addr %s2237, 8
        %s2239 = scalar_lea.vmem %s9, %s2238
      $region76: #{rnn_model_forward.3} parent=71 // pred_fallthru
        _
      // Predicated region
      $region77: #{rnn_model_forward.3} parent=71 // pred_check
        %p2240 = pneg %p267
      $region78: #{rnn_model_forward.3} parent=71 // pred_check_branch
        %2242 = sbr.rel (%p2240) target = $region80
      $region79: #{rnn_model_forward.3} parent=71 // pred_region
        %s2243 = smul.u32 4, %s24
        %p2244 = scmp.lt.s32.totalorder %s2243, 7
        %s2245 = scalar_select %p2244, %s2243, 7
        %s2246 = smul.addr %s2245, 8
        %s2247 = scalar_lea.vmem %s10, %s2246
      $region80: #{rnn_model_forward.3} parent=71 // pred_fallthru
        _
      // Predicated region
      $region81: #{rnn_model_forward.3} parent=71 // pred_check
        %p2248 = pneg %p293
      $region82: #{rnn_model_forward.3} parent=71 // pred_check_branch
        %2250 = sbr.rel (%p2248) target = $region84
      $region83: #{rnn_model_forward.3} parent=71 // pred_region
        %s2251 = smul.u32 4, %s24
        %p2252 = scmp.lt.s32.totalorder %s2251, 7
        %s2253 = scalar_select %p2252, %s2251, 7
        %s2254 = smul.addr %s2253, 2
        %s2255 = smul.addr %s2254, 8
        %s2256 = scalar_lea.vmem %s11, %s2255
      $region84: #{rnn_model_forward.3} parent=71 // pred_fallthru
        _
    $region72: #{rnn_model_forward.3} parent=5 // pred_fallthru
      _
  $region6: #{rnn_model_forward.3} parent=0 // loop_footer
    %s22 = sadd.s32 1, %s18
  $region7: #{rnn_model_forward.3} parent=0 // loop_footer_branch
    %17 = sbr.rel target = $region3
  $region8: #{rnn_model_forward.3} parent=0 // loop_exit
    _

// kernel: rnn_model_forward.2
$region0: #{rnn_model_forward.2}
  #allocation0 [shape = 'u32[]', space=smem, size = 0x4, offset = 0x4, fixed_abs, tag = 'smem constant byte address 0x4 - core index']
  #allocation1 [shape = 'u32[144,128]{1,0:T(1,128)}', space=vmem, size = 0x12000, scoped, tag = 'internal scratch']
  #allocation2 [shape = 'bf16[64,128]{1,0:T(16,128)(2,1)}', space=vmem, size = 0x4000, scoped, tag = 'scratch operand']
  #allocation3 [shape = 'bf16[64,128]{1,0:T(16,128)(2,1)}', space=vmem, size = 0x4000, scoped, tag = 'scratch operand']
  #allocation4 [shape = 'f32[64,512]{1,0:T(8,128)}', space=vmem, size = 0x20000, scoped, tag = 'scratch operand']
  %s0 = inlined_call_operand.vmem [shape: bf16[64,128], index: 0, kind: input, shape index: {}]
  %s1 = inlined_call_operand.vmem [shape: f32[2,8,128], index: 1, kind: input, shape index: {}, may-alias: {1,7}]
  %s2 = inlined_call_operand.vmem [shape: f32[2,8,128], index: 2, kind: input, shape index: {}, may-alias: {2,8}]
  %s3 = inlined_call_operand.vmem [shape: bf16[2,128,512], index: 3, kind: input, shape index: {}]
  %s4 = inlined_call_operand.vmem [shape: bf16[2,128,512], index: 4, kind: input, shape index: {}]
  %s5 = inlined_call_operand.vmem [shape: f32[2,1,512], index: 5, kind: input, shape index: {}]
  %s6 = inlined_call_operand.vmem [shape: bf16[64,128], index: 6, kind: output, shape index: {0}]
  %s7 = inlined_call_operand.vmem [shape: f32[2,8,128], index: 7, kind: output, shape index: {1}, may-alias: {1,7}]
  %s8 = inlined_call_operand.vmem [shape: f32[2,8,128], index: 8, kind: output, shape index: {2}, may-alias: {2,8}]
  %9 = xla_tuple %s6, %s7, %s8
  %s10 = sld [smem:[#allocation0]]
  $region50: #{rnn_model_forward.2} parent=0
    _
  %s12 = ssub.s32 1, %s10
  %s13 = scalar_select 0, %s12, %s10
  // Predicated region
  $region2: #{rnn_model_forward.2} parent=0 // pred_check
    _
  $region3: #{rnn_model_forward.2} parent=0 // pred_check_branch
    %15 = sbr.rel (0) target = $region5
  $region4: #{rnn_model_forward.2} parent=0 // pred_region
    _
  $region5: #{rnn_model_forward.2} parent=0 // pred_fallthru
    _
  // Predicated region
  $region6: #{rnn_model_forward.2} parent=0 // pred_check
    _
  $region7: #{rnn_model_forward.2} parent=0 // pred_check_branch
    %17 = sbr.rel (0) target = $region9
  $region8: #{rnn_model_forward.2} parent=0 // pred_region
    _
  $region9: #{rnn_model_forward.2} parent=0 // pred_fallthru
    _
  // Predicated region
  $region10: #{rnn_model_forward.2} parent=0 // pred_check
    _
  $region11: #{rnn_model_forward.2} parent=0 // pred_check_branch
    %19 = sbr.rel (0) target = $region13
  $region12: #{rnn_model_forward.2} parent=0 // pred_region
    _
  $region13: #{rnn_model_forward.2} parent=0 // pred_fallthru
    _
  // Predicated region
  $region14: #{rnn_model_forward.2} parent=0 // pred_check
    _
  $region15: #{rnn_model_forward.2} parent=0 // pred_check_branch
    %21 = sbr.rel (0) target = $region17
  $region16: #{rnn_model_forward.2} parent=0 // pred_region
    _
  $region17: #{rnn_model_forward.2} parent=0 // pred_fallthru
    _
  // Predicated region
  $region18: #{rnn_model_forward.2} parent=0 // pred_check
    _
  $region19: #{rnn_model_forward.2} parent=0 // pred_check_branch
    %23 = sbr.rel (0) target = $region21
  $region20: #{rnn_model_forward.2} parent=0 // pred_region
    _
  $region21: #{rnn_model_forward.2} parent=0 // pred_fallthru
    _
  // Predicated region
  $region22: #{rnn_model_forward.2} parent=0 // pred_check
    _
  $region23: #{rnn_model_forward.2} parent=0 // pred_check_branch
    %25 = sbr.rel (0) target = $region25
  $region24: #{rnn_model_forward.2} parent=0 // pred_region
    _
  $region25: #{rnn_model_forward.2} parent=0 // pred_fallthru
    _
  %v27 = vld [vmem:[%s0] sm:$0xf]
  %v28 = vld [vmem:[%s0 + $0x4] sm:$0xf]
  %v29 = vld [vmem:[%s0 + $0x8] sm:$0xf]
  %v30 = vld [vmem:[%s0 + $0xc] sm:$0xf]
  %v31 = vld [vmem:[%s0 + $0x10] sm:$0xf]
  %v32 = vld [vmem:[%s0 + $0x14] sm:$0xf]
  %v33 = vld [vmem:[%s0 + $0x18] sm:$0xf]
  %v34 = vld [vmem:[%s0 + $0x1c] sm:$0xf]
  %v35 = vld [vmem:[%s3] sm:$0xff]
  %v36 = vld [vmem:[%s3 + $0x8] sm:$0xff]
  %v37 = vld [vmem:[%s3 + $0x10] sm:$0xff]
  %v38 = vld [vmem:[%s3 + $0x18] sm:$0xff]
  %v39 = vld [vmem:[%s3 + $0x20] sm:$0xff]
  %v40 = vld [vmem:[%s3 + $0x28] sm:$0xff]
  %v41 = vld [vmem:[%s3 + $0x30] sm:$0xff]
  %v42 = vld [vmem:[%s3 + $0x38] sm:$0xff]
  %v43 = vld [vmem:[%s3 + $0x40] sm:$0xff]
  %v44 = vld [vmem:[%s3 + $0x48] sm:$0xff]
  %v45 = vld [vmem:[%s3 + $0x50] sm:$0xff]
  %v46 = vld [vmem:[%s3 + $0x58] sm:$0xff]
  %v47 = vld [vmem:[%s3 + $0x60] sm:$0xff]
  %v48 = vld [vmem:[%s3 + $0x68] sm:$0xff]
  %v49 = vld [vmem:[%s3 + $0x70] sm:$0xff]
  %v50 = vld [vmem:[%s3 + $0x78] sm:$0xff]
  %v51 = vld [vmem:[%s3 + $0x80] sm:$0xff]
  %v52 = vld [vmem:[%s3 + $0x88] sm:$0xff]
  %v53 = vld [vmem:[%s3 + $0x90] sm:$0xff]
  %v54 = vld [vmem:[%s3 + $0x98] sm:$0xff]
  %v55 = vld [vmem:[%s3 + $0xa0] sm:$0xff]
  %v56 = vld [vmem:[%s3 + $0xa8] sm:$0xff]
  %v57 = vld [vmem:[%s3 + $0xb0] sm:$0xff]
  %v58 = vld [vmem:[%s3 + $0xb8] sm:$0xff]
  %v59 = vld [vmem:[%s3 + $0xc0] sm:$0xff]
  %v60 = vld [vmem:[%s3 + $0xc8] sm:$0xff]
  %v61 = vld [vmem:[%s3 + $0xd0] sm:$0xff]
  %v62 = vld [vmem:[%s3 + $0xd8] sm:$0xff]
  %v63 = vld [vmem:[%s3 + $0xe0] sm:$0xff]
  %v64 = vld [vmem:[%s3 + $0xe8] sm:$0xff]
  %v65 = vld [vmem:[%s3 + $0xf0] sm:$0xff]
  %v66 = vld [vmem:[%s3 + $0xf8] sm:$0xff]
  %v67 = vld [vmem:[%s5] sm:$0xf]
  %v69 = vlaneseq
  %v70 = vshrl.u32 %v69, 7
  %v71 = vsub.s32 0, %v70
  %v72 = vrot.slane %v67, %v71
  %v73 = vlaneseq
  %v74 = vshrl.u32 %v73, 7
  %v75 = vsub.s32 1, %v74
  %v76 = vrot.slane %v67, %v75
  %v77 = vlaneseq
  %v78 = vshrl.u32 %v77, 7
  %v79 = vsub.s32 2, %v78
  %v80 = vrot.slane %v67, %v79
  %v81 = vlaneseq
  %v82 = vshrl.u32 %v81, 7
  %v83 = vsub.s32 3, %v82
  %v84 = vrot.slane %v67, %v83
  %v97 = vunpack.c.l.b16 %v27
  %v98 = vunpack.c.l.b16 %v28
  %v99 = vunpack.c.l.b16 %v29
  %v100 = vunpack.c.l.b16 %v30
  %v101 = vunpack.c.l.b16 %v31
  %v102 = vunpack.c.l.b16 %v32
  %v103 = vunpack.c.l.b16 %v33
  %v104 = vunpack.c.l.b16 %v34
  %v105 = vpack.c.b16 %v98, %v97
  %v106 = vpack.c.b16 %v100, %v99
  %v107 = vpack.c.b16 %v102, %v101
  %v108 = vpack.c.b16 %v104, %v103
  %v145 = vunpack.c.l.b16 %v35
  %v146 = vunpack.c.h.b16 %v35
  %v147 = vunpack.c.l.b16 %v36
  %v148 = vunpack.c.h.b16 %v36
  %v149 = vunpack.c.l.b16 %v37
  %v150 = vunpack.c.h.b16 %v37
  %v151 = vunpack.c.l.b16 %v38
  %v152 = vunpack.c.h.b16 %v38
  %v153 = vunpack.c.l.b16 %v39
  %v154 = vunpack.c.h.b16 %v39
  %v155 = vunpack.c.l.b16 %v40
  %v156 = vunpack.c.h.b16 %v40
  %v157 = vunpack.c.l.b16 %v41
  %v158 = vunpack.c.h.b16 %v41
  %v159 = vunpack.c.l.b16 %v42
  %v160 = vunpack.c.h.b16 %v42
  %v161 = vunpack.c.l.b16 %v43
  %v162 = vunpack.c.h.b16 %v43
  %v163 = vunpack.c.l.b16 %v44
  %v164 = vunpack.c.h.b16 %v44
  %v165 = vunpack.c.l.b16 %v45
  %v166 = vunpack.c.h.b16 %v45
  %v167 = vunpack.c.l.b16 %v46
  %v168 = vunpack.c.h.b16 %v46
  %v169 = vunpack.c.l.b16 %v47
  %v170 = vunpack.c.h.b16 %v47
  %v171 = vunpack.c.l.b16 %v48
  %v172 = vunpack.c.h.b16 %v48
  %v173 = vunpack.c.l.b16 %v49
  %v174 = vunpack.c.h.b16 %v49
  %v175 = vunpack.c.l.b16 %v50
  %v176 = vunpack.c.h.b16 %v50
  %v177 = vunpack.c.l.b16 %v51
  %v178 = vunpack.c.h.b16 %v51
  %v179 = vunpack.c.l.b16 %v52
  %v180 = vunpack.c.h.b16 %v52
  %v181 = vunpack.c.l.b16 %v53
  %v182 = vunpack.c.h.b16 %v53
  %v183 = vunpack.c.l.b16 %v54
  %v184 = vunpack.c.h.b16 %v54
  %v185 = vunpack.c.l.b16 %v55
  %v186 = vunpack.c.h.b16 %v55
  %v187 = vunpack.c.l.b16 %v56
  %v188 = vunpack.c.h.b16 %v56
  %v189 = vunpack.c.l.b16 %v57
  %v190 = vunpack.c.h.b16 %v57
  %v191 = vunpack.c.l.b16 %v58
  %v192 = vunpack.c.h.b16 %v58
  %v193 = vunpack.c.l.b16 %v59
  %v194 = vunpack.c.h.b16 %v59
  %v195 = vunpack.c.l.b16 %v60
  %v196 = vunpack.c.h.b16 %v60
  %v197 = vunpack.c.l.b16 %v61
  %v198 = vunpack.c.h.b16 %v61
  %v199 = vunpack.c.l.b16 %v62
  %v200 = vunpack.c.h.b16 %v62
  %v201 = vunpack.c.l.b16 %v63
  %v202 = vunpack.c.h.b16 %v63
  %v203 = vunpack.c.l.b16 %v64
  %v204 = vunpack.c.h.b16 %v64
  %v205 = vunpack.c.l.b16 %v65
  %v206 = vunpack.c.h.b16 %v65
  %v207 = vunpack.c.l.b16 %v66
  %v208 = vunpack.c.h.b16 %v66
  %v209 = vpack.c.b16 %v149, %v145
  %v210 = vpack.c.b16 %v150, %v146
  %v211 = vpack.c.b16 %v151, %v147
  %v212 = vpack.c.b16 %v152, %v148
  %v213 = vpack.c.b16 %v157, %v153
  %v214 = vpack.c.b16 %v158, %v154
  %v215 = vpack.c.b16 %v159, %v155
  %v216 = vpack.c.b16 %v160, %v156
  %v217 = vpack.c.b16 %v165, %v161
  %v218 = vpack.c.b16 %v166, %v162
  %v219 = vpack.c.b16 %v167, %v163
  %v220 = vpack.c.b16 %v168, %v164
  %v221 = vpack.c.b16 %v173, %v169
  %v222 = vpack.c.b16 %v174, %v170
  %v223 = vpack.c.b16 %v175, %v171
  %v224 = vpack.c.b16 %v176, %v172
  %v225 = vpack.c.b16 %v181, %v177
  %v226 = vpack.c.b16 %v182, %v178
  %v227 = vpack.c.b16 %v183, %v179
  %v228 = vpack.c.b16 %v184, %v180
  %v229 = vpack.c.b16 %v189, %v185
  %v230 = vpack.c.b16 %v190, %v186
  %v231 = vpack.c.b16 %v191, %v187
  %v232 = vpack.c.b16 %v192, %v188
  %v233 = vpack.c.b16 %v197, %v193
  %v234 = vpack.c.b16 %v198, %v194
  %v235 = vpack.c.b16 %v199, %v195
  %v236 = vpack.c.b16 %v200, %v196
  %v237 = vpack.c.b16 %v205, %v201
  %v238 = vpack.c.b16 %v206, %v202
  %v239 = vpack.c.b16 %v207, %v203
  %v240 = vpack.c.b16 %v208, %v204
  %273 = vmatprep.subr.bf16.mxu0 %v210
  %274 = vmatpush1.bf16.msra.mxu0 %v209
  %275 = vmatprep.subr.bf16.mxu0 %v214
  %276 = vmatpush1.bf16.msra.mxu0 %v213
  %277 = vmatprep.subr.bf16.mxu0 %v218
  %278 = vmatpush1.bf16.msra.mxu0 %v217
  %279 = vmatprep.subr.bf16.mxu0 %v222
  %280 = vmatpush1.bf16.msra.mxu0 %v221
  %281 = vmatprep.subr.bf16.mxu0 %v226
  %282 = vmatpush1.bf16.msra.mxu0 %v225
  %283 = vmatprep.subr.bf16.mxu0 %v230
  %284 = vmatpush1.bf16.msra.mxu0 %v229
  %285 = vmatprep.subr.bf16.mxu0 %v234
  %286 = vmatpush1.bf16.msra.mxu0 %v233
  %287 = vmatprep.subr.bf16.mxu0 %v238
  %288 = vmatpush1.bf16.msra.mxu0 %v237
  %289 = vmatprep.subr.bf16.mxu0 0
  %290 = vmatpush1.bf16.msra.mxu0 0
  %291 = vmatprep.subr.bf16.mxu0 0
  %292 = vmatpush1.bf16.msra.mxu0 0
  %293 = vmatprep.subr.bf16.mxu0 0
  %294 = vmatpush1.bf16.msra.mxu0 0
  %295 = vmatprep.subr.bf16.mxu0 0
  %296 = vmatpush1.bf16.msra.mxu0 0
  %297 = vmatprep.subr.bf16.mxu0 0
  %298 = vmatpush1.bf16.msra.mxu0 0
  %299 = vmatprep.subr.bf16.mxu0 0
  %300 = vmatpush1.bf16.msra.mxu0 0
  %301 = vmatprep.subr.bf16.mxu0 0
  %302 = vmatpush1.bf16.msra.mxu0 0
  %303 = vmatprep.subr.bf16.mxu0 0
  %304 = vmatpush1.bf16.msra.mxu0 0
  %305 = vmatprep.mubr.bf16.mxu0 0
  %306 = vmatmul.mubr.bf16.gmra.mrb[0].mxu0 %v105
  %v307 = vpop.f32.mrb[0].mxu0
  %v308 = vadd.f32 %v72, %v307
  %v309 = vpop.f32.mrb[0].mxu0
  %v310 = vadd.f32 %v76, %v309
  %v311 = vpop.f32.mrb[0].mxu0
  %v312 = vadd.f32 %v72, %v311
  %v313 = vpop.f32.mrb[0].mxu0
  %v314 = vadd.f32 %v76, %v313
  %315 = vmatprep.mubr.bf16.mxu0 0
  %316 = vmatmul.mubr.bf16.gmra.mrb[0].mxu0 %v106
  %v317 = vpop.f32.mrb[0].mxu0
  %v318 = vadd.f32 %v72, %v317
  %v319 = vpop.f32.mrb[0].mxu0
  %v320 = vadd.f32 %v76, %v319
  %v321 = vpop.f32.mrb[0].mxu0
  %v322 = vadd.f32 %v72, %v321
  %v323 = vpop.f32.mrb[0].mxu0
  %v324 = vadd.f32 %v76, %v323
  %325 = vmatprep.mubr.bf16.mxu0 0
  %326 = vmatmul.mubr.bf16.gmra.mrb[0].mxu0 %v107
  %v327 = vpop.f32.mrb[0].mxu0
  %v328 = vadd.f32 %v72, %v327
  %v329 = vpop.f32.mrb[0].mxu0
  %v330 = vadd.f32 %v76, %v329
  %v331 = vpop.f32.mrb[0].mxu0
  %v332 = vadd.f32 %v72, %v331
  %v333 = vpop.f32.mrb[0].mxu0
  %v334 = vadd.f32 %v76, %v333
  %335 = vmatprep.mubr.bf16.mxu0 0
  %336 = vmatmul.mubr.bf16.gmra.mrb[0].mxu0 %v108
  %v337 = vpop.f32.mrb[0].mxu0
  %v338 = vadd.f32 %v72, %v337
  %v339 = vpop.f32.mrb[0].mxu0
  %v340 = vadd.f32 %v76, %v339
  %v341 = vpop.f32.mrb[0].mxu0
  %v342 = vadd.f32 %v72, %v341
  %v343 = vpop.f32.mrb[0].mxu0
  %v344 = vadd.f32 %v76, %v343
  %345 = vdwg.mxu0
  %346 = vmatprep.subr.bf16.mxu0 %v212
  %347 = vmatpush1.bf16.msra.mxu0 %v211
  %348 = vmatprep.subr.bf16.mxu0 %v216
  %349 = vmatpush1.bf16.msra.mxu0 %v215
  %350 = vmatprep.subr.bf16.mxu0 %v220
  %351 = vmatpush1.bf16.msra.mxu0 %v219
  %352 = vmatprep.subr.bf16.mxu0 %v224
  %353 = vmatpush1.bf16.msra.mxu0 %v223
  %354 = vmatprep.subr.bf16.mxu0 %v228
  %355 = vmatpush1.bf16.msra.mxu0 %v227
  %356 = vmatprep.subr.bf16.mxu0 %v232
  %357 = vmatpush1.bf16.msra.mxu0 %v231
  %358 = vmatprep.subr.bf16.mxu0 %v236
  %359 = vmatpush1.bf16.msra.mxu0 %v235
  %360 = vmatprep.subr.bf16.mxu0 %v240
  %361 = vmatpush1.bf16.msra.mxu0 %v239
  %362 = vmatprep.subr.bf16.mxu0 0
  %363 = vmatpush1.bf16.msra.mxu0 0
  %364 = vmatprep.subr.bf16.mxu0 0
  %365 = vmatpush1.bf16.msra.mxu0 0
  %366 = vmatprep.subr.bf16.mxu0 0
  %367 = vmatpush1.bf16.msra.mxu0 0
  %368 = vmatprep.subr.bf16.mxu0 0
  %369 = vmatpush1.bf16.msra.mxu0 0
  %370 = vmatprep.subr.bf16.mxu0 0
  %371 = vmatpush1.bf16.msra.mxu0 0
  %372 = vmatprep.subr.bf16.mxu0 0
  %373 = vmatpush1.bf16.msra.mxu0 0
  %374 = vmatprep.subr.bf16.mxu0 0
  %375 = vmatpush1.bf16.msra.mxu0 0
  %376 = vmatprep.subr.bf16.mxu0 0
  %377 = vmatpush1.bf16.msra.mxu0 0
  %378 = vmatprep.mubr.bf16.mxu0 0
  %379 = vmatmul.mubr.bf16.gmra.mrb[0].mxu0 %v105
  %v380 = vpop.f32.mrb[0].mxu0
  %v381 = vadd.f32 %v80, %v380
  %v382 = vpop.f32.mrb[0].mxu0
  %v383 = vadd.f32 %v84, %v382
  %v384 = vpop.f32.mrb[0].mxu0
  %v385 = vadd.f32 %v80, %v384
  %v386 = vpop.f32.mrb[0].mxu0
  %v387 = vadd.f32 %v84, %v386
  %388 = vmatprep.mubr.bf16.mxu0 0
  %389 = vmatmul.mubr.bf16.gmra.mrb[0].mxu0 %v106
  %v390 = vpop.f32.mrb[0].mxu0
  %v391 = vadd.f32 %v80, %v390
  %v392 = vpop.f32.mrb[0].mxu0
  %v393 = vadd.f32 %v84, %v392
  %v394 = vpop.f32.mrb[0].mxu0
  %v395 = vadd.f32 %v80, %v394
  %v396 = vpop.f32.mrb[0].mxu0
  %v397 = vadd.f32 %v84, %v396
  %398 = vmatprep.mubr.bf16.mxu0 0
  %399 = vmatmul.mubr.bf16.gmra.mrb[0].mxu0 %v107
  %v400 = vpop.f32.mrb[0].mxu0
  %v401 = vadd.f32 %v80, %v400
  %v402 = vpop.f32.mrb[0].mxu0
  %v403 = vadd.f32 %v84, %v402
  %v404 = vpop.f32.mrb[0].mxu0
  %v405 = vadd.f32 %v80, %v404
  %v406 = vpop.f32.mrb[0].mxu0
  %v407 = vadd.f32 %v84, %v406
  %408 = vmatprep.mubr.bf16.mxu0 0
  %409 = vmatmul.mubr.bf16.gmra.mrb[0].mxu0 %v108
  %v410 = vpop.f32.mrb[0].mxu0
  %v411 = vadd.f32 %v80, %v410
  %v412 = vpop.f32.mrb[0].mxu0
  %v413 = vadd.f32 %v84, %v412
  %v414 = vpop.f32.mrb[0].mxu0
  %v415 = vadd.f32 %v80, %v414
  %v416 = vpop.f32.mrb[0].mxu0
  %v417 = vadd.f32 %v84, %v416
  %418 = vdwg.mxu0
  %419 = vst [vmem:[#allocation4] sm:$0xff] %v308
  %420 = vst [vmem:[#allocation4 + $0x8] sm:$0xff] %v310
  %421 = vst [vmem:[#allocation4 + $0x10] sm:$0xff] %v381
  %422 = vst [vmem:[#allocation4 + $0x18] sm:$0xff] %v383
  %423 = vst [vmem:[#allocation4 + $0x20] sm:$0xff] %v312
  %424 = vst [vmem:[#allocation4 + $0x28] sm:$0xff] %v314
  %425 = vst [vmem:[#allocation4 + $0x30] sm:$0xff] %v385
  %426 = vst [vmem:[#allocation4 + $0x38] sm:$0xff] %v387
  %427 = vst [vmem:[#allocation4 + $0x40] sm:$0xff] %v318
  %428 = vst [vmem:[#allocation4 + $0x48] sm:$0xff] %v320
  %429 = vst [vmem:[#allocation4 + $0x50] sm:$0xff] %v391
  %430 = vst [vmem:[#allocation4 + $0x58] sm:$0xff] %v393
  %431 = vst [vmem:[#allocation4 + $0x60] sm:$0xff] %v322
  %432 = vst [vmem:[#allocation4 + $0x68] sm:$0xff] %v324
  %433 = vst [vmem:[#allocation4 + $0x70] sm:$0xff] %v395
  %434 = vst [vmem:[#allocation4 + $0x78] sm:$0xff] %v397
  %435 = vst [vmem:[#allocation4 + $0x80] sm:$0xff] %v328
  %436 = vst [vmem:[#allocation4 + $0x88] sm:$0xff] %v330
  %437 = vst [vmem:[#allocation4 + $0x90] sm:$0xff] %v401
  %438 = vst [vmem:[#allocation4 + $0x98] sm:$0xff] %v403
  %439 = vst [vmem:[#allocation4 + $0xa0] sm:$0xff] %v332
  %440 = vst [vmem:[#allocation4 + $0xa8] sm:$0xff] %v334
  %441 = vst [vmem:[#allocation4 + $0xb0] sm:$0xff] %v405
  %442 = vst [vmem:[#allocation4 + $0xb8] sm:$0xff] %v407
  %443 = vst [vmem:[#allocation4 + $0xc0] sm:$0xff] %v338
  %444 = vst [vmem:[#allocation4 + $0xc8] sm:$0xff] %v340
  %445 = vst [vmem:[#allocation4 + $0xd0] sm:$0xff] %v411
  %446 = vst [vmem:[#allocation4 + $0xd8] sm:$0xff] %v413
  %447 = vst [vmem:[#allocation4 + $0xe0] sm:$0xff] %v342
  %448 = vst [vmem:[#allocation4 + $0xe8] sm:$0xff] %v344
  %449 = vst [vmem:[#allocation4 + $0xf0] sm:$0xff] %v415
  %450 = vst [vmem:[#allocation4 + $0xf8] sm:$0xff] %v417
  %v451 = vld [vmem:[%s1] sm:$0xff]
  %v452 = vld [vmem:[%s2] sm:$0xff]
  %v453 = vld [vmem:[#allocation4] sm:$0xff]
  %v454 = vld [vmem:[#allocation4 + $0x8] sm:$0xff]
  %v455 = vld [vmem:[#allocation4 + $0x10] sm:$0xff]
  %v456 = vld [vmem:[#allocation4 + $0x18] sm:$0xff]
  %v457 = vpack.c.bf16 %v451, %v451
  %v458 = vld [vmem:[%s4] sm:$0xff]
  %v459 = vld [vmem:[%s4 + $0x8] sm:$0xff]
  %v460 = vld [vmem:[%s4 + $0x10] sm:$0xff]
  %v461 = vld [vmem:[%s4 + $0x18] sm:$0xff]
  %v462 = vld [vmem:[%s4 + $0x20] sm:$0xff]
  %v463 = vld [vmem:[%s4 + $0x28] sm:$0xff]
  %v464 = vld [vmem:[%s4 + $0x30] sm:$0xff]
  %v465 = vld [vmem:[%s4 + $0x38] sm:$0xff]
  %v466 = vld [vmem:[%s4 + $0x40] sm:$0xff]
  %v467 = vld [vmem:[%s4 + $0x48] sm:$0xff]
  %v468 = vld [vmem:[%s4 + $0x50] sm:$0xff]
  %v469 = vld [vmem:[%s4 + $0x58] sm:$0xff]
  %v470 = vld [vmem:[%s4 + $0x60] sm:$0xff]
  %v471 = vld [vmem:[%s4 + $0x68] sm:$0xff]
  %v472 = vld [vmem:[%s4 + $0x70] sm:$0xff]
  %v473 = vld [vmem:[%s4 + $0x78] sm:$0xff]
  %v474 = vld [vmem:[%s4 + $0x80] sm:$0xff]
  %v475 = vld [vmem:[%s4 + $0x88] sm:$0xff]
  %v476 = vld [vmem:[%s4 + $0x90] sm:$0xff]
  %v477 = vld [vmem:[%s4 + $0x98] sm:$0xff]
  %v478 = vld [vmem:[%s4 + $0xa0] sm:$0xff]
  %v479 = vld [vmem:[%s4 + $0xa8] sm:$0xff]
  %v480 = vld [vmem:[%s4 + $0xb0] sm:$0xff]
  %v481 = vld [vmem:[%s4 + $0xb8] sm:$0xff]
  %v482 = vld [vmem:[%s4 + $0xc0] sm:$0xff]
  %v483 = vld [vmem:[%s4 + $0xc8] sm:$0xff]
  %v484 = vld [vmem:[%s4 + $0xd0] sm:$0xff]
  %v485 = vld [vmem:[%s4 + $0xd8] sm:$0xff]
  %v486 = vld [vmem:[%s4 + $0xe0] sm:$0xff]
  %v487 = vld [vmem:[%s4 + $0xe8] sm:$0xff]
  %v488 = vld [vmem:[%s4 + $0xf0] sm:$0xff]
  %v489 = vld [vmem:[%s4 + $0xf8] sm:$0xff]
  %v522 = vunpack.c.l.b16 %v458
  %v523 = vunpack.c.h.b16 %v458
  %v524 = vunpack.c.l.b16 %v459
  %v525 = vunpack.c.h.b16 %v459
  %v526 = vunpack.c.l.b16 %v460
  %v527 = vunpack.c.h.b16 %v460
  %v528 = vunpack.c.l.b16 %v461
  %v529 = vunpack.c.h.b16 %v461
  %v530 = vunpack.c.l.b16 %v462
  %v531 = vunpack.c.h.b16 %v462
  %v532 = vunpack.c.l.b16 %v463
  %v533 = vunpack.c.h.b16 %v463
  %v534 = vunpack.c.l.b16 %v464
  %v535 = vunpack.c.h.b16 %v464
  %v536 = vunpack.c.l.b16 %v465
  %v537 = vunpack.c.h.b16 %v465
  %v538 = vunpack.c.l.b16 %v466
  %v539 = vunpack.c.h.b16 %v466
  %v540 = vunpack.c.l.b16 %v467
  %v541 = vunpack.c.h.b16 %v467
  %v542 = vunpack.c.l.b16 %v468
  %v543 = vunpack.c.h.b16 %v468
  %v544 = vunpack.c.l.b16 %v469
  %v545 = vunpack.c.h.b16 %v469
  %v546 = vunpack.c.l.b16 %v470
  %v547 = vunpack.c.h.b16 %v470
  %v548 = vunpack.c.l.b16 %v471
  %v549 = vunpack.c.h.b16 %v471
  %v550 = vunpack.c.l.b16 %v472
  %v551 = vunpack.c.h.b16 %v472
  %v552 = vunpack.c.l.b16 %v473
  %v553 = vunpack.c.h.b16 %v473
  %v554 = vunpack.c.l.b16 %v474
  %v555 = vunpack.c.h.b16 %v474
  %v556 = vunpack.c.l.b16 %v475
  %v557 = vunpack.c.h.b16 %v475
  %v558 = vunpack.c.l.b16 %v476
  %v559 = vunpack.c.h.b16 %v476
  %v560 = vunpack.c.l.b16 %v477
  %v561 = vunpack.c.h.b16 %v477
  %v562 = vunpack.c.l.b16 %v478
  %v563 = vunpack.c.h.b16 %v478
  %v564 = vunpack.c.l.b16 %v479
  %v565 = vunpack.c.h.b16 %v479
  %v566 = vunpack.c.l.b16 %v480
  %v567 = vunpack.c.h.b16 %v480
  %v568 = vunpack.c.l.b16 %v481
  %v569 = vunpack.c.h.b16 %v481
  %v570 = vunpack.c.l.b16 %v482
  %v571 = vunpack.c.h.b16 %v482
  %v572 = vunpack.c.l.b16 %v483
  %v573 = vunpack.c.h.b16 %v483
  %v574 = vunpack.c.l.b16 %v484
  %v575 = vunpack.c.h.b16 %v484
  %v576 = vunpack.c.l.b16 %v485
  %v577 = vunpack.c.h.b16 %v485
  %v578 = vunpack.c.l.b16 %v486
  %v579 = vunpack.c.h.b16 %v486
  %v580 = vunpack.c.l.b16 %v487
  %v581 = vunpack.c.h.b16 %v487
  %v582 = vunpack.c.l.b16 %v488
  %v583 = vunpack.c.h.b16 %v488
  %v584 = vunpack.c.l.b16 %v489
  %v585 = vunpack.c.h.b16 %v489
  %v586 = vpack.c.b16 %v526, %v522
  %v587 = vpack.c.b16 %v527, %v523
  %v588 = vpack.c.b16 %v528, %v524
  %v589 = vpack.c.b16 %v529, %v525
  %v590 = vpack.c.b16 %v534, %v530
  %v591 = vpack.c.b16 %v535, %v531
  %v592 = vpack.c.b16 %v536, %v532
  %v593 = vpack.c.b16 %v537, %v533
  %v594 = vpack.c.b16 %v542, %v538
  %v595 = vpack.c.b16 %v543, %v539
  %v596 = vpack.c.b16 %v544, %v540
  %v597 = vpack.c.b16 %v545, %v541
  %v598 = vpack.c.b16 %v550, %v546
  %v599 = vpack.c.b16 %v551, %v547
  %v600 = vpack.c.b16 %v552, %v548
  %v601 = vpack.c.b16 %v553, %v549
  %v602 = vpack.c.b16 %v558, %v554
  %v603 = vpack.c.b16 %v559, %v555
  %v604 = vpack.c.b16 %v560, %v556
  %v605 = vpack.c.b16 %v561, %v557
  %v606 = vpack.c.b16 %v566, %v562
  %v607 = vpack.c.b16 %v567, %v563
  %v608 = vpack.c.b16 %v568, %v564
  %v609 = vpack.c.b16 %v569, %v565
  %v610 = vpack.c.b16 %v574, %v570
  %v611 = vpack.c.b16 %v575, %v571
  %v612 = vpack.c.b16 %v576, %v572
  %v613 = vpack.c.b16 %v577, %v573
  %v614 = vpack.c.b16 %v582, %v578
  %v615 = vpack.c.b16 %v583, %v579
  %v616 = vpack.c.b16 %v584, %v580
  %v617 = vpack.c.b16 %v585, %v581
  %650 = vmatprep.subr.bf16.mxu0 %v587
  %651 = vmatpush1.bf16.msra.mxu0 %v586
  %652 = vmatprep.subr.bf16.mxu0 %v591
  %653 = vmatpush1.bf16.msra.mxu0 %v590
  %654 = vmatprep.subr.bf16.mxu0 %v595
  %655 = vmatpush1.bf16.msra.mxu0 %v594
  %656 = vmatprep.subr.bf16.mxu0 %v599
  %657 = vmatpush1.bf16.msra.mxu0 %v598
  %658 = vmatprep.subr.bf16.mxu0 %v603
  %659 = vmatpush1.bf16.msra.mxu0 %v602
  %660 = vmatprep.subr.bf16.mxu0 %v607
  %661 = vmatpush1.bf16.msra.mxu0 %v606
  %662 = vmatprep.subr.bf16.mxu0 %v611
  %663 = vmatpush1.bf16.msra.mxu0 %v610
  %664 = vmatprep.subr.bf16.mxu0 %v615
  %665 = vmatpush1.bf16.msra.mxu0 %v614
  %666 = vmatprep.subr.bf16.mxu0 0
  %667 = vmatpush1.bf16.msra.mxu0 0
  %668 = vmatprep.subr.bf16.mxu0 0
  %669 = vmatpush1.bf16.msra.mxu0 0
  %670 = vmatprep.subr.bf16.mxu0 0
  %671 = vmatpush1.bf16.msra.mxu0 0
  %672 = vmatprep.subr.bf16.mxu0 0
  %673 = vmatpush1.bf16.msra.mxu0 0
  %674 = vmatprep.subr.bf16.mxu0 0
  %675 = vmatpush1.bf16.msra.mxu0 0
  %676 = vmatprep.subr.bf16.mxu0 0
  %677 = vmatpush1.bf16.msra.mxu0 0
  %678 = vmatprep.subr.bf16.mxu0 0
  %679 = vmatpush1.bf16.msra.mxu0 0
  %680 = vmatprep.subr.bf16.mxu0 0
  %681 = vmatpush1.bf16.msra.mxu0 0
  %682 = vmatprep.mubr.bf16.mxu0 0
  %683 = vmatmul.mubr.bf16.gmra.mrb[0].mxu0 %v457
  %v684 = vpop.f32.mrb[0].mxu0
  %v685 = vadd.f32 0.0, %v684
  %v686 = vpop.f32.mrb[0].mxu0
  %v687 = vadd.f32 0.0, %v686
  %v688 = vpop.f32.mrb[0].mxu0
  %v689 = vpop.f32.mrb[0].mxu0
  %690 = vdwg.mxu0
  %691 = vmatprep.subr.bf16.mxu0 %v589
  %692 = vmatpush1.bf16.msra.mxu0 %v588
  %693 = vmatprep.subr.bf16.mxu0 %v593
  %694 = vmatpush1.bf16.msra.mxu0 %v592
  %695 = vmatprep.subr.bf16.mxu0 %v597
  %696 = vmatpush1.bf16.msra.mxu0 %v596
  %697 = vmatprep.subr.bf16.mxu0 %v601
  %698 = vmatpush1.bf16.msra.mxu0 %v600
  %699 = vmatprep.subr.bf16.mxu0 %v605
  %700 = vmatpush1.bf16.msra.mxu0 %v604
  %701 = vmatprep.subr.bf16.mxu0 %v609
  %702 = vmatpush1.bf16.msra.mxu0 %v608
  %703 = vmatprep.subr.bf16.mxu0 %v613
  %704 = vmatpush1.bf16.msra.mxu0 %v612
  %705 = vmatprep.subr.bf16.mxu0 %v617
  %706 = vmatpush1.bf16.msra.mxu0 %v616
  %707 = vmatprep.subr.bf16.mxu0 0
  %708 = vmatpush1.bf16.msra.mxu0 0
  %709 = vmatprep.subr.bf16.mxu0 0
  %710 = vmatpush1.bf16.msra.mxu0 0
  %711 = vmatprep.subr.bf16.mxu0 0
  %712 = vmatpush1.bf16.msra.mxu0 0
  %713 = vmatprep.subr.bf16.mxu0 0
  %714 = vmatpush1.bf16.msra.mxu0 0
  %715 = vmatprep.subr.bf16.mxu0 0
  %716 = vmatpush1.bf16.msra.mxu0 0
  %717 = vmatprep.subr.bf16.mxu0 0
  %718 = vmatpush1.bf16.msra.mxu0 0
  %719 = vmatprep.subr.bf16.mxu0 0
  %720 = vmatpush1.bf16.msra.mxu0 0
  %721 = vmatprep.subr.bf16.mxu0 0
  %722 = vmatpush1.bf16.msra.mxu0 0
  %723 = vmatprep.mubr.bf16.mxu0 0
  %724 = vmatmul.mubr.bf16.gmra.mrb[0].mxu0 %v457
  %v725 = vpop.f32.mrb[0].mxu0
  %v726 = vadd.f32 0.0, %v725
  %v727 = vpop.f32.mrb[0].mxu0
  %v728 = vadd.f32 0.0, %v727
  %v729 = vpop.f32.mrb[0].mxu0
  %v730 = vpop.f32.mrb[0].mxu0
  %731 = vdwg.mxu0
  %v732 = vadd.f32 %v453, %v685
  %v733 = vadd.f32 %v454, %v687
  %v734 = vadd.f32 %v455, %v726
  %v735 = vadd.f32 %v456, %v728
  %v736 = vxor.u32 %v732, 2147483648
  %v737 = vmul.f32 %v736, 1.442695
  %v738 = vpow.pop %v737
  %v739 = vadd.f32 %v738, 1.0
  %v740 = vrcp.pop %v739
  %v741 = vmul.f32 1.0, %v740
  %v742 = vxor.u32 %v733, 2147483648
  %v743 = vmul.f32 %v742, 1.442695
  %v744 = vpow.pop %v743
  %v745 = vadd.f32 %v744, 1.0
  %v746 = vrcp.pop %v745
  %v747 = vmul.f32 1.0, %v746
  %v748 = vtanh.pop %v734
  %v749 = vxor.u32 %v735, 2147483648
  %v750 = vmul.f32 %v749, 1.442695
  %v751 = vpow.pop %v750
  %v752 = vadd.f32 %v751, 1.0
  %v753 = vrcp.pop %v752
  %v754 = vmul.f32 1.0, %v753
  %v755 = vmul.f32 %v747, %v452
  %v756 = vmul.f32 %v741, %v748
  %v757 = vadd.f32 %v755, %v756
  %v758 = vtanh.pop %v757
  %v759 = vmul.f32 %v754, %v758
  %v760 = vpack.c.bf16 %v759, %v759
  %761 = vst [vmem:[#allocation2] sm:$0xf] %v760
  %v762 = vld [vmem:[#allocation4 + $0x20] sm:$0xff]
  %v763 = vld [vmem:[#allocation4 + $0x28] sm:$0xff]
  %v764 = vld [vmem:[#allocation4 + $0x30] sm:$0xff]
  %v765 = vld [vmem:[#allocation4 + $0x38] sm:$0xff]
  %v766 = vld [vmem:[%s4] sm:$0xff]
  %v767 = vld [vmem:[%s4 + $0x8] sm:$0xff]
  %v768 = vld [vmem:[%s4 + $0x10] sm:$0xff]
  %v769 = vld [vmem:[%s4 + $0x18] sm:$0xff]
  %v770 = vld [vmem:[%s4 + $0x20] sm:$0xff]
  %v771 = vld [vmem:[%s4 + $0x28] sm:$0xff]
  %v772 = vld [vmem:[%s4 + $0x30] sm:$0xff]
  %v773 = vld [vmem:[%s4 + $0x38] sm:$0xff]
  %v774 = vld [vmem:[%s4 + $0x40] sm:$0xff]
  %v775 = vld [vmem:[%s4 + $0x48] sm:$0xff]
  %v776 = vld [vmem:[%s4 + $0x50] sm:$0xff]
  %v777 = vld [vmem:[%s4 + $0x58] sm:$0xff]
  %v778 = vld [vmem:[%s4 + $0x60] sm:$0xff]
  %v779 = vld [vmem:[%s4 + $0x68] sm:$0xff]
  %v780 = vld [vmem:[%s4 + $0x70] sm:$0xff]
  %v781 = vld [vmem:[%s4 + $0x78] sm:$0xff]
  %v782 = vld [vmem:[%s4 + $0x80] sm:$0xff]
  %v783 = vld [vmem:[%s4 + $0x88] sm:$0xff]
  %v784 = vld [vmem:[%s4 + $0x90] sm:$0xff]
  %v785 = vld [vmem:[%s4 + $0x98] sm:$0xff]
  %v786 = vld [vmem:[%s4 + $0xa0] sm:$0xff]
  %v787 = vld [vmem:[%s4 + $0xa8] sm:$0xff]
  %v788 = vld [vmem:[%s4 + $0xb0] sm:$0xff]
  %v789 = vld [vmem:[%s4 + $0xb8] sm:$0xff]
  %v790 = vld [vmem:[%s4 + $0xc0] sm:$0xff]
  %v791 = vld [vmem:[%s4 + $0xc8] sm:$0xff]
  %v792 = vld [vmem:[%s4 + $0xd0] sm:$0xff]
  %v793 = vld [vmem:[%s4 + $0xd8] sm:$0xff]
  %v794 = vld [vmem:[%s4 + $0xe0] sm:$0xff]
  %v795 = vld [vmem:[%s4 + $0xe8] sm:$0xff]
  %v796 = vld [vmem:[%s4 + $0xf0] sm:$0xff]
  %v797 = vld [vmem:[%s4 + $0xf8] sm:$0xff]
  %v830 = vunpack.c.l.b16 %v766
  %v831 = vunpack.c.h.b16 %v766
  %v832 = vunpack.c.l.b16 %v767
  %v833 = vunpack.c.h.b16 %v767
  %v834 = vunpack.c.l.b16 %v768
  %v835 = vunpack.c.h.b16 %v768
  %v836 = vunpack.c.l.b16 %v769
  %v837 = vunpack.c.h.b16 %v769
  %v838 = vunpack.c.l.b16 %v770
  %v839 = vunpack.c.h.b16 %v770
  %v840 = vunpack.c.l.b16 %v771
  %v841 = vunpack.c.h.b16 %v771
  %v842 = vunpack.c.l.b16 %v772
  %v843 = vunpack.c.h.b16 %v772
  %v844 = vunpack.c.l.b16 %v773
  %v845 = vunpack.c.h.b16 %v773
  %v846 = vunpack.c.l.b16 %v774
  %v847 = vunpack.c.h.b16 %v774
  %v848 = vunpack.c.l.b16 %v775
  %v849 = vunpack.c.h.b16 %v775
  %v850 = vunpack.c.l.b16 %v776
  %v851 = vunpack.c.h.b16 %v776
  %v852 = vunpack.c.l.b16 %v777
  %v853 = vunpack.c.h.b16 %v777
  %v854 = vunpack.c.l.b16 %v778
  %v855 = vunpack.c.h.b16 %v778
  %v856 = vunpack.c.l.b16 %v779
  %v857 = vunpack.c.h.b16 %v779
  %v858 = vunpack.c.l.b16 %v780
  %v859 = vunpack.c.h.b16 %v780
  %v860 = vunpack.c.l.b16 %v781
  %v861 = vunpack.c.h.b16 %v781
  %v862 = vunpack.c.l.b16 %v782
  %v863 = vunpack.c.h.b16 %v782
  %v864 = vunpack.c.l.b16 %v783
  %v865 = vunpack.c.h.b16 %v783
  %v866 = vunpack.c.l.b16 %v784
  %v867 = vunpack.c.h.b16 %v784
  %v868 = vunpack.c.l.b16 %v785
  %v869 = vunpack.c.h.b16 %v785
  %v870 = vunpack.c.l.b16 %v786
  %v871 = vunpack.c.h.b16 %v786
  %v872 = vunpack.c.l.b16 %v787
  %v873 = vunpack.c.h.b16 %v787
  %v874 = vunpack.c.l.b16 %v788
  %v875 = vunpack.c.h.b16 %v788
  %v876 = vunpack.c.l.b16 %v789
  %v877 = vunpack.c.h.b16 %v789
  %v878 = vunpack.c.l.b16 %v790
  %v879 = vunpack.c.h.b16 %v790
  %v880 = vunpack.c.l.b16 %v791
  %v881 = vunpack.c.h.b16 %v791
  %v882 = vunpack.c.l.b16 %v792
  %v883 = vunpack.c.h.b16 %v792
  %v884 = vunpack.c.l.b16 %v793
  %v885 = vunpack.c.h.b16 %v793
  %v886 = vunpack.c.l.b16 %v794
  %v887 = vunpack.c.h.b16 %v794
  %v888 = vunpack.c.l.b16 %v795
  %v889 = vunpack.c.h.b16 %v795
  %v890 = vunpack.c.l.b16 %v796
  %v891 = vunpack.c.h.b16 %v796
  %v892 = vunpack.c.l.b16 %v797
  %v893 = vunpack.c.h.b16 %v797
  %v894 = vpack.c.b16 %v834, %v830
  %v895 = vpack.c.b16 %v835, %v831
  %v896 = vpack.c.b16 %v836, %v832
  %v897 = vpack.c.b16 %v837, %v833
  %v898 = vpack.c.b16 %v842, %v838
  %v899 = vpack.c.b16 %v843, %v839
  %v900 = vpack.c.b16 %v844, %v840
  %v901 = vpack.c.b16 %v845, %v841
  %v902 = vpack.c.b16 %v850, %v846
  %v903 = vpack.c.b16 %v851, %v847
  %v904 = vpack.c.b16 %v852, %v848
  %v905 = vpack.c.b16 %v853, %v849
  %v906 = vpack.c.b16 %v858, %v854
  %v907 = vpack.c.b16 %v859, %v855
  %v908 = vpack.c.b16 %v860, %v856
  %v909 = vpack.c.b16 %v861, %v857
  %v910 = vpack.c.b16 %v866, %v862
  %v911 = vpack.c.b16 %v867, %v863
  %v912 = vpack.c.b16 %v868, %v864
  %v913 = vpack.c.b16 %v869, %v865
  %v914 = vpack.c.b16 %v874, %v870
  %v915 = vpack.c.b16 %v875, %v871
  %v916 = vpack.c.b16 %v876, %v872
  %v917 = vpack.c.b16 %v877, %v873
  %v918 = vpack.c.b16 %v882, %v878
  %v919 = vpack.c.b16 %v883, %v879
  %v920 = vpack.c.b16 %v884, %v880
  %v921 = vpack.c.b16 %v885, %v881
  %v922 = vpack.c.b16 %v890, %v886
  %v923 = vpack.c.b16 %v891, %v887
  %v924 = vpack.c.b16 %v892, %v888
  %v925 = vpack.c.b16 %v893, %v889
  %958 = vmatprep.subr.bf16.mxu0 %v895
  %959 = vmatpush1.bf16.msra.mxu0 %v894
  %960 = vmatprep.subr.bf16.mxu0 %v899
  %961 = vmatpush1.bf16.msra.mxu0 %v898
  %962 = vmatprep.subr.bf16.mxu0 %v903
  %963 = vmatpush1.bf16.msra.mxu0 %v902
  %964 = vmatprep.subr.bf16.mxu0 %v907
  %965 = vmatpush1.bf16.msra.mxu0 %v906
  %966 = vmatprep.subr.bf16.mxu0 %v911
  %967 = vmatpush1.bf16.msra.mxu0 %v910
  %968 = vmatprep.subr.bf16.mxu0 %v915
  %969 = vmatpush1.bf16.msra.mxu0 %v914
  %970 = vmatprep.subr.bf16.mxu0 %v919
  %971 = vmatpush1.bf16.msra.mxu0 %v918
  %972 = vmatprep.subr.bf16.mxu0 %v923
  %973 = vmatpush1.bf16.msra.mxu0 %v922
  %974 = vmatprep.subr.bf16.mxu0 0
  %975 = vmatpush1.bf16.msra.mxu0 0
  %976 = vmatprep.subr.bf16.mxu0 0
  %977 = vmatpush1.bf16.msra.mxu0 0
  %978 = vmatprep.subr.bf16.mxu0 0
  %979 = vmatpush1.bf16.msra.mxu0 0
  %980 = vmatprep.subr.bf16.mxu0 0
  %981 = vmatpush1.bf16.msra.mxu0 0
  %982 = vmatprep.subr.bf16.mxu0 0
  %983 = vmatpush1.bf16.msra.mxu0 0
  %984 = vmatprep.subr.bf16.mxu0 0
  %985 = vmatpush1.bf16.msra.mxu0 0
  %986 = vmatprep.subr.bf16.mxu0 0
  %987 = vmatpush1.bf16.msra.mxu0 0
  %988 = vmatprep.subr.bf16.mxu0 0
  %989 = vmatpush1.bf16.msra.mxu0 0
  %990 = vmatprep.mubr.bf16.mxu0 0
  %991 = vmatmul.mubr.bf16.gmra.mrb[0].mxu0 %v760
  %v992 = vpop.f32.mrb[0].mxu0
  %v993 = vadd.f32 0.0, %v992
  %v994 = vpop.f32.mrb[0].mxu0
  %v995 = vadd.f32 0.0, %v994
  %v996 = vpop.f32.mrb[0].mxu0
  %v997 = vpop.f32.mrb[0].mxu0
  %998 = vdwg.mxu0
  %999 = vmatprep.subr.bf16.mxu0 %v897
  %1000 = vmatpush1.bf16.msra.mxu0 %v896
  %1001 = vmatprep.subr.bf16.mxu0 %v901
  %1002 = vmatpush1.bf16.msra.mxu0 %v900
  %1003 = vmatprep.subr.bf16.mxu0 %v905
  %1004 = vmatpush1.bf16.msra.mxu0 %v904
  %1005 = vmatprep.subr.bf16.mxu0 %v909
  %1006 = vmatpush1.bf16.msra.mxu0 %v908
  %1007 = vmatprep.subr.bf16.mxu0 %v913
  %1008 = vmatpush1.bf16.msra.mxu0 %v912
  %1009 = vmatprep.subr.bf16.mxu0 %v917
  %1010 = vmatpush1.bf16.msra.mxu0 %v916
  %1011 = vmatprep.subr.bf16.mxu0 %v921
  %1012 = vmatpush1.bf16.msra.mxu0 %v920
  %1013 = vmatprep.subr.bf16.mxu0 %v925
  %1014 = vmatpush1.bf16.msra.mxu0 %v924
  %1015 = vmatprep.subr.bf16.mxu0 0
  %1016 = vmatpush1.bf16.msra.mxu0 0
  %1017 = vmatprep.subr.bf16.mxu0 0
  %1018 = vmatpush1.bf16.msra.mxu0 0
  %1019 = vmatprep.subr.bf16.mxu0 0
  %1020 = vmatpush1.bf16.msra.mxu0 0
  %1021 = vmatprep.subr.bf16.mxu0 0
  %1022 = vmatpush1.bf16.msra.mxu0 0
  %1023 = vmatprep.subr.bf16.mxu0 0
  %1024 = vmatpush1.bf16.msra.mxu0 0
  %1025 = vmatprep.subr.bf16.mxu0 0
  %1026 = vmatpush1.bf16.msra.mxu0 0
  %1027 = vmatprep.subr.bf16.mxu0 0
  %1028 = vmatpush1.bf16.msra.mxu0 0
  %1029 = vmatprep.subr.bf16.mxu0 0
  %1030 = vmatpush1.bf16.msra.mxu0 0
  %1031 = vmatprep.mubr.bf16.mxu0 0
  %1032 = vmatmul.mubr.bf16.gmra.mrb[0].mxu0 %v760
  %v1033 = vpop.f32.mrb[0].mxu0
  %v1034 = vadd.f32 0.0, %v1033
  %v1035 = vpop.f32.mrb[0].mxu0
  %v1036 = vadd.f32 0.0, %v1035
  %v1037 = vpop.f32.mrb[0].mxu0
  %v1038 = vpop.f32.mrb[0].mxu0
  %1039 = vdwg.mxu0
  %v1040 = vadd.f32 %v762, %v993
  %v1041 = vadd.f32 %v763, %v995
  %v1042 = vadd.f32 %v764, %v1034
  %v1043 = vadd.f32 %v765, %v1036
  %v1044 = vxor.u32 %v1040, 2147483648
  %v1045 = vmul.f32 %v1044, 1.442695
  %v1046 = vpow.pop %v1045
  %v1047 = vadd.f32 %v1046, 1.0
  %v1048 = vrcp.pop %v1047
  %v1049 = vmul.f32 1.0, %v1048
  %v1050 = vxor.u32 %v1041, 2147483648
  %v1051 = vmul.f32 %v1050, 1.442695
  %v1052 = vpow.pop %v1051
  %v1053 = vadd.f32 %v1052, 1.0
  %v1054 = vrcp.pop %v1053
  %v1055 = vmul.f32 1.0, %v1054
  %v1056 = vtanh.pop %v1042
  %v1057 = vxor.u32 %v1043, 2147483648
  %v1058 = vmul.f32 %v1057, 1.442695
  %v1059 = vpow.pop %v1058
  %v1060 = vadd.f32 %v1059, 1.0
  %v1061 = vrcp.pop %v1060
  %v1062 = vmul.f32 1.0, %v1061
  %v1063 = vmul.f32 %v1055, %v757
  %v1064 = vmul.f32 %v1049, %v1056
  %v1065 = vadd.f32 %v1063, %v1064
  %v1066 = vtanh.pop %v1065
  %v1067 = vmul.f32 %v1062, %v1066
  %v1068 = vpack.c.bf16 %v1067, %v1067
  %v1070 = vrot.slane %v1068, 4
  %1072 = vst [vmem:[#allocation2] sm:$0xf0] %v1070
  %v1073 = vld [vmem:[#allocation4 + $0x40] sm:$0xff]
  %v1074 = vld [vmem:[#allocation4 + $0x48] sm:$0xff]
  %v1075 = vld [vmem:[#allocation4 + $0x50] sm:$0xff]
  %v1076 = vld [vmem:[#allocation4 + $0x58] sm:$0xff]
  %v1077 = vld [vmem:[%s4] sm:$0xff]
  %v1078 = vld [vmem:[%s4 + $0x8] sm:$0xff]
  %v1079 = vld [vmem:[%s4 + $0x10] sm:$0xff]
  %v1080 = vld [vmem:[%s4 + $0x18] sm:$0xff]
  %v1081 = vld [vmem:[%s4 + $0x20] sm:$0xff]
  %v1082 = vld [vmem:[%s4 + $0x28] sm:$0xff]
  %v1083 = vld [vmem:[%s4 + $0x30] sm:$0xff]
  %v1084 = vld [vmem:[%s4 + $0x38] sm:$0xff]
  %v1085 = vld [vmem:[%s4 + $0x40] sm:$0xff]
  %v1086 = vld [vmem:[%s4 + $0x48] sm:$0xff]
  %v1087 = vld [vmem:[%s4 + $0x50] sm:$0xff]
  %v1088 = vld [vmem:[%s4 + $0x58] sm:$0xff]
  %v1089 = vld [vmem:[%s4 + $0x60] sm:$0xff]
  %v1090 = vld [vmem:[%s4 + $0x68] sm:$0xff]
  %v1091 = vld [vmem:[%s4 + $0x70] sm:$0xff]
  %v1092 = vld [vmem:[%s4 + $0x78] sm:$0xff]
  %v1093 = vld [vmem:[%s4 + $0x80] sm:$0xff]
  %v1094 = vld [vmem:[%s4 + $0x88] sm:$0xff]
  %v1095 = vld [vmem:[%s4 + $0x90] sm:$0xff]
  %v1096 = vld [vmem:[%s4 + $0x98] sm:$0xff]
  %v1097 = vld [vmem:[%s4 + $0xa0] sm:$0xff]
  %v1098 = vld [vmem:[%s4 + $0xa8] sm:$0xff]
  %v1099 = vld [vmem:[%s4 + $0xb0] sm:$0xff]
  %v1100 = vld [vmem:[%s4 + $0xb8] sm:$0xff]
  %v1101 = vld [vmem:[%s4 + $0xc0] sm:$0xff]
  %v1102 = vld [vmem:[%s4 + $0xc8] sm:$0xff]
  %v1103 = vld [vmem:[%s4 + $0xd0] sm:$0xff]
  %v1104 = vld [vmem:[%s4 + $0xd8] sm:$0xff]
  %v1105 = vld [vmem:[%s4 + $0xe0] sm:$0xff]
  %v1106 = vld [vmem:[%s4 + $0xe8] sm:$0xff]
  %v1107 = vld [vmem:[%s4 + $0xf0] sm:$0xff]
  %v1108 = vld [vmem:[%s4 + $0xf8] sm:$0xff]
  %v1141 = vunpack.c.l.b16 %v1077
  %v1142 = vunpack.c.h.b16 %v1077
  %v1143 = vunpack.c.l.b16 %v1078
  %v1144 = vunpack.c.h.b16 %v1078
  %v1145 = vunpack.c.l.b16 %v1079
  %v1146 = vunpack.c.h.b16 %v1079
  %v1147 = vunpack.c.l.b16 %v1080
  %v1148 = vunpack.c.h.b16 %v1080
  %v1149 = vunpack.c.l.b16 %v1081
  %v1150 = vunpack.c.h.b16 %v1081
  %v1151 = vunpack.c.l.b16 %v1082
  %v1152 = vunpack.c.h.b16 %v1082
  %v1153 = vunpack.c.l.b16 %v1083
  %v1154 = vunpack.c.h.b16 %v1083
  %v1155 = vunpack.c.l.b16 %v1084
  %v1156 = vunpack.c.h.b16 %v1084
  %v1157 = vunpack.c.l.b16 %v1085
  %v1158 = vunpack.c.h.b16 %v1085
  %v1159 = vunpack.c.l.b16 %v1086
  %v1160 = vunpack.c.h.b16 %v1086
  %v1161 = vunpack.c.l.b16 %v1087
  %v1162 = vunpack.c.h.b16 %v1087
  %v1163 = vunpack.c.l.b16 %v1088
  %v1164 = vunpack.c.h.b16 %v1088
  %v1165 = vunpack.c.l.b16 %v1089
  %v1166 = vunpack.c.h.b16 %v1089
  %v1167 = vunpack.c.l.b16 %v1090
  %v1168 = vunpack.c.h.b16 %v1090
  %v1169 = vunpack.c.l.b16 %v1091
  %v1170 = vunpack.c.h.b16 %v1091
  %v1171 = vunpack.c.l.b16 %v1092
  %v1172 = vunpack.c.h.b16 %v1092
  %v1173 = vunpack.c.l.b16 %v1093
  %v1174 = vunpack.c.h.b16 %v1093
  %v1175 = vunpack.c.l.b16 %v1094
  %v1176 = vunpack.c.h.b16 %v1094
  %v1177 = vunpack.c.l.b16 %v1095
  %v1178 = vunpack.c.h.b16 %v1095
  %v1179 = vunpack.c.l.b16 %v1096
  %v1180 = vunpack.c.h.b16 %v1096
  %v1181 = vunpack.c.l.b16 %v1097
  %v1182 = vunpack.c.h.b16 %v1097
  %v1183 = vunpack.c.l.b16 %v1098
  %v1184 = vunpack.c.h.b16 %v1098
  %v1185 = vunpack.c.l.b16 %v1099
  %v1186 = vunpack.c.h.b16 %v1099
  %v1187 = vunpack.c.l.b16 %v1100
  %v1188 = vunpack.c.h.b16 %v1100
  %v1189 = vunpack.c.l.b16 %v1101
  %v1190 = vunpack.c.h.b16 %v1101
  %v1191 = vunpack.c.l.b16 %v1102
  %v1192 = vunpack.c.h.b16 %v1102
  %v1193 = vunpack.c.l.b16 %v1103
  %v1194 = vunpack.c.h.b16 %v1103
  %v1195 = vunpack.c.l.b16 %v1104
  %v1196 = vunpack.c.h.b16 %v1104
  %v1197 = vunpack.c.l.b16 %v1105
  %v1198 = vunpack.c.h.b16 %v1105
  %v1199 = vunpack.c.l.b16 %v1106
  %v1200 = vunpack.c.h.b16 %v1106
  %v1201 = vunpack.c.l.b16 %v1107
  %v1202 = vunpack.c.h.b16 %v1107
  %v1203 = vunpack.c.l.b16 %v1108
  %v1204 = vunpack.c.h.b16 %v1108
  %v1205 = vpack.c.b16 %v1145, %v1141
  %v1206 = vpack.c.b16 %v1146, %v1142
  %v1207 = vpack.c.b16 %v1147, %v1143
  %v1208 = vpack.c.b16 %v1148, %v1144
  %v1209 = vpack.c.b16 %v1153, %v1149
  %v1210 = vpack.c.b16 %v1154, %v1150
  %v1211 = vpack.c.b16 %v1155, %v1151
  %v1212 = vpack.c.b16 %v1156, %v1152
  %v1213 = vpack.c.b16 %v1161, %v1157
  %v1214 = vpack.c.b16 %v1162, %v1158
  %v1215 = vpack.c.b16 %v1163, %v1159
  %v1216 = vpack.c.b16 %v1164, %v1160
  %v1217 = vpack.c.b16 %v1169, %v1165
  %v1218 = vpack.c.b16 %v1170, %v1166
  %v1219 = vpack.c.b16 %v1171, %v1167
  %v1220 = vpack.c.b16 %v1172, %v1168
  %v1221 = vpack.c.b16 %v1177, %v1173
  %v1222 = vpack.c.b16 %v1178, %v1174
  %v1223 = vpack.c.b16 %v1179, %v1175
  %v1224 = vpack.c.b16 %v1180, %v1176
  %v1225 = vpack.c.b16 %v1185, %v1181
  %v1226 = vpack.c.b16 %v1186, %v1182
  %v1227 = vpack.c.b16 %v1187, %v1183
  %v1228 = vpack.c.b16 %v1188, %v1184
  %v1229 = vpack.c.b16 %v1193, %v1189
  %v1230 = vpack.c.b16 %v1194, %v1190
  %v1231 = vpack.c.b16 %v1195, %v1191
  %v1232 = vpack.c.b16 %v1196, %v1192
  %v1233 = vpack.c.b16 %v1201, %v1197
  %v1234 = vpack.c.b16 %v1202, %v1198
  %v1235 = vpack.c.b16 %v1203, %v1199
  %v1236 = vpack.c.b16 %v1204, %v1200
  %1269 = vmatprep.subr.bf16.mxu0 %v1206
  %1270 = vmatpush1.bf16.msra.mxu0 %v1205
  %1271 = vmatprep.subr.bf16.mxu0 %v1210
  %1272 = vmatpush1.bf16.msra.mxu0 %v1209
  %1273 = vmatprep.subr.bf16.mxu0 %v1214
  %1274 = vmatpush1.bf16.msra.mxu0 %v1213
  %1275 = vmatprep.subr.bf16.mxu0 %v1218
  %1276 = vmatpush1.bf16.msra.mxu0 %v1217
  %1277 = vmatprep.subr.bf16.mxu0 %v1222
  %1278 = vmatpush1.bf16.msra.mxu0 %v1221
  %1279 = vmatprep.subr.bf16.mxu0 %v1226
  %1280 = vmatpush1.bf16.msra.mxu0 %v1225
  %1281 = vmatprep.subr.bf16.mxu0 %v1230
  %1282 = vmatpush1.bf16.msra.mxu0 %v1229
  %1283 = vmatprep.subr.bf16.mxu0 %v1234
  %1284 = vmatpush1.bf16.msra.mxu0 %v1233
  %1285 = vmatprep.subr.bf16.mxu0 0
  %1286 = vmatpush1.bf16.msra.mxu0 0
  %1287 = vmatprep.subr.bf16.mxu0 0
  %1288 = vmatpush1.bf16.msra.mxu0 0
  %1289 = vmatprep.subr.bf16.mxu0 0
  %1290 = vmatpush1.bf16.msra.mxu0 0
  %1291 = vmatprep.subr.bf16.mxu0 0
  %1292 = vmatpush1.bf16.msra.mxu0 0
  %1293 = vmatprep.subr.bf16.mxu0 0
  %1294 = vmatpush1.bf16.msra.mxu0 0
  %1295 = vmatprep.subr.bf16.mxu0 0
  %1296 = vmatpush1.bf16.msra.mxu0 0
  %1297 = vmatprep.subr.bf16.mxu0 0
  %1298 = vmatpush1.bf16.msra.mxu0 0
  %1299 = vmatprep.subr.bf16.mxu0 0
  %1300 = vmatpush1.bf16.msra.mxu0 0
  %1301 = vmatprep.mubr.bf16.mxu0 0
  %1302 = vmatmul.mubr.bf16.gmra.mrb[0].mxu0 %v1068
  %v1303 = vpop.f32.mrb[0].mxu0
  %v1304 = vadd.f32 0.0, %v1303
  %v1305 = vpop.f32.mrb[0].mxu0
  %v1306 = vadd.f32 0.0, %v1305
  %v1307 = vpop.f32.mrb[0].mxu0
  %v1308 = vpop.f32.mrb[0].mxu0
  %1309 = vdwg.mxu0
  %1310 = vmatprep.subr.bf16.mxu0 %v1208
  %1311 = vmatpush1.bf16.msra.mxu0 %v1207
  %1312 = vmatprep.subr.bf16.mxu0 %v1212
  %1313 = vmatpush1.bf16.msra.mxu0 %v1211
  %1314 = vmatprep.subr.bf16.mxu0 %v1216
  %1315 = vmatpush1.bf16.msra.mxu0 %v1215
  %1316 = vmatprep.subr.bf16.mxu0 %v1220
  %1317 = vmatpush1.bf16.msra.mxu0 %v1219
  %1318 = vmatprep.subr.bf16.mxu0 %v1224
  %1319 = vmatpush1.bf16.msra.mxu0 %v1223
  %1320 = vmatprep.subr.bf16.mxu0 %v1228
  %1321 = vmatpush1.bf16.msra.mxu0 %v1227
  %1322 = vmatprep.subr.bf16.mxu0 %v1232
  %1323 = vmatpush1.bf16.msra.mxu0 %v1231
  %1324 = vmatprep.subr.bf16.mxu0 %v1236
  %1325 = vmatpush1.bf16.msra.mxu0 %v1235
  %1326 = vmatprep.subr.bf16.mxu0 0
  %1327 = vmatpush1.bf16.msra.mxu0 0
  %1328 = vmatprep.subr.bf16.mxu0 0
  %1329 = vmatpush1.bf16.msra.mxu0 0
  %1330 = vmatprep.subr.bf16.mxu0 0
  %1331 = vmatpush1.bf16.msra.mxu0 0
  %1332 = vmatprep.subr.bf16.mxu0 0
  %1333 = vmatpush1.bf16.msra.mxu0 0
  %1334 = vmatprep.subr.bf16.mxu0 0
  %1335 = vmatpush1.bf16.msra.mxu0 0
  %1336 = vmatprep.subr.bf16.mxu0 0
  %1337 = vmatpush1.bf16.msra.mxu0 0
  %1338 = vmatprep.subr.bf16.mxu0 0
  %1339 = vmatpush1.bf16.msra.mxu0 0
  %1340 = vmatprep.subr.bf16.mxu0 0
  %1341 = vmatpush1.bf16.msra.mxu0 0
  %1342 = vmatprep.mubr.bf16.mxu0 0
  %1343 = vmatmul.mubr.bf16.gmra.mrb[0].mxu0 %v1068
  %v1344 = vpop.f32.mrb[0].mxu0
  %v1345 = vadd.f32 0.0, %v1344
  %v1346 = vpop.f32.mrb[0].mxu0
  %v1347 = vadd.f32 0.0, %v1346
  %v1348 = vpop.f32.mrb[0].mxu0
  %v1349 = vpop.f32.mrb[0].mxu0
  %1350 = vdwg.mxu0
  %v1351 = vadd.f32 %v1073, %v1304
  %v1352 = vadd.f32 %v1074, %v1306
  %v1353 = vadd.f32 %v1075, %v1345
  %v1354 = vadd.f32 %v1076, %v1347
  %v1355 = vxor.u32 %v1351, 2147483648
  %v1356 = vmul.f32 %v1355, 1.442695
  %v1357 = vpow.pop %v1356
  %v1358 = vadd.f32 %v1357, 1.0
  %v1359 = vrcp.pop %v1358
  %v1360 = vmul.f32 1.0, %v1359
  %v1361 = vxor.u32 %v1352, 2147483648
  %v1362 = vmul.f32 %v1361, 1.442695
  %v1363 = vpow.pop %v1362
  %v1364 = vadd.f32 %v1363, 1.0
  %v1365 = vrcp.pop %v1364
  %v1366 = vmul.f32 1.0, %v1365
  %v1367 = vtanh.pop %v1353
  %v1368 = vxor.u32 %v1354, 2147483648
  %v1369 = vmul.f32 %v1368, 1.442695
  %v1370 = vpow.pop %v1369
  %v1371 = vadd.f32 %v1370, 1.0
  %v1372 = vrcp.pop %v1371
  %v1373 = vmul.f32 1.0, %v1372
  %v1374 = vmul.f32 %v1366, %v1065
  %v1375 = vmul.f32 %v1360, %v1367
  %v1376 = vadd.f32 %v1374, %v1375
  %v1377 = vtanh.pop %v1376
  %v1378 = vmul.f32 %v1373, %v1377
  %v1379 = vpack.c.bf16 %v1378, %v1378
  %1380 = vst [vmem:[#allocation2 + $0x8] sm:$0xf] %v1379
  %v1381 = vld [vmem:[#allocation4 + $0x60] sm:$0xff]
  %v1382 = vld [vmem:[#allocation4 + $0x68] sm:$0xff]
  %v1383 = vld [vmem:[#allocation4 + $0x70] sm:$0xff]
  %v1384 = vld [vmem:[#allocation4 + $0x78] sm:$0xff]
  %v1385 = vld [vmem:[%s4] sm:$0xff]
  %v1386 = vld [vmem:[%s4 + $0x8] sm:$0xff]
  %v1387 = vld [vmem:[%s4 + $0x10] sm:$0xff]
  %v1388 = vld [vmem:[%s4 + $0x18] sm:$0xff]
  %v1389 = vld [vmem:[%s4 + $0x20] sm:$0xff]
  %v1390 = vld [vmem:[%s4 + $0x28] sm:$0xff]
  %v1391 = vld [vmem:[%s4 + $0x30] sm:$0xff]
  %v1392 = vld [vmem:[%s4 + $0x38] sm:$0xff]
  %v1393 = vld [vmem:[%s4 + $0x40] sm:$0xff]
  %v1394 = vld [vmem:[%s4 + $0x48] sm:$0xff]
  %v1395 = vld [vmem:[%s4 + $0x50] sm:$0xff]
  %v1396 = vld [vmem:[%s4 + $0x58] sm:$0xff]
  %v1397 = vld [vmem:[%s4 + $0x60] sm:$0xff]
  %v1398 = vld [vmem:[%s4 + $0x68] sm:$0xff]
  %v1399 = vld [vmem:[%s4 + $0x70] sm:$0xff]
  %v1400 = vld [vmem:[%s4 + $0x78] sm:$0xff]
  %v1401 = vld [vmem:[%s4 + $0x80] sm:$0xff]
  %v1402 = vld [vmem:[%s4 + $0x88] sm:$0xff]
  %v1403 = vld [vmem:[%s4 + $0x90] sm:$0xff]
  %v1404 = vld [vmem:[%s4 + $0x98] sm:$0xff]
  %v1405 = vld [vmem:[%s4 + $0xa0] sm:$0xff]
  %v1406 = vld [vmem:[%s4 + $0xa8] sm:$0xff]
  %v1407 = vld [vmem:[%s4 + $0xb0] sm:$0xff]
  %v1408 = vld [vmem:[%s4 + $0xb8] sm:$0xff]
  %v1409 = vld [vmem:[%s4 + $0xc0] sm:$0xff]
  %v1410 = vld [vmem:[%s4 + $0xc8] sm:$0xff]
  %v1411 = vld [vmem:[%s4 + $0xd0] sm:$0xff]
  %v1412 = vld [vmem:[%s4 + $0xd8] sm:$0xff]
  %v1413 = vld [vmem:[%s4 + $0xe0] sm:$0xff]
  %v1414 = vld [vmem:[%s4 + $0xe8] sm:$0xff]
  %v1415 = vld [vmem:[%s4 + $0xf0] sm:$0xff]
  %v1416 = vld [vmem:[%s4 + $0xf8] sm:$0xff]
  %v1449 = vunpack.c.l.b16 %v1385
  %v1450 = vunpack.c.h.b16 %v1385
  %v1451 = vunpack.c.l.b16 %v1386
  %v1452 = vunpack.c.h.b16 %v1386
  %v1453 = vunpack.c.l.b16 %v1387
  %v1454 = vunpack.c.h.b16 %v1387
  %v1455 = vunpack.c.l.b16 %v1388
  %v1456 = vunpack.c.h.b16 %v1388
  %v1457 = vunpack.c.l.b16 %v1389
  %v1458 = vunpack.c.h.b16 %v1389
  %v1459 = vunpack.c.l.b16 %v1390
  %v1460 = vunpack.c.h.b16 %v1390
  %v1461 = vunpack.c.l.b16 %v1391
  %v1462 = vunpack.c.h.b16 %v1391
  %v1463 = vunpack.c.l.b16 %v1392
  %v1464 = vunpack.c.h.b16 %v1392
  %v1465 = vunpack.c.l.b16 %v1393
  %v1466 = vunpack.c.h.b16 %v1393
  %v1467 = vunpack.c.l.b16 %v1394
  %v1468 = vunpack.c.h.b16 %v1394
  %v1469 = vunpack.c.l.b16 %v1395
  %v1470 = vunpack.c.h.b16 %v1395
  %v1471 = vunpack.c.l.b16 %v1396
  %v1472 = vunpack.c.h.b16 %v1396
  %v1473 = vunpack.c.l.b16 %v1397
  %v1474 = vunpack.c.h.b16 %v1397
  %v1475 = vunpack.c.l.b16 %v1398
  %v1476 = vunpack.c.h.b16 %v1398
  %v1477 = vunpack.c.l.b16 %v1399
  %v1478 = vunpack.c.h.b16 %v1399
  %v1479 = vunpack.c.l.b16 %v1400
  %v1480 = vunpack.c.h.b16 %v1400
  %v1481 = vunpack.c.l.b16 %v1401
  %v1482 = vunpack.c.h.b16 %v1401
  %v1483 = vunpack.c.l.b16 %v1402
  %v1484 = vunpack.c.h.b16 %v1402
  %v1485 = vunpack.c.l.b16 %v1403
  %v1486 = vunpack.c.h.b16 %v1403
  %v1487 = vunpack.c.l.b16 %v1404
  %v1488 = vunpack.c.h.b16 %v1404
  %v1489 = vunpack.c.l.b16 %v1405
  %v1490 = vunpack.c.h.b16 %v1405
  %v1491 = vunpack.c.l.b16 %v1406
  %v1492 = vunpack.c.h.b16 %v1406
  %v1493 = vunpack.c.l.b16 %v1407
  %v1494 = vunpack.c.h.b16 %v1407
  %v1495 = vunpack.c.l.b16 %v1408
  %v1496 = vunpack.c.h.b16 %v1408
  %v1497 = vunpack.c.l.b16 %v1409
  %v1498 = vunpack.c.h.b16 %v1409
  %v1499 = vunpack.c.l.b16 %v1410
  %v1500 = vunpack.c.h.b16 %v1410
  %v1501 = vunpack.c.l.b16 %v1411
  %v1502 = vunpack.c.h.b16 %v1411
  %v1503 = vunpack.c.l.b16 %v1412
  %v1504 = vunpack.c.h.b16 %v1412
  %v1505 = vunpack.c.l.b16 %v1413
  %v1506 = vunpack.c.h.b16 %v1413
  %v1507 = vunpack.c.l.b16 %v1414
  %v1508 = vunpack.c.h.b16 %v1414
  %v1509 = vunpack.c.l.b16 %v1415
  %v1510 = vunpack.c.h.b16 %v1415
  %v1511 = vunpack.c.l.b16 %v1416
  %v1512 = vunpack.c.h.b16 %v1416
  %v1513 = vpack.c.b16 %v1453, %v1449
  %v1514 = vpack.c.b16 %v1454, %v1450
  %v1515 = vpack.c.b16 %v1455, %v1451
  %v1516 = vpack.c.b16 %v1456, %v1452
  %v1517 = vpack.c.b16 %v1461, %v1457
  %v1518 = vpack.c.b16 %v1462, %v1458
  %v1519 = vpack.c.b16 %v1463, %v1459
  %v1520 = vpack.c.b16 %v1464, %v1460
  %v1521 = vpack.c.b16 %v1469, %v1465
  %v1522 = vpack.c.b16 %v1470, %v1466
  %v1523 = vpack.c.b16 %v1471, %v1467
  %v1524 = vpack.c.b16 %v1472, %v1468
  %v1525 = vpack.c.b16 %v1477, %v1473
  %v1526 = vpack.c.b16 %v1478, %v1474
  %v1527 = vpack.c.b16 %v1479, %v1475
  %v1528 = vpack.c.b16 %v1480, %v1476
  %v1529 = vpack.c.b16 %v1485, %v1481
  %v1530 = vpack.c.b16 %v1486, %v1482
  %v1531 = vpack.c.b16 %v1487, %v1483
  %v1532 = vpack.c.b16 %v1488, %v1484
  %v1533 = vpack.c.b16 %v1493, %v1489
  %v1534 = vpack.c.b16 %v1494, %v1490
  %v1535 = vpack.c.b16 %v1495, %v1491
  %v1536 = vpack.c.b16 %v1496, %v1492
  %v1537 = vpack.c.b16 %v1501, %v1497
  %v1538 = vpack.c.b16 %v1502, %v1498
  %v1539 = vpack.c.b16 %v1503, %v1499
  %v1540 = vpack.c.b16 %v1504, %v1500
  %v1541 = vpack.c.b16 %v1509, %v1505
  %v1542 = vpack.c.b16 %v1510, %v1506
  %v1543 = vpack.c.b16 %v1511, %v1507
  %v1544 = vpack.c.b16 %v1512, %v1508
  %1577 = vmatprep.subr.bf16.mxu0 %v1514
  %1578 = vmatpush1.bf16.msra.mxu0 %v1513
  %1579 = vmatprep.subr.bf16.mxu0 %v1518
  %1580 = vmatpush1.bf16.msra.mxu0 %v1517
  %1581 = vmatprep.subr.bf16.mxu0 %v1522
  %1582 = vmatpush1.bf16.msra.mxu0 %v1521
  %1583 = vmatprep.subr.bf16.mxu0 %v1526
  %1584 = vmatpush1.bf16.msra.mxu0 %v1525
  %1585 = vmatprep.subr.bf16.mxu0 %v1530
  %1586 = vmatpush1.bf16.msra.mxu0 %v1529
  %1587 = vmatprep.subr.bf16.mxu0 %v1534
  %1588 = vmatpush1.bf16.msra.mxu0 %v1533
  %1589 = vmatprep.subr.bf16.mxu0 %v1538
  %1590 = vmatpush1.bf16.msra.mxu0 %v1537
  %1591 = vmatprep.subr.bf16.mxu0 %v1542
  %1592 = vmatpush1.bf16.msra.mxu0 %v1541
  %1593 = vmatprep.subr.bf16.mxu0 0
  %1594 = vmatpush1.bf16.msra.mxu0 0
  %1595 = vmatprep.subr.bf16.mxu0 0
  %1596 = vmatpush1.bf16.msra.mxu0 0
  %1597 = vmatprep.subr.bf16.mxu0 0
  %1598 = vmatpush1.bf16.msra.mxu0 0
  %1599 = vmatprep.subr.bf16.mxu0 0
  %1600 = vmatpush1.bf16.msra.mxu0 0
  %1601 = vmatprep.subr.bf16.mxu0 0
  %1602 = vmatpush1.bf16.msra.mxu0 0
  %1603 = vmatprep.subr.bf16.mxu0 0
  %1604 = vmatpush1.bf16.msra.mxu0 0
  %1605 = vmatprep.subr.bf16.mxu0 0
  %1606 = vmatpush1.bf16.msra.mxu0 0
  %1607 = vmatprep.subr.bf16.mxu0 0
  %1608 = vmatpush1.bf16.msra.mxu0 0
  %1609 = vmatprep.mubr.bf16.mxu0 0
  %1610 = vmatmul.mubr.bf16.gmra.mrb[0].mxu0 %v1379
  %v1611 = vpop.f32.mrb[0].mxu0
  %v1612 = vadd.f32 0.0, %v1611
  %v1613 = vpop.f32.mrb[0].mxu0
  %v1614 = vadd.f32 0.0, %v1613
  %v1615 = vpop.f32.mrb[0].mxu0
  %v1616 = vpop.f32.mrb[0].mxu0
  %1617 = vdwg.mxu0
  %1618 = vmatprep.subr.bf16.mxu0 %v1516
  %1619 = vmatpush1.bf16.msra.mxu0 %v1515
  %1620 = vmatprep.subr.bf16.mxu0 %v1520
  %1621 = vmatpush1.bf16.msra.mxu0 %v1519
  %1622 = vmatprep.subr.bf16.mxu0 %v1524
  %1623 = vmatpush1.bf16.msra.mxu0 %v1523
  %1624 = vmatprep.subr.bf16.mxu0 %v1528
  %1625 = vmatpush1.bf16.msra.mxu0 %v1527
  %1626 = vmatprep.subr.bf16.mxu0 %v1532
  %1627 = vmatpush1.bf16.msra.mxu0 %v1531
  %1628 = vmatprep.subr.bf16.mxu0 %v1536
  %1629 = vmatpush1.bf16.msra.mxu0 %v1535
  %1630 = vmatprep.subr.bf16.mxu0 %v1540
  %1631 = vmatpush1.bf16.msra.mxu0 %v1539
  %1632 = vmatprep.subr.bf16.mxu0 %v1544
  %1633 = vmatpush1.bf16.msra.mxu0 %v1543
  %1634 = vmatprep.subr.bf16.mxu0 0
  %1635 = vmatpush1.bf16.msra.mxu0 0
  %1636 = vmatprep.subr.bf16.mxu0 0
  %1637 = vmatpush1.bf16.msra.mxu0 0
  %1638 = vmatprep.subr.bf16.mxu0 0
  %1639 = vmatpush1.bf16.msra.mxu0 0
  %1640 = vmatprep.subr.bf16.mxu0 0
  %1641 = vmatpush1.bf16.msra.mxu0 0
  %1642 = vmatprep.subr.bf16.mxu0 0
  %1643 = vmatpush1.bf16.msra.mxu0 0
  %1644 = vmatprep.subr.bf16.mxu0 0
  %1645 = vmatpush1.bf16.msra.mxu0 0
  %1646 = vmatprep.subr.bf16.mxu0 0
  %1647 = vmatpush1.bf16.msra.mxu0 0
  %1648 = vmatprep.subr.bf16.mxu0 0
  %1649 = vmatpush1.bf16.msra.mxu0 0
  %1650 = vmatprep.mubr.bf16.mxu0 0
  %1651 = vmatmul.mubr.bf16.gmra.mrb[0].mxu0 %v1379
  %v1652 = vpop.f32.mrb[0].mxu0
  %v1653 = vadd.f32 0.0, %v1652
  %v1654 = vpop.f32.mrb[0].mxu0
  %v1655 = vadd.f32 0.0, %v1654
  %v1656 = vpop.f32.mrb[0].mxu0
  %v1657 = vpop.f32.mrb[0].mxu0
  %1658 = vdwg.mxu0
  %v1659 = vadd.f32 %v1381, %v1612
  %v1660 = vadd.f32 %v1382, %v1614
  %v1661 = vadd.f32 %v1383, %v1653
  %v1662 = vadd.f32 %v1384, %v1655
  %v1663 = vxor.u32 %v1659, 2147483648
  %v1664 = vmul.f32 %v1663, 1.442695
  %v1665 = vpow.pop %v1664
  %v1666 = vadd.f32 %v1665, 1.0
  %v1667 = vrcp.pop %v1666
  %v1668 = vmul.f32 1.0, %v1667
  %v1669 = vxor.u32 %v1660, 2147483648
  %v1670 = vmul.f32 %v1669, 1.442695
  %v1671 = vpow.pop %v1670
  %v1672 = vadd.f32 %v1671, 1.0
  %v1673 = vrcp.pop %v1672
  %v1674 = vmul.f32 1.0, %v1673
  %v1675 = vtanh.pop %v1661
  %v1676 = vxor.u32 %v1662, 2147483648
  %v1677 = vmul.f32 %v1676, 1.442695
  %v1678 = vpow.pop %v1677
  %v1679 = vadd.f32 %v1678, 1.0
  %v1680 = vrcp.pop %v1679
  %v1681 = vmul.f32 1.0, %v1680
  %v1682 = vmul.f32 %v1674, %v1376
  %v1683 = vmul.f32 %v1668, %v1675
  %v1684 = vadd.f32 %v1682, %v1683
  %v1685 = vtanh.pop %v1684
  %v1686 = vmul.f32 %v1681, %v1685
  %v1687 = vpack.c.bf16 %v1686, %v1686
  %v1689 = vrot.slane %v1687, 4
  %1691 = vst [vmem:[#allocation2 + $0x8] sm:$0xf0] %v1689
  %v1692 = vld [vmem:[#allocation4 + $0x80] sm:$0xff]
  %v1693 = vld [vmem:[#allocation4 + $0x88] sm:$0xff]
  %v1694 = vld [vmem:[#allocation4 + $0x90] sm:$0xff]
  %v1695 = vld [vmem:[#allocation4 + $0x98] sm:$0xff]
  %v1696 = vld [vmem:[%s4] sm:$0xff]
  %v1697 = vld [vmem:[%s4 + $0x8] sm:$0xff]
  %v1698 = vld [vmem:[%s4 + $0x10] sm:$0xff]
  %v1699 = vld [vmem:[%s4 + $0x18] sm:$0xff]
  %v1700 = vld [vmem:[%s4 + $0x20] sm:$0xff]
  %v1701 = vld [vmem:[%s4 + $0x28] sm:$0xff]
  %v1702 = vld [vmem:[%s4 + $0x30] sm:$0xff]
  %v1703 = vld [vmem:[%s4 + $0x38] sm:$0xff]
  %v1704 = vld [vmem:[%s4 + $0x40] sm:$0xff]
  %v1705 = vld [vmem:[%s4 + $0x48] sm:$0xff]
  %v1706 = vld [vmem:[%s4 + $0x50] sm:$0xff]
  %v1707 = vld [vmem:[%s4 + $0x58] sm:$0xff]
  %v1708 = vld [vmem:[%s4 + $0x60] sm:$0xff]
  %v1709 = vld [vmem:[%s4 + $0x68] sm:$0xff]
  %v1710 = vld [vmem:[%s4 + $0x70] sm:$0xff]
  %v1711 = vld [vmem:[%s4 + $0x78] sm:$0xff]
  %v1712 = vld [vmem:[%s4 + $0x80] sm:$0xff]
  %v1713 = vld [vmem:[%s4 + $0x88] sm:$0xff]
  %v1714 = vld [vmem:[%s4 + $0x90] sm:$0xff]
  %v1715 = vld [vmem:[%s4 + $0x98] sm:$0xff]
  %v1716 = vld [vmem:[%s4 + $0xa0] sm:$0xff]
  %v1717 = vld [vmem:[%s4 + $0xa8] sm:$0xff]
  %v1718 = vld [vmem:[%s4 + $0xb0] sm:$0xff]
  %v1719 = vld [vmem:[%s4 + $0xb8] sm:$0xff]
  %v1720 = vld [vmem:[%s4 + $0xc0] sm:$0xff]
  %v1721 = vld [vmem:[%s4 + $0xc8] sm:$0xff]
  %v1722 = vld [vmem:[%s4 + $0xd0] sm:$0xff]
  %v1723 = vld [vmem:[%s4 + $0xd8] sm:$0xff]
  %v1724 = vld [vmem:[%s4 + $0xe0] sm:$0xff]
  %v1725 = vld [vmem:[%s4 + $0xe8] sm:$0xff]
  %v1726 = vld [vmem:[%s4 + $0xf0] sm:$0xff]
  %v1727 = vld [vmem:[%s4 + $0xf8] sm:$0xff]
  %v1760 = vunpack.c.l.b16 %v1696
  %v1761 = vunpack.c.h.b16 %v1696
  %v1762 = vunpack.c.l.b16 %v1697
  %v1763 = vunpack.c.h.b16 %v1697
  %v1764 = vunpack.c.l.b16 %v1698
  %v1765 = vunpack.c.h.b16 %v1698
  %v1766 = vunpack.c.l.b16 %v1699
  %v1767 = vunpack.c.h.b16 %v1699
  %v1768 = vunpack.c.l.b16 %v1700
  %v1769 = vunpack.c.h.b16 %v1700
  %v1770 = vunpack.c.l.b16 %v1701
  %v1771 = vunpack.c.h.b16 %v1701
  %v1772 = vunpack.c.l.b16 %v1702
  %v1773 = vunpack.c.h.b16 %v1702
  %v1774 = vunpack.c.l.b16 %v1703
  %v1775 = vunpack.c.h.b16 %v1703
  %v1776 = vunpack.c.l.b16 %v1704
  %v1777 = vunpack.c.h.b16 %v1704
  %v1778 = vunpack.c.l.b16 %v1705
  %v1779 = vunpack.c.h.b16 %v1705
  %v1780 = vunpack.c.l.b16 %v1706
  %v1781 = vunpack.c.h.b16 %v1706
  %v1782 = vunpack.c.l.b16 %v1707
  %v1783 = vunpack.c.h.b16 %v1707
  %v1784 = vunpack.c.l.b16 %v1708
  %v1785 = vunpack.c.h.b16 %v1708
  %v1786 = vunpack.c.l.b16 %v1709
  %v1787 = vunpack.c.h.b16 %v1709
  %v1788 = vunpack.c.l.b16 %v1710
  %v1789 = vunpack.c.h.b16 %v1710
  %v1790 = vunpack.c.l.b16 %v1711
  %v1791 = vunpack.c.h.b16 %v1711
  %v1792 = vunpack.c.l.b16 %v1712
  %v1793 = vunpack.c.h.b16 %v1712
  %v1794 = vunpack.c.l.b16 %v1713
  %v1795 = vunpack.c.h.b16 %v1713
  %v1796 = vunpack.c.l.b16 %v1714
  %v1797 = vunpack.c.h.b16 %v1714
  %v1798 = vunpack.c.l.b16 %v1715
  %v1799 = vunpack.c.h.b16 %v1715
  %v1800 = vunpack.c.l.b16 %v1716
  %v1801 = vunpack.c.h.b16 %v1716
  %v1802 = vunpack.c.l.b16 %v1717
  %v1803 = vunpack.c.h.b16 %v1717
  %v1804 = vunpack.c.l.b16 %v1718
  %v1805 = vunpack.c.h.b16 %v1718
  %v1806 = vunpack.c.l.b16 %v1719
  %v1807 = vunpack.c.h.b16 %v1719
  %v1808 = vunpack.c.l.b16 %v1720
  %v1809 = vunpack.c.h.b16 %v1720
  %v1810 = vunpack.c.l.b16 %v1721
  %v1811 = vunpack.c.h.b16 %v1721
  %v1812 = vunpack.c.l.b16 %v1722
  %v1813 = vunpack.c.h.b16 %v1722
  %v1814 = vunpack.c.l.b16 %v1723
  %v1815 = vunpack.c.h.b16 %v1723
  %v1816 = vunpack.c.l.b16 %v1724
  %v1817 = vunpack.c.h.b16 %v1724
  %v1818 = vunpack.c.l.b16 %v1725
  %v1819 = vunpack.c.h.b16 %v1725
  %v1820 = vunpack.c.l.b16 %v1726
  %v1821 = vunpack.c.h.b16 %v1726
  %v1822 = vunpack.c.l.b16 %v1727
  %v1823 = vunpack.c.h.b16 %v1727
  %v1824 = vpack.c.b16 %v1764, %v1760
  %v1825 = vpack.c.b16 %v1765, %v1761
  %v1826 = vpack.c.b16 %v1766, %v1762
  %v1827 = vpack.c.b16 %v1767, %v1763
  %v1828 = vpack.c.b16 %v1772, %v1768
  %v1829 = vpack.c.b16 %v1773, %v1769
  %v1830 = vpack.c.b16 %v1774, %v1770
  %v1831 = vpack.c.b16 %v1775, %v1771
  %v1832 = vpack.c.b16 %v1780, %v1776
  %v1833 = vpack.c.b16 %v1781, %v1777
  %v1834 = vpack.c.b16 %v1782, %v1778
  %v1835 = vpack.c.b16 %v1783, %v1779
  %v1836 = vpack.c.b16 %v1788, %v1784
  %v1837 = vpack.c.b16 %v1789, %v1785
  %v1838 = vpack.c.b16 %v1790, %v1786
  %v1839 = vpack.c.b16 %v1791, %v1787
  %v1840 = vpack.c.b16 %v1796, %v1792
  %v1841 = vpack.c.b16 %v1797, %v1793
  %v1842 = vpack.c.b16 %v1798, %v1794
  %v1843 = vpack.c.b16 %v1799, %v1795
  %v1844 = vpack.c.b16 %v1804, %v1800
  %v1845 = vpack.c.b16 %v1805, %v1801
  %v1846 = vpack.c.b16 %v1806, %v1802
  %v1847 = vpack.c.b16 %v1807, %v1803
  %v1848 = vpack.c.b16 %v1812, %v1808
  %v1849 = vpack.c.b16 %v1813, %v1809
  %v1850 = vpack.c.b16 %v1814, %v1810
  %v1851 = vpack.c.b16 %v1815, %v1811
  %v1852 = vpack.c.b16 %v1820, %v1816
  %v1853 = vpack.c.b16 %v1821, %v1817
  %v1854 = vpack.c.b16 %v1822, %v1818
  %v1855 = vpack.c.b16 %v1823, %v1819
  %1888 = vmatprep.subr.bf16.mxu0 %v1825
  %1889 = vmatpush1.bf16.msra.mxu0 %v1824
  %1890 = vmatprep.subr.bf16.mxu0 %v1829
  %1891 = vmatpush1.bf16.msra.mxu0 %v1828
  %1892 = vmatprep.subr.bf16.mxu0 %v1833
  %1893 = vmatpush1.bf16.msra.mxu0 %v1832
  %1894 = vmatprep.subr.bf16.mxu0 %v1837
  %1895 = vmatpush1.bf16.msra.mxu0 %v1836
  %1896 = vmatprep.subr.bf16.mxu0 %v1841
  %1897 = vmatpush1.bf16.msra.mxu0 %v1840
  %1898 = vmatprep.subr.bf16.mxu0 %v1845
  %1899 = vmatpush1.bf16.msra.mxu0 %v1844
  %1900 = vmatprep.subr.bf16.mxu0 %v1849
  %1901 = vmatpush1.bf16.msra.mxu0 %v1848
  %1902 = vmatprep.subr.bf16.mxu0 %v1853
  %1903 = vmatpush1.bf16.msra.mxu0 %v1852
  %1904 = vmatprep.subr.bf16.mxu0 0
  %1905 = vmatpush1.bf16.msra.mxu0 0
  %1906 = vmatprep.subr.bf16.mxu0 0
  %1907 = vmatpush1.bf16.msra.mxu0 0
  %1908 = vmatprep.subr.bf16.mxu0 0
  %1909 = vmatpush1.bf16.msra.mxu0 0
  %1910 = vmatprep.subr.bf16.mxu0 0
  %1911 = vmatpush1.bf16.msra.mxu0 0
  %1912 = vmatprep.subr.bf16.mxu0 0
  %1913 = vmatpush1.bf16.msra.mxu0 0
  %1914 = vmatprep.subr.bf16.mxu0 0
  %1915 = vmatpush1.bf16.msra.mxu0 0
  %1916 = vmatprep.subr.bf16.mxu0 0
  %1917 = vmatpush1.bf16.msra.mxu0 0
  %1918 = vmatprep.subr.bf16.mxu0 0
  %1919 = vmatpush1.bf16.msra.mxu0 0
  %1920 = vmatprep.mubr.bf16.mxu0 0
  %1921 = vmatmul.mubr.bf16.gmra.mrb[0].mxu0 %v1687
  %v1922 = vpop.f32.mrb[0].mxu0
  %v1923 = vadd.f32 0.0, %v1922
  %v1924 = vpop.f32.mrb[0].mxu0
  %v1925 = vadd.f32 0.0, %v1924
  %v1926 = vpop.f32.mrb[0].mxu0
  %v1927 = vpop.f32.mrb[0].mxu0
  %1928 = vdwg.mxu0
  %1929 = vmatprep.subr.bf16.mxu0 %v1827
  %1930 = vmatpush1.bf16.msra.mxu0 %v1826
  %1931 = vmatprep.subr.bf16.mxu0 %v1831
  %1932 = vmatpush1.bf16.msra.mxu0 %v1830
  %1933 = vmatprep.subr.bf16.mxu0 %v1835
  %1934 = vmatpush1.bf16.msra.mxu0 %v1834
  %1935 = vmatprep.subr.bf16.mxu0 %v1839
  %1936 = vmatpush1.bf16.msra.mxu0 %v1838
  %1937 = vmatprep.subr.bf16.mxu0 %v1843
  %1938 = vmatpush1.bf16.msra.mxu0 %v1842
  %1939 = vmatprep.subr.bf16.mxu0 %v1847
  %1940 = vmatpush1.bf16.msra.mxu0 %v1846
  %1941 = vmatprep.subr.bf16.mxu0 %v1851
  %1942 = vmatpush1.bf16.msra.mxu0 %v1850
  %1943 = vmatprep.subr.bf16.mxu0 %v1855
  %1944 = vmatpush1.bf16.msra.mxu0 %v1854
  %1945 = vmatprep.subr.bf16.mxu0 0
  %1946 = vmatpush1.bf16.msra.mxu0 0
  %1947 = vmatprep.subr.bf16.mxu0 0
  %1948 = vmatpush1.bf16.msra.mxu0 0
  %1949 = vmatprep.subr.bf16.mxu0 0
  %1950 = vmatpush1.bf16.msra.mxu0 0
  %1951 = vmatprep.subr.bf16.mxu0 0
  %1952 = vmatpush1.bf16.msra.mxu0 0
  %1953 = vmatprep.subr.bf16.mxu0 0
  %1954 = vmatpush1.bf16.msra.mxu0 0
  %1955 = vmatprep.subr.bf16.mxu0 0
  %1956 = vmatpush1.bf16.msra.mxu0 0
  %1957 = vmatprep.subr.bf16.mxu0 0
  %1958 = vmatpush1.bf16.msra.mxu0 0
  %1959 = vmatprep.subr.bf16.mxu0 0
  %1960 = vmatpush1.bf16.msra.mxu0 0
  %1961 = vmatprep.mubr.bf16.mxu0 0
  %1962 = vmatmul.mubr.bf16.gmra.mrb[0].mxu0 %v1687
  %v1963 = vpop.f32.mrb[0].mxu0
  %v1964 = vadd.f32 0.0, %v1963
  %v1965 = vpop.f32.mrb[0].mxu0
  %v1966 = vadd.f32 0.0, %v1965
  %v1967 = vpop.f32.mrb[0].mxu0
  %v1968 = vpop.f32.mrb[0].mxu0
  %1969 = vdwg.mxu0
  %v1970 = vadd.f32 %v1692, %v1923
  %v1971 = vadd.f32 %v1693, %v1925
  %v1972 = vadd.f32 %v1694, %v1964
  %v1973 = vadd.f32 %v1695, %v1966
  %v1974 = vxor.u32 %v1970, 2147483648
  %v1975 = vmul.f32 %v1974, 1.442695
  %v1976 = vpow.pop %v1975
  %v1977 = vadd.f32 %v1976, 1.0
  %v1978 = vrcp.pop %v1977
  %v1979 = vmul.f32 1.0, %v1978
  %v1980 = vxor.u32 %v1971, 2147483648
  %v1981 = vmul.f32 %v1980, 1.442695
  %v1982 = vpow.pop %v1981
  %v1983 = vadd.f32 %v1982, 1.0
  %v1984 = vrcp.pop %v1983
  %v1985 = vmul.f32 1.0, %v1984
  %v1986 = vtanh.pop %v1972
  %v1987 = vxor.u32 %v1973, 2147483648
  %v1988 = vmul.f32 %v1987, 1.442695
  %v1989 = vpow.pop %v1988
  %v1990 = vadd.f32 %v1989, 1.0
  %v1991 = vrcp.pop %v1990
  %v1992 = vmul.f32 1.0, %v1991
  %v1993 = vmul.f32 %v1985, %v1684
  %v1994 = vmul.f32 %v1979, %v1986
  %v1995 = vadd.f32 %v1993, %v1994
  %v1996 = vtanh.pop %v1995
  %v1997 = vmul.f32 %v1992, %v1996
  %v1998 = vpack.c.bf16 %v1997, %v1997
  %1999 = vst [vmem:[#allocation2 + $0x10] sm:$0xf] %v1998
  %v2000 = vld [vmem:[#allocation4 + $0xa0] sm:$0xff]
  %v2001 = vld [vmem:[#allocation4 + $0xa8] sm:$0xff]
  %v2002 = vld [vmem:[#allocation4 + $0xb0] sm:$0xff]
  %v2003 = vld [vmem:[#allocation4 + $0xb8] sm:$0xff]
  %v2004 = vld [vmem:[%s4] sm:$0xff]
  %v2005 = vld [vmem:[%s4 + $0x8] sm:$0xff]
  %v2006 = vld [vmem:[%s4 + $0x10] sm:$0xff]
  %v2007 = vld [vmem:[%s4 + $0x18] sm:$0xff]
  %v2008 = vld [vmem:[%s4 + $0x20] sm:$0xff]
  %v2009 = vld [vmem:[%s4 + $0x28] sm:$0xff]
  %v2010 = vld [vmem:[%s4 + $0x30] sm:$0xff]
  %v2011 = vld [vmem:[%s4 + $0x38] sm:$0xff]
  %v2012 = vld [vmem:[%s4 + $0x40] sm:$0xff]
  %v2013 = vld [vmem:[%s4 + $0x48] sm:$0xff]
  %v2014 = vld [vmem:[%s4 + $0x50] sm:$0xff]
  %v2015 = vld [vmem:[%s4 + $0x58] sm:$0xff]
  %v2016 = vld [vmem:[%s4 + $0x60] sm:$0xff]
  %v2017 = vld [vmem:[%s4 + $0x68] sm:$0xff]
  %v2018 = vld [vmem:[%s4 + $0x70] sm:$0xff]
  %v2019 = vld [vmem:[%s4 + $0x78] sm:$0xff]
  %v2020 = vld [vmem:[%s4 + $0x80] sm:$0xff]
  %v2021 = vld [vmem:[%s4 + $0x88] sm:$0xff]
  %v2022 = vld [vmem:[%s4 + $0x90] sm:$0xff]
  %v2023 = vld [vmem:[%s4 + $0x98] sm:$0xff]
  %v2024 = vld [vmem:[%s4 + $0xa0] sm:$0xff]
  %v2025 = vld [vmem:[%s4 + $0xa8] sm:$0xff]
  %v2026 = vld [vmem:[%s4 + $0xb0] sm:$0xff]
  %v2027 = vld [vmem:[%s4 + $0xb8] sm:$0xff]
  %v2028 = vld [vmem:[%s4 + $0xc0] sm:$0xff]
  %v2029 = vld [vmem:[%s4 + $0xc8] sm:$0xff]
  %v2030 = vld [vmem:[%s4 + $0xd0] sm:$0xff]
  %v2031 = vld [vmem:[%s4 + $0xd8] sm:$0xff]
  %v2032 = vld [vmem:[%s4 + $0xe0] sm:$0xff]
  %v2033 = vld [vmem:[%s4 + $0xe8] sm:$0xff]
  %v2034 = vld [vmem:[%s4 + $0xf0] sm:$0xff]
  %v2035 = vld [vmem:[%s4 + $0xf8] sm:$0xff]
  %v2068 = vunpack.c.l.b16 %v2004
  %v2069 = vunpack.c.h.b16 %v2004
  %v2070 = vunpack.c.l.b16 %v2005
  %v2071 = vunpack.c.h.b16 %v2005
  %v2072 = vunpack.c.l.b16 %v2006
  %v2073 = vunpack.c.h.b16 %v2006
  %v2074 = vunpack.c.l.b16 %v2007
  %v2075 = vunpack.c.h.b16 %v2007
  %v2076 = vunpack.c.l.b16 %v2008
  %v2077 = vunpack.c.h.b16 %v2008
  %v2078 = vunpack.c.l.b16 %v2009
  %v2079 = vunpack.c.h.b16 %v2009
  %v2080 = vunpack.c.l.b16 %v2010
  %v2081 = vunpack.c.h.b16 %v2010
  %v2082 = vunpack.c.l.b16 %v2011
  %v2083 = vunpack.c.h.b16 %v2011
  %v2084 = vunpack.c.l.b16 %v2012
  %v2085 = vunpack.c.h.b16 %v2012
  %v2086 = vunpack.c.l.b16 %v2013
  %v2087 = vunpack.c.h.b16 %v2013
  %v2088 = vunpack.c.l.b16 %v2014
  %v2089 = vunpack.c.h.b16 %v2014
  %v2090 = vunpack.c.l.b16 %v2015
  %v2091 = vunpack.c.h.b16 %v2015
  %v2092 = vunpack.c.l.b16 %v2016
  %v2093 = vunpack.c.h.b16 %v2016
  %v2094 = vunpack.c.l.b16 %v2017
  %v2095 = vunpack.c.h.b16 %v2017
  %v2096 = vunpack.c.l.b16 %v2018
  %v2097 = vunpack.c.h.b16 %v2018
  %v2098 = vunpack.c.l.b16 %v2019
  %v2099 = vunpack.c.h.b16 %v2019
  %v2100 = vunpack.c.l.b16 %v2020
  %v2101 = vunpack.c.h.b16 %v2020
  %v2102 = vunpack.c.l.b16 %v2021
  %v2103 = vunpack.c.h.b16 %v2021
  %v2104 = vunpack.c.l.b16 %v2022
  %v2105 = vunpack.c.h.b16 %v2022
  %v2106 = vunpack.c.l.b16 %v2023
  %v2107 = vunpack.c.h.b16 %v2023
  %v2108 = vunpack.c.l.b16 %v2024
  %v2109 = vunpack.c.h.b16 %v2024
  %v2110 = vunpack.c.l.b16 %v2025
  %v2111 = vunpack.c.h.b16 %v2025
  %v2112 = vunpack.c.l.b16 %v2026
  %v2113 = vunpack.c.h.b16 %v2026
  %v2114 = vunpack.c.l.b16 %v2027
  %v2115 = vunpack.c.h.b16 %v2027
  %v2116 = vunpack.c.l.b16 %v2028
  %v2117 = vunpack.c.h.b16 %v2028
  %v2118 = vunpack.c.l.b16 %v2029
  %v2119 = vunpack.c.h.b16 %v2029
  %v2120 = vunpack.c.l.b16 %v2030
  %v2121 = vunpack.c.h.b16 %v2030
  %v2122 = vunpack.c.l.b16 %v2031
  %v2123 = vunpack.c.h.b16 %v2031
  %v2124 = vunpack.c.l.b16 %v2032
  %v2125 = vunpack.c.h.b16 %v2032
  %v2126 = vunpack.c.l.b16 %v2033
  %v2127 = vunpack.c.h.b16 %v2033
  %v2128 = vunpack.c.l.b16 %v2034
  %v2129 = vunpack.c.h.b16 %v2034
  %v2130 = vunpack.c.l.b16 %v2035
  %v2131 = vunpack.c.h.b16 %v2035
  %v2132 = vpack.c.b16 %v2072, %v2068
  %v2133 = vpack.c.b16 %v2073, %v2069
  %v2134 = vpack.c.b16 %v2074, %v2070
  %v2135 = vpack.c.b16 %v2075, %v2071
  %v2136 = vpack.c.b16 %v2080, %v2076
  %v2137 = vpack.c.b16 %v2081, %v2077
  %v2138 = vpack.c.b16 %v2082, %v2078
  %v2139 = vpack.c.b16 %v2083, %v2079
  %v2140 = vpack.c.b16 %v2088, %v2084
  %v2141 = vpack.c.b16 %v2089, %v2085
  %v2142 = vpack.c.b16 %v2090, %v2086
  %v2143 = vpack.c.b16 %v2091, %v2087
  %v2144 = vpack.c.b16 %v2096, %v2092
  %v2145 = vpack.c.b16 %v2097, %v2093
  %v2146 = vpack.c.b16 %v2098, %v2094
  %v2147 = vpack.c.b16 %v2099, %v2095
  %v2148 = vpack.c.b16 %v2104, %v2100
  %v2149 = vpack.c.b16 %v2105, %v2101
  %v2150 = vpack.c.b16 %v2106, %v2102
  %v2151 = vpack.c.b16 %v2107, %v2103
  %v2152 = vpack.c.b16 %v2112, %v2108
  %v2153 = vpack.c.b16 %v2113, %v2109
  %v2154 = vpack.c.b16 %v2114, %v2110
  %v2155 = vpack.c.b16 %v2115, %v2111
  %v2156 = vpack.c.b16 %v2120, %v2116
  %v2157 = vpack.c.b16 %v2121, %v2117
  %v2158 = vpack.c.b16 %v2122, %v2118
  %v2159 = vpack.c.b16 %v2123, %v2119
  %v2160 = vpack.c.b16 %v2128, %v2124
  %v2161 = vpack.c.b16 %v2129, %v2125
  %v2162 = vpack.c.b16 %v2130, %v2126
  %v2163 = vpack.c.b16 %v2131, %v2127
  %2196 = vmatprep.subr.bf16.mxu0 %v2133
  %2197 = vmatpush1.bf16.msra.mxu0 %v2132
  %2198 = vmatprep.subr.bf16.mxu0 %v2137
  %2199 = vmatpush1.bf16.msra.mxu0 %v2136
  %2200 = vmatprep.subr.bf16.mxu0 %v2141
  %2201 = vmatpush1.bf16.msra.mxu0 %v2140
  %2202 = vmatprep.subr.bf16.mxu0 %v2145
  %2203 = vmatpush1.bf16.msra.mxu0 %v2144
  %2204 = vmatprep.subr.bf16.mxu0 %v2149
  %2205 = vmatpush1.bf16.msra.mxu0 %v2148
  %2206 = vmatprep.subr.bf16.mxu0 %v2153
  %2207 = vmatpush1.bf16.msra.mxu0 %v2152
  %2208 = vmatprep.subr.bf16.mxu0 %v2157
  %2209 = vmatpush1.bf16.msra.mxu0 %v2156
  %2210 = vmatprep.subr.bf16.mxu0 %v2161
  %2211 = vmatpush1.bf16.msra.mxu0 %v2160
  %2212 = vmatprep.subr.bf16.mxu0 0
  %2213 = vmatpush1.bf16.msra.mxu0 0
  %2214 = vmatprep.subr.bf16.mxu0 0
  %2215 = vmatpush1.bf16.msra.mxu0 0
  %2216 = vmatprep.subr.bf16.mxu0 0
  %2217 = vmatpush1.bf16.msra.mxu0 0
  %2218 = vmatprep.subr.bf16.mxu0 0
  %2219 = vmatpush1.bf16.msra.mxu0 0
  %2220 = vmatprep.subr.bf16.mxu0 0
  %2221 = vmatpush1.bf16.msra.mxu0 0
  %2222 = vmatprep.subr.bf16.mxu0 0
  %2223 = vmatpush1.bf16.msra.mxu0 0
  %2224 = vmatprep.subr.bf16.mxu0 0
  %2225 = vmatpush1.bf16.msra.mxu0 0
  %2226 = vmatprep.subr.bf16.mxu0 0
  %2227 = vmatpush1.bf16.msra.mxu0 0
  %2228 = vmatprep.mubr.bf16.mxu0 0
  %2229 = vmatmul.mubr.bf16.gmra.mrb[0].mxu0 %v1998
  %v2230 = vpop.f32.mrb[0].mxu0
  %v2231 = vadd.f32 0.0, %v2230
  %v2232 = vpop.f32.mrb[0].mxu0
  %v2233 = vadd.f32 0.0, %v2232
  %v2234 = vpop.f32.mrb[0].mxu0
  %v2235 = vpop.f32.mrb[0].mxu0
  %2236 = vdwg.mxu0
  %2237 = vmatprep.subr.bf16.mxu0 %v2135
  %2238 = vmatpush1.bf16.msra.mxu0 %v2134
  %2239 = vmatprep.subr.bf16.mxu0 %v2139
  %2240 = vmatpush1.bf16.msra.mxu0 %v2138
  %2241 = vmatprep.subr.bf16.mxu0 %v2143
  %2242 = vmatpush1.bf16.msra.mxu0 %v2142
  %2243 = vmatprep.subr.bf16.mxu0 %v2147
  %2244 = vmatpush1.bf16.msra.mxu0 %v2146
  %2245 = vmatprep.subr.bf16.mxu0 %v2151
  %2246 = vmatpush1.bf16.msra.mxu0 %v2150
  %2247 = vmatprep.subr.bf16.mxu0 %v2155
  %2248 = vmatpush1.bf16.msra.mxu0 %v2154
  %2249 = vmatprep.subr.bf16.mxu0 %v2159
  %2250 = vmatpush1.bf16.msra.mxu0 %v2158
  %2251 = vmatprep.subr.bf16.mxu0 %v2163
  %2252 = vmatpush1.bf16.msra.mxu0 %v2162
  %2253 = vmatprep.subr.bf16.mxu0 0
  %2254 = vmatpush1.bf16.msra.mxu0 0
  %2255 = vmatprep.subr.bf16.mxu0 0
  %2256 = vmatpush1.bf16.msra.mxu0 0
  %2257 = vmatprep.subr.bf16.mxu0 0
  %2258 = vmatpush1.bf16.msra.mxu0 0
  %2259 = vmatprep.subr.bf16.mxu0 0
  %2260 = vmatpush1.bf16.msra.mxu0 0
  %2261 = vmatprep.subr.bf16.mxu0 0
  %2262 = vmatpush1.bf16.msra.mxu0 0
  %2263 = vmatprep.subr.bf16.mxu0 0
  %2264 = vmatpush1.bf16.msra.mxu0 0
  %2265 = vmatprep.subr.bf16.mxu0 0
  %2266 = vmatpush1.bf16.msra.mxu0 0
  %2267 = vmatprep.subr.bf16.mxu0 0
  %2268 = vmatpush1.bf16.msra.mxu0 0
  %2269 = vmatprep.mubr.bf16.mxu0 0
  %2270 = vmatmul.mubr.bf16.gmra.mrb[0].mxu0 %v1998
  %v2271 = vpop.f32.mrb[0].mxu0
  %v2272 = vadd.f32 0.0, %v2271
  %v2273 = vpop.f32.mrb[0].mxu0
  %v2274 = vadd.f32 0.0, %v2273
  %v2275 = vpop.f32.mrb[0].mxu0
  %v2276 = vpop.f32.mrb[0].mxu0
  %2277 = vdwg.mxu0
  %v2278 = vadd.f32 %v2000, %v2231
  %v2279 = vadd.f32 %v2001, %v2233
  %v2280 = vadd.f32 %v2002, %v2272
  %v2281 = vadd.f32 %v2003, %v2274
  %v2282 = vxor.u32 %v2278, 2147483648
  %v2283 = vmul.f32 %v2282, 1.442695
  %v2284 = vpow.pop %v2283
  %v2285 = vadd.f32 %v2284, 1.0
  %v2286 = vrcp.pop %v2285
  %v2287 = vmul.f32 1.0, %v2286
  %v2288 = vxor.u32 %v2279, 2147483648
  %v2289 = vmul.f32 %v2288, 1.442695
  %v2290 = vpow.pop %v2289
  %v2291 = vadd.f32 %v2290, 1.0
  %v2292 = vrcp.pop %v2291
  %v2293 = vmul.f32 1.0, %v2292
  %v2294 = vtanh.pop %v2280
  %v2295 = vxor.u32 %v2281, 2147483648
  %v2296 = vmul.f32 %v2295, 1.442695
  %v2297 = vpow.pop %v2296
  %v2298 = vadd.f32 %v2297, 1.0
  %v2299 = vrcp.pop %v2298
  %v2300 = vmul.f32 1.0, %v2299
  %v2301 = vmul.f32 %v2293, %v1995
  %v2302 = vmul.f32 %v2287, %v2294
  %v2303 = vadd.f32 %v2301, %v2302
  %v2304 = vtanh.pop %v2303
  %v2305 = vmul.f32 %v2300, %v2304
  %v2306 = vpack.c.bf16 %v2305, %v2305
  %v2308 = vrot.slane %v2306, 4
  %2310 = vst [vmem:[#allocation2 + $0x10] sm:$0xf0] %v2308
  %v2311 = vld [vmem:[#allocation4 + $0xc0] sm:$0xff]
  %v2312 = vld [vmem:[#allocation4 + $0xc8] sm:$0xff]
  %v2313 = vld [vmem:[#allocation4 + $0xd0] sm:$0xff]
  %v2314 = vld [vmem:[#allocation4 + $0xd8] sm:$0xff]
  %v2315 = vld [vmem:[%s4] sm:$0xff]
  %v2316 = vld [vmem:[%s4 + $0x8] sm:$0xff]
  %v2317 = vld [vmem:[%s4 + $0x10] sm:$0xff]
  %v2318 = vld [vmem:[%s4 + $0x18] sm:$0xff]
  %v2319 = vld [vmem:[%s4 + $0x20] sm:$0xff]
  %v2320 = vld [vmem:[%s4 + $0x28] sm:$0xff]
  %v2321 = vld [vmem:[%s4 + $0x30] sm:$0xff]
  %v2322 = vld [vmem:[%s4 + $0x38] sm:$0xff]
  %v2323 = vld [vmem:[%s4 + $0x40] sm:$0xff]
  %v2324 = vld [vmem:[%s4 + $0x48] sm:$0xff]
  %v2325 = vld [vmem:[%s4 + $0x50] sm:$0xff]
  %v2326 = vld [vmem:[%s4 + $0x58] sm:$0xff]
  %v2327 = vld [vmem:[%s4 + $0x60] sm:$0xff]
  %v2328 = vld [vmem:[%s4 + $0x68] sm:$0xff]
  %v2329 = vld [vmem:[%s4 + $0x70] sm:$0xff]
  %v2330 = vld [vmem:[%s4 + $0x78] sm:$0xff]
  %v2331 = vld [vmem:[%s4 + $0x80] sm:$0xff]
  %v2332 = vld [vmem:[%s4 + $0x88] sm:$0xff]
  %v2333 = vld [vmem:[%s4 + $0x90] sm:$0xff]
  %v2334 = vld [vmem:[%s4 + $0x98] sm:$0xff]
  %v2335 = vld [vmem:[%s4 + $0xa0] sm:$0xff]
  %v2336 = vld [vmem:[%s4 + $0xa8] sm:$0xff]
  %v2337 = vld [vmem:[%s4 + $0xb0] sm:$0xff]
  %v2338 = vld [vmem:[%s4 + $0xb8] sm:$0xff]
  %v2339 = vld [vmem:[%s4 + $0xc0] sm:$0xff]
  %v2340 = vld [vmem:[%s4 + $0xc8] sm:$0xff]
  %v2341 = vld [vmem:[%s4 + $0xd0] sm:$0xff]
  %v2342 = vld [vmem:[%s4 + $0xd8] sm:$0xff]
  %v2343 = vld [vmem:[%s4 + $0xe0] sm:$0xff]
  %v2344 = vld [vmem:[%s4 + $0xe8] sm:$0xff]
  %v2345 = vld [vmem:[%s4 + $0xf0] sm:$0xff]
  %v2346 = vld [vmem:[%s4 + $0xf8] sm:$0xff]
  %v2379 = vunpack.c.l.b16 %v2315
  %v2380 = vunpack.c.h.b16 %v2315
  %v2381 = vunpack.c.l.b16 %v2316
  %v2382 = vunpack.c.h.b16 %v2316
  %v2383 = vunpack.c.l.b16 %v2317
  %v2384 = vunpack.c.h.b16 %v2317
  %v2385 = vunpack.c.l.b16 %v2318
  %v2386 = vunpack.c.h.b16 %v2318
  %v2387 = vunpack.c.l.b16 %v2319
  %v2388 = vunpack.c.h.b16 %v2319
  %v2389 = vunpack.c.l.b16 %v2320
  %v2390 = vunpack.c.h.b16 %v2320
  %v2391 = vunpack.c.l.b16 %v2321
  %v2392 = vunpack.c.h.b16 %v2321
  %v2393 = vunpack.c.l.b16 %v2322
  %v2394 = vunpack.c.h.b16 %v2322
  %v2395 = vunpack.c.l.b16 %v2323
  %v2396 = vunpack.c.h.b16 %v2323
  %v2397 = vunpack.c.l.b16 %v2324
  %v2398 = vunpack.c.h.b16 %v2324
  %v2399 = vunpack.c.l.b16 %v2325
  %v2400 = vunpack.c.h.b16 %v2325
  %v2401 = vunpack.c.l.b16 %v2326
  %v2402 = vunpack.c.h.b16 %v2326
  %v2403 = vunpack.c.l.b16 %v2327
  %v2404 = vunpack.c.h.b16 %v2327
  %v2405 = vunpack.c.l.b16 %v2328
  %v2406 = vunpack.c.h.b16 %v2328
  %v2407 = vunpack.c.l.b16 %v2329
  %v2408 = vunpack.c.h.b16 %v2329
  %v2409 = vunpack.c.l.b16 %v2330
  %v2410 = vunpack.c.h.b16 %v2330
  %v2411 = vunpack.c.l.b16 %v2331
  %v2412 = vunpack.c.h.b16 %v2331
  %v2413 = vunpack.c.l.b16 %v2332
  %v2414 = vunpack.c.h.b16 %v2332
  %v2415 = vunpack.c.l.b16 %v2333
  %v2416 = vunpack.c.h.b16 %v2333
  %v2417 = vunpack.c.l.b16 %v2334
  %v2418 = vunpack.c.h.b16 %v2334
  %v2419 = vunpack.c.l.b16 %v2335
  %v2420 = vunpack.c.h.b16 %v2335
  %v2421 = vunpack.c.l.b16 %v2336
  %v2422 = vunpack.c.h.b16 %v2336
  %v2423 = vunpack.c.l.b16 %v2337
  %v2424 = vunpack.c.h.b16 %v2337
  %v2425 = vunpack.c.l.b16 %v2338
  %v2426 = vunpack.c.h.b16 %v2338
  %v2427 = vunpack.c.l.b16 %v2339
  %v2428 = vunpack.c.h.b16 %v2339
  %v2429 = vunpack.c.l.b16 %v2340
  %v2430 = vunpack.c.h.b16 %v2340
  %v2431 = vunpack.c.l.b16 %v2341
  %v2432 = vunpack.c.h.b16 %v2341
  %v2433 = vunpack.c.l.b16 %v2342
  %v2434 = vunpack.c.h.b16 %v2342
  %v2435 = vunpack.c.l.b16 %v2343
  %v2436 = vunpack.c.h.b16 %v2343
  %v2437 = vunpack.c.l.b16 %v2344
  %v2438 = vunpack.c.h.b16 %v2344
  %v2439 = vunpack.c.l.b16 %v2345
  %v2440 = vunpack.c.h.b16 %v2345
  %v2441 = vunpack.c.l.b16 %v2346
  %v2442 = vunpack.c.h.b16 %v2346
  %v2443 = vpack.c.b16 %v2383, %v2379
  %v2444 = vpack.c.b16 %v2384, %v2380
  %v2445 = vpack.c.b16 %v2385, %v2381
  %v2446 = vpack.c.b16 %v2386, %v2382
  %v2447 = vpack.c.b16 %v2391, %v2387
  %v2448 = vpack.c.b16 %v2392, %v2388
  %v2449 = vpack.c.b16 %v2393, %v2389
  %v2450 = vpack.c.b16 %v2394, %v2390
  %v2451 = vpack.c.b16 %v2399, %v2395
  %v2452 = vpack.c.b16 %v2400, %v2396
  %v2453 = vpack.c.b16 %v2401, %v2397
  %v2454 = vpack.c.b16 %v2402, %v2398
  %v2455 = vpack.c.b16 %v2407, %v2403
  %v2456 = vpack.c.b16 %v2408, %v2404
  %v2457 = vpack.c.b16 %v2409, %v2405
  %v2458 = vpack.c.b16 %v2410, %v2406
  %v2459 = vpack.c.b16 %v2415, %v2411
  %v2460 = vpack.c.b16 %v2416, %v2412
  %v2461 = vpack.c.b16 %v2417, %v2413
  %v2462 = vpack.c.b16 %v2418, %v2414
  %v2463 = vpack.c.b16 %v2423, %v2419
  %v2464 = vpack.c.b16 %v2424, %v2420
  %v2465 = vpack.c.b16 %v2425, %v2421
  %v2466 = vpack.c.b16 %v2426, %v2422
  %v2467 = vpack.c.b16 %v2431, %v2427
  %v2468 = vpack.c.b16 %v2432, %v2428
  %v2469 = vpack.c.b16 %v2433, %v2429
  %v2470 = vpack.c.b16 %v2434, %v2430
  %v2471 = vpack.c.b16 %v2439, %v2435
  %v2472 = vpack.c.b16 %v2440, %v2436
  %v2473 = vpack.c.b16 %v2441, %v2437
  %v2474 = vpack.c.b16 %v2442, %v2438
  %2507 = vmatprep.subr.bf16.mxu0 %v2444
  %2508 = vmatpush1.bf16.msra.mxu0 %v2443
  %2509 = vmatprep.subr.bf16.mxu0 %v2448
  %2510 = vmatpush1.bf16.msra.mxu0 %v2447
  %2511 = vmatprep.subr.bf16.mxu0 %v2452
  %2512 = vmatpush1.bf16.msra.mxu0 %v2451
  %2513 = vmatprep.subr.bf16.mxu0 %v2456
  %2514 = vmatpush1.bf16.msra.mxu0 %v2455
  %2515 = vmatprep.subr.bf16.mxu0 %v2460
  %2516 = vmatpush1.bf16.msra.mxu0 %v2459
  %2517 = vmatprep.subr.bf16.mxu0 %v2464
  %2518 = vmatpush1.bf16.msra.mxu0 %v2463
  %2519 = vmatprep.subr.bf16.mxu0 %v2468
  %2520 = vmatpush1.bf16.msra.mxu0 %v2467
  %2521 = vmatprep.subr.bf16.mxu0 %v2472
  %2522 = vmatpush1.bf16.msra.mxu0 %v2471
  %2523 = vmatprep.subr.bf16.mxu0 0
  %2524 = vmatpush1.bf16.msra.mxu0 0
  %2525 = vmatprep.subr.bf16.mxu0 0
  %2526 = vmatpush1.bf16.msra.mxu0 0
  %2527 = vmatprep.subr.bf16.mxu0 0
  %2528 = vmatpush1.bf16.msra.mxu0 0
  %2529 = vmatprep.subr.bf16.mxu0 0
  %2530 = vmatpush1.bf16.msra.mxu0 0
  %2531 = vmatprep.subr.bf16.mxu0 0
  %2532 = vmatpush1.bf16.msra.mxu0 0
  %2533 = vmatprep.subr.bf16.mxu0 0
  %2534 = vmatpush1.bf16.msra.mxu0 0
  %2535 = vmatprep.subr.bf16.mxu0 0
  %2536 = vmatpush1.bf16.msra.mxu0 0
  %2537 = vmatprep.subr.bf16.mxu0 0
  %2538 = vmatpush1.bf16.msra.mxu0 0
  %2539 = vmatprep.mubr.bf16.mxu0 0
  %2540 = vmatmul.mubr.bf16.gmra.mrb[0].mxu0 %v2306
  %v2541 = vpop.f32.mrb[0].mxu0
  %v2542 = vadd.f32 0.0, %v2541
  %v2543 = vpop.f32.mrb[0].mxu0
  %v2544 = vadd.f32 0.0, %v2543
  %v2545 = vpop.f32.mrb[0].mxu0
  %v2546 = vpop.f32.mrb[0].mxu0
  %2547 = vdwg.mxu0
  %2548 = vmatprep.subr.bf16.mxu0 %v2446
  %2549 = vmatpush1.bf16.msra.mxu0 %v2445
  %2550 = vmatprep.subr.bf16.mxu0 %v2450
  %2551 = vmatpush1.bf16.msra.mxu0 %v2449
  %2552 = vmatprep.subr.bf16.mxu0 %v2454
  %2553 = vmatpush1.bf16.msra.mxu0 %v2453
  %2554 = vmatprep.subr.bf16.mxu0 %v2458
  %2555 = vmatpush1.bf16.msra.mxu0 %v2457
  %2556 = vmatprep.subr.bf16.mxu0 %v2462
  %2557 = vmatpush1.bf16.msra.mxu0 %v2461
  %2558 = vmatprep.subr.bf16.mxu0 %v2466
  %2559 = vmatpush1.bf16.msra.mxu0 %v2465
  %2560 = vmatprep.subr.bf16.mxu0 %v2470
  %2561 = vmatpush1.bf16.msra.mxu0 %v2469
  %2562 = vmatprep.subr.bf16.mxu0 %v2474
  %2563 = vmatpush1.bf16.msra.mxu0 %v2473
  %2564 = vmatprep.subr.bf16.mxu0 0
  %2565 = vmatpush1.bf16.msra.mxu0 0
  %2566 = vmatprep.subr.bf16.mxu0 0
  %2567 = vmatpush1.bf16.msra.mxu0 0
  %2568 = vmatprep.subr.bf16.mxu0 0
  %2569 = vmatpush1.bf16.msra.mxu0 0
  %2570 = vmatprep.subr.bf16.mxu0 0
  %2571 = vmatpush1.bf16.msra.mxu0 0
  %2572 = vmatprep.subr.bf16.mxu0 0
  %2573 = vmatpush1.bf16.msra.mxu0 0
  %2574 = vmatprep.subr.bf16.mxu0 0
  %2575 = vmatpush1.bf16.msra.mxu0 0
  %2576 = vmatprep.subr.bf16.mxu0 0
  %2577 = vmatpush1.bf16.msra.mxu0 0
  %2578 = vmatprep.subr.bf16.mxu0 0
  %2579 = vmatpush1.bf16.msra.mxu0 0
  %2580 = vmatprep.mubr.bf16.mxu0 0
  %2581 = vmatmul.mubr.bf16.gmra.mrb[0].mxu0 %v2306
  %v2582 = vpop.f32.mrb[0].mxu0
  %v2583 = vadd.f32 0.0, %v2582
  %v2584 = vpop.f32.mrb[0].mxu0
  %v2585 = vadd.f32 0.0, %v2584
  %v2586 = vpop.f32.mrb[0].mxu0
  %v2587 = vpop.f32.mrb[0].mxu0
  %2588 = vdwg.mxu0
  %v2589 = vadd.f32 %v2311, %v2542
  %v2590 = vadd.f32 %v2312, %v2544
  %v2591 = vadd.f32 %v2313, %v2583
  %v2592 = vadd.f32 %v2314, %v2585
  %v2593 = vxor.u32 %v2589, 2147483648
  %v2594 = vmul.f32 %v2593, 1.442695
  %v2595 = vpow.pop %v2594
  %v2596 = vadd.f32 %v2595, 1.0
  %v2597 = vrcp.pop %v2596
  %v2598 = vmul.f32 1.0, %v2597
  %v2599 = vxor.u32 %v2590, 2147483648
  %v2600 = vmul.f32 %v2599, 1.442695
  %v2601 = vpow.pop %v2600
  %v2602 = vadd.f32 %v2601, 1.0
  %v2603 = vrcp.pop %v2602
  %v2604 = vmul.f32 1.0, %v2603
  %v2605 = vtanh.pop %v2591
  %v2606 = vxor.u32 %v2592, 2147483648
  %v2607 = vmul.f32 %v2606, 1.442695
  %v2608 = vpow.pop %v2607
  %v2609 = vadd.f32 %v2608, 1.0
  %v2610 = vrcp.pop %v2609
  %v2611 = vmul.f32 1.0, %v2610
  %v2612 = vmul.f32 %v2604, %v2303
  %v2613 = vmul.f32 %v2598, %v2605
  %v2614 = vadd.f32 %v2612, %v2613
  %v2615 = vtanh.pop %v2614
  %v2616 = vmul.f32 %v2611, %v2615
  %v2617 = vpack.c.bf16 %v2616, %v2616
  %2618 = vst [vmem:[#allocation2 + $0x18] sm:$0xf] %v2617
  %v2619 = vld [vmem:[#allocation4 + $0xe0] sm:$0xff]
  %v2620 = vld [vmem:[#allocation4 + $0xe8] sm:$0xff]
  %v2621 = vld [vmem:[#allocation4 + $0xf0] sm:$0xff]
  %v2622 = vld [vmem:[#allocation4 + $0xf8] sm:$0xff]
  %v2623 = vld [vmem:[%s4] sm:$0xff]
  %v2624 = vld [vmem:[%s4 + $0x8] sm:$0xff]
  %v2625 = vld [vmem:[%s4 + $0x10] sm:$0xff]
  %v2626 = vld [vmem:[%s4 + $0x18] sm:$0xff]
  %v2627 = vld [vmem:[%s4 + $0x20] sm:$0xff]
  %v2628 = vld [vmem:[%s4 + $0x28] sm:$0xff]
  %v2629 = vld [vmem:[%s4 + $0x30] sm:$0xff]
  %v2630 = vld [vmem:[%s4 + $0x38] sm:$0xff]
  %v2631 = vld [vmem:[%s4 + $0x40] sm:$0xff]
  %v2632 = vld [vmem:[%s4 + $0x48] sm:$0xff]
  %v2633 = vld [vmem:[%s4 + $0x50] sm:$0xff]
  %v2634 = vld [vmem:[%s4 + $0x58] sm:$0xff]
  %v2635 = vld [vmem:[%s4 + $0x60] sm:$0xff]
  %v2636 = vld [vmem:[%s4 + $0x68] sm:$0xff]
  %v2637 = vld [vmem:[%s4 + $0x70] sm:$0xff]
  %v2638 = vld [vmem:[%s4 + $0x78] sm:$0xff]
  %v2639 = vld [vmem:[%s4 + $0x80] sm:$0xff]
  %v2640 = vld [vmem:[%s4 + $0x88] sm:$0xff]
  %v2641 = vld [vmem:[%s4 + $0x90] sm:$0xff]
  %v2642 = vld [vmem:[%s4 + $0x98] sm:$0xff]
  %v2643 = vld [vmem:[%s4 + $0xa0] sm:$0xff]
  %v2644 = vld [vmem:[%s4 + $0xa8] sm:$0xff]
  %v2645 = vld [vmem:[%s4 + $0xb0] sm:$0xff]
  %v2646 = vld [vmem:[%s4 + $0xb8] sm:$0xff]
  %v2647 = vld [vmem:[%s4 + $0xc0] sm:$0xff]
  %v2648 = vld [vmem:[%s4 + $0xc8] sm:$0xff]
  %v2649 = vld [vmem:[%s4 + $0xd0] sm:$0xff]
  %v2650 = vld [vmem:[%s4 + $0xd8] sm:$0xff]
  %v2651 = vld [vmem:[%s4 + $0xe0] sm:$0xff]
  %v2652 = vld [vmem:[%s4 + $0xe8] sm:$0xff]
  %v2653 = vld [vmem:[%s4 + $0xf0] sm:$0xff]
  %v2654 = vld [vmem:[%s4 + $0xf8] sm:$0xff]
  %v2687 = vunpack.c.l.b16 %v2623
  %v2688 = vunpack.c.h.b16 %v2623
  %v2689 = vunpack.c.l.b16 %v2624
  %v2690 = vunpack.c.h.b16 %v2624
  %v2691 = vunpack.c.l.b16 %v2625
  %v2692 = vunpack.c.h.b16 %v2625
  %v2693 = vunpack.c.l.b16 %v2626
  %v2694 = vunpack.c.h.b16 %v2626
  %v2695 = vunpack.c.l.b16 %v2627
  %v2696 = vunpack.c.h.b16 %v2627
  %v2697 = vunpack.c.l.b16 %v2628
  %v2698 = vunpack.c.h.b16 %v2628
  %v2699 = vunpack.c.l.b16 %v2629
  %v2700 = vunpack.c.h.b16 %v2629
  %v2701 = vunpack.c.l.b16 %v2630
  %v2702 = vunpack.c.h.b16 %v2630
  %v2703 = vunpack.c.l.b16 %v2631
  %v2704 = vunpack.c.h.b16 %v2631
  %v2705 = vunpack.c.l.b16 %v2632
  %v2706 = vunpack.c.h.b16 %v2632
  %v2707 = vunpack.c.l.b16 %v2633
  %v2708 = vunpack.c.h.b16 %v2633
  %v2709 = vunpack.c.l.b16 %v2634
  %v2710 = vunpack.c.h.b16 %v2634
  %v2711 = vunpack.c.l.b16 %v2635
  %v2712 = vunpack.c.h.b16 %v2635
  %v2713 = vunpack.c.l.b16 %v2636
  %v2714 = vunpack.c.h.b16 %v2636
  %v2715 = vunpack.c.l.b16 %v2637
  %v2716 = vunpack.c.h.b16 %v2637
  %v2717 = vunpack.c.l.b16 %v2638
  %v2718 = vunpack.c.h.b16 %v2638
  %v2719 = vunpack.c.l.b16 %v2639
  %v2720 = vunpack.c.h.b16 %v2639
  %v2721 = vunpack.c.l.b16 %v2640
  %v2722 = vunpack.c.h.b16 %v2640
  %v2723 = vunpack.c.l.b16 %v2641
  %v2724 = vunpack.c.h.b16 %v2641
  %v2725 = vunpack.c.l.b16 %v2642
  %v2726 = vunpack.c.h.b16 %v2642
  %v2727 = vunpack.c.l.b16 %v2643
  %v2728 = vunpack.c.h.b16 %v2643
  %v2729 = vunpack.c.l.b16 %v2644
  %v2730 = vunpack.c.h.b16 %v2644
  %v2731 = vunpack.c.l.b16 %v2645
  %v2732 = vunpack.c.h.b16 %v2645
  %v2733 = vunpack.c.l.b16 %v2646
  %v2734 = vunpack.c.h.b16 %v2646
  %v2735 = vunpack.c.l.b16 %v2647
  %v2736 = vunpack.c.h.b16 %v2647
  %v2737 = vunpack.c.l.b16 %v2648
  %v2738 = vunpack.c.h.b16 %v2648
  %v2739 = vunpack.c.l.b16 %v2649
  %v2740 = vunpack.c.h.b16 %v2649
  %v2741 = vunpack.c.l.b16 %v2650
  %v2742 = vunpack.c.h.b16 %v2650
  %v2743 = vunpack.c.l.b16 %v2651
  %v2744 = vunpack.c.h.b16 %v2651
  %v2745 = vunpack.c.l.b16 %v2652
  %v2746 = vunpack.c.h.b16 %v2652
  %v2747 = vunpack.c.l.b16 %v2653
  %v2748 = vunpack.c.h.b16 %v2653
  %v2749 = vunpack.c.l.b16 %v2654
  %v2750 = vunpack.c.h.b16 %v2654
  %v2751 = vpack.c.b16 %v2691, %v2687
  %v2752 = vpack.c.b16 %v2692, %v2688
  %v2753 = vpack.c.b16 %v2693, %v2689
  %v2754 = vpack.c.b16 %v2694, %v2690
  %v2755 = vpack.c.b16 %v2699, %v2695
  %v2756 = vpack.c.b16 %v2700, %v2696
  %v2757 = vpack.c.b16 %v2701, %v2697
  %v2758 = vpack.c.b16 %v2702, %v2698
  %v2759 = vpack.c.b16 %v2707, %v2703
  %v2760 = vpack.c.b16 %v2708, %v2704
  %v2761 = vpack.c.b16 %v2709, %v2705
  %v2762 = vpack.c.b16 %v2710, %v2706
  %v2763 = vpack.c.b16 %v2715, %v2711
  %v2764 = vpack.c.b16 %v2716, %v2712
  %v2765 = vpack.c.b16 %v2717, %v2713
  %v2766 = vpack.c.b16 %v2718, %v2714
  %v2767 = vpack.c.b16 %v2723, %v2719
  %v2768 = vpack.c.b16 %v2724, %v2720
  %v2769 = vpack.c.b16 %v2725, %v2721
  %v2770 = vpack.c.b16 %v2726, %v2722
  %v2771 = vpack.c.b16 %v2731, %v2727
  %v2772 = vpack.c.b16 %v2732, %v2728
  %v2773 = vpack.c.b16 %v2733, %v2729
  %v2774 = vpack.c.b16 %v2734, %v2730
  %v2775 = vpack.c.b16 %v2739, %v2735
  %v2776 = vpack.c.b16 %v2740, %v2736
  %v2777 = vpack.c.b16 %v2741, %v2737
  %v2778 = vpack.c.b16 %v2742, %v2738
  %v2779 = vpack.c.b16 %v2747, %v2743
  %v2780 = vpack.c.b16 %v2748, %v2744
  %v2781 = vpack.c.b16 %v2749, %v2745
  %v2782 = vpack.c.b16 %v2750, %v2746
  %2815 = vmatprep.subr.bf16.mxu0 %v2752
  %2816 = vmatpush1.bf16.msra.mxu0 %v2751
  %2817 = vmatprep.subr.bf16.mxu0 %v2756
  %2818 = vmatpush1.bf16.msra.mxu0 %v2755
  %2819 = vmatprep.subr.bf16.mxu0 %v2760
  %2820 = vmatpush1.bf16.msra.mxu0 %v2759
  %2821 = vmatprep.subr.bf16.mxu0 %v2764
  %2822 = vmatpush1.bf16.msra.mxu0 %v2763
  %2823 = vmatprep.subr.bf16.mxu0 %v2768
  %2824 = vmatpush1.bf16.msra.mxu0 %v2767
  %2825 = vmatprep.subr.bf16.mxu0 %v2772
  %2826 = vmatpush1.bf16.msra.mxu0 %v2771
  %2827 = vmatprep.subr.bf16.mxu0 %v2776
  %2828 = vmatpush1.bf16.msra.mxu0 %v2775
  %2829 = vmatprep.subr.bf16.mxu0 %v2780
  %2830 = vmatpush1.bf16.msra.mxu0 %v2779
  %2831 = vmatprep.subr.bf16.mxu0 0
  %2832 = vmatpush1.bf16.msra.mxu0 0
  %2833 = vmatprep.subr.bf16.mxu0 0
  %2834 = vmatpush1.bf16.msra.mxu0 0
  %2835 = vmatprep.subr.bf16.mxu0 0
  %2836 = vmatpush1.bf16.msra.mxu0 0
  %2837 = vmatprep.subr.bf16.mxu0 0
  %2838 = vmatpush1.bf16.msra.mxu0 0
  %2839 = vmatprep.subr.bf16.mxu0 0
  %2840 = vmatpush1.bf16.msra.mxu0 0
  %2841 = vmatprep.subr.bf16.mxu0 0
  %2842 = vmatpush1.bf16.msra.mxu0 0
  %2843 = vmatprep.subr.bf16.mxu0 0
  %2844 = vmatpush1.bf16.msra.mxu0 0
  %2845 = vmatprep.subr.bf16.mxu0 0
  %2846 = vmatpush1.bf16.msra.mxu0 0
  %2847 = vmatprep.mubr.bf16.mxu0 0
  %2848 = vmatmul.mubr.bf16.gmra.mrb[0].mxu0 %v2617
  %v2849 = vpop.f32.mrb[0].mxu0
  %v2850 = vadd.f32 0.0, %v2849
  %v2851 = vpop.f32.mrb[0].mxu0
  %v2852 = vadd.f32 0.0, %v2851
  %v2853 = vpop.f32.mrb[0].mxu0
  %v2854 = vpop.f32.mrb[0].mxu0
  %2855 = vdwg.mxu0
  %2856 = vmatprep.subr.bf16.mxu0 %v2754
  %2857 = vmatpush1.bf16.msra.mxu0 %v2753
  %2858 = vmatprep.subr.bf16.mxu0 %v2758
  %2859 = vmatpush1.bf16.msra.mxu0 %v2757
  %2860 = vmatprep.subr.bf16.mxu0 %v2762
  %2861 = vmatpush1.bf16.msra.mxu0 %v2761
  %2862 = vmatprep.subr.bf16.mxu0 %v2766
  %2863 = vmatpush1.bf16.msra.mxu0 %v2765
  %2864 = vmatprep.subr.bf16.mxu0 %v2770
  %2865 = vmatpush1.bf16.msra.mxu0 %v2769
  %2866 = vmatprep.subr.bf16.mxu0 %v2774
  %2867 = vmatpush1.bf16.msra.mxu0 %v2773
  %2868 = vmatprep.subr.bf16.mxu0 %v2778
  %2869 = vmatpush1.bf16.msra.mxu0 %v2777
  %2870 = vmatprep.subr.bf16.mxu0 %v2782
  %2871 = vmatpush1.bf16.msra.mxu0 %v2781
  %2872 = vmatprep.subr.bf16.mxu0 0
  %2873 = vmatpush1.bf16.msra.mxu0 0
  %2874 = vmatprep.subr.bf16.mxu0 0
  %2875 = vmatpush1.bf16.msra.mxu0 0
  %2876 = vmatprep.subr.bf16.mxu0 0
  %2877 = vmatpush1.bf16.msra.mxu0 0
  %2878 = vmatprep.subr.bf16.mxu0 0
  %2879 = vmatpush1.bf16.msra.mxu0 0
  %2880 = vmatprep.subr.bf16.mxu0 0
  %2881 = vmatpush1.bf16.msra.mxu0 0
  %2882 = vmatprep.subr.bf16.mxu0 0
  %2883 = vmatpush1.bf16.msra.mxu0 0
  %2884 = vmatprep.subr.bf16.mxu0 0
  %2885 = vmatpush1.bf16.msra.mxu0 0
  %2886 = vmatprep.subr.bf16.mxu0 0
  %2887 = vmatpush1.bf16.msra.mxu0 0
  %2888 = vmatprep.mubr.bf16.mxu0 0
  %2889 = vmatmul.mubr.bf16.gmra.mrb[0].mxu0 %v2617
  %v2890 = vpop.f32.mrb[0].mxu0
  %v2891 = vadd.f32 0.0, %v2890
  %v2892 = vpop.f32.mrb[0].mxu0
  %v2893 = vadd.f32 0.0, %v2892
  %v2894 = vpop.f32.mrb[0].mxu0
  %v2895 = vpop.f32.mrb[0].mxu0
  %2896 = vdwg.mxu0
  %v2897 = vadd.f32 %v2619, %v2850
  %v2898 = vadd.f32 %v2620, %v2852
  %v2899 = vadd.f32 %v2621, %v2891
  %v2900 = vadd.f32 %v2622, %v2893
  %v2901 = vxor.u32 %v2897, 2147483648
  %v2902 = vmul.f32 %v2901, 1.442695
  %v2903 = vpow.pop %v2902
  %v2904 = vadd.f32 %v2903, 1.0
  %v2905 = vrcp.pop %v2904
  %v2906 = vmul.f32 1.0, %v2905
  %v2907 = vxor.u32 %v2898, 2147483648
  %v2908 = vmul.f32 %v2907, 1.442695
  %v2909 = vpow.pop %v2908
  %v2910 = vadd.f32 %v2909, 1.0
  %v2911 = vrcp.pop %v2910
  %v2912 = vmul.f32 1.0, %v2911
  %v2913 = vtanh.pop %v2899
  %v2914 = vxor.u32 %v2900, 2147483648
  %v2915 = vmul.f32 %v2914, 1.442695
  %v2916 = vpow.pop %v2915
  %v2917 = vadd.f32 %v2916, 1.0
  %v2918 = vrcp.pop %v2917
  %v2919 = vmul.f32 1.0, %v2918
  %v2920 = vmul.f32 %v2912, %v2614
  %v2921 = vmul.f32 %v2906, %v2913
  %v2922 = vadd.f32 %v2920, %v2921
  %v2923 = vtanh.pop %v2922
  %v2924 = vmul.f32 %v2919, %v2923
  %v2925 = vpack.c.bf16 %v2924, %v2924
  %v2927 = vrot.slane %v2925, 4
  %2929 = vst [vmem:[#allocation2 + $0x18] sm:$0xf0] %v2927
  %2930 = vst [vmem:[%s7] sm:$0xff] %v2924
  %2931 = vst [vmem:[%s8] sm:$0xff] %v2922
  %v2932 = vld [vmem:[#allocation2] sm:$0xff]
  %v2933 = vld [vmem:[#allocation2 + $0x8] sm:$0xff]
  %v2934 = vld [vmem:[#allocation2 + $0x10] sm:$0xff]
  %v2935 = vld [vmem:[#allocation2 + $0x18] sm:$0xff]
  %s2936 = scalar_lea.vmem %s3, 256
  %v2937 = vld [vmem:[%s2936] sm:$0xff]
  %v2938 = vld [vmem:[%s2936 + $0x8] sm:$0xff]
  %v2939 = vld [vmem:[%s2936 + $0x10] sm:$0xff]
  %v2940 = vld [vmem:[%s2936 + $0x18] sm:$0xff]
  %v2941 = vld [vmem:[%s2936 + $0x20] sm:$0xff]
  %v2942 = vld [vmem:[%s2936 + $0x28] sm:$0xff]
  %v2943 = vld [vmem:[%s2936 + $0x30] sm:$0xff]
  %v2944 = vld [vmem:[%s2936 + $0x38] sm:$0xff]
  %v2945 = vld [vmem:[%s2936 + $0x40] sm:$0xff]
  %v2946 = vld [vmem:[%s2936 + $0x48] sm:$0xff]
  %v2947 = vld [vmem:[%s2936 + $0x50] sm:$0xff]
  %v2948 = vld [vmem:[%s2936 + $0x58] sm:$0xff]
  %v2949 = vld [vmem:[%s2936 + $0x60] sm:$0xff]
  %v2950 = vld [vmem:[%s2936 + $0x68] sm:$0xff]
  %v2951 = vld [vmem:[%s2936 + $0x70] sm:$0xff]
  %v2952 = vld [vmem:[%s2936 + $0x78] sm:$0xff]
  %v2953 = vld [vmem:[%s2936 + $0x80] sm:$0xff]
  %v2954 = vld [vmem:[%s2936 + $0x88] sm:$0xff]
  %v2955 = vld [vmem:[%s2936 + $0x90] sm:$0xff]
  %v2956 = vld [vmem:[%s2936 + $0x98] sm:$0xff]
  %v2957 = vld [vmem:[%s2936 + $0xa0] sm:$0xff]
  %v2958 = vld [vmem:[%s2936 + $0xa8] sm:$0xff]
  %v2959 = vld [vmem:[%s2936 + $0xb0] sm:$0xff]
  %v2960 = vld [vmem:[%s2936 + $0xb8] sm:$0xff]
  %v2961 = vld [vmem:[%s2936 + $0xc0] sm:$0xff]
  %v2962 = vld [vmem:[%s2936 + $0xc8] sm:$0xff]
  %v2963 = vld [vmem:[%s2936 + $0xd0] sm:$0xff]
  %v2964 = vld [vmem:[%s2936 + $0xd8] sm:$0xff]
  %v2965 = vld [vmem:[%s2936 + $0xe0] sm:$0xff]
  %v2966 = vld [vmem:[%s2936 + $0xe8] sm:$0xff]
  %v2967 = vld [vmem:[%s2936 + $0xf0] sm:$0xff]
  %v2968 = vld [vmem:[%s2936 + $0xf8] sm:$0xff]
  %s2969 = scalar_lea.vmem %s5, 4
  %v2970 = vld [vmem:[%s2969] sm:$0xf]
  %v2972 = vlaneseq
  %v2973 = vshrl.u32 %v2972, 7
  %v2974 = vsub.s32 0, %v2973
  %v2975 = vrot.slane %v2970, %v2974
  %v2976 = vlaneseq
  %v2977 = vshrl.u32 %v2976, 7
  %v2978 = vsub.s32 1, %v2977
  %v2979 = vrot.slane %v2970, %v2978
  %v2980 = vlaneseq
  %v2981 = vshrl.u32 %v2980, 7
  %v2982 = vsub.s32 2, %v2981
  %v2983 = vrot.slane %v2970, %v2982
  %v2984 = vlaneseq
  %v2985 = vshrl.u32 %v2984, 7
  %v2986 = vsub.s32 3, %v2985
  %v2987 = vrot.slane %v2970, %v2986
  %v3024 = vunpack.c.l.b16 %v2937
  %v3025 = vunpack.c.h.b16 %v2937
  %v3026 = vunpack.c.l.b16 %v2938
  %v3027 = vunpack.c.h.b16 %v2938
  %v3028 = vunpack.c.l.b16 %v2939
  %v3029 = vunpack.c.h.b16 %v2939
  %v3030 = vunpack.c.l.b16 %v2940
  %v3031 = vunpack.c.h.b16 %v2940
  %v3032 = vunpack.c.l.b16 %v2941
  %v3033 = vunpack.c.h.b16 %v2941
  %v3034 = vunpack.c.l.b16 %v2942
  %v3035 = vunpack.c.h.b16 %v2942
  %v3036 = vunpack.c.l.b16 %v2943
  %v3037 = vunpack.c.h.b16 %v2943
  %v3038 = vunpack.c.l.b16 %v2944
  %v3039 = vunpack.c.h.b16 %v2944
  %v3040 = vunpack.c.l.b16 %v2945
  %v3041 = vunpack.c.h.b16 %v2945
  %v3042 = vunpack.c.l.b16 %v2946
  %v3043 = vunpack.c.h.b16 %v2946
  %v3044 = vunpack.c.l.b16 %v2947
  %v3045 = vunpack.c.h.b16 %v2947
  %v3046 = vunpack.c.l.b16 %v2948
  %v3047 = vunpack.c.h.b16 %v2948
  %v3048 = vunpack.c.l.b16 %v2949
  %v3049 = vunpack.c.h.b16 %v2949
  %v3050 = vunpack.c.l.b16 %v2950
  %v3051 = vunpack.c.h.b16 %v2950
  %v3052 = vunpack.c.l.b16 %v2951
  %v3053 = vunpack.c.h.b16 %v2951
  %v3054 = vunpack.c.l.b16 %v2952
  %v3055 = vunpack.c.h.b16 %v2952
  %v3056 = vunpack.c.l.b16 %v2953
  %v3057 = vunpack.c.h.b16 %v2953
  %v3058 = vunpack.c.l.b16 %v2954
  %v3059 = vunpack.c.h.b16 %v2954
  %v3060 = vunpack.c.l.b16 %v2955
  %v3061 = vunpack.c.h.b16 %v2955
  %v3062 = vunpack.c.l.b16 %v2956
  %v3063 = vunpack.c.h.b16 %v2956
  %v3064 = vunpack.c.l.b16 %v2957
  %v3065 = vunpack.c.h.b16 %v2957
  %v3066 = vunpack.c.l.b16 %v2958
  %v3067 = vunpack.c.h.b16 %v2958
  %v3068 = vunpack.c.l.b16 %v2959
  %v3069 = vunpack.c.h.b16 %v2959
  %v3070 = vunpack.c.l.b16 %v2960
  %v3071 = vunpack.c.h.b16 %v2960
  %v3072 = vunpack.c.l.b16 %v2961
  %v3073 = vunpack.c.h.b16 %v2961
  %v3074 = vunpack.c.l.b16 %v2962
  %v3075 = vunpack.c.h.b16 %v2962
  %v3076 = vunpack.c.l.b16 %v2963
  %v3077 = vunpack.c.h.b16 %v2963
  %v3078 = vunpack.c.l.b16 %v2964
  %v3079 = vunpack.c.h.b16 %v2964
  %v3080 = vunpack.c.l.b16 %v2965
  %v3081 = vunpack.c.h.b16 %v2965
  %v3082 = vunpack.c.l.b16 %v2966
  %v3083 = vunpack.c.h.b16 %v2966
  %v3084 = vunpack.c.l.b16 %v2967
  %v3085 = vunpack.c.h.b16 %v2967
  %v3086 = vunpack.c.l.b16 %v2968
  %v3087 = vunpack.c.h.b16 %v2968
  %v3088 = vpack.c.b16 %v3028, %v3024
  %v3089 = vpack.c.b16 %v3029, %v3025
  %v3090 = vpack.c.b16 %v3030, %v3026
  %v3091 = vpack.c.b16 %v3031, %v3027
  %v3092 = vpack.c.b16 %v3036, %v3032
  %v3093 = vpack.c.b16 %v3037, %v3033
  %v3094 = vpack.c.b16 %v3038, %v3034
  %v3095 = vpack.c.b16 %v3039, %v3035
  %v3096 = vpack.c.b16 %v3044, %v3040
  %v3097 = vpack.c.b16 %v3045, %v3041
  %v3098 = vpack.c.b16 %v3046, %v3042
  %v3099 = vpack.c.b16 %v3047, %v3043
  %v3100 = vpack.c.b16 %v3052, %v3048
  %v3101 = vpack.c.b16 %v3053, %v3049
  %v3102 = vpack.c.b16 %v3054, %v3050
  %v3103 = vpack.c.b16 %v3055, %v3051
  %v3104 = vpack.c.b16 %v3060, %v3056
  %v3105 = vpack.c.b16 %v3061, %v3057
  %v3106 = vpack.c.b16 %v3062, %v3058
  %v3107 = vpack.c.b16 %v3063, %v3059
  %v3108 = vpack.c.b16 %v3068, %v3064
  %v3109 = vpack.c.b16 %v3069, %v3065
  %v3110 = vpack.c.b16 %v3070, %v3066
  %v3111 = vpack.c.b16 %v3071, %v3067
  %v3112 = vpack.c.b16 %v3076, %v3072
  %v3113 = vpack.c.b16 %v3077, %v3073
  %v3114 = vpack.c.b16 %v3078, %v3074
  %v3115 = vpack.c.b16 %v3079, %v3075
  %v3116 = vpack.c.b16 %v3084, %v3080
  %v3117 = vpack.c.b16 %v3085, %v3081
  %v3118 = vpack.c.b16 %v3086, %v3082
  %v3119 = vpack.c.b16 %v3087, %v3083
  %3152 = vmatprep.subr.bf16.mxu0 %v3089
  %3153 = vmatpush1.bf16.msra.mxu0 %v3088
  %3154 = vmatprep.subr.bf16.mxu0 %v3093
  %3155 = vmatpush1.bf16.msra.mxu0 %v3092
  %3156 = vmatprep.subr.bf16.mxu0 %v3097
  %3157 = vmatpush1.bf16.msra.mxu0 %v3096
  %3158 = vmatprep.subr.bf16.mxu0 %v3101
  %3159 = vmatpush1.bf16.msra.mxu0 %v3100
  %3160 = vmatprep.subr.bf16.mxu0 %v3105
  %3161 = vmatpush1.bf16.msra.mxu0 %v3104
  %3162 = vmatprep.subr.bf16.mxu0 %v3109
  %3163 = vmatpush1.bf16.msra.mxu0 %v3108
  %3164 = vmatprep.subr.bf16.mxu0 %v3113
  %3165 = vmatpush1.bf16.msra.mxu0 %v3112
  %3166 = vmatprep.subr.bf16.mxu0 %v3117
  %3167 = vmatpush1.bf16.msra.mxu0 %v3116
  %3168 = vmatprep.subr.bf16.mxu0 0
  %3169 = vmatpush1.bf16.msra.mxu0 0
  %3170 = vmatprep.subr.bf16.mxu0 0
  %3171 = vmatpush1.bf16.msra.mxu0 0
  %3172 = vmatprep.subr.bf16.mxu0 0
  %3173 = vmatpush1.bf16.msra.mxu0 0
  %3174 = vmatprep.subr.bf16.mxu0 0
  %3175 = vmatpush1.bf16.msra.mxu0 0
  %3176 = vmatprep.subr.bf16.mxu0 0
  %3177 = vmatpush1.bf16.msra.mxu0 0
  %3178 = vmatprep.subr.bf16.mxu0 0
  %3179 = vmatpush1.bf16.msra.mxu0 0
  %3180 = vmatprep.subr.bf16.mxu0 0
  %3181 = vmatpush1.bf16.msra.mxu0 0
  %3182 = vmatprep.subr.bf16.mxu0 0
  %3183 = vmatpush1.bf16.msra.mxu0 0
  %3184 = vmatprep.mubr.bf16.mxu0 0
  %3185 = vmatmul.mubr.bf16.gmra.mrb[0].mxu0 %v2932
  %v3186 = vpop.f32.mrb[0].mxu0
  %v3187 = vadd.f32 %v2975, %v3186
  %v3188 = vpop.f32.mrb[0].mxu0
  %v3189 = vadd.f32 %v2979, %v3188
  %v3190 = vpop.f32.mrb[0].mxu0
  %v3191 = vadd.f32 %v2975, %v3190
  %v3192 = vpop.f32.mrb[0].mxu0
  %v3193 = vadd.f32 %v2979, %v3192
  %3194 = vmatprep.mubr.bf16.mxu0 0
  %3195 = vmatmul.mubr.bf16.gmra.mrb[0].mxu0 %v2933
  %v3196 = vpop.f32.mrb[0].mxu0
  %v3197 = vadd.f32 %v2975, %v3196
  %v3198 = vpop.f32.mrb[0].mxu0
  %v3199 = vadd.f32 %v2979, %v3198
  %v3200 = vpop.f32.mrb[0].mxu0
  %v3201 = vadd.f32 %v2975, %v3200
  %v3202 = vpop.f32.mrb[0].mxu0
  %v3203 = vadd.f32 %v2979, %v3202
  %3204 = vmatprep.mubr.bf16.mxu0 0
  %3205 = vmatmul.mubr.bf16.gmra.mrb[0].mxu0 %v2934
  %v3206 = vpop.f32.mrb[0].mxu0
  %v3207 = vadd.f32 %v2975, %v3206
  %v3208 = vpop.f32.mrb[0].mxu0
  %v3209 = vadd.f32 %v2979, %v3208
  %v3210 = vpop.f32.mrb[0].mxu0
  %v3211 = vadd.f32 %v2975, %v3210
  %v3212 = vpop.f32.mrb[0].mxu0
  %v3213 = vadd.f32 %v2979, %v3212
  %3214 = vmatprep.mubr.bf16.mxu0 0
  %3215 = vmatmul.mubr.bf16.gmra.mrb[0].mxu0 %v2935
  %v3216 = vpop.f32.mrb[0].mxu0
  %v3217 = vadd.f32 %v2975, %v3216
  %v3218 = vpop.f32.mrb[0].mxu0
  %v3219 = vadd.f32 %v2979, %v3218
  %v3220 = vpop.f32.mrb[0].mxu0
  %v3221 = vadd.f32 %v2975, %v3220
  %v3222 = vpop.f32.mrb[0].mxu0
  %v3223 = vadd.f32 %v2979, %v3222
  %3224 = vdwg.mxu0
  %3225 = vmatprep.subr.bf16.mxu0 %v3091
  %3226 = vmatpush1.bf16.msra.mxu0 %v3090
  %3227 = vmatprep.subr.bf16.mxu0 %v3095
  %3228 = vmatpush1.bf16.msra.mxu0 %v3094
  %3229 = vmatprep.subr.bf16.mxu0 %v3099
  %3230 = vmatpush1.bf16.msra.mxu0 %v3098
  %3231 = vmatprep.subr.bf16.mxu0 %v3103
  %3232 = vmatpush1.bf16.msra.mxu0 %v3102
  %3233 = vmatprep.subr.bf16.mxu0 %v3107
  %3234 = vmatpush1.bf16.msra.mxu0 %v3106
  %3235 = vmatprep.subr.bf16.mxu0 %v3111
  %3236 = vmatpush1.bf16.msra.mxu0 %v3110
  %3237 = vmatprep.subr.bf16.mxu0 %v3115
  %3238 = vmatpush1.bf16.msra.mxu0 %v3114
  %3239 = vmatprep.subr.bf16.mxu0 %v3119
  %3240 = vmatpush1.bf16.msra.mxu0 %v3118
  %3241 = vmatprep.subr.bf16.mxu0 0
  %3242 = vmatpush1.bf16.msra.mxu0 0
  %3243 = vmatprep.subr.bf16.mxu0 0
  %3244 = vmatpush1.bf16.msra.mxu0 0
  %3245 = vmatprep.subr.bf16.mxu0 0
  %3246 = vmatpush1.bf16.msra.mxu0 0
  %3247 = vmatprep.subr.bf16.mxu0 0
  %3248 = vmatpush1.bf16.msra.mxu0 0
  %3249 = vmatprep.subr.bf16.mxu0 0
  %3250 = vmatpush1.bf16.msra.mxu0 0
  %3251 = vmatprep.subr.bf16.mxu0 0
  %3252 = vmatpush1.bf16.msra.mxu0 0
  %3253 = vmatprep.subr.bf16.mxu0 0
  %3254 = vmatpush1.bf16.msra.mxu0 0
  %3255 = vmatprep.subr.bf16.mxu0 0
  %3256 = vmatpush1.bf16.msra.mxu0 0
  %3257 = vmatprep.mubr.bf16.mxu0 0
  %3258 = vmatmul.mubr.bf16.gmra.mrb[0].mxu0 %v2932
  %v3259 = vpop.f32.mrb[0].mxu0
  %v3260 = vadd.f32 %v2983, %v3259
  %v3261 = vpop.f32.mrb[0].mxu0
  %v3262 = vadd.f32 %v2987, %v3261
  %v3263 = vpop.f32.mrb[0].mxu0
  %v3264 = vadd.f32 %v2983, %v3263
  %v3265 = vpop.f32.mrb[0].mxu0
  %v3266 = vadd.f32 %v2987, %v3265
  %3267 = vmatprep.mubr.bf16.mxu0 0
  %3268 = vmatmul.mubr.bf16.gmra.mrb[0].mxu0 %v2933
  %v3269 = vpop.f32.mrb[0].mxu0
  %v3270 = vadd.f32 %v2983, %v3269
  %v3271 = vpop.f32.mrb[0].mxu0
  %v3272 = vadd.f32 %v2987, %v3271
  %v3273 = vpop.f32.mrb[0].mxu0
  %v3274 = vadd.f32 %v2983, %v3273
  %v3275 = vpop.f32.mrb[0].mxu0
  %v3276 = vadd.f32 %v2987, %v3275
  %3277 = vmatprep.mubr.bf16.mxu0 0
  %3278 = vmatmul.mubr.bf16.gmra.mrb[0].mxu0 %v2934
  %v3279 = vpop.f32.mrb[0].mxu0
  %v3280 = vadd.f32 %v2983, %v3279
  %v3281 = vpop.f32.mrb[0].mxu0
  %v3282 = vadd.f32 %v2987, %v3281
  %v3283 = vpop.f32.mrb[0].mxu0
  %v3284 = vadd.f32 %v2983, %v3283
  %v3285 = vpop.f32.mrb[0].mxu0
  %v3286 = vadd.f32 %v2987, %v3285
  %3287 = vmatprep.mubr.bf16.mxu0 0
  %3288 = vmatmul.mubr.bf16.gmra.mrb[0].mxu0 %v2935
  %v3289 = vpop.f32.mrb[0].mxu0
  %v3290 = vadd.f32 %v2983, %v3289
  %v3291 = vpop.f32.mrb[0].mxu0
  %v3292 = vadd.f32 %v2987, %v3291
  %v3293 = vpop.f32.mrb[0].mxu0
  %v3294 = vadd.f32 %v2983, %v3293
  %v3295 = vpop.f32.mrb[0].mxu0
  %v3296 = vadd.f32 %v2987, %v3295
  %3297 = vdwg.mxu0
  %3298 = vst [vmem:[#allocation4] sm:$0xff] %v3187
  %3299 = vst [vmem:[#allocation4 + $0x8] sm:$0xff] %v3189
  %3300 = vst [vmem:[#allocation4 + $0x10] sm:$0xff] %v3260
  %3301 = vst [vmem:[#allocation4 + $0x18] sm:$0xff] %v3262
  %3302 = vst [vmem:[#allocation4 + $0x20] sm:$0xff] %v3191
  %3303 = vst [vmem:[#allocation4 + $0x28] sm:$0xff] %v3193
  %3304 = vst [vmem:[#allocation4 + $0x30] sm:$0xff] %v3264
  %3305 = vst [vmem:[#allocation4 + $0x38] sm:$0xff] %v3266
  %3306 = vst [vmem:[#allocation4 + $0x40] sm:$0xff] %v3197
  %3307 = vst [vmem:[#allocation4 + $0x48] sm:$0xff] %v3199
  %3308 = vst [vmem:[#allocation4 + $0x50] sm:$0xff] %v3270
  %3309 = vst [vmem:[#allocation4 + $0x58] sm:$0xff] %v3272
  %3310 = vst [vmem:[#allocation4 + $0x60] sm:$0xff] %v3201
  %3311 = vst [vmem:[#allocation4 + $0x68] sm:$0xff] %v3203
  %3312 = vst [vmem:[#allocation4 + $0x70] sm:$0xff] %v3274
  %3313 = vst [vmem:[#allocation4 + $0x78] sm:$0xff] %v3276
  %3314 = vst [vmem:[#allocation4 + $0x80] sm:$0xff] %v3207
  %3315 = vst [vmem:[#allocation4 + $0x88] sm:$0xff] %v3209
  %3316 = vst [vmem:[#allocation4 + $0x90] sm:$0xff] %v3280
  %3317 = vst [vmem:[#allocation4 + $0x98] sm:$0xff] %v3282
  %3318 = vst [vmem:[#allocation4 + $0xa0] sm:$0xff] %v3211
  %3319 = vst [vmem:[#allocation4 + $0xa8] sm:$0xff] %v3213
  %3320 = vst [vmem:[#allocation4 + $0xb0] sm:$0xff] %v3284
  %3321 = vst [vmem:[#allocation4 + $0xb8] sm:$0xff] %v3286
  %3322 = vst [vmem:[#allocation4 + $0xc0] sm:$0xff] %v3217
  %3323 = vst [vmem:[#allocation4 + $0xc8] sm:$0xff] %v3219
  %3324 = vst [vmem:[#allocation4 + $0xd0] sm:$0xff] %v3290
  %3325 = vst [vmem:[#allocation4 + $0xd8] sm:$0xff] %v3292
  %3326 = vst [vmem:[#allocation4 + $0xe0] sm:$0xff] %v3221
  %3327 = vst [vmem:[#allocation4 + $0xe8] sm:$0xff] %v3223
  %3328 = vst [vmem:[#allocation4 + $0xf0] sm:$0xff] %v3294
  %3329 = vst [vmem:[#allocation4 + $0xf8] sm:$0xff] %v3296
  %s3330 = scalar_lea.vmem %s1, 8
  %v3331 = vld [vmem:[%s3330] sm:$0xff]
  %s3332 = scalar_lea.vmem %s2, 8
  %v3333 = vld [vmem:[%s3332] sm:$0xff]
  %v3334 = vld [vmem:[#allocation4] sm:$0xff]
  %v3335 = vld [vmem:[#allocation4 + $0x8] sm:$0xff]
  %v3336 = vld [vmem:[#allocation4 + $0x10] sm:$0xff]
  %v3337 = vld [vmem:[#allocation4 + $0x18] sm:$0xff]
  %v3338 = vpack.c.bf16 %v3331, %v3331
  %s3339 = scalar_lea.vmem %s4, 256
  %v3340 = vld [vmem:[%s3339] sm:$0xff]
  %v3341 = vld [vmem:[%s3339 + $0x8] sm:$0xff]
  %v3342 = vld [vmem:[%s3339 + $0x10] sm:$0xff]
  %v3343 = vld [vmem:[%s3339 + $0x18] sm:$0xff]
  %v3344 = vld [vmem:[%s3339 + $0x20] sm:$0xff]
  %v3345 = vld [vmem:[%s3339 + $0x28] sm:$0xff]
  %v3346 = vld [vmem:[%s3339 + $0x30] sm:$0xff]
  %v3347 = vld [vmem:[%s3339 + $0x38] sm:$0xff]
  %v3348 = vld [vmem:[%s3339 + $0x40] sm:$0xff]
  %v3349 = vld [vmem:[%s3339 + $0x48] sm:$0xff]
  %v3350 = vld [vmem:[%s3339 + $0x50] sm:$0xff]
  %v3351 = vld [vmem:[%s3339 + $0x58] sm:$0xff]
  %v3352 = vld [vmem:[%s3339 + $0x60] sm:$0xff]
  %v3353 = vld [vmem:[%s3339 + $0x68] sm:$0xff]
  %v3354 = vld [vmem:[%s3339 + $0x70] sm:$0xff]
  %v3355 = vld [vmem:[%s3339 + $0x78] sm:$0xff]
  %v3356 = vld [vmem:[%s3339 + $0x80] sm:$0xff]
  %v3357 = vld [vmem:[%s3339 + $0x88] sm:$0xff]
  %v3358 = vld [vmem:[%s3339 + $0x90] sm:$0xff]
  %v3359 = vld [vmem:[%s3339 + $0x98] sm:$0xff]
  %v3360 = vld [vmem:[%s3339 + $0xa0] sm:$0xff]
  %v3361 = vld [vmem:[%s3339 + $0xa8] sm:$0xff]
  %v3362 = vld [vmem:[%s3339 + $0xb0] sm:$0xff]
  %v3363 = vld [vmem:[%s3339 + $0xb8] sm:$0xff]
  %v3364 = vld [vmem:[%s3339 + $0xc0] sm:$0xff]
  %v3365 = vld [vmem:[%s3339 + $0xc8] sm:$0xff]
  %v3366 = vld [vmem:[%s3339 + $0xd0] sm:$0xff]
  %v3367 = vld [vmem:[%s3339 + $0xd8] sm:$0xff]
  %v3368 = vld [vmem:[%s3339 + $0xe0] sm:$0xff]
  %v3369 = vld [vmem:[%s3339 + $0xe8] sm:$0xff]
  %v3370 = vld [vmem:[%s3339 + $0xf0] sm:$0xff]
  %v3371 = vld [vmem:[%s3339 + $0xf8] sm:$0xff]
  %v3404 = vunpack.c.l.b16 %v3340
  %v3405 = vunpack.c.h.b16 %v3340
  %v3406 = vunpack.c.l.b16 %v3341
  %v3407 = vunpack.c.h.b16 %v3341
  %v3408 = vunpack.c.l.b16 %v3342
  %v3409 = vunpack.c.h.b16 %v3342
  %v3410 = vunpack.c.l.b16 %v3343
  %v3411 = vunpack.c.h.b16 %v3343
  %v3412 = vunpack.c.l.b16 %v3344
  %v3413 = vunpack.c.h.b16 %v3344
  %v3414 = vunpack.c.l.b16 %v3345
  %v3415 = vunpack.c.h.b16 %v3345
  %v3416 = vunpack.c.l.b16 %v3346
  %v3417 = vunpack.c.h.b16 %v3346
  %v3418 = vunpack.c.l.b16 %v3347
  %v3419 = vunpack.c.h.b16 %v3347
  %v3420 = vunpack.c.l.b16 %v3348
  %v3421 = vunpack.c.h.b16 %v3348
  %v3422 = vunpack.c.l.b16 %v3349
  %v3423 = vunpack.c.h.b16 %v3349
  %v3424 = vunpack.c.l.b16 %v3350
  %v3425 = vunpack.c.h.b16 %v3350
  %v3426 = vunpack.c.l.b16 %v3351
  %v3427 = vunpack.c.h.b16 %v3351
  %v3428 = vunpack.c.l.b16 %v3352
  %v3429 = vunpack.c.h.b16 %v3352
  %v3430 = vunpack.c.l.b16 %v3353
  %v3431 = vunpack.c.h.b16 %v3353
  %v3432 = vunpack.c.l.b16 %v3354
  %v3433 = vunpack.c.h.b16 %v3354
  %v3434 = vunpack.c.l.b16 %v3355
  %v3435 = vunpack.c.h.b16 %v3355
  %v3436 = vunpack.c.l.b16 %v3356
  %v3437 = vunpack.c.h.b16 %v3356
  %v3438 = vunpack.c.l.b16 %v3357
  %v3439 = vunpack.c.h.b16 %v3357
  %v3440 = vunpack.c.l.b16 %v3358
  %v3441 = vunpack.c.h.b16 %v3358
  %v3442 = vunpack.c.l.b16 %v3359
  %v3443 = vunpack.c.h.b16 %v3359
  %v3444 = vunpack.c.l.b16 %v3360
  %v3445 = vunpack.c.h.b16 %v3360
  %v3446 = vunpack.c.l.b16 %v3361
  %v3447 = vunpack.c.h.b16 %v3361
  %v3448 = vunpack.c.l.b16 %v3362
  %v3449 = vunpack.c.h.b16 %v3362
  %v3450 = vunpack.c.l.b16 %v3363
  %v3451 = vunpack.c.h.b16 %v3363
  %v3452 = vunpack.c.l.b16 %v3364
  %v3453 = vunpack.c.h.b16 %v3364
  %v3454 = vunpack.c.l.b16 %v3365
  %v3455 = vunpack.c.h.b16 %v3365
  %v3456 = vunpack.c.l.b16 %v3366
  %v3457 = vunpack.c.h.b16 %v3366
  %v3458 = vunpack.c.l.b16 %v3367
  %v3459 = vunpack.c.h.b16 %v3367
  %v3460 = vunpack.c.l.b16 %v3368
  %v3461 = vunpack.c.h.b16 %v3368
  %v3462 = vunpack.c.l.b16 %v3369
  %v3463 = vunpack.c.h.b16 %v3369
  %v3464 = vunpack.c.l.b16 %v3370
  %v3465 = vunpack.c.h.b16 %v3370
  %v3466 = vunpack.c.l.b16 %v3371
  %v3467 = vunpack.c.h.b16 %v3371
  %v3468 = vpack.c.b16 %v3408, %v3404
  %v3469 = vpack.c.b16 %v3409, %v3405
  %v3470 = vpack.c.b16 %v3410, %v3406
  %v3471 = vpack.c.b16 %v3411, %v3407
  %v3472 = vpack.c.b16 %v3416, %v3412
  %v3473 = vpack.c.b16 %v3417, %v3413
  %v3474 = vpack.c.b16 %v3418, %v3414
  %v3475 = vpack.c.b16 %v3419, %v3415
  %v3476 = vpack.c.b16 %v3424, %v3420
  %v3477 = vpack.c.b16 %v3425, %v3421
  %v3478 = vpack.c.b16 %v3426, %v3422
  %v3479 = vpack.c.b16 %v3427, %v3423
  %v3480 = vpack.c.b16 %v3432, %v3428
  %v3481 = vpack.c.b16 %v3433, %v3429
  %v3482 = vpack.c.b16 %v3434, %v3430
  %v3483 = vpack.c.b16 %v3435, %v3431
  %v3484 = vpack.c.b16 %v3440, %v3436
  %v3485 = vpack.c.b16 %v3441, %v3437
  %v3486 = vpack.c.b16 %v3442, %v3438
  %v3487 = vpack.c.b16 %v3443, %v3439
  %v3488 = vpack.c.b16 %v3448, %v3444
  %v3489 = vpack.c.b16 %v3449, %v3445
  %v3490 = vpack.c.b16 %v3450, %v3446
  %v3491 = vpack.c.b16 %v3451, %v3447
  %v3492 = vpack.c.b16 %v3456, %v3452
  %v3493 = vpack.c.b16 %v3457, %v3453
  %v3494 = vpack.c.b16 %v3458, %v3454
  %v3495 = vpack.c.b16 %v3459, %v3455
  %v3496 = vpack.c.b16 %v3464, %v3460
  %v3497 = vpack.c.b16 %v3465, %v3461
  %v3498 = vpack.c.b16 %v3466, %v3462
  %v3499 = vpack.c.b16 %v3467, %v3463
  %3532 = vmatprep.subr.bf16.mxu0 %v3469
  %3533 = vmatpush1.bf16.msra.mxu0 %v3468
  %3534 = vmatprep.subr.bf16.mxu0 %v3473
  %3535 = vmatpush1.bf16.msra.mxu0 %v3472
  %3536 = vmatprep.subr.bf16.mxu0 %v3477
  %3537 = vmatpush1.bf16.msra.mxu0 %v3476
  %3538 = vmatprep.subr.bf16.mxu0 %v3481
  %3539 = vmatpush1.bf16.msra.mxu0 %v3480
  %3540 = vmatprep.subr.bf16.mxu0 %v3485
  %3541 = vmatpush1.bf16.msra.mxu0 %v3484
  %3542 = vmatprep.subr.bf16.mxu0 %v3489
  %3543 = vmatpush1.bf16.msra.mxu0 %v3488
  %3544 = vmatprep.subr.bf16.mxu0 %v3493
  %3545 = vmatpush1.bf16.msra.mxu0 %v3492
  %3546 = vmatprep.subr.bf16.mxu0 %v3497
  %3547 = vmatpush1.bf16.msra.mxu0 %v3496
  %3548 = vmatprep.subr.bf16.mxu0 0
  %3549 = vmatpush1.bf16.msra.mxu0 0
  %3550 = vmatprep.subr.bf16.mxu0 0
  %3551 = vmatpush1.bf16.msra.mxu0 0
  %3552 = vmatprep.subr.bf16.mxu0 0
  %3553 = vmatpush1.bf16.msra.mxu0 0
  %3554 = vmatprep.subr.bf16.mxu0 0
  %3555 = vmatpush1.bf16.msra.mxu0 0
  %3556 = vmatprep.subr.bf16.mxu0 0
  %3557 = vmatpush1.bf16.msra.mxu0 0
  %3558 = vmatprep.subr.bf16.mxu0 0
  %3559 = vmatpush1.bf16.msra.mxu0 0
  %3560 = vmatprep.subr.bf16.mxu0 0
  %3561 = vmatpush1.bf16.msra.mxu0 0
  %3562 = vmatprep.subr.bf16.mxu0 0
  %3563 = vmatpush1.bf16.msra.mxu0 0
  %3564 = vmatprep.mubr.bf16.mxu0 0
  %3565 = vmatmul.mubr.bf16.gmra.mrb[0].mxu0 %v3338
  %v3566 = vpop.f32.mrb[0].mxu0
  %v3567 = vadd.f32 0.0, %v3566
  %v3568 = vpop.f32.mrb[0].mxu0
  %v3569 = vadd.f32 0.0, %v3568
  %v3570 = vpop.f32.mrb[0].mxu0
  %v3571 = vpop.f32.mrb[0].mxu0
  %3572 = vdwg.mxu0
  %3573 = vmatprep.subr.bf16.mxu0 %v3471
  %3574 = vmatpush1.bf16.msra.mxu0 %v3470
  %3575 = vmatprep.subr.bf16.mxu0 %v3475
  %3576 = vmatpush1.bf16.msra.mxu0 %v3474
  %3577 = vmatprep.subr.bf16.mxu0 %v3479
  %3578 = vmatpush1.bf16.msra.mxu0 %v3478
  %3579 = vmatprep.subr.bf16.mxu0 %v3483
  %3580 = vmatpush1.bf16.msra.mxu0 %v3482
  %3581 = vmatprep.subr.bf16.mxu0 %v3487
  %3582 = vmatpush1.bf16.msra.mxu0 %v3486
  %3583 = vmatprep.subr.bf16.mxu0 %v3491
  %3584 = vmatpush1.bf16.msra.mxu0 %v3490
  %3585 = vmatprep.subr.bf16.mxu0 %v3495
  %3586 = vmatpush1.bf16.msra.mxu0 %v3494
  %3587 = vmatprep.subr.bf16.mxu0 %v3499
  %3588 = vmatpush1.bf16.msra.mxu0 %v3498
  %3589 = vmatprep.subr.bf16.mxu0 0
  %3590 = vmatpush1.bf16.msra.mxu0 0
  %3591 = vmatprep.subr.bf16.mxu0 0
  %3592 = vmatpush1.bf16.msra.mxu0 0
  %3593 = vmatprep.subr.bf16.mxu0 0
  %3594 = vmatpush1.bf16.msra.mxu0 0
  %3595 = vmatprep.subr.bf16.mxu0 0
  %3596 = vmatpush1.bf16.msra.mxu0 0
  %3597 = vmatprep.subr.bf16.mxu0 0
  %3598 = vmatpush1.bf16.msra.mxu0 0
  %3599 = vmatprep.subr.bf16.mxu0 0
  %3600 = vmatpush1.bf16.msra.mxu0 0
  %3601 = vmatprep.subr.bf16.mxu0 0
  %3602 = vmatpush1.bf16.msra.mxu0 0
  %3603 = vmatprep.subr.bf16.mxu0 0
  %3604 = vmatpush1.bf16.msra.mxu0 0
  %3605 = vmatprep.mubr.bf16.mxu0 0
  %3606 = vmatmul.mubr.bf16.gmra.mrb[0].mxu0 %v3338
  %v3607 = vpop.f32.mrb[0].mxu0
  %v3608 = vadd.f32 0.0, %v3607
  %v3609 = vpop.f32.mrb[0].mxu0
  %v3610 = vadd.f32 0.0, %v3609
  %v3611 = vpop.f32.mrb[0].mxu0
  %v3612 = vpop.f32.mrb[0].mxu0
  %3613 = vdwg.mxu0
  %v3614 = vadd.f32 %v3334, %v3567
  %v3615 = vadd.f32 %v3335, %v3569
  %v3616 = vadd.f32 %v3336, %v3608
  %v3617 = vadd.f32 %v3337, %v3610
  %v3618 = vxor.u32 %v3614, 2147483648
  %v3619 = vmul.f32 %v3618, 1.442695
  %v3620 = vpow.pop %v3619
  %v3621 = vadd.f32 %v3620, 1.0
  %v3622 = vrcp.pop %v3621
  %v3623 = vmul.f32 1.0, %v3622
  %v3624 = vxor.u32 %v3615, 2147483648
  %v3625 = vmul.f32 %v3624, 1.442695
  %v3626 = vpow.pop %v3625
  %v3627 = vadd.f32 %v3626, 1.0
  %v3628 = vrcp.pop %v3627
  %v3629 = vmul.f32 1.0, %v3628
  %v3630 = vtanh.pop %v3616
  %v3631 = vxor.u32 %v3617, 2147483648
  %v3632 = vmul.f32 %v3631, 1.442695
  %v3633 = vpow.pop %v3632
  %v3634 = vadd.f32 %v3633, 1.0
  %v3635 = vrcp.pop %v3634
  %v3636 = vmul.f32 1.0, %v3635
  %v3637 = vmul.f32 %v3629, %v3333
  %v3638 = vmul.f32 %v3623, %v3630
  %v3639 = vadd.f32 %v3637, %v3638
  %v3640 = vtanh.pop %v3639
  %v3641 = vmul.f32 %v3636, %v3640
  %v3642 = vpack.c.bf16 %v3641, %v3641
  %3643 = vst [vmem:[%s6] sm:$0xf] %v3642
  %v3644 = vld [vmem:[#allocation4 + $0x20] sm:$0xff]
  %v3645 = vld [vmem:[#allocation4 + $0x28] sm:$0xff]
  %v3646 = vld [vmem:[#allocation4 + $0x30] sm:$0xff]
  %v3647 = vld [vmem:[#allocation4 + $0x38] sm:$0xff]
  %v3648 = vld [vmem:[%s3339] sm:$0xff]
  %v3649 = vld [vmem:[%s3339 + $0x8] sm:$0xff]
  %v3650 = vld [vmem:[%s3339 + $0x10] sm:$0xff]
  %v3651 = vld [vmem:[%s3339 + $0x18] sm:$0xff]
  %v3652 = vld [vmem:[%s3339 + $0x20] sm:$0xff]
  %v3653 = vld [vmem:[%s3339 + $0x28] sm:$0xff]
  %v3654 = vld [vmem:[%s3339 + $0x30] sm:$0xff]
  %v3655 = vld [vmem:[%s3339 + $0x38] sm:$0xff]
  %v3656 = vld [vmem:[%s3339 + $0x40] sm:$0xff]
  %v3657 = vld [vmem:[%s3339 + $0x48] sm:$0xff]
  %v3658 = vld [vmem:[%s3339 + $0x50] sm:$0xff]
  %v3659 = vld [vmem:[%s3339 + $0x58] sm:$0xff]
  %v3660 = vld [vmem:[%s3339 + $0x60] sm:$0xff]
  %v3661 = vld [vmem:[%s3339 + $0x68] sm:$0xff]
  %v3662 = vld [vmem:[%s3339 + $0x70] sm:$0xff]
  %v3663 = vld [vmem:[%s3339 + $0x78] sm:$0xff]
  %v3664 = vld [vmem:[%s3339 + $0x80] sm:$0xff]
  %v3665 = vld [vmem:[%s3339 + $0x88] sm:$0xff]
  %v3666 = vld [vmem:[%s3339 + $0x90] sm:$0xff]
  %v3667 = vld [vmem:[%s3339 + $0x98] sm:$0xff]
  %v3668 = vld [vmem:[%s3339 + $0xa0] sm:$0xff]
  %v3669 = vld [vmem:[%s3339 + $0xa8] sm:$0xff]
  %v3670 = vld [vmem:[%s3339 + $0xb0] sm:$0xff]
  %v3671 = vld [vmem:[%s3339 + $0xb8] sm:$0xff]
  %v3672 = vld [vmem:[%s3339 + $0xc0] sm:$0xff]
  %v3673 = vld [vmem:[%s3339 + $0xc8] sm:$0xff]
  %v3674 = vld [vmem:[%s3339 + $0xd0] sm:$0xff]
  %v3675 = vld [vmem:[%s3339 + $0xd8] sm:$0xff]
  %v3676 = vld [vmem:[%s3339 + $0xe0] sm:$0xff]
  %v3677 = vld [vmem:[%s3339 + $0xe8] sm:$0xff]
  %v3678 = vld [vmem:[%s3339 + $0xf0] sm:$0xff]
  %v3679 = vld [vmem:[%s3339 + $0xf8] sm:$0xff]
  %v3712 = vunpack.c.l.b16 %v3648
  %v3713 = vunpack.c.h.b16 %v3648
  %v3714 = vunpack.c.l.b16 %v3649
  %v3715 = vunpack.c.h.b16 %v3649
  %v3716 = vunpack.c.l.b16 %v3650
  %v3717 = vunpack.c.h.b16 %v3650
  %v3718 = vunpack.c.l.b16 %v3651
  %v3719 = vunpack.c.h.b16 %v3651
  %v3720 = vunpack.c.l.b16 %v3652
  %v3721 = vunpack.c.h.b16 %v3652
  %v3722 = vunpack.c.l.b16 %v3653
  %v3723 = vunpack.c.h.b16 %v3653
  %v3724 = vunpack.c.l.b16 %v3654
  %v3725 = vunpack.c.h.b16 %v3654
  %v3726 = vunpack.c.l.b16 %v3655
  %v3727 = vunpack.c.h.b16 %v3655
  %v3728 = vunpack.c.l.b16 %v3656
  %v3729 = vunpack.c.h.b16 %v3656
  %v3730 = vunpack.c.l.b16 %v3657
  %v3731 = vunpack.c.h.b16 %v3657
  %v3732 = vunpack.c.l.b16 %v3658
  %v3733 = vunpack.c.h.b16 %v3658
  %v3734 = vunpack.c.l.b16 %v3659
  %v3735 = vunpack.c.h.b16 %v3659
  %v3736 = vunpack.c.l.b16 %v3660
  %v3737 = vunpack.c.h.b16 %v3660
  %v3738 = vunpack.c.l.b16 %v3661
  %v3739 = vunpack.c.h.b16 %v3661
  %v3740 = vunpack.c.l.b16 %v3662
  %v3741 = vunpack.c.h.b16 %v3662
  %v3742 = vunpack.c.l.b16 %v3663
  %v3743 = vunpack.c.h.b16 %v3663
  %v3744 = vunpack.c.l.b16 %v3664
  %v3745 = vunpack.c.h.b16 %v3664
  %v3746 = vunpack.c.l.b16 %v3665
  %v3747 = vunpack.c.h.b16 %v3665
  %v3748 = vunpack.c.l.b16 %v3666
  %v3749 = vunpack.c.h.b16 %v3666
  %v3750 = vunpack.c.l.b16 %v3667
  %v3751 = vunpack.c.h.b16 %v3667
  %v3752 = vunpack.c.l.b16 %v3668
  %v3753 = vunpack.c.h.b16 %v3668
  %v3754 = vunpack.c.l.b16 %v3669
  %v3755 = vunpack.c.h.b16 %v3669
  %v3756 = vunpack.c.l.b16 %v3670
  %v3757 = vunpack.c.h.b16 %v3670
  %v3758 = vunpack.c.l.b16 %v3671
  %v3759 = vunpack.c.h.b16 %v3671
  %v3760 = vunpack.c.l.b16 %v3672
  %v3761 = vunpack.c.h.b16 %v3672
  %v3762 = vunpack.c.l.b16 %v3673
  %v3763 = vunpack.c.h.b16 %v3673
  %v3764 = vunpack.c.l.b16 %v3674
  %v3765 = vunpack.c.h.b16 %v3674
  %v3766 = vunpack.c.l.b16 %v3675
  %v3767 = vunpack.c.h.b16 %v3675
  %v3768 = vunpack.c.l.b16 %v3676
  %v3769 = vunpack.c.h.b16 %v3676
  %v3770 = vunpack.c.l.b16 %v3677
  %v3771 = vunpack.c.h.b16 %v3677
  %v3772 = vunpack.c.l.b16 %v3678
  %v3773 = vunpack.c.h.b16 %v3678
  %v3774 = vunpack.c.l.b16 %v3679
  %v3775 = vunpack.c.h.b16 %v3679
  %v3776 = vpack.c.b16 %v3716, %v3712
  %v3777 = vpack.c.b16 %v3717, %v3713
  %v3778 = vpack.c.b16 %v3718, %v3714
  %v3779 = vpack.c.b16 %v3719, %v3715
  %v3780 = vpack.c.b16 %v3724, %v3720
  %v3781 = vpack.c.b16 %v3725, %v3721
  %v3782 = vpack.c.b16 %v3726, %v3722
  %v3783 = vpack.c.b16 %v3727, %v3723
  %v3784 = vpack.c.b16 %v3732, %v3728
  %v3785 = vpack.c.b16 %v3733, %v3729
  %v3786 = vpack.c.b16 %v3734, %v3730
  %v3787 = vpack.c.b16 %v3735, %v3731
  %v3788 = vpack.c.b16 %v3740, %v3736
  %v3789 = vpack.c.b16 %v3741, %v3737
  %v3790 = vpack.c.b16 %v3742, %v3738
  %v3791 = vpack.c.b16 %v3743, %v3739
  %v3792 = vpack.c.b16 %v3748, %v3744
  %v3793 = vpack.c.b16 %v3749, %v3745
  %v3794 = vpack.c.b16 %v3750, %v3746
  %v3795 = vpack.c.b16 %v3751, %v3747
  %v3796 = vpack.c.b16 %v3756, %v3752
  %v3797 = vpack.c.b16 %v3757, %v3753
  %v3798 = vpack.c.b16 %v3758, %v3754
  %v3799 = vpack.c.b16 %v3759, %v3755
  %v3800 = vpack.c.b16 %v3764, %v3760
  %v3801 = vpack.c.b16 %v3765, %v3761
  %v3802 = vpack.c.b16 %v3766, %v3762
  %v3803 = vpack.c.b16 %v3767, %v3763
  %v3804 = vpack.c.b16 %v3772, %v3768
  %v3805 = vpack.c.b16 %v3773, %v3769
  %v3806 = vpack.c.b16 %v3774, %v3770
  %v3807 = vpack.c.b16 %v3775, %v3771
  %3840 = vmatprep.subr.bf16.mxu0 %v3777
  %3841 = vmatpush1.bf16.msra.mxu0 %v3776
  %3842 = vmatprep.subr.bf16.mxu0 %v3781
  %3843 = vmatpush1.bf16.msra.mxu0 %v3780
  %3844 = vmatprep.subr.bf16.mxu0 %v3785
  %3845 = vmatpush1.bf16.msra.mxu0 %v3784
  %3846 = vmatprep.subr.bf16.mxu0 %v3789
  %3847 = vmatpush1.bf16.msra.mxu0 %v3788
  %3848 = vmatprep.subr.bf16.mxu0 %v3793
  %3849 = vmatpush1.bf16.msra.mxu0 %v3792
  %3850 = vmatprep.subr.bf16.mxu0 %v3797
  %3851 = vmatpush1.bf16.msra.mxu0 %v3796
  %3852 = vmatprep.subr.bf16.mxu0 %v3801
  %3853 = vmatpush1.bf16.msra.mxu0 %v3800
  %3854 = vmatprep.subr.bf16.mxu0 %v3805
  %3855 = vmatpush1.bf16.msra.mxu0 %v3804
  %3856 = vmatprep.subr.bf16.mxu0 0
  %3857 = vmatpush1.bf16.msra.mxu0 0
  %3858 = vmatprep.subr.bf16.mxu0 0
  %3859 = vmatpush1.bf16.msra.mxu0 0
  %3860 = vmatprep.subr.bf16.mxu0 0
  %3861 = vmatpush1.bf16.msra.mxu0 0
  %3862 = vmatprep.subr.bf16.mxu0 0
  %3863 = vmatpush1.bf16.msra.mxu0 0
  %3864 = vmatprep.subr.bf16.mxu0 0
  %3865 = vmatpush1.bf16.msra.mxu0 0
  %3866 = vmatprep.subr.bf16.mxu0 0
  %3867 = vmatpush1.bf16.msra.mxu0 0
  %3868 = vmatprep.subr.bf16.mxu0 0
  %3869 = vmatpush1.bf16.msra.mxu0 0
  %3870 = vmatprep.subr.bf16.mxu0 0
  %3871 = vmatpush1.bf16.msra.mxu0 0
  %3872 = vmatprep.mubr.bf16.mxu0 0
  %3873 = vmatmul.mubr.bf16.gmra.mrb[0].mxu0 %v3642
  %v3874 = vpop.f32.mrb[0].mxu0
  %v3875 = vadd.f32 0.0, %v3874
  %v3876 = vpop.f32.mrb[0].mxu0
  %v3877 = vadd.f32 0.0, %v3876
  %v3878 = vpop.f32.mrb[0].mxu0
  %v3879 = vpop.f32.mrb[0].mxu0
  %3880 = vdwg.mxu0
  %3881 = vmatprep.subr.bf16.mxu0 %v3779
  %3882 = vmatpush1.bf16.msra.mxu0 %v3778
  %3883 = vmatprep.subr.bf16.mxu0 %v3783
  %3884 = vmatpush1.bf16.msra.mxu0 %v3782
  %3885 = vmatprep.subr.bf16.mxu0 %v3787
  %3886 = vmatpush1.bf16.msra.mxu0 %v3786
  %3887 = vmatprep.subr.bf16.mxu0 %v3791
  %3888 = vmatpush1.bf16.msra.mxu0 %v3790
  %3889 = vmatprep.subr.bf16.mxu0 %v3795
  %3890 = vmatpush1.bf16.msra.mxu0 %v3794
  %3891 = vmatprep.subr.bf16.mxu0 %v3799
  %3892 = vmatpush1.bf16.msra.mxu0 %v3798
  %3893 = vmatprep.subr.bf16.mxu0 %v3803
  %3894 = vmatpush1.bf16.msra.mxu0 %v3802
  %3895 = vmatprep.subr.bf16.mxu0 %v3807
  %3896 = vmatpush1.bf16.msra.mxu0 %v3806
  %3897 = vmatprep.subr.bf16.mxu0 0
  %3898 = vmatpush1.bf16.msra.mxu0 0
  %3899 = vmatprep.subr.bf16.mxu0 0
  %3900 = vmatpush1.bf16.msra.mxu0 0
  %3901 = vmatprep.subr.bf16.mxu0 0
  %3902 = vmatpush1.bf16.msra.mxu0 0
  %3903 = vmatprep.subr.bf16.mxu0 0
  %3904 = vmatpush1.bf16.msra.mxu0 0
  %3905 = vmatprep.subr.bf16.mxu0 0
  %3906 = vmatpush1.bf16.msra.mxu0 0
  %3907 = vmatprep.subr.bf16.mxu0 0
  %3908 = vmatpush1.bf16.msra.mxu0 0
  %3909 = vmatprep.subr.bf16.mxu0 0
  %3910 = vmatpush1.bf16.msra.mxu0 0
  %3911 = vmatprep.subr.bf16.mxu0 0
  %3912 = vmatpush1.bf16.msra.mxu0 0
  %3913 = vmatprep.mubr.bf16.mxu0 0
  %3914 = vmatmul.mubr.bf16.gmra.mrb[0].mxu0 %v3642
  %v3915 = vpop.f32.mrb[0].mxu0
  %v3916 = vadd.f32 0.0, %v3915
  %v3917 = vpop.f32.mrb[0].mxu0
  %v3918 = vadd.f32 0.0, %v3917
  %v3919 = vpop.f32.mrb[0].mxu0
  %v3920 = vpop.f32.mrb[0].mxu0
  %3921 = vdwg.mxu0
  %v3922 = vadd.f32 %v3644, %v3875
  %v3923 = vadd.f32 %v3645, %v3877
  %v3924 = vadd.f32 %v3646, %v3916
  %v3925 = vadd.f32 %v3647, %v3918
  %v3926 = vxor.u32 %v3922, 2147483648
  %v3927 = vmul.f32 %v3926, 1.442695
  %v3928 = vpow.pop %v3927
  %v3929 = vadd.f32 %v3928, 1.0
  %v3930 = vrcp.pop %v3929
  %v3931 = vmul.f32 1.0, %v3930
  %v3932 = vxor.u32 %v3923, 2147483648
  %v3933 = vmul.f32 %v3932, 1.442695
  %v3934 = vpow.pop %v3933
  %v3935 = vadd.f32 %v3934, 1.0
  %v3936 = vrcp.pop %v3935
  %v3937 = vmul.f32 1.0, %v3936
  %v3938 = vtanh.pop %v3924
  %v3939 = vxor.u32 %v3925, 2147483648
  %v3940 = vmul.f32 %v3939, 1.442695
  %v3941 = vpow.pop %v3940
  %v3942 = vadd.f32 %v3941, 1.0
  %v3943 = vrcp.pop %v3942
  %v3944 = vmul.f32 1.0, %v3943
  %v3945 = vmul.f32 %v3937, %v3639
  %v3946 = vmul.f32 %v3931, %v3938
  %v3947 = vadd.f32 %v3945, %v3946
  %v3948 = vtanh.pop %v3947
  %v3949 = vmul.f32 %v3944, %v3948
  %v3950 = vpack.c.bf16 %v3949, %v3949
  %3951 = vst [vmem:[%s6 + $0x4] sm:$0xf] %v3950
  %v3952 = vld [vmem:[#allocation4 + $0x40] sm:$0xff]
  %v3953 = vld [vmem:[#allocation4 + $0x48] sm:$0xff]
  %v3954 = vld [vmem:[#allocation4 + $0x50] sm:$0xff]
  %v3955 = vld [vmem:[#allocation4 + $0x58] sm:$0xff]
  %v3956 = vld [vmem:[%s3339] sm:$0xff]
  %v3957 = vld [vmem:[%s3339 + $0x8] sm:$0xff]
  %v3958 = vld [vmem:[%s3339 + $0x10] sm:$0xff]
  %v3959 = vld [vmem:[%s3339 + $0x18] sm:$0xff]
  %v3960 = vld [vmem:[%s3339 + $0x20] sm:$0xff]
  %v3961 = vld [vmem:[%s3339 + $0x28] sm:$0xff]
  %v3962 = vld [vmem:[%s3339 + $0x30] sm:$0xff]
  %v3963 = vld [vmem:[%s3339 + $0x38] sm:$0xff]
  %v3964 = vld [vmem:[%s3339 + $0x40] sm:$0xff]
  %v3965 = vld [vmem:[%s3339 + $0x48] sm:$0xff]
  %v3966 = vld [vmem:[%s3339 + $0x50] sm:$0xff]
  %v3967 = vld [vmem:[%s3339 + $0x58] sm:$0xff]
  %v3968 = vld [vmem:[%s3339 + $0x60] sm:$0xff]
  %v3969 = vld [vmem:[%s3339 + $0x68] sm:$0xff]
  %v3970 = vld [vmem:[%s3339 + $0x70] sm:$0xff]
  %v3971 = vld [vmem:[%s3339 + $0x78] sm:$0xff]
  %v3972 = vld [vmem:[%s3339 + $0x80] sm:$0xff]
  %v3973 = vld [vmem:[%s3339 + $0x88] sm:$0xff]
  %v3974 = vld [vmem:[%s3339 + $0x90] sm:$0xff]
  %v3975 = vld [vmem:[%s3339 + $0x98] sm:$0xff]
  %v3976 = vld [vmem:[%s3339 + $0xa0] sm:$0xff]
  %v3977 = vld [vmem:[%s3339 + $0xa8] sm:$0xff]
  %v3978 = vld [vmem:[%s3339 + $0xb0] sm:$0xff]
  %v3979 = vld [vmem:[%s3339 + $0xb8] sm:$0xff]
  %v3980 = vld [vmem:[%s3339 + $0xc0] sm:$0xff]
  %v3981 = vld [vmem:[%s3339 + $0xc8] sm:$0xff]
  %v3982 = vld [vmem:[%s3339 + $0xd0] sm:$0xff]
  %v3983 = vld [vmem:[%s3339 + $0xd8] sm:$0xff]
  %v3984 = vld [vmem:[%s3339 + $0xe0] sm:$0xff]
  %v3985 = vld [vmem:[%s3339 + $0xe8] sm:$0xff]
  %v3986 = vld [vmem:[%s3339 + $0xf0] sm:$0xff]
  %v3987 = vld [vmem:[%s3339 + $0xf8] sm:$0xff]
  %v4020 = vunpack.c.l.b16 %v3956
  %v4021 = vunpack.c.h.b16 %v3956
  %v4022 = vunpack.c.l.b16 %v3957
  %v4023 = vunpack.c.h.b16 %v3957
  %v4024 = vunpack.c.l.b16 %v3958
  %v4025 = vunpack.c.h.b16 %v3958
  %v4026 = vunpack.c.l.b16 %v3959
  %v4027 = vunpack.c.h.b16 %v3959
  %v4028 = vunpack.c.l.b16 %v3960
  %v4029 = vunpack.c.h.b16 %v3960
  %v4030 = vunpack.c.l.b16 %v3961
  %v4031 = vunpack.c.h.b16 %v3961
  %v4032 = vunpack.c.l.b16 %v3962
  %v4033 = vunpack.c.h.b16 %v3962
  %v4034 = vunpack.c.l.b16 %v3963
  %v4035 = vunpack.c.h.b16 %v3963
  %v4036 = vunpack.c.l.b16 %v3964
  %v4037 = vunpack.c.h.b16 %v3964
  %v4038 = vunpack.c.l.b16 %v3965
  %v4039 = vunpack.c.h.b16 %v3965
  %v4040 = vunpack.c.l.b16 %v3966
  %v4041 = vunpack.c.h.b16 %v3966
  %v4042 = vunpack.c.l.b16 %v3967
  %v4043 = vunpack.c.h.b16 %v3967
  %v4044 = vunpack.c.l.b16 %v3968
  %v4045 = vunpack.c.h.b16 %v3968
  %v4046 = vunpack.c.l.b16 %v3969
  %v4047 = vunpack.c.h.b16 %v3969
  %v4048 = vunpack.c.l.b16 %v3970
  %v4049 = vunpack.c.h.b16 %v3970
  %v4050 = vunpack.c.l.b16 %v3971
  %v4051 = vunpack.c.h.b16 %v3971
  %v4052 = vunpack.c.l.b16 %v3972
  %v4053 = vunpack.c.h.b16 %v3972
  %v4054 = vunpack.c.l.b16 %v3973
  %v4055 = vunpack.c.h.b16 %v3973
  %v4056 = vunpack.c.l.b16 %v3974
  %v4057 = vunpack.c.h.b16 %v3974
  %v4058 = vunpack.c.l.b16 %v3975
  %v4059 = vunpack.c.h.b16 %v3975
  %v4060 = vunpack.c.l.b16 %v3976
  %v4061 = vunpack.c.h.b16 %v3976
  %v4062 = vunpack.c.l.b16 %v3977
  %v4063 = vunpack.c.h.b16 %v3977
  %v4064 = vunpack.c.l.b16 %v3978
  %v4065 = vunpack.c.h.b16 %v3978
  %v4066 = vunpack.c.l.b16 %v3979
  %v4067 = vunpack.c.h.b16 %v3979
  %v4068 = vunpack.c.l.b16 %v3980
  %v4069 = vunpack.c.h.b16 %v3980
  %v4070 = vunpack.c.l.b16 %v3981
  %v4071 = vunpack.c.h.b16 %v3981
  %v4072 = vunpack.c.l.b16 %v3982
  %v4073 = vunpack.c.h.b16 %v3982
  %v4074 = vunpack.c.l.b16 %v3983
  %v4075 = vunpack.c.h.b16 %v3983
  %v4076 = vunpack.c.l.b16 %v3984
  %v4077 = vunpack.c.h.b16 %v3984
  %v4078 = vunpack.c.l.b16 %v3985
  %v4079 = vunpack.c.h.b16 %v3985
  %v4080 = vunpack.c.l.b16 %v3986
  %v4081 = vunpack.c.h.b16 %v3986
  %v4082 = vunpack.c.l.b16 %v3987
  %v4083 = vunpack.c.h.b16 %v3987
  %v4084 = vpack.c.b16 %v4024, %v4020
  %v4085 = vpack.c.b16 %v4025, %v4021
  %v4086 = vpack.c.b16 %v4026, %v4022
  %v4087 = vpack.c.b16 %v4027, %v4023
  %v4088 = vpack.c.b16 %v4032, %v4028
  %v4089 = vpack.c.b16 %v4033, %v4029
  %v4090 = vpack.c.b16 %v4034, %v4030
  %v4091 = vpack.c.b16 %v4035, %v4031
  %v4092 = vpack.c.b16 %v4040, %v4036
  %v4093 = vpack.c.b16 %v4041, %v4037
  %v4094 = vpack.c.b16 %v4042, %v4038
  %v4095 = vpack.c.b16 %v4043, %v4039
  %v4096 = vpack.c.b16 %v4048, %v4044
  %v4097 = vpack.c.b16 %v4049, %v4045
  %v4098 = vpack.c.b16 %v4050, %v4046
  %v4099 = vpack.c.b16 %v4051, %v4047
  %v4100 = vpack.c.b16 %v4056, %v4052
  %v4101 = vpack.c.b16 %v4057, %v4053
  %v4102 = vpack.c.b16 %v4058, %v4054
  %v4103 = vpack.c.b16 %v4059, %v4055
  %v4104 = vpack.c.b16 %v4064, %v4060
  %v4105 = vpack.c.b16 %v4065, %v4061
  %v4106 = vpack.c.b16 %v4066, %v4062
  %v4107 = vpack.c.b16 %v4067, %v4063
  %v4108 = vpack.c.b16 %v4072, %v4068
  %v4109 = vpack.c.b16 %v4073, %v4069
  %v4110 = vpack.c.b16 %v4074, %v4070
  %v4111 = vpack.c.b16 %v4075, %v4071
  %v4112 = vpack.c.b16 %v4080, %v4076
  %v4113 = vpack.c.b16 %v4081, %v4077
  %v4114 = vpack.c.b16 %v4082, %v4078
  %v4115 = vpack.c.b16 %v4083, %v4079
  %4148 = vmatprep.subr.bf16.mxu0 %v4085
  %4149 = vmatpush1.bf16.msra.mxu0 %v4084
  %4150 = vmatprep.subr.bf16.mxu0 %v4089
  %4151 = vmatpush1.bf16.msra.mxu0 %v4088
  %4152 = vmatprep.subr.bf16.mxu0 %v4093
  %4153 = vmatpush1.bf16.msra.mxu0 %v4092
  %4154 = vmatprep.subr.bf16.mxu0 %v4097
  %4155 = vmatpush1.bf16.msra.mxu0 %v4096
  %4156 = vmatprep.subr.bf16.mxu0 %v4101
  %4157 = vmatpush1.bf16.msra.mxu0 %v4100
  %4158 = vmatprep.subr.bf16.mxu0 %v4105
  %4159 = vmatpush1.bf16.msra.mxu0 %v4104
  %4160 = vmatprep.subr.bf16.mxu0 %v4109
  %4161 = vmatpush1.bf16.msra.mxu0 %v4108
  %4162 = vmatprep.subr.bf16.mxu0 %v4113
  %4163 = vmatpush1.bf16.msra.mxu0 %v4112
  %4164 = vmatprep.subr.bf16.mxu0 0
  %4165 = vmatpush1.bf16.msra.mxu0 0
  %4166 = vmatprep.subr.bf16.mxu0 0
  %4167 = vmatpush1.bf16.msra.mxu0 0
  %4168 = vmatprep.subr.bf16.mxu0 0
  %4169 = vmatpush1.bf16.msra.mxu0 0
  %4170 = vmatprep.subr.bf16.mxu0 0
  %4171 = vmatpush1.bf16.msra.mxu0 0
  %4172 = vmatprep.subr.bf16.mxu0 0
  %4173 = vmatpush1.bf16.msra.mxu0 0
  %4174 = vmatprep.subr.bf16.mxu0 0
  %4175 = vmatpush1.bf16.msra.mxu0 0
  %4176 = vmatprep.subr.bf16.mxu0 0
  %4177 = vmatpush1.bf16.msra.mxu0 0
  %4178 = vmatprep.subr.bf16.mxu0 0
  %4179 = vmatpush1.bf16.msra.mxu0 0
  %4180 = vmatprep.mubr.bf16.mxu0 0
  %4181 = vmatmul.mubr.bf16.gmra.mrb[0].mxu0 %v3950
  %v4182 = vpop.f32.mrb[0].mxu0
  %v4183 = vadd.f32 0.0, %v4182
  %v4184 = vpop.f32.mrb[0].mxu0
  %v4185 = vadd.f32 0.0, %v4184
  %v4186 = vpop.f32.mrb[0].mxu0
  %v4187 = vpop.f32.mrb[0].mxu0
  %4188 = vdwg.mxu0
  %4189 = vmatprep.subr.bf16.mxu0 %v4087
  %4190 = vmatpush1.bf16.msra.mxu0 %v4086
  %4191 = vmatprep.subr.bf16.mxu0 %v4091
  %4192 = vmatpush1.bf16.msra.mxu0 %v4090
  %4193 = vmatprep.subr.bf16.mxu0 %v4095
  %4194 = vmatpush1.bf16.msra.mxu0 %v4094
  %4195 = vmatprep.subr.bf16.mxu0 %v4099
  %4196 = vmatpush1.bf16.msra.mxu0 %v4098
  %4197 = vmatprep.subr.bf16.mxu0 %v4103
  %4198 = vmatpush1.bf16.msra.mxu0 %v4102
  %4199 = vmatprep.subr.bf16.mxu0 %v4107
  %4200 = vmatpush1.bf16.msra.mxu0 %v4106
  %4201 = vmatprep.subr.bf16.mxu0 %v4111
  %4202 = vmatpush1.bf16.msra.mxu0 %v4110
  %4203 = vmatprep.subr.bf16.mxu0 %v4115
  %4204 = vmatpush1.bf16.msra.mxu0 %v4114
  %4205 = vmatprep.subr.bf16.mxu0 0
  %4206 = vmatpush1.bf16.msra.mxu0 0
  %4207 = vmatprep.subr.bf16.mxu0 0
  %4208 = vmatpush1.bf16.msra.mxu0 0
  %4209 = vmatprep.subr.bf16.mxu0 0
  %4210 = vmatpush1.bf16.msra.mxu0 0
  %4211 = vmatprep.subr.bf16.mxu0 0
  %4212 = vmatpush1.bf16.msra.mxu0 0
  %4213 = vmatprep.subr.bf16.mxu0 0
  %4214 = vmatpush1.bf16.msra.mxu0 0
  %4215 = vmatprep.subr.bf16.mxu0 0
  %4216 = vmatpush1.bf16.msra.mxu0 0
  %4217 = vmatprep.subr.bf16.mxu0 0
  %4218 = vmatpush1.bf16.msra.mxu0 0
  %4219 = vmatprep.subr.bf16.mxu0 0
  %4220 = vmatpush1.bf16.msra.mxu0 0
  %4221 = vmatprep.mubr.bf16.mxu0 0
  %4222 = vmatmul.mubr.bf16.gmra.mrb[0].mxu0 %v3950
  %v4223 = vpop.f32.mrb[0].mxu0
  %v4224 = vadd.f32 0.0, %v4223
  %v4225 = vpop.f32.mrb[0].mxu0
  %v4226 = vadd.f32 0.0, %v4225
  %v4227 = vpop.f32.mrb[0].mxu0
  %v4228 = vpop.f32.mrb[0].mxu0
  %4229 = vdwg.mxu0
  %v4230 = vadd.f32 %v3952, %v4183
  %v4231 = vadd.f32 %v3953, %v4185
  %v4232 = vadd.f32 %v3954, %v4224
  %v4233 = vadd.f32 %v3955, %v4226
  %v4234 = vxor.u32 %v4230, 2147483648
  %v4235 = vmul.f32 %v4234, 1.442695
  %v4236 = vpow.pop %v4235
  %v4237 = vadd.f32 %v4236, 1.0
  %v4238 = vrcp.pop %v4237
  %v4239 = vmul.f32 1.0, %v4238
  %v4240 = vxor.u32 %v4231, 2147483648
  %v4241 = vmul.f32 %v4240, 1.442695
  %v4242 = vpow.pop %v4241
  %v4243 = vadd.f32 %v4242, 1.0
  %v4244 = vrcp.pop %v4243
  %v4245 = vmul.f32 1.0, %v4244
  %v4246 = vtanh.pop %v4232
  %v4247 = vxor.u32 %v4233, 2147483648
  %v4248 = vmul.f32 %v4247, 1.442695
  %v4249 = vpow.pop %v4248
  %v4250 = vadd.f32 %v4249, 1.0
  %v4251 = vrcp.pop %v4250
  %v4252 = vmul.f32 1.0, %v4251
  %v4253 = vmul.f32 %v4245, %v3947
  %v4254 = vmul.f32 %v4239, %v4246
  %v4255 = vadd.f32 %v4253, %v4254
  %v4256 = vtanh.pop %v4255
  %v4257 = vmul.f32 %v4252, %v4256
  %v4258 = vpack.c.bf16 %v4257, %v4257
  %4259 = vst [vmem:[%s6 + $0x8] sm:$0xf] %v4258
  %v4260 = vld [vmem:[#allocation4 + $0x60] sm:$0xff]
  %v4261 = vld [vmem:[#allocation4 + $0x68] sm:$0xff]
  %v4262 = vld [vmem:[#allocation4 + $0x70] sm:$0xff]
  %v4263 = vld [vmem:[#allocation4 + $0x78] sm:$0xff]
  %v4264 = vld [vmem:[%s3339] sm:$0xff]
  %v4265 = vld [vmem:[%s3339 + $0x8] sm:$0xff]
  %v4266 = vld [vmem:[%s3339 + $0x10] sm:$0xff]
  %v4267 = vld [vmem:[%s3339 + $0x18] sm:$0xff]
  %v4268 = vld [vmem:[%s3339 + $0x20] sm:$0xff]
  %v4269 = vld [vmem:[%s3339 + $0x28] sm:$0xff]
  %v4270 = vld [vmem:[%s3339 + $0x30] sm:$0xff]
  %v4271 = vld [vmem:[%s3339 + $0x38] sm:$0xff]
  %v4272 = vld [vmem:[%s3339 + $0x40] sm:$0xff]
  %v4273 = vld [vmem:[%s3339 + $0x48] sm:$0xff]
  %v4274 = vld [vmem:[%s3339 + $0x50] sm:$0xff]
  %v4275 = vld [vmem:[%s3339 + $0x58] sm:$0xff]
  %v4276 = vld [vmem:[%s3339 + $0x60] sm:$0xff]
  %v4277 = vld [vmem:[%s3339 + $0x68] sm:$0xff]
  %v4278 = vld [vmem:[%s3339 + $0x70] sm:$0xff]
  %v4279 = vld [vmem:[%s3339 + $0x78] sm:$0xff]
  %v4280 = vld [vmem:[%s3339 + $0x80] sm:$0xff]
  %v4281 = vld [vmem:[%s3339 + $0x88] sm:$0xff]
  %v4282 = vld [vmem:[%s3339 + $0x90] sm:$0xff]
  %v4283 = vld [vmem:[%s3339 + $0x98] sm:$0xff]
  %v4284 = vld [vmem:[%s3339 + $0xa0] sm:$0xff]
  %v4285 = vld [vmem:[%s3339 + $0xa8] sm:$0xff]
  %v4286 = vld [vmem:[%s3339 + $0xb0] sm:$0xff]
  %v4287 = vld [vmem:[%s3339 + $0xb8] sm:$0xff]
  %v4288 = vld [vmem:[%s3339 + $0xc0] sm:$0xff]
  %v4289 = vld [vmem:[%s3339 + $0xc8] sm:$0xff]
  %v4290 = vld [vmem:[%s3339 + $0xd0] sm:$0xff]
  %v4291 = vld [vmem:[%s3339 + $0xd8] sm:$0xff]
  %v4292 = vld [vmem:[%s3339 + $0xe0] sm:$0xff]
  %v4293 = vld [vmem:[%s3339 + $0xe8] sm:$0xff]
  %v4294 = vld [vmem:[%s3339 + $0xf0] sm:$0xff]
  %v4295 = vld [vmem:[%s3339 + $0xf8] sm:$0xff]
  %v4328 = vunpack.c.l.b16 %v4264
  %v4329 = vunpack.c.h.b16 %v4264
  %v4330 = vunpack.c.l.b16 %v4265
  %v4331 = vunpack.c.h.b16 %v4265
  %v4332 = vunpack.c.l.b16 %v4266
  %v4333 = vunpack.c.h.b16 %v4266
  %v4334 = vunpack.c.l.b16 %v4267
  %v4335 = vunpack.c.h.b16 %v4267
  %v4336 = vunpack.c.l.b16 %v4268
  %v4337 = vunpack.c.h.b16 %v4268
  %v4338 = vunpack.c.l.b16 %v4269
  %v4339 = vunpack.c.h.b16 %v4269
  %v4340 = vunpack.c.l.b16 %v4270
  %v4341 = vunpack.c.h.b16 %v4270
  %v4342 = vunpack.c.l.b16 %v4271
  %v4343 = vunpack.c.h.b16 %v4271
  %v4344 = vunpack.c.l.b16 %v4272
  %v4345 = vunpack.c.h.b16 %v4272
  %v4346 = vunpack.c.l.b16 %v4273
  %v4347 = vunpack.c.h.b16 %v4273
  %v4348 = vunpack.c.l.b16 %v4274
  %v4349 = vunpack.c.h.b16 %v4274
  %v4350 = vunpack.c.l.b16 %v4275
  %v4351 = vunpack.c.h.b16 %v4275
  %v4352 = vunpack.c.l.b16 %v4276
  %v4353 = vunpack.c.h.b16 %v4276
  %v4354 = vunpack.c.l.b16 %v4277
  %v4355 = vunpack.c.h.b16 %v4277
  %v4356 = vunpack.c.l.b16 %v4278
  %v4357 = vunpack.c.h.b16 %v4278
  %v4358 = vunpack.c.l.b16 %v4279
  %v4359 = vunpack.c.h.b16 %v4279
  %v4360 = vunpack.c.l.b16 %v4280
  %v4361 = vunpack.c.h.b16 %v4280
  %v4362 = vunpack.c.l.b16 %v4281
  %v4363 = vunpack.c.h.b16 %v4281
  %v4364 = vunpack.c.l.b16 %v4282
  %v4365 = vunpack.c.h.b16 %v4282
  %v4366 = vunpack.c.l.b16 %v4283
  %v4367 = vunpack.c.h.b16 %v4283
  %v4368 = vunpack.c.l.b16 %v4284
  %v4369 = vunpack.c.h.b16 %v4284
  %v4370 = vunpack.c.l.b16 %v4285
  %v4371 = vunpack.c.h.b16 %v4285
  %v4372 = vunpack.c.l.b16 %v4286
  %v4373 = vunpack.c.h.b16 %v4286
  %v4374 = vunpack.c.l.b16 %v4287
  %v4375 = vunpack.c.h.b16 %v4287
  %v4376 = vunpack.c.l.b16 %v4288
  %v4377 = vunpack.c.h.b16 %v4288
  %v4378 = vunpack.c.l.b16 %v4289
  %v4379 = vunpack.c.h.b16 %v4289
  %v4380 = vunpack.c.l.b16 %v4290
  %v4381 = vunpack.c.h.b16 %v4290
  %v4382 = vunpack.c.l.b16 %v4291
  %v4383 = vunpack.c.h.b16 %v4291
  %v4384 = vunpack.c.l.b16 %v4292
  %v4385 = vunpack.c.h.b16 %v4292
  %v4386 = vunpack.c.l.b16 %v4293
  %v4387 = vunpack.c.h.b16 %v4293
  %v4388 = vunpack.c.l.b16 %v4294
  %v4389 = vunpack.c.h.b16 %v4294
  %v4390 = vunpack.c.l.b16 %v4295
  %v4391 = vunpack.c.h.b16 %v4295
  %v4392 = vpack.c.b16 %v4332, %v4328
  %v4393 = vpack.c.b16 %v4333, %v4329
  %v4394 = vpack.c.b16 %v4334, %v4330
  %v4395 = vpack.c.b16 %v4335, %v4331
  %v4396 = vpack.c.b16 %v4340, %v4336
  %v4397 = vpack.c.b16 %v4341, %v4337
  %v4398 = vpack.c.b16 %v4342, %v4338
  %v4399 = vpack.c.b16 %v4343, %v4339
  %v4400 = vpack.c.b16 %v4348, %v4344
  %v4401 = vpack.c.b16 %v4349, %v4345
  %v4402 = vpack.c.b16 %v4350, %v4346
  %v4403 = vpack.c.b16 %v4351, %v4347
  %v4404 = vpack.c.b16 %v4356, %v4352
  %v4405 = vpack.c.b16 %v4357, %v4353
  %v4406 = vpack.c.b16 %v4358, %v4354
  %v4407 = vpack.c.b16 %v4359, %v4355
  %v4408 = vpack.c.b16 %v4364, %v4360
  %v4409 = vpack.c.b16 %v4365, %v4361
  %v4410 = vpack.c.b16 %v4366, %v4362
  %v4411 = vpack.c.b16 %v4367, %v4363
  %v4412 = vpack.c.b16 %v4372, %v4368
  %v4413 = vpack.c.b16 %v4373, %v4369
  %v4414 = vpack.c.b16 %v4374, %v4370
  %v4415 = vpack.c.b16 %v4375, %v4371
  %v4416 = vpack.c.b16 %v4380, %v4376
  %v4417 = vpack.c.b16 %v4381, %v4377
  %v4418 = vpack.c.b16 %v4382, %v4378
  %v4419 = vpack.c.b16 %v4383, %v4379
  %v4420 = vpack.c.b16 %v4388, %v4384
  %v4421 = vpack.c.b16 %v4389, %v4385
  %v4422 = vpack.c.b16 %v4390, %v4386
  %v4423 = vpack.c.b16 %v4391, %v4387
  %4456 = vmatprep.subr.bf16.mxu0 %v4393
  %4457 = vmatpush1.bf16.msra.mxu0 %v4392
  %4458 = vmatprep.subr.bf16.mxu0 %v4397
  %4459 = vmatpush1.bf16.msra.mxu0 %v4396
  %4460 = vmatprep.subr.bf16.mxu0 %v4401
  %4461 = vmatpush1.bf16.msra.mxu0 %v4400
  %4462 = vmatprep.subr.bf16.mxu0 %v4405
  %4463 = vmatpush1.bf16.msra.mxu0 %v4404
  %4464 = vmatprep.subr.bf16.mxu0 %v4409
  %4465 = vmatpush1.bf16.msra.mxu0 %v4408
  %4466 = vmatprep.subr.bf16.mxu0 %v4413
  %4467 = vmatpush1.bf16.msra.mxu0 %v4412
  %4468 = vmatprep.subr.bf16.mxu0 %v4417
  %4469 = vmatpush1.bf16.msra.mxu0 %v4416
  %4470 = vmatprep.subr.bf16.mxu0 %v4421
  %4471 = vmatpush1.bf16.msra.mxu0 %v4420
  %4472 = vmatprep.subr.bf16.mxu0 0
  %4473 = vmatpush1.bf16.msra.mxu0 0
  %4474 = vmatprep.subr.bf16.mxu0 0
  %4475 = vmatpush1.bf16.msra.mxu0 0
  %4476 = vmatprep.subr.bf16.mxu0 0
  %4477 = vmatpush1.bf16.msra.mxu0 0
  %4478 = vmatprep.subr.bf16.mxu0 0
  %4479 = vmatpush1.bf16.msra.mxu0 0
  %4480 = vmatprep.subr.bf16.mxu0 0
  %4481 = vmatpush1.bf16.msra.mxu0 0
  %4482 = vmatprep.subr.bf16.mxu0 0
  %4483 = vmatpush1.bf16.msra.mxu0 0
  %4484 = vmatprep.subr.bf16.mxu0 0
  %4485 = vmatpush1.bf16.msra.mxu0 0
  %4486 = vmatprep.subr.bf16.mxu0 0
  %4487 = vmatpush1.bf16.msra.mxu0 0
  %4488 = vmatprep.mubr.bf16.mxu0 0
  %4489 = vmatmul.mubr.bf16.gmra.mrb[0].mxu0 %v4258
  %v4490 = vpop.f32.mrb[0].mxu0
  %v4491 = vadd.f32 0.0, %v4490
  %v4492 = vpop.f32.mrb[0].mxu0
  %v4493 = vadd.f32 0.0, %v4492
  %v4494 = vpop.f32.mrb[0].mxu0
  %v4495 = vpop.f32.mrb[0].mxu0
  %4496 = vdwg.mxu0
  %4497 = vmatprep.subr.bf16.mxu0 %v4395
  %4498 = vmatpush1.bf16.msra.mxu0 %v4394
  %4499 = vmatprep.subr.bf16.mxu0 %v4399
  %4500 = vmatpush1.bf16.msra.mxu0 %v4398
  %4501 = vmatprep.subr.bf16.mxu0 %v4403
  %4502 = vmatpush1.bf16.msra.mxu0 %v4402
  %4503 = vmatprep.subr.bf16.mxu0 %v4407
  %4504 = vmatpush1.bf16.msra.mxu0 %v4406
  %4505 = vmatprep.subr.bf16.mxu0 %v4411
  %4506 = vmatpush1.bf16.msra.mxu0 %v4410
  %4507 = vmatprep.subr.bf16.mxu0 %v4415
  %4508 = vmatpush1.bf16.msra.mxu0 %v4414
  %4509 = vmatprep.subr.bf16.mxu0 %v4419
  %4510 = vmatpush1.bf16.msra.mxu0 %v4418
  %4511 = vmatprep.subr.bf16.mxu0 %v4423
  %4512 = vmatpush1.bf16.msra.mxu0 %v4422
  %4513 = vmatprep.subr.bf16.mxu0 0
  %4514 = vmatpush1.bf16.msra.mxu0 0
  %4515 = vmatprep.subr.bf16.mxu0 0
  %4516 = vmatpush1.bf16.msra.mxu0 0
  %4517 = vmatprep.subr.bf16.mxu0 0
  %4518 = vmatpush1.bf16.msra.mxu0 0
  %4519 = vmatprep.subr.bf16.mxu0 0
  %4520 = vmatpush1.bf16.msra.mxu0 0
  %4521 = vmatprep.subr.bf16.mxu0 0
  %4522 = vmatpush1.bf16.msra.mxu0 0
  %4523 = vmatprep.subr.bf16.mxu0 0
  %4524 = vmatpush1.bf16.msra.mxu0 0
  %4525 = vmatprep.subr.bf16.mxu0 0
  %4526 = vmatpush1.bf16.msra.mxu0 0
  %4527 = vmatprep.subr.bf16.mxu0 0
  %4528 = vmatpush1.bf16.msra.mxu0 0
  %4529 = vmatprep.mubr.bf16.mxu0 0
  %4530 = vmatmul.mubr.bf16.gmra.mrb[0].mxu0 %v4258
  %v4531 = vpop.f32.mrb[0].mxu0
  %v4532 = vadd.f32 0.0, %v4531
  %v4533 = vpop.f32.mrb[0].mxu0
  %v4534 = vadd.f32 0.0, %v4533
  %v4535 = vpop.f32.mrb[0].mxu0
  %v4536 = vpop.f32.mrb[0].mxu0
  %4537 = vdwg.mxu0
  %v4538 = vadd.f32 %v4260, %v4491
  %v4539 = vadd.f32 %v4261, %v4493
  %v4540 = vadd.f32 %v4262, %v4532
  %v4541 = vadd.f32 %v4263, %v4534
  %v4542 = vxor.u32 %v4538, 2147483648
  %v4543 = vmul.f32 %v4542, 1.442695
  %v4544 = vpow.pop %v4543
  %v4545 = vadd.f32 %v4544, 1.0
  %v4546 = vrcp.pop %v4545
  %v4547 = vmul.f32 1.0, %v4546
  %v4548 = vxor.u32 %v4539, 2147483648
  %v4549 = vmul.f32 %v4548, 1.442695
  %v4550 = vpow.pop %v4549
  %v4551 = vadd.f32 %v4550, 1.0
  %v4552 = vrcp.pop %v4551
  %v4553 = vmul.f32 1.0, %v4552
  %v4554 = vtanh.pop %v4540
  %v4555 = vxor.u32 %v4541, 2147483648
  %v4556 = vmul.f32 %v4555, 1.442695
  %v4557 = vpow.pop %v4556
  %v4558 = vadd.f32 %v4557, 1.0
  %v4559 = vrcp.pop %v4558
  %v4560 = vmul.f32 1.0, %v4559
  %v4561 = vmul.f32 %v4553, %v4255
  %v4562 = vmul.f32 %v4547, %v4554
  %v4563 = vadd.f32 %v4561, %v4562
  %v4564 = vtanh.pop %v4563
  %v4565 = vmul.f32 %v4560, %v4564
  %v4566 = vpack.c.bf16 %v4565, %v4565
  %4567 = vst [vmem:[%s6 + $0xc] sm:$0xf] %v4566
  %v4568 = vld [vmem:[#allocation4 + $0x80] sm:$0xff]
  %v4569 = vld [vmem:[#allocation4 + $0x88] sm:$0xff]
  %v4570 = vld [vmem:[#allocation4 + $0x90] sm:$0xff]
  %v4571 = vld [vmem:[#allocation4 + $0x98] sm:$0xff]
  %v4572 = vld [vmem:[%s3339] sm:$0xff]
  %v4573 = vld [vmem:[%s3339 + $0x8] sm:$0xff]
  %v4574 = vld [vmem:[%s3339 + $0x10] sm:$0xff]
  %v4575 = vld [vmem:[%s3339 + $0x18] sm:$0xff]
  %v4576 = vld [vmem:[%s3339 + $0x20] sm:$0xff]
  %v4577 = vld [vmem:[%s3339 + $0x28] sm:$0xff]
  %v4578 = vld [vmem:[%s3339 + $0x30] sm:$0xff]
  %v4579 = vld [vmem:[%s3339 + $0x38] sm:$0xff]
  %v4580 = vld [vmem:[%s3339 + $0x40] sm:$0xff]
  %v4581 = vld [vmem:[%s3339 + $0x48] sm:$0xff]
  %v4582 = vld [vmem:[%s3339 + $0x50] sm:$0xff]
  %v4583 = vld [vmem:[%s3339 + $0x58] sm:$0xff]
  %v4584 = vld [vmem:[%s3339 + $0x60] sm:$0xff]
  %v4585 = vld [vmem:[%s3339 + $0x68] sm:$0xff]
  %v4586 = vld [vmem:[%s3339 + $0x70] sm:$0xff]
  %v4587 = vld [vmem:[%s3339 + $0x78] sm:$0xff]
  %v4588 = vld [vmem:[%s3339 + $0x80] sm:$0xff]
  %v4589 = vld [vmem:[%s3339 + $0x88] sm:$0xff]
  %v4590 = vld [vmem:[%s3339 + $0x90] sm:$0xff]
  %v4591 = vld [vmem:[%s3339 + $0x98] sm:$0xff]
  %v4592 = vld [vmem:[%s3339 + $0xa0] sm:$0xff]
  %v4593 = vld [vmem:[%s3339 + $0xa8] sm:$0xff]
  %v4594 = vld [vmem:[%s3339 + $0xb0] sm:$0xff]
  %v4595 = vld [vmem:[%s3339 + $0xb8] sm:$0xff]
  %v4596 = vld [vmem:[%s3339 + $0xc0] sm:$0xff]
  %v4597 = vld [vmem:[%s3339 + $0xc8] sm:$0xff]
  %v4598 = vld [vmem:[%s3339 + $0xd0] sm:$0xff]
  %v4599 = vld [vmem:[%s3339 + $0xd8] sm:$0xff]
  %v4600 = vld [vmem:[%s3339 + $0xe0] sm:$0xff]
  %v4601 = vld [vmem:[%s3339 + $0xe8] sm:$0xff]
  %v4602 = vld [vmem:[%s3339 + $0xf0] sm:$0xff]
  %v4603 = vld [vmem:[%s3339 + $0xf8] sm:$0xff]
  %v4636 = vunpack.c.l.b16 %v4572
  %v4637 = vunpack.c.h.b16 %v4572
  %v4638 = vunpack.c.l.b16 %v4573
  %v4639 = vunpack.c.h.b16 %v4573
  %v4640 = vunpack.c.l.b16 %v4574
  %v4641 = vunpack.c.h.b16 %v4574
  %v4642 = vunpack.c.l.b16 %v4575
  %v4643 = vunpack.c.h.b16 %v4575
  %v4644 = vunpack.c.l.b16 %v4576
  %v4645 = vunpack.c.h.b16 %v4576
  %v4646 = vunpack.c.l.b16 %v4577
  %v4647 = vunpack.c.h.b16 %v4577
  %v4648 = vunpack.c.l.b16 %v4578
  %v4649 = vunpack.c.h.b16 %v4578
  %v4650 = vunpack.c.l.b16 %v4579
  %v4651 = vunpack.c.h.b16 %v4579
  %v4652 = vunpack.c.l.b16 %v4580
  %v4653 = vunpack.c.h.b16 %v4580
  %v4654 = vunpack.c.l.b16 %v4581
  %v4655 = vunpack.c.h.b16 %v4581
  %v4656 = vunpack.c.l.b16 %v4582
  %v4657 = vunpack.c.h.b16 %v4582
  %v4658 = vunpack.c.l.b16 %v4583
  %v4659 = vunpack.c.h.b16 %v4583
  %v4660 = vunpack.c.l.b16 %v4584
  %v4661 = vunpack.c.h.b16 %v4584
  %v4662 = vunpack.c.l.b16 %v4585
  %v4663 = vunpack.c.h.b16 %v4585
  %v4664 = vunpack.c.l.b16 %v4586
  %v4665 = vunpack.c.h.b16 %v4586
  %v4666 = vunpack.c.l.b16 %v4587
  %v4667 = vunpack.c.h.b16 %v4587
  %v4668 = vunpack.c.l.b16 %v4588
  %v4669 = vunpack.c.h.b16 %v4588
  %v4670 = vunpack.c.l.b16 %v4589
  %v4671 = vunpack.c.h.b16 %v4589
  %v4672 = vunpack.c.l.b16 %v4590
  %v4673 = vunpack.c.h.b16 %v4590
  %v4674 = vunpack.c.l.b16 %v4591
  %v4675 = vunpack.c.h.b16 %v4591
  %v4676 = vunpack.c.l.b16 %v4592
  %v4677 = vunpack.c.h.b16 %v4592
  %v4678 = vunpack.c.l.b16 %v4593
  %v4679 = vunpack.c.h.b16 %v4593
  %v4680 = vunpack.c.l.b16 %v4594
  %v4681 = vunpack.c.h.b16 %v4594
  %v4682 = vunpack.c.l.b16 %v4595
  %v4683 = vunpack.c.h.b16 %v4595
  %v4684 = vunpack.c.l.b16 %v4596
  %v4685 = vunpack.c.h.b16 %v4596
  %v4686 = vunpack.c.l.b16 %v4597
  %v4687 = vunpack.c.h.b16 %v4597
  %v4688 = vunpack.c.l.b16 %v4598
  %v4689 = vunpack.c.h.b16 %v4598
  %v4690 = vunpack.c.l.b16 %v4599
  %v4691 = vunpack.c.h.b16 %v4599
  %v4692 = vunpack.c.l.b16 %v4600
  %v4693 = vunpack.c.h.b16 %v4600
  %v4694 = vunpack.c.l.b16 %v4601
  %v4695 = vunpack.c.h.b16 %v4601
  %v4696 = vunpack.c.l.b16 %v4602
  %v4697 = vunpack.c.h.b16 %v4602
  %v4698 = vunpack.c.l.b16 %v4603
  %v4699 = vunpack.c.h.b16 %v4603
  %v4700 = vpack.c.b16 %v4640, %v4636
  %v4701 = vpack.c.b16 %v4641, %v4637
  %v4702 = vpack.c.b16 %v4642, %v4638
  %v4703 = vpack.c.b16 %v4643, %v4639
  %v4704 = vpack.c.b16 %v4648, %v4644
  %v4705 = vpack.c.b16 %v4649, %v4645
  %v4706 = vpack.c.b16 %v4650, %v4646
  %v4707 = vpack.c.b16 %v4651, %v4647
  %v4708 = vpack.c.b16 %v4656, %v4652
  %v4709 = vpack.c.b16 %v4657, %v4653
  %v4710 = vpack.c.b16 %v4658, %v4654
  %v4711 = vpack.c.b16 %v4659, %v4655
  %v4712 = vpack.c.b16 %v4664, %v4660
  %v4713 = vpack.c.b16 %v4665, %v4661
  %v4714 = vpack.c.b16 %v4666, %v4662
  %v4715 = vpack.c.b16 %v4667, %v4663
  %v4716 = vpack.c.b16 %v4672, %v4668
  %v4717 = vpack.c.b16 %v4673, %v4669
  %v4718 = vpack.c.b16 %v4674, %v4670
  %v4719 = vpack.c.b16 %v4675, %v4671
  %v4720 = vpack.c.b16 %v4680, %v4676
  %v4721 = vpack.c.b16 %v4681, %v4677
  %v4722 = vpack.c.b16 %v4682, %v4678
  %v4723 = vpack.c.b16 %v4683, %v4679
  %v4724 = vpack.c.b16 %v4688, %v4684
  %v4725 = vpack.c.b16 %v4689, %v4685
  %v4726 = vpack.c.b16 %v4690, %v4686
  %v4727 = vpack.c.b16 %v4691, %v4687
  %v4728 = vpack.c.b16 %v4696, %v4692
  %v4729 = vpack.c.b16 %v4697, %v4693
  %v4730 = vpack.c.b16 %v4698, %v4694
  %v4731 = vpack.c.b16 %v4699, %v4695
  %4764 = vmatprep.subr.bf16.mxu0 %v4701
  %4765 = vmatpush1.bf16.msra.mxu0 %v4700
  %4766 = vmatprep.subr.bf16.mxu0 %v4705
  %4767 = vmatpush1.bf16.msra.mxu0 %v4704
  %4768 = vmatprep.subr.bf16.mxu0 %v4709
  %4769 = vmatpush1.bf16.msra.mxu0 %v4708
  %4770 = vmatprep.subr.bf16.mxu0 %v4713
  %4771 = vmatpush1.bf16.msra.mxu0 %v4712
  %4772 = vmatprep.subr.bf16.mxu0 %v4717
  %4773 = vmatpush1.bf16.msra.mxu0 %v4716
  %4774 = vmatprep.subr.bf16.mxu0 %v4721
  %4775 = vmatpush1.bf16.msra.mxu0 %v4720
  %4776 = vmatprep.subr.bf16.mxu0 %v4725
  %4777 = vmatpush1.bf16.msra.mxu0 %v4724
  %4778 = vmatprep.subr.bf16.mxu0 %v4729
  %4779 = vmatpush1.bf16.msra.mxu0 %v4728
  %4780 = vmatprep.subr.bf16.mxu0 0
  %4781 = vmatpush1.bf16.msra.mxu0 0
  %4782 = vmatprep.subr.bf16.mxu0 0
  %4783 = vmatpush1.bf16.msra.mxu0 0
  %4784 = vmatprep.subr.bf16.mxu0 0
  %4785 = vmatpush1.bf16.msra.mxu0 0
  %4786 = vmatprep.subr.bf16.mxu0 0
  %4787 = vmatpush1.bf16.msra.mxu0 0
  %4788 = vmatprep.subr.bf16.mxu0 0
  %4789 = vmatpush1.bf16.msra.mxu0 0
  %4790 = vmatprep.subr.bf16.mxu0 0
  %4791 = vmatpush1.bf16.msra.mxu0 0
  %4792 = vmatprep.subr.bf16.mxu0 0
  %4793 = vmatpush1.bf16.msra.mxu0 0
  %4794 = vmatprep.subr.bf16.mxu0 0
  %4795 = vmatpush1.bf16.msra.mxu0 0
  %4796 = vmatprep.mubr.bf16.mxu0 0
  %4797 = vmatmul.mubr.bf16.gmra.mrb[0].mxu0 %v4566
  %v4798 = vpop.f32.mrb[0].mxu0
  %v4799 = vadd.f32 0.0, %v4798
  %v4800 = vpop.f32.mrb[0].mxu0
  %v4801 = vadd.f32 0.0, %v4800
  %v4802 = vpop.f32.mrb[0].mxu0
  %v4803 = vpop.f32.mrb[0].mxu0
  %4804 = vdwg.mxu0
  %4805 = vmatprep.subr.bf16.mxu0 %v4703
  %4806 = vmatpush1.bf16.msra.mxu0 %v4702
  %4807 = vmatprep.subr.bf16.mxu0 %v4707
  %4808 = vmatpush1.bf16.msra.mxu0 %v4706
  %4809 = vmatprep.subr.bf16.mxu0 %v4711
  %4810 = vmatpush1.bf16.msra.mxu0 %v4710
  %4811 = vmatprep.subr.bf16.mxu0 %v4715
  %4812 = vmatpush1.bf16.msra.mxu0 %v4714
  %4813 = vmatprep.subr.bf16.mxu0 %v4719
  %4814 = vmatpush1.bf16.msra.mxu0 %v4718
  %4815 = vmatprep.subr.bf16.mxu0 %v4723
  %4816 = vmatpush1.bf16.msra.mxu0 %v4722
  %4817 = vmatprep.subr.bf16.mxu0 %v4727
  %4818 = vmatpush1.bf16.msra.mxu0 %v4726
  %4819 = vmatprep.subr.bf16.mxu0 %v4731
  %4820 = vmatpush1.bf16.msra.mxu0 %v4730
  %4821 = vmatprep.subr.bf16.mxu0 0
  %4822 = vmatpush1.bf16.msra.mxu0 0
  %4823 = vmatprep.subr.bf16.mxu0 0
  %4824 = vmatpush1.bf16.msra.mxu0 0
  %4825 = vmatprep.subr.bf16.mxu0 0
  %4826 = vmatpush1.bf16.msra.mxu0 0
  %4827 = vmatprep.subr.bf16.mxu0 0
  %4828 = vmatpush1.bf16.msra.mxu0 0
  %4829 = vmatprep.subr.bf16.mxu0 0
  %4830 = vmatpush1.bf16.msra.mxu0 0
  %4831 = vmatprep.subr.bf16.mxu0 0
  %4832 = vmatpush1.bf16.msra.mxu0 0
  %4833 = vmatprep.subr.bf16.mxu0 0
  %4834 = vmatpush1.bf16.msra.mxu0 0
  %4835 = vmatprep.subr.bf16.mxu0 0
  %4836 = vmatpush1.bf16.msra.mxu0 0
  %4837 = vmatprep.mubr.bf16.mxu0 0
  %4838 = vmatmul.mubr.bf16.gmra.mrb[0].mxu0 %v4566
  %v4839 = vpop.f32.mrb[0].mxu0
  %v4840 = vadd.f32 0.0, %v4839
  %v4841 = vpop.f32.mrb[0].mxu0
  %v4842 = vadd.f32 0.0, %v4841
  %v4843 = vpop.f32.mrb[0].mxu0
  %v4844 = vpop.f32.mrb[0].mxu0
  %4845 = vdwg.mxu0
  %v4846 = vadd.f32 %v4568, %v4799
  %v4847 = vadd.f32 %v4569, %v4801
  %v4848 = vadd.f32 %v4570, %v4840
  %v4849 = vadd.f32 %v4571, %v4842
  %v4850 = vxor.u32 %v4846, 2147483648
  %v4851 = vmul.f32 %v4850, 1.442695
  %v4852 = vpow.pop %v4851
  %v4853 = vadd.f32 %v4852, 1.0
  %v4854 = vrcp.pop %v4853
  %v4855 = vmul.f32 1.0, %v4854
  %v4856 = vxor.u32 %v4847, 2147483648
  %v4857 = vmul.f32 %v4856, 1.442695
  %v4858 = vpow.pop %v4857
  %v4859 = vadd.f32 %v4858, 1.0
  %v4860 = vrcp.pop %v4859
  %v4861 = vmul.f32 1.0, %v4860
  %v4862 = vtanh.pop %v4848
  %v4863 = vxor.u32 %v4849, 2147483648
  %v4864 = vmul.f32 %v4863, 1.442695
  %v4865 = vpow.pop %v4864
  %v4866 = vadd.f32 %v4865, 1.0
  %v4867 = vrcp.pop %v4866
  %v4868 = vmul.f32 1.0, %v4867
  %v4869 = vmul.f32 %v4861, %v4563
  %v4870 = vmul.f32 %v4855, %v4862
  %v4871 = vadd.f32 %v4869, %v4870
  %v4872 = vtanh.pop %v4871
  %v4873 = vmul.f32 %v4868, %v4872
  %v4874 = vpack.c.bf16 %v4873, %v4873
  %4875 = vst [vmem:[%s6 + $0x10] sm:$0xf] %v4874
  %v4876 = vld [vmem:[#allocation4 + $0xa0] sm:$0xff]
  %v4877 = vld [vmem:[#allocation4 + $0xa8] sm:$0xff]
  %v4878 = vld [vmem:[#allocation4 + $0xb0] sm:$0xff]
  %v4879 = vld [vmem:[#allocation4 + $0xb8] sm:$0xff]
  %v4880 = vld [vmem:[%s3339] sm:$0xff]
  %v4881 = vld [vmem:[%s3339 + $0x8] sm:$0xff]
  %v4882 = vld [vmem:[%s3339 + $0x10] sm:$0xff]
  %v4883 = vld [vmem:[%s3339 + $0x18] sm:$0xff]
  %v4884 = vld [vmem:[%s3339 + $0x20] sm:$0xff]
  %v4885 = vld [vmem:[%s3339 + $0x28] sm:$0xff]
  %v4886 = vld [vmem:[%s3339 + $0x30] sm:$0xff]
  %v4887 = vld [vmem:[%s3339 + $0x38] sm:$0xff]
  %v4888 = vld [vmem:[%s3339 + $0x40] sm:$0xff]
  %v4889 = vld [vmem:[%s3339 + $0x48] sm:$0xff]
  %v4890 = vld [vmem:[%s3339 + $0x50] sm:$0xff]
  %v4891 = vld [vmem:[%s3339 + $0x58] sm:$0xff]
  %v4892 = vld [vmem:[%s3339 + $0x60] sm:$0xff]
  %v4893 = vld [vmem:[%s3339 + $0x68] sm:$0xff]
  %v4894 = vld [vmem:[%s3339 + $0x70] sm:$0xff]
  %v4895 = vld [vmem:[%s3339 + $0x78] sm:$0xff]
  %v4896 = vld [vmem:[%s3339 + $0x80] sm:$0xff]
  %v4897 = vld [vmem:[%s3339 + $0x88] sm:$0xff]
  %v4898 = vld [vmem:[%s3339 + $0x90] sm:$0xff]
  %v4899 = vld [vmem:[%s3339 + $0x98] sm:$0xff]
  %v4900 = vld [vmem:[%s3339 + $0xa0] sm:$0xff]
  %v4901 = vld [vmem:[%s3339 + $0xa8] sm:$0xff]
  %v4902 = vld [vmem:[%s3339 + $0xb0] sm:$0xff]
  %v4903 = vld [vmem:[%s3339 + $0xb8] sm:$0xff]
  %v4904 = vld [vmem:[%s3339 + $0xc0] sm:$0xff]
  %v4905 = vld [vmem:[%s3339 + $0xc8] sm:$0xff]
  %v4906 = vld [vmem:[%s3339 + $0xd0] sm:$0xff]
  %v4907 = vld [vmem:[%s3339 + $0xd8] sm:$0xff]
  %v4908 = vld [vmem:[%s3339 + $0xe0] sm:$0xff]
  %v4909 = vld [vmem:[%s3339 + $0xe8] sm:$0xff]
  %v4910 = vld [vmem:[%s3339 + $0xf0] sm:$0xff]
  %v4911 = vld [vmem:[%s3339 + $0xf8] sm:$0xff]
  %v4944 = vunpack.c.l.b16 %v4880
  %v4945 = vunpack.c.h.b16 %v4880
  %v4946 = vunpack.c.l.b16 %v4881
  %v4947 = vunpack.c.h.b16 %v4881
  %v4948 = vunpack.c.l.b16 %v4882
  %v4949 = vunpack.c.h.b16 %v4882
  %v4950 = vunpack.c.l.b16 %v4883
  %v4951 = vunpack.c.h.b16 %v4883
  %v4952 = vunpack.c.l.b16 %v4884
  %v4953 = vunpack.c.h.b16 %v4884
  %v4954 = vunpack.c.l.b16 %v4885
  %v4955 = vunpack.c.h.b16 %v4885
  %v4956 = vunpack.c.l.b16 %v4886
  %v4957 = vunpack.c.h.b16 %v4886
  %v4958 = vunpack.c.l.b16 %v4887
  %v4959 = vunpack.c.h.b16 %v4887
  %v4960 = vunpack.c.l.b16 %v4888
  %v4961 = vunpack.c.h.b16 %v4888
  %v4962 = vunpack.c.l.b16 %v4889
  %v4963 = vunpack.c.h.b16 %v4889
  %v4964 = vunpack.c.l.b16 %v4890
  %v4965 = vunpack.c.h.b16 %v4890
  %v4966 = vunpack.c.l.b16 %v4891
  %v4967 = vunpack.c.h.b16 %v4891
  %v4968 = vunpack.c.l.b16 %v4892
  %v4969 = vunpack.c.h.b16 %v4892
  %v4970 = vunpack.c.l.b16 %v4893
  %v4971 = vunpack.c.h.b16 %v4893
  %v4972 = vunpack.c.l.b16 %v4894
  %v4973 = vunpack.c.h.b16 %v4894
  %v4974 = vunpack.c.l.b16 %v4895
  %v4975 = vunpack.c.h.b16 %v4895
  %v4976 = vunpack.c.l.b16 %v4896
  %v4977 = vunpack.c.h.b16 %v4896
  %v4978 = vunpack.c.l.b16 %v4897
  %v4979 = vunpack.c.h.b16 %v4897
  %v4980 = vunpack.c.l.b16 %v4898
  %v4981 = vunpack.c.h.b16 %v4898
  %v4982 = vunpack.c.l.b16 %v4899
  %v4983 = vunpack.c.h.b16 %v4899
  %v4984 = vunpack.c.l.b16 %v4900
  %v4985 = vunpack.c.h.b16 %v4900
  %v4986 = vunpack.c.l.b16 %v4901
  %v4987 = vunpack.c.h.b16 %v4901
  %v4988 = vunpack.c.l.b16 %v4902
  %v4989 = vunpack.c.h.b16 %v4902
  %v4990 = vunpack.c.l.b16 %v4903
  %v4991 = vunpack.c.h.b16 %v4903
  %v4992 = vunpack.c.l.b16 %v4904
  %v4993 = vunpack.c.h.b16 %v4904
  %v4994 = vunpack.c.l.b16 %v4905
  %v4995 = vunpack.c.h.b16 %v4905
  %v4996 = vunpack.c.l.b16 %v4906
  %v4997 = vunpack.c.h.b16 %v4906
  %v4998 = vunpack.c.l.b16 %v4907
  %v4999 = vunpack.c.h.b16 %v4907
  %v5000 = vunpack.c.l.b16 %v4908
  %v5001 = vunpack.c.h.b16 %v4908
  %v5002 = vunpack.c.l.b16 %v4909
  %v5003 = vunpack.c.h.b16 %v4909
  %v5004 = vunpack.c.l.b16 %v4910
  %v5005 = vunpack.c.h.b16 %v4910
  %v5006 = vunpack.c.l.b16 %v4911
  %v5007 = vunpack.c.h.b16 %v4911
  %v5008 = vpack.c.b16 %v4948, %v4944
  %v5009 = vpack.c.b16 %v4949, %v4945
  %v5010 = vpack.c.b16 %v4950, %v4946
  %v5011 = vpack.c.b16 %v4951, %v4947
  %v5012 = vpack.c.b16 %v4956, %v4952
  %v5013 = vpack.c.b16 %v4957, %v4953
  %v5014 = vpack.c.b16 %v4958, %v4954
  %v5015 = vpack.c.b16 %v4959, %v4955
  %v5016 = vpack.c.b16 %v4964, %v4960
  %v5017 = vpack.c.b16 %v4965, %v4961
  %v5018 = vpack.c.b16 %v4966, %v4962
  %v5019 = vpack.c.b16 %v4967, %v4963
  %v5020 = vpack.c.b16 %v4972, %v4968
  %v5021 = vpack.c.b16 %v4973, %v4969
  %v5022 = vpack.c.b16 %v4974, %v4970
  %v5023 = vpack.c.b16 %v4975, %v4971
  %v5024 = vpack.c.b16 %v4980, %v4976
  %v5025 = vpack.c.b16 %v4981, %v4977
  %v5026 = vpack.c.b16 %v4982, %v4978
  %v5027 = vpack.c.b16 %v4983, %v4979
  %v5028 = vpack.c.b16 %v4988, %v4984
  %v5029 = vpack.c.b16 %v4989, %v4985
  %v5030 = vpack.c.b16 %v4990, %v4986
  %v5031 = vpack.c.b16 %v4991, %v4987
  %v5032 = vpack.c.b16 %v4996, %v4992
  %v5033 = vpack.c.b16 %v4997, %v4993
  %v5034 = vpack.c.b16 %v4998, %v4994
  %v5035 = vpack.c.b16 %v4999, %v4995
  %v5036 = vpack.c.b16 %v5004, %v5000
  %v5037 = vpack.c.b16 %v5005, %v5001
  %v5038 = vpack.c.b16 %v5006, %v5002
  %v5039 = vpack.c.b16 %v5007, %v5003
  %5072 = vmatprep.subr.bf16.mxu0 %v5009
  %5073 = vmatpush1.bf16.msra.mxu0 %v5008
  %5074 = vmatprep.subr.bf16.mxu0 %v5013
  %5075 = vmatpush1.bf16.msra.mxu0 %v5012
  %5076 = vmatprep.subr.bf16.mxu0 %v5017
  %5077 = vmatpush1.bf16.msra.mxu0 %v5016
  %5078 = vmatprep.subr.bf16.mxu0 %v5021
  %5079 = vmatpush1.bf16.msra.mxu0 %v5020
  %5080 = vmatprep.subr.bf16.mxu0 %v5025
  %5081 = vmatpush1.bf16.msra.mxu0 %v5024
  %5082 = vmatprep.subr.bf16.mxu0 %v5029
  %5083 = vmatpush1.bf16.msra.mxu0 %v5028
  %5084 = vmatprep.subr.bf16.mxu0 %v5033
  %5085 = vmatpush1.bf16.msra.mxu0 %v5032
  %5086 = vmatprep.subr.bf16.mxu0 %v5037
  %5087 = vmatpush1.bf16.msra.mxu0 %v5036
  %5088 = vmatprep.subr.bf16.mxu0 0
  %5089 = vmatpush1.bf16.msra.mxu0 0
  %5090 = vmatprep.subr.bf16.mxu0 0
  %5091 = vmatpush1.bf16.msra.mxu0 0
  %5092 = vmatprep.subr.bf16.mxu0 0
  %5093 = vmatpush1.bf16.msra.mxu0 0
  %5094 = vmatprep.subr.bf16.mxu0 0
  %5095 = vmatpush1.bf16.msra.mxu0 0
  %5096 = vmatprep.subr.bf16.mxu0 0
  %5097 = vmatpush1.bf16.msra.mxu0 0
  %5098 = vmatprep.subr.bf16.mxu0 0
  %5099 = vmatpush1.bf16.msra.mxu0 0
  %5100 = vmatprep.subr.bf16.mxu0 0
  %5101 = vmatpush1.bf16.msra.mxu0 0
  %5102 = vmatprep.subr.bf16.mxu0 0
  %5103 = vmatpush1.bf16.msra.mxu0 0
  %5104 = vmatprep.mubr.bf16.mxu0 0
  %5105 = vmatmul.mubr.bf16.gmra.mrb[0].mxu0 %v4874
  %v5106 = vpop.f32.mrb[0].mxu0
  %v5107 = vadd.f32 0.0, %v5106
  %v5108 = vpop.f32.mrb[0].mxu0
  %v5109 = vadd.f32 0.0, %v5108
  %v5110 = vpop.f32.mrb[0].mxu0
  %v5111 = vpop.f32.mrb[0].mxu0
  %5112 = vdwg.mxu0
  %5113 = vmatprep.subr.bf16.mxu0 %v5011
  %5114 = vmatpush1.bf16.msra.mxu0 %v5010
  %5115 = vmatprep.subr.bf16.mxu0 %v5015
  %5116 = vmatpush1.bf16.msra.mxu0 %v5014
  %5117 = vmatprep.subr.bf16.mxu0 %v5019
  %5118 = vmatpush1.bf16.msra.mxu0 %v5018
  %5119 = vmatprep.subr.bf16.mxu0 %v5023
  %5120 = vmatpush1.bf16.msra.mxu0 %v5022
  %5121 = vmatprep.subr.bf16.mxu0 %v5027
  %5122 = vmatpush1.bf16.msra.mxu0 %v5026
  %5123 = vmatprep.subr.bf16.mxu0 %v5031
  %5124 = vmatpush1.bf16.msra.mxu0 %v5030
  %5125 = vmatprep.subr.bf16.mxu0 %v5035
  %5126 = vmatpush1.bf16.msra.mxu0 %v5034
  %5127 = vmatprep.subr.bf16.mxu0 %v5039
  %5128 = vmatpush1.bf16.msra.mxu0 %v5038
  %5129 = vmatprep.subr.bf16.mxu0 0
  %5130 = vmatpush1.bf16.msra.mxu0 0
  %5131 = vmatprep.subr.bf16.mxu0 0
  %5132 = vmatpush1.bf16.msra.mxu0 0
  %5133 = vmatprep.subr.bf16.mxu0 0
  %5134 = vmatpush1.bf16.msra.mxu0 0
  %5135 = vmatprep.subr.bf16.mxu0 0
  %5136 = vmatpush1.bf16.msra.mxu0 0
  %5137 = vmatprep.subr.bf16.mxu0 0
  %5138 = vmatpush1.bf16.msra.mxu0 0
  %5139 = vmatprep.subr.bf16.mxu0 0
  %5140 = vmatpush1.bf16.msra.mxu0 0
  %5141 = vmatprep.subr.bf16.mxu0 0
  %5142 = vmatpush1.bf16.msra.mxu0 0
  %5143 = vmatprep.subr.bf16.mxu0 0
  %5144 = vmatpush1.bf16.msra.mxu0 0
  %5145 = vmatprep.mubr.bf16.mxu0 0
  %5146 = vmatmul.mubr.bf16.gmra.mrb[0].mxu0 %v4874
  %v5147 = vpop.f32.mrb[0].mxu0
  %v5148 = vadd.f32 0.0, %v5147
  %v5149 = vpop.f32.mrb[0].mxu0
  %v5150 = vadd.f32 0.0, %v5149
  %v5151 = vpop.f32.mrb[0].mxu0
  %v5152 = vpop.f32.mrb[0].mxu0
  %5153 = vdwg.mxu0
  %v5154 = vadd.f32 %v4876, %v5107
  %v5155 = vadd.f32 %v4877, %v5109
  %v5156 = vadd.f32 %v4878, %v5148
  %v5157 = vadd.f32 %v4879, %v5150
  %v5158 = vxor.u32 %v5154, 2147483648
  %v5159 = vmul.f32 %v5158, 1.442695
  %v5160 = vpow.pop %v5159
  %v5161 = vadd.f32 %v5160, 1.0
  %v5162 = vrcp.pop %v5161
  %v5163 = vmul.f32 1.0, %v5162
  %v5164 = vxor.u32 %v5155, 2147483648
  %v5165 = vmul.f32 %v5164, 1.442695
  %v5166 = vpow.pop %v5165
  %v5167 = vadd.f32 %v5166, 1.0
  %v5168 = vrcp.pop %v5167
  %v5169 = vmul.f32 1.0, %v5168
  %v5170 = vtanh.pop %v5156
  %v5171 = vxor.u32 %v5157, 2147483648
  %v5172 = vmul.f32 %v5171, 1.442695
  %v5173 = vpow.pop %v5172
  %v5174 = vadd.f32 %v5173, 1.0
  %v5175 = vrcp.pop %v5174
  %v5176 = vmul.f32 1.0, %v5175
  %v5177 = vmul.f32 %v5169, %v4871
  %v5178 = vmul.f32 %v5163, %v5170
  %v5179 = vadd.f32 %v5177, %v5178
  %v5180 = vtanh.pop %v5179
  %v5181 = vmul.f32 %v5176, %v5180
  %v5182 = vpack.c.bf16 %v5181, %v5181
  %5183 = vst [vmem:[%s6 + $0x14] sm:$0xf] %v5182
  %v5184 = vld [vmem:[#allocation4 + $0xc0] sm:$0xff]
  %v5185 = vld [vmem:[#allocation4 + $0xc8] sm:$0xff]
  %v5186 = vld [vmem:[#allocation4 + $0xd0] sm:$0xff]
  %v5187 = vld [vmem:[#allocation4 + $0xd8] sm:$0xff]
  %v5188 = vld [vmem:[%s3339] sm:$0xff]
  %v5189 = vld [vmem:[%s3339 + $0x8] sm:$0xff]
  %v5190 = vld [vmem:[%s3339 + $0x10] sm:$0xff]
  %v5191 = vld [vmem:[%s3339 + $0x18] sm:$0xff]
  %v5192 = vld [vmem:[%s3339 + $0x20] sm:$0xff]
  %v5193 = vld [vmem:[%s3339 + $0x28] sm:$0xff]
  %v5194 = vld [vmem:[%s3339 + $0x30] sm:$0xff]
  %v5195 = vld [vmem:[%s3339 + $0x38] sm:$0xff]
  %v5196 = vld [vmem:[%s3339 + $0x40] sm:$0xff]
  %v5197 = vld [vmem:[%s3339 + $0x48] sm:$0xff]
  %v5198 = vld [vmem:[%s3339 + $0x50] sm:$0xff]
  %v5199 = vld [vmem:[%s3339 + $0x58] sm:$0xff]
  %v5200 = vld [vmem:[%s3339 + $0x60] sm:$0xff]
  %v5201 = vld [vmem:[%s3339 + $0x68] sm:$0xff]
  %v5202 = vld [vmem:[%s3339 + $0x70] sm:$0xff]
  %v5203 = vld [vmem:[%s3339 + $0x78] sm:$0xff]
  %v5204 = vld [vmem:[%s3339 + $0x80] sm:$0xff]
  %v5205 = vld [vmem:[%s3339 + $0x88] sm:$0xff]
  %v5206 = vld [vmem:[%s3339 + $0x90] sm:$0xff]
  %v5207 = vld [vmem:[%s3339 + $0x98] sm:$0xff]
  %v5208 = vld [vmem:[%s3339 + $0xa0] sm:$0xff]
  %v5209 = vld [vmem:[%s3339 + $0xa8] sm:$0xff]
  %v5210 = vld [vmem:[%s3339 + $0xb0] sm:$0xff]
  %v5211 = vld [vmem:[%s3339 + $0xb8] sm:$0xff]
  %v5212 = vld [vmem:[%s3339 + $0xc0] sm:$0xff]
  %v5213 = vld [vmem:[%s3339 + $0xc8] sm:$0xff]
  %v5214 = vld [vmem:[%s3339 + $0xd0] sm:$0xff]
  %v5215 = vld [vmem:[%s3339 + $0xd8] sm:$0xff]
  %v5216 = vld [vmem:[%s3339 + $0xe0] sm:$0xff]
  %v5217 = vld [vmem:[%s3339 + $0xe8] sm:$0xff]
  %v5218 = vld [vmem:[%s3339 + $0xf0] sm:$0xff]
  %v5219 = vld [vmem:[%s3339 + $0xf8] sm:$0xff]
  %v5252 = vunpack.c.l.b16 %v5188
  %v5253 = vunpack.c.h.b16 %v5188
  %v5254 = vunpack.c.l.b16 %v5189
  %v5255 = vunpack.c.h.b16 %v5189
  %v5256 = vunpack.c.l.b16 %v5190
  %v5257 = vunpack.c.h.b16 %v5190
  %v5258 = vunpack.c.l.b16 %v5191
  %v5259 = vunpack.c.h.b16 %v5191
  %v5260 = vunpack.c.l.b16 %v5192
  %v5261 = vunpack.c.h.b16 %v5192
  %v5262 = vunpack.c.l.b16 %v5193
  %v5263 = vunpack.c.h.b16 %v5193
  %v5264 = vunpack.c.l.b16 %v5194
  %v5265 = vunpack.c.h.b16 %v5194
  %v5266 = vunpack.c.l.b16 %v5195
  %v5267 = vunpack.c.h.b16 %v5195
  %v5268 = vunpack.c.l.b16 %v5196
  %v5269 = vunpack.c.h.b16 %v5196
  %v5270 = vunpack.c.l.b16 %v5197
  %v5271 = vunpack.c.h.b16 %v5197
  %v5272 = vunpack.c.l.b16 %v5198
  %v5273 = vunpack.c.h.b16 %v5198
  %v5274 = vunpack.c.l.b16 %v5199
  %v5275 = vunpack.c.h.b16 %v5199
  %v5276 = vunpack.c.l.b16 %v5200
  %v5277 = vunpack.c.h.b16 %v5200
  %v5278 = vunpack.c.l.b16 %v5201
  %v5279 = vunpack.c.h.b16 %v5201
  %v5280 = vunpack.c.l.b16 %v5202
  %v5281 = vunpack.c.h.b16 %v5202
  %v5282 = vunpack.c.l.b16 %v5203
  %v5283 = vunpack.c.h.b16 %v5203
  %v5284 = vunpack.c.l.b16 %v5204
  %v5285 = vunpack.c.h.b16 %v5204
  %v5286 = vunpack.c.l.b16 %v5205
  %v5287 = vunpack.c.h.b16 %v5205
  %v5288 = vunpack.c.l.b16 %v5206
  %v5289 = vunpack.c.h.b16 %v5206
  %v5290 = vunpack.c.l.b16 %v5207
  %v5291 = vunpack.c.h.b16 %v5207
  %v5292 = vunpack.c.l.b16 %v5208
  %v5293 = vunpack.c.h.b16 %v5208
  %v5294 = vunpack.c.l.b16 %v5209
  %v5295 = vunpack.c.h.b16 %v5209
  %v5296 = vunpack.c.l.b16 %v5210
  %v5297 = vunpack.c.h.b16 %v5210
  %v5298 = vunpack.c.l.b16 %v5211
  %v5299 = vunpack.c.h.b16 %v5211
  %v5300 = vunpack.c.l.b16 %v5212
  %v5301 = vunpack.c.h.b16 %v5212
  %v5302 = vunpack.c.l.b16 %v5213
  %v5303 = vunpack.c.h.b16 %v5213
  %v5304 = vunpack.c.l.b16 %v5214
  %v5305 = vunpack.c.h.b16 %v5214
  %v5306 = vunpack.c.l.b16 %v5215
  %v5307 = vunpack.c.h.b16 %v5215
  %v5308 = vunpack.c.l.b16 %v5216
  %v5309 = vunpack.c.h.b16 %v5216
  %v5310 = vunpack.c.l.b16 %v5217
  %v5311 = vunpack.c.h.b16 %v5217
  %v5312 = vunpack.c.l.b16 %v5218
  %v5313 = vunpack.c.h.b16 %v5218
  %v5314 = vunpack.c.l.b16 %v5219
  %v5315 = vunpack.c.h.b16 %v5219
  %v5316 = vpack.c.b16 %v5256, %v5252
  %v5317 = vpack.c.b16 %v5257, %v5253
  %v5318 = vpack.c.b16 %v5258, %v5254
  %v5319 = vpack.c.b16 %v5259, %v5255
  %v5320 = vpack.c.b16 %v5264, %v5260
  %v5321 = vpack.c.b16 %v5265, %v5261
  %v5322 = vpack.c.b16 %v5266, %v5262
  %v5323 = vpack.c.b16 %v5267, %v5263
  %v5324 = vpack.c.b16 %v5272, %v5268
  %v5325 = vpack.c.b16 %v5273, %v5269
  %v5326 = vpack.c.b16 %v5274, %v5270
  %v5327 = vpack.c.b16 %v5275, %v5271
  %v5328 = vpack.c.b16 %v5280, %v5276
  %v5329 = vpack.c.b16 %v5281, %v5277
  %v5330 = vpack.c.b16 %v5282, %v5278
  %v5331 = vpack.c.b16 %v5283, %v5279
  %v5332 = vpack.c.b16 %v5288, %v5284
  %v5333 = vpack.c.b16 %v5289, %v5285
  %v5334 = vpack.c.b16 %v5290, %v5286
  %v5335 = vpack.c.b16 %v5291, %v5287
  %v5336 = vpack.c.b16 %v5296, %v5292
  %v5337 = vpack.c.b16 %v5297, %v5293
  %v5338 = vpack.c.b16 %v5298, %v5294
  %v5339 = vpack.c.b16 %v5299, %v5295
  %v5340 = vpack.c.b16 %v5304, %v5300
  %v5341 = vpack.c.b16 %v5305, %v5301
  %v5342 = vpack.c.b16 %v5306, %v5302
  %v5343 = vpack.c.b16 %v5307, %v5303
  %v5344 = vpack.c.b16 %v5312, %v5308
  %v5345 = vpack.c.b16 %v5313, %v5309
  %v5346 = vpack.c.b16 %v5314, %v5310
  %v5347 = vpack.c.b16 %v5315, %v5311
  %5380 = vmatprep.subr.bf16.mxu0 %v5317
  %5381 = vmatpush1.bf16.msra.mxu0 %v5316
  %5382 = vmatprep.subr.bf16.mxu0 %v5321
  %5383 = vmatpush1.bf16.msra.mxu0 %v5320
  %5384 = vmatprep.subr.bf16.mxu0 %v5325
  %5385 = vmatpush1.bf16.msra.mxu0 %v5324
  %5386 = vmatprep.subr.bf16.mxu0 %v5329
  %5387 = vmatpush1.bf16.msra.mxu0 %v5328
  %5388 = vmatprep.subr.bf16.mxu0 %v5333
  %5389 = vmatpush1.bf16.msra.mxu0 %v5332
  %5390 = vmatprep.subr.bf16.mxu0 %v5337
  %5391 = vmatpush1.bf16.msra.mxu0 %v5336
  %5392 = vmatprep.subr.bf16.mxu0 %v5341
  %5393 = vmatpush1.bf16.msra.mxu0 %v5340
  %5394 = vmatprep.subr.bf16.mxu0 %v5345
  %5395 = vmatpush1.bf16.msra.mxu0 %v5344
  %5396 = vmatprep.subr.bf16.mxu0 0
  %5397 = vmatpush1.bf16.msra.mxu0 0
  %5398 = vmatprep.subr.bf16.mxu0 0
  %5399 = vmatpush1.bf16.msra.mxu0 0
  %5400 = vmatprep.subr.bf16.mxu0 0
  %5401 = vmatpush1.bf16.msra.mxu0 0
  %5402 = vmatprep.subr.bf16.mxu0 0
  %5403 = vmatpush1.bf16.msra.mxu0 0
  %5404 = vmatprep.subr.bf16.mxu0 0
  %5405 = vmatpush1.bf16.msra.mxu0 0
  %5406 = vmatprep.subr.bf16.mxu0 0
  %5407 = vmatpush1.bf16.msra.mxu0 0
  %5408 = vmatprep.subr.bf16.mxu0 0
  %5409 = vmatpush1.bf16.msra.mxu0 0
  %5410 = vmatprep.subr.bf16.mxu0 0
  %5411 = vmatpush1.bf16.msra.mxu0 0
  %5412 = vmatprep.mubr.bf16.mxu0 0
  %5413 = vmatmul.mubr.bf16.gmra.mrb[0].mxu0 %v5182
  %v5414 = vpop.f32.mrb[0].mxu0
  %v5415 = vadd.f32 0.0, %v5414
  %v5416 = vpop.f32.mrb[0].mxu0
  %v5417 = vadd.f32 0.0, %v5416
  %v5418 = vpop.f32.mrb[0].mxu0
  %v5419 = vpop.f32.mrb[0].mxu0
  %5420 = vdwg.mxu0
  %5421 = vmatprep.subr.bf16.mxu0 %v5319
  %5422 = vmatpush1.bf16.msra.mxu0 %v5318
  %5423 = vmatprep.subr.bf16.mxu0 %v5323
  %5424 = vmatpush1.bf16.msra.mxu0 %v5322
  %5425 = vmatprep.subr.bf16.mxu0 %v5327
  %5426 = vmatpush1.bf16.msra.mxu0 %v5326
  %5427 = vmatprep.subr.bf16.mxu0 %v5331
  %5428 = vmatpush1.bf16.msra.mxu0 %v5330
  %5429 = vmatprep.subr.bf16.mxu0 %v5335
  %5430 = vmatpush1.bf16.msra.mxu0 %v5334
  %5431 = vmatprep.subr.bf16.mxu0 %v5339
  %5432 = vmatpush1.bf16.msra.mxu0 %v5338
  %5433 = vmatprep.subr.bf16.mxu0 %v5343
  %5434 = vmatpush1.bf16.msra.mxu0 %v5342
  %5435 = vmatprep.subr.bf16.mxu0 %v5347
  %5436 = vmatpush1.bf16.msra.mxu0 %v5346
  %5437 = vmatprep.subr.bf16.mxu0 0
  %5438 = vmatpush1.bf16.msra.mxu0 0
  %5439 = vmatprep.subr.bf16.mxu0 0
  %5440 = vmatpush1.bf16.msra.mxu0 0
  %5441 = vmatprep.subr.bf16.mxu0 0
  %5442 = vmatpush1.bf16.msra.mxu0 0
  %5443 = vmatprep.subr.bf16.mxu0 0
  %5444 = vmatpush1.bf16.msra.mxu0 0
  %5445 = vmatprep.subr.bf16.mxu0 0
  %5446 = vmatpush1.bf16.msra.mxu0 0
  %5447 = vmatprep.subr.bf16.mxu0 0
  %5448 = vmatpush1.bf16.msra.mxu0 0
  %5449 = vmatprep.subr.bf16.mxu0 0
  %5450 = vmatpush1.bf16.msra.mxu0 0
  %5451 = vmatprep.subr.bf16.mxu0 0
  %5452 = vmatpush1.bf16.msra.mxu0 0
  %5453 = vmatprep.mubr.bf16.mxu0 0
  %5454 = vmatmul.mubr.bf16.gmra.mrb[0].mxu0 %v5182
  %v5455 = vpop.f32.mrb[0].mxu0
  %v5456 = vadd.f32 0.0, %v5455
  %v5457 = vpop.f32.mrb[0].mxu0
  %v5458 = vadd.f32 0.0, %v5457
  %v5459 = vpop.f32.mrb[0].mxu0
  %v5460 = vpop.f32.mrb[0].mxu0
  %5461 = vdwg.mxu0
  %v5462 = vadd.f32 %v5184, %v5415
  %v5463 = vadd.f32 %v5185, %v5417
  %v5464 = vadd.f32 %v5186, %v5456
  %v5465 = vadd.f32 %v5187, %v5458
  %v5466 = vxor.u32 %v5462, 2147483648
  %v5467 = vmul.f32 %v5466, 1.442695
  %v5468 = vpow.pop %v5467
  %v5469 = vadd.f32 %v5468, 1.0
  %v5470 = vrcp.pop %v5469
  %v5471 = vmul.f32 1.0, %v5470
  %v5472 = vxor.u32 %v5463, 2147483648
  %v5473 = vmul.f32 %v5472, 1.442695
  %v5474 = vpow.pop %v5473
  %v5475 = vadd.f32 %v5474, 1.0
  %v5476 = vrcp.pop %v5475
  %v5477 = vmul.f32 1.0, %v5476
  %v5478 = vtanh.pop %v5464
  %v5479 = vxor.u32 %v5465, 2147483648
  %v5480 = vmul.f32 %v5479, 1.442695
  %v5481 = vpow.pop %v5480
  %v5482 = vadd.f32 %v5481, 1.0
  %v5483 = vrcp.pop %v5482
  %v5484 = vmul.f32 1.0, %v5483
  %v5485 = vmul.f32 %v5477, %v5179
  %v5486 = vmul.f32 %v5471, %v5478
  %v5487 = vadd.f32 %v5485, %v5486
  %v5488 = vtanh.pop %v5487
  %v5489 = vmul.f32 %v5484, %v5488
  %v5490 = vpack.c.bf16 %v5489, %v5489
  %5491 = vst [vmem:[%s6 + $0x18] sm:$0xf] %v5490
  %v5492 = vld [vmem:[#allocation4 + $0xe0] sm:$0xff]
  %v5493 = vld [vmem:[#allocation4 + $0xe8] sm:$0xff]
  %v5494 = vld [vmem:[#allocation4 + $0xf0] sm:$0xff]
  %v5495 = vld [vmem:[#allocation4 + $0xf8] sm:$0xff]
  %v5496 = vld [vmem:[%s3339] sm:$0xff]
  %v5497 = vld [vmem:[%s3339 + $0x8] sm:$0xff]
  %v5498 = vld [vmem:[%s3339 + $0x10] sm:$0xff]
  %v5499 = vld [vmem:[%s3339 + $0x18] sm:$0xff]
  %v5500 = vld [vmem:[%s3339 + $0x20] sm:$0xff]
  %v5501 = vld [vmem:[%s3339 + $0x28] sm:$0xff]
  %v5502 = vld [vmem:[%s3339 + $0x30] sm:$0xff]
  %v5503 = vld [vmem:[%s3339 + $0x38] sm:$0xff]
  %v5504 = vld [vmem:[%s3339 + $0x40] sm:$0xff]
  %v5505 = vld [vmem:[%s3339 + $0x48] sm:$0xff]
  %v5506 = vld [vmem:[%s3339 + $0x50] sm:$0xff]
  %v5507 = vld [vmem:[%s3339 + $0x58] sm:$0xff]
  %v5508 = vld [vmem:[%s3339 + $0x60] sm:$0xff]
  %v5509 = vld [vmem:[%s3339 + $0x68] sm:$0xff]
  %v5510 = vld [vmem:[%s3339 + $0x70] sm:$0xff]
  %v5511 = vld [vmem:[%s3339 + $0x78] sm:$0xff]
  %v5512 = vld [vmem:[%s3339 + $0x80] sm:$0xff]
  %v5513 = vld [vmem:[%s3339 + $0x88] sm:$0xff]
  %v5514 = vld [vmem:[%s3339 + $0x90] sm:$0xff]
  %v5515 = vld [vmem:[%s3339 + $0x98] sm:$0xff]
  %v5516 = vld [vmem:[%s3339 + $0xa0] sm:$0xff]
  %v5517 = vld [vmem:[%s3339 + $0xa8] sm:$0xff]
  %v5518 = vld [vmem:[%s3339 + $0xb0] sm:$0xff]
  %v5519 = vld [vmem:[%s3339 + $0xb8] sm:$0xff]
  %v5520 = vld [vmem:[%s3339 + $0xc0] sm:$0xff]
  %v5521 = vld [vmem:[%s3339 + $0xc8] sm:$0xff]
  %v5522 = vld [vmem:[%s3339 + $0xd0] sm:$0xff]
  %v5523 = vld [vmem:[%s3339 + $0xd8] sm:$0xff]
  %v5524 = vld [vmem:[%s3339 + $0xe0] sm:$0xff]
  %v5525 = vld [vmem:[%s3339 + $0xe8] sm:$0xff]
  %v5526 = vld [vmem:[%s3339 + $0xf0] sm:$0xff]
  %v5527 = vld [vmem:[%s3339 + $0xf8] sm:$0xff]
  %v5560 = vunpack.c.l.b16 %v5496
  %v5561 = vunpack.c.h.b16 %v5496
  %v5562 = vunpack.c.l.b16 %v5497
  %v5563 = vunpack.c.h.b16 %v5497
  %v5564 = vunpack.c.l.b16 %v5498
  %v5565 = vunpack.c.h.b16 %v5498
  %v5566 = vunpack.c.l.b16 %v5499
  %v5567 = vunpack.c.h.b16 %v5499
  %v5568 = vunpack.c.l.b16 %v5500
  %v5569 = vunpack.c.h.b16 %v5500
  %v5570 = vunpack.c.l.b16 %v5501
  %v5571 = vunpack.c.h.b16 %v5501
  %v5572 = vunpack.c.l.b16 %v5502
  %v5573 = vunpack.c.h.b16 %v5502
  %v5574 = vunpack.c.l.b16 %v5503
  %v5575 = vunpack.c.h.b16 %v5503
  %v5576 = vunpack.c.l.b16 %v5504
  %v5577 = vunpack.c.h.b16 %v5504
  %v5578 = vunpack.c.l.b16 %v5505
  %v5579 = vunpack.c.h.b16 %v5505
  %v5580 = vunpack.c.l.b16 %v5506
  %v5581 = vunpack.c.h.b16 %v5506
  %v5582 = vunpack.c.l.b16 %v5507
  %v5583 = vunpack.c.h.b16 %v5507
  %v5584 = vunpack.c.l.b16 %v5508
  %v5585 = vunpack.c.h.b16 %v5508
  %v5586 = vunpack.c.l.b16 %v5509
  %v5587 = vunpack.c.h.b16 %v5509
  %v5588 = vunpack.c.l.b16 %v5510
  %v5589 = vunpack.c.h.b16 %v5510
  %v5590 = vunpack.c.l.b16 %v5511
  %v5591 = vunpack.c.h.b16 %v5511
  %v5592 = vunpack.c.l.b16 %v5512
  %v5593 = vunpack.c.h.b16 %v5512
  %v5594 = vunpack.c.l.b16 %v5513
  %v5595 = vunpack.c.h.b16 %v5513
  %v5596 = vunpack.c.l.b16 %v5514
  %v5597 = vunpack.c.h.b16 %v5514
  %v5598 = vunpack.c.l.b16 %v5515
  %v5599 = vunpack.c.h.b16 %v5515
  %v5600 = vunpack.c.l.b16 %v5516
  %v5601 = vunpack.c.h.b16 %v5516
  %v5602 = vunpack.c.l.b16 %v5517
  %v5603 = vunpack.c.h.b16 %v5517
  %v5604 = vunpack.c.l.b16 %v5518
  %v5605 = vunpack.c.h.b16 %v5518
  %v5606 = vunpack.c.l.b16 %v5519
  %v5607 = vunpack.c.h.b16 %v5519
  %v5608 = vunpack.c.l.b16 %v5520
  %v5609 = vunpack.c.h.b16 %v5520
  %v5610 = vunpack.c.l.b16 %v5521
  %v5611 = vunpack.c.h.b16 %v5521
  %v5612 = vunpack.c.l.b16 %v5522
  %v5613 = vunpack.c.h.b16 %v5522
  %v5614 = vunpack.c.l.b16 %v5523
  %v5615 = vunpack.c.h.b16 %v5523
  %v5616 = vunpack.c.l.b16 %v5524
  %v5617 = vunpack.c.h.b16 %v5524
  %v5618 = vunpack.c.l.b16 %v5525
  %v5619 = vunpack.c.h.b16 %v5525
  %v5620 = vunpack.c.l.b16 %v5526
  %v5621 = vunpack.c.h.b16 %v5526
  %v5622 = vunpack.c.l.b16 %v5527
  %v5623 = vunpack.c.h.b16 %v5527
  %v5624 = vpack.c.b16 %v5564, %v5560
  %v5625 = vpack.c.b16 %v5565, %v5561
  %v5626 = vpack.c.b16 %v5566, %v5562
  %v5627 = vpack.c.b16 %v5567, %v5563
  %v5628 = vpack.c.b16 %v5572, %v5568
  %v5629 = vpack.c.b16 %v5573, %v5569
  %v5630 = vpack.c.b16 %v5574, %v5570
  %v5631 = vpack.c.b16 %v5575, %v5571
  %v5632 = vpack.c.b16 %v5580, %v5576
  %v5633 = vpack.c.b16 %v5581, %v5577
  %v5634 = vpack.c.b16 %v5582, %v5578
  %v5635 = vpack.c.b16 %v5583, %v5579
  %v5636 = vpack.c.b16 %v5588, %v5584
  %v5637 = vpack.c.b16 %v5589, %v5585
  %v5638 = vpack.c.b16 %v5590, %v5586
  %v5639 = vpack.c.b16 %v5591, %v5587
  %v5640 = vpack.c.b16 %v5596, %v5592
  %v5641 = vpack.c.b16 %v5597, %v5593
  %v5642 = vpack.c.b16 %v5598, %v5594
  %v5643 = vpack.c.b16 %v5599, %v5595
  %v5644 = vpack.c.b16 %v5604, %v5600
  %v5645 = vpack.c.b16 %v5605, %v5601
  %v5646 = vpack.c.b16 %v5606, %v5602
  %v5647 = vpack.c.b16 %v5607, %v5603
  %v5648 = vpack.c.b16 %v5612, %v5608
  %v5649 = vpack.c.b16 %v5613, %v5609
  %v5650 = vpack.c.b16 %v5614, %v5610
  %v5651 = vpack.c.b16 %v5615, %v5611
  %v5652 = vpack.c.b16 %v5620, %v5616
  %v5653 = vpack.c.b16 %v5621, %v5617
  %v5654 = vpack.c.b16 %v5622, %v5618
  %v5655 = vpack.c.b16 %v5623, %v5619
  %5688 = vmatprep.subr.bf16.mxu0 %v5625
  %5689 = vmatpush1.bf16.msra.mxu0 %v5624
  %5690 = vmatprep.subr.bf16.mxu0 %v5629
  %5691 = vmatpush1.bf16.msra.mxu0 %v5628
  %5692 = vmatprep.subr.bf16.mxu0 %v5633
  %5693 = vmatpush1.bf16.msra.mxu0 %v5632
  %5694 = vmatprep.subr.bf16.mxu0 %v5637
  %5695 = vmatpush1.bf16.msra.mxu0 %v5636
  %5696 = vmatprep.subr.bf16.mxu0 %v5641
  %5697 = vmatpush1.bf16.msra.mxu0 %v5640
  %5698 = vmatprep.subr.bf16.mxu0 %v5645
  %5699 = vmatpush1.bf16.msra.mxu0 %v5644
  %5700 = vmatprep.subr.bf16.mxu0 %v5649
  %5701 = vmatpush1.bf16.msra.mxu0 %v5648
  %5702 = vmatprep.subr.bf16.mxu0 %v5653
  %5703 = vmatpush1.bf16.msra.mxu0 %v5652
  %5704 = vmatprep.subr.bf16.mxu0 0
  %5705 = vmatpush1.bf16.msra.mxu0 0
  %5706 = vmatprep.subr.bf16.mxu0 0
  %5707 = vmatpush1.bf16.msra.mxu0 0
  %5708 = vmatprep.subr.bf16.mxu0 0
  %5709 = vmatpush1.bf16.msra.mxu0 0
  %5710 = vmatprep.subr.bf16.mxu0 0
  %5711 = vmatpush1.bf16.msra.mxu0 0
  %5712 = vmatprep.subr.bf16.mxu0 0
  %5713 = vmatpush1.bf16.msra.mxu0 0
  %5714 = vmatprep.subr.bf16.mxu0 0
  %5715 = vmatpush1.bf16.msra.mxu0 0
  %5716 = vmatprep.subr.bf16.mxu0 0
  %5717 = vmatpush1.bf16.msra.mxu0 0
  %5718 = vmatprep.subr.bf16.mxu0 0
  %5719 = vmatpush1.bf16.msra.mxu0 0
  %5720 = vmatprep.mubr.bf16.mxu0 0
  %5721 = vmatmul.mubr.bf16.gmra.mrb[0].mxu0 %v5490
  %v5722 = vpop.f32.mrb[0].mxu0
  %v5723 = vadd.f32 0.0, %v5722
  %v5724 = vpop.f32.mrb[0].mxu0
  %v5725 = vadd.f32 0.0, %v5724
  %v5726 = vpop.f32.mrb[0].mxu0
  %v5727 = vpop.f32.mrb[0].mxu0
  %5728 = vdwg.mxu0
  %5729 = vmatprep.subr.bf16.mxu0 %v5627
  %5730 = vmatpush1.bf16.msra.mxu0 %v5626
  %5731 = vmatprep.subr.bf16.mxu0 %v5631
  %5732 = vmatpush1.bf16.msra.mxu0 %v5630
  %5733 = vmatprep.subr.bf16.mxu0 %v5635
  %5734 = vmatpush1.bf16.msra.mxu0 %v5634
  %5735 = vmatprep.subr.bf16.mxu0 %v5639
  %5736 = vmatpush1.bf16.msra.mxu0 %v5638
  %5737 = vmatprep.subr.bf16.mxu0 %v5643
  %5738 = vmatpush1.bf16.msra.mxu0 %v5642
  %5739 = vmatprep.subr.bf16.mxu0 %v5647
  %5740 = vmatpush1.bf16.msra.mxu0 %v5646
  %5741 = vmatprep.subr.bf16.mxu0 %v5651
  %5742 = vmatpush1.bf16.msra.mxu0 %v5650
  %5743 = vmatprep.subr.bf16.mxu0 %v5655
  %5744 = vmatpush1.bf16.msra.mxu0 %v5654
  %5745 = vmatprep.subr.bf16.mxu0 0
  %5746 = vmatpush1.bf16.msra.mxu0 0
  %5747 = vmatprep.subr.bf16.mxu0 0
  %5748 = vmatpush1.bf16.msra.mxu0 0
  %5749 = vmatprep.subr.bf16.mxu0 0
  %5750 = vmatpush1.bf16.msra.mxu0 0
  %5751 = vmatprep.subr.bf16.mxu0 0
  %5752 = vmatpush1.bf16.msra.mxu0 0
  %5753 = vmatprep.subr.bf16.mxu0 0
  %5754 = vmatpush1.bf16.msra.mxu0 0
  %5755 = vmatprep.subr.bf16.mxu0 0
  %5756 = vmatpush1.bf16.msra.mxu0 0
  %5757 = vmatprep.subr.bf16.mxu0 0
  %5758 = vmatpush1.bf16.msra.mxu0 0
  %5759 = vmatprep.subr.bf16.mxu0 0
  %5760 = vmatpush1.bf16.msra.mxu0 0
  %5761 = vmatprep.mubr.bf16.mxu0 0
  %5762 = vmatmul.mubr.bf16.gmra.mrb[0].mxu0 %v5490
  %v5763 = vpop.f32.mrb[0].mxu0
  %v5764 = vadd.f32 0.0, %v5763
  %v5765 = vpop.f32.mrb[0].mxu0
  %v5766 = vadd.f32 0.0, %v5765
  %v5767 = vpop.f32.mrb[0].mxu0
  %v5768 = vpop.f32.mrb[0].mxu0
  %5769 = vdwg.mxu0
  %v5770 = vadd.f32 %v5492, %v5723
  %v5771 = vadd.f32 %v5493, %v5725
  %v5772 = vadd.f32 %v5494, %v5764
  %v5773 = vadd.f32 %v5495, %v5766
  %v5774 = vxor.u32 %v5770, 2147483648
  %v5775 = vmul.f32 %v5774, 1.442695
  %v5776 = vpow.pop %v5775
  %v5777 = vadd.f32 %v5776, 1.0
  %v5778 = vrcp.pop %v5777
  %v5779 = vmul.f32 1.0, %v5778
  %v5780 = vxor.u32 %v5771, 2147483648
  %v5781 = vmul.f32 %v5780, 1.442695
  %v5782 = vpow.pop %v5781
  %v5783 = vadd.f32 %v5782, 1.0
  %v5784 = vrcp.pop %v5783
  %v5785 = vmul.f32 1.0, %v5784
  %v5786 = vtanh.pop %v5772
  %v5787 = vxor.u32 %v5773, 2147483648
  %v5788 = vmul.f32 %v5787, 1.442695
  %v5789 = vpow.pop %v5788
  %v5790 = vadd.f32 %v5789, 1.0
  %v5791 = vrcp.pop %v5790
  %v5792 = vmul.f32 1.0, %v5791
  %v5793 = vmul.f32 %v5785, %v5487
  %v5794 = vmul.f32 %v5779, %v5786
  %v5795 = vadd.f32 %v5793, %v5794
  %v5796 = vtanh.pop %v5795
  %v5797 = vmul.f32 %v5792, %v5796
  %v5798 = vpack.c.bf16 %v5797, %v5797
  %5799 = vst [vmem:[%s6 + $0x1c] sm:$0xf] %v5798
  %s5800 = scalar_lea.vmem %s7, 8
  %5801 = vst [vmem:[%s5800] sm:$0xff] %v5797
  %s5802 = scalar_lea.vmem %s8, 8
  %5803 = vst [vmem:[%s5802] sm:$0xff] %v5795
  // Predicated region
  $region26: #{rnn_model_forward.2} parent=0 // pred_check
    _
  $region27: #{rnn_model_forward.2} parent=0 // pred_check_branch
    %5805 = sbr.rel (0) target = $region29
  $region28: #{rnn_model_forward.2} parent=0 // pred_region
    _
  $region29: #{rnn_model_forward.2} parent=0 // pred_fallthru
    _
  // Predicated region
  $region30: #{rnn_model_forward.2} parent=0 // pred_check
    _
  $region31: #{rnn_model_forward.2} parent=0 // pred_check_branch
    %5807 = sbr.rel (0) target = $region33
  $region32: #{rnn_model_forward.2} parent=0 // pred_region
    _
  $region33: #{rnn_model_forward.2} parent=0 // pred_fallthru
    _
  // Predicated region
  $region34: #{rnn_model_forward.2} parent=0 // pred_check
    _
  $region35: #{rnn_model_forward.2} parent=0 // pred_check_branch
    %5809 = sbr.rel (0) target = $region37
  $region36: #{rnn_model_forward.2} parent=0 // pred_region
    _
  $region37: #{rnn_model_forward.2} parent=0 // pred_fallthru
    _
  // Predicated region
  $region38: #{rnn_model_forward.2} parent=0 // pred_check
    _
  $region39: #{rnn_model_forward.2} parent=0 // pred_check_branch
    %5811 = sbr.rel (0) target = $region41
  $region40: #{rnn_model_forward.2} parent=0 // pred_region
    _
  $region41: #{rnn_model_forward.2} parent=0 // pred_fallthru
    _
  // Predicated region
  $region42: #{rnn_model_forward.2} parent=0 // pred_check
    _
  $region43: #{rnn_model_forward.2} parent=0 // pred_check_branch
    %5813 = sbr.rel (0) target = $region45
  $region44: #{rnn_model_forward.2} parent=0 // pred_region
    _
  $region45: #{rnn_model_forward.2} parent=0 // pred_fallthru
    _
  // Predicated region
  $region46: #{rnn_model_forward.2} parent=0 // pred_check
    _
  $region47: #{rnn_model_forward.2} parent=0 // pred_check_branch
    %5815 = sbr.rel (0) target = $region49
  $region48: #{rnn_model_forward.2} parent=0 // pred_region
    _
  $region49: #{rnn_model_forward.2} parent=0 // pred_fallthru
    _

</llo_original>
